<compile_context>
chip_gen: v7x
topology: tpu7x:2x2x1
jax: 0.10.0
libtpu: 0.0.40
codegen_flags: <defaults>
</compile_context>

<pallas_src>
import jax
import jax.numpy as jnp
from jax import lax
from jax.experimental import pallas as pl
from jax.experimental.pallas import tpu as pltpu

# ---------------- model hyper-parameters (small, synthetic) ----------------
D_MODEL = 32
D_K = 8
D_V = 8
H = 4
D_FF = 64
LN_EPS = 1e-5
NEG_INF = -1e30          # torch uses -inf; -1e30 keeps fully-masked rows finite.
SCALE = 1.0 / (D_K ** 0.5)

_HDK = H * D_K           # 32
_HDV = H * D_V           # 32

# packed-module indices
GLOBAL_GRID, GLOBAL_REGION, GCLS_GRID, GCLS_REGION, SELF_GRID, SELF_REGION = range(6)
_MHA_ORDER = ("global_grid", "global_region", "golbal_cls_grid",
              "golbal_cls_region", "self_grid", "self_region")
_FFN_ORDER = ("pwff_grid", "pwff_region")


def _bf(x):
    return x.astype(jnp.bfloat16)


def _layer_norm(x, g, b):
    mu = jnp.mean(x, axis=-1, keepdims=True)
    var = jnp.mean((x - mu) ** 2, axis=-1, keepdims=True)
    return (x - mu) * lax.rsqrt(var + LN_EPS) * g + b


def _softmax_last(s):
    m = jnp.max(s, axis=-1, keepdims=True)
    e = jnp.exp(s - m)
    return e * pl.reciprocal(jnp.sum(e, axis=-1, keepdims=True), approx=True)


def _heads(x, g):
    """(rows, g*8) -> (g, rows, 8) via static lane slices + stack (Mosaic-safe)."""
    return jnp.stack([x[:, 8 * i:8 * (i + 1)] for i in range(g)], axis=0)


# ------------------------------ fused kernel --------------------------------
def _encoder_kernel(gf_ref, rf_ref, bias_r_ref, bias_full_ref,
                    mha_wqkv_ref, mha_bqkv_ref, mha_wo_ref, mha_vec_ref,
                    ffn_w1_ref, ffn_w2_ref, ffn_b1_ref, ffn_vec_ref,
                    gate_wg_ref, gate_wf_ref, gate_vec_ref, cls_ref,
                    go_ref, ro_ref):
    ng = gf_ref.shape[0]
    nr = rf_ref.shape[0]
    gf = gf_ref[...]                 # (ng, D) f32
    rf = rf_ref[...]                 # (nr, D) f32
    bias_r = bias_r_ref[...]         # (1, nr)   additive key bias
    bias_full = bias_full_ref[...]   # (1, nr+2) additive key bias

    def attend(q3, k3, v3, wo3, bias):
        # q3 (H, nq, dk), k3/v3 (H, nk, 8) f32; wo3 (H, dv, D) bf16.
        s = jnp.einsum('hqd,hkd->hqk', _bf(q3), _bf(k3),
                       preferred_element_type=jnp.float32) * SCALE
        if bias is not None:
            s = s + bias                       # (1, nk) broadcasts over (H, nq, nk)
        p = _softmax_last(s)
        o = jnp.einsum('hqk,hkd->hqd', _bf(p), _bf(v3),
                       preferred_element_type=jnp.float32)
        c = jnp.einsum('hqd,hdm->hqm', _bf(o), wo3,
                       preferred_element_type=jnp.float32)
        return jnp.sum(c, axis=0)              # (nq, D)

    def mha(idx, xq, xkv, bias, shortcut, fused_qkv):
        wqkv = mha_wqkv_ref[idx]     # (D, 96)  bf16  [Wq|Wk|Wv]
        bqkv = mha_bqkv_ref[idx]     # (1, 96)  f32
        wo3 = mha_wo_ref[idx]        # (H, dv, D) bf16
        vec = mha_vec_ref[idx]       # (3, D)   f32: [bo, ln_g, ln_b]
        if fused_qkv:                # self-attention: one fused QKV matmul
            proj = jnp.dot(_bf(xq), wqkv,
                           preferred_element_type=jnp.float32) + bqkv
            hs = _heads(proj, 3 * H)
            q3, k3, v3 = hs[0:H], hs[H:2 * H], hs[2 * H:3 * H]
        else:                        # cross-attention: Q alone, K|V fused
            q = jnp.dot(_bf(xq), wqkv[:, :_HDK],
                        preferred_element_type=jnp.float32) + bqkv[:, :_HDK]
            kv = jnp.dot(_bf(xkv), wqkv[:, _HDK:],
                         preferred_element_type=jnp.float32) + bqkv[:, _HDK:]
            q3 = _heads(q, H)
            kvh = _heads(kv, 2 * H)
            k3, v3 = kvh[0:H], kvh[H:2 * H]
        out = attend(q3, k3, v3, wo3, bias) + vec[0:1]
        if shortcut:
            out = out + xq
        return _layer_norm(out, vec[1:2], vec[2:3])

    def single_key_mha(idx, x):
        # nq == nk == 1 (cls_num == 1): softmax over one key is exactly 1, so the
        # attention collapses exactly to LN((x@Wv+bv)@Wo+bo); shortcut=False.
        wqkv = mha_wqkv_ref[idx]
        bqkv = mha_bqkv_ref[idx]
        wo3 = mha_wo_ref[idx]
        vec = mha_vec_ref[idx]
        v = jnp.dot(_bf(x), wqkv[:, 2 * _HDK:],
                    preferred_element_type=jnp.float32) + bqkv[:, 2 * _HDK:]
        v3 = _heads(v, H)
        c = jnp.einsum('hqd,hdm->hqm', _bf(v3), wo3,
                       preferred_element_type=jnp.float32)
        out = jnp.sum(c, axis=0) + vec[0:1]
        return _layer_norm(out, vec[1:2], vec[2:3])

    def ffn(idx, x):
        w1 = ffn_w1_ref[idx]         # (D, D_FF) bf16
        w2 = ffn_w2_ref[idx]         # (D_FF, D) bf16
        b1 = ffn_b1_ref[idx]         # (1, D_FF) f32
        vec = ffn_vec_ref[idx]       # (3, D)    f32: [b2, ln_g, ln_b]
        h1 = jnp.maximum(
            jnp.dot(_bf(x), w1, preferred_element_type=jnp.float32) + b1, 0.0)
        o = jnp.dot(_bf(h1), w2, preferred_element_type=jnp.float32) + vec[0:1]
        return _layer_norm(o + x, vec[1:2], vec[2:3])

    # ------------------------------ cls path --------------------------------
    cls_g_q = cls_ref[0:1, :]                      # (1, D)
    cls_r_q = cls_ref[1:2, :]                      # (1, D)
    cls_g = mha(GLOBAL_GRID, cls_g_q, gf, None, shortcut=False, fused_qkv=False)
    cls_r = mha(GLOBAL_REGION, cls_r_q, rf, bias_r, shortcut=False, fused_qkv=False)

    cg_cross = single_key_mha(GCLS_GRID, cls_g)    # golbal_cls_grid(.., cls_g, cls_g)
    cr_cross = single_key_mha(GCLS_REGION, cls_r)  # golbal_cls_region(.., cls_r, cls_r)

    # gate over [cg_cross | cr_cross]; split weight == concat then matmul.
    wg = gate_wg_ref[...]                          # (2D, 2) f32
    gvec = gate_vec_ref[...]                       # (4, D)  f32: [bg, ln_g, ln_b, bf]
    logits = (jnp.dot(cg_cross, wg[:D_MODEL, :], preferred_element_type=jnp.float32)
              + jnp.dot(cr_cross, wg[D_MODEL:, :], preferred_element_type=jnp.float32)
              + gvec[0:1, 0:2])                    # (1, 2)
    e = jnp.exp(logits - jnp.max(logits, axis=-1, keepdims=True))
    w = e / jnp.sum(e, axis=-1, keepdims=True)     # exact softmax for the gate
    mid = _layer_norm(w[:, 0:1] * cg_cross + w[:, 1:2] * cr_cross,
                      gvec[1:2], gvec[2:3])
    middle = jnp.maximum(
        jnp.dot(_bf(mid), gate_wf_ref[...], preferred_element_type=jnp.float32)
        + gvec[3:4], 0.0)                          # (1, D)

    # Tokens ordered [features..., cls, middle]: key order is softmax-invariant,
    # bias_full matches this order, and the final strip is an aligned prefix.
    gcat = jnp.concatenate([gf, cls_g, middle], axis=0)    # (ng+2, D)
    rcat = jnp.concatenate([rf, cls_r, middle], axis=0)    # (nr+2, D)

    g_att = mha(SELF_GRID, gcat, gcat, None, shortcut=True, fused_qkv=True)
    r_att = mha(SELF_REGION, rcat, rcat, bias_full, shortcut=True, fused_qkv=True)

    go_ref[...] = ffn(0, g_att)[:ng, :]
    ro_ref[...] = ffn(1, r_att)[:nr, :]


# --------------------------- parameter packing -------------------------------
def _pack_params(params):
    """Consolidate the many tiny leaves into 12 arrays (weights in bf16)."""
    wqkv = jnp.stack([params[n]["w_qkv"] for n in _MHA_ORDER]).astype(jnp.bfloat16)
    bqkv = jnp.stack([params[n]["b_qkv"] for n in _MHA_ORDER])                 # (6,1,96)
    wo = jnp.stack([params[n]["wo"].reshape(H, D_V, D_MODEL)
                    for n in _MHA_ORDER]).astype(jnp.bfloat16)                 # (6,H,dv,D)
    mvec = jnp.stack([jnp.concatenate(
        [params[n]["bo"], params[n]["ln_g"], params[n]["ln_b"]], axis=0)
        for n in _MHA_ORDER])                                                  # (6,3,D)

    f_w1 = jnp.stack([params[n]["w1"] for n in _FFN_ORDER]).astype(jnp.bfloat16)
    f_w2 = jnp.stack([params[n]["w2"] for n in _FFN_ORDER]).astype(jnp.bfloat16)
    f_b1 = jnp.stack([params[n]["b1"] for n in _FFN_ORDER])                    # (2,1,64)
    f_vec = jnp.stack([jnp.concatenate(
        [params[n]["b2"], params[n]["ln_g"], params[n]["ln_b"]], axis=0)
        for n in _FFN_ORDER])                                                  # (2,3,D)

    g = params["gate"]
    gate_wg = g["wg"]                                                          # (2D,2)
    gate_wf = g["wf"].astype(jnp.bfloat16)                                     # (D,D)
    gate_vec = jnp.concatenate(
        [jnp.pad(g["bg"], ((0, 0), (0, D_MODEL - 2))),
         g["ln_g"], g["ln_b"], g["bf"]], axis=0)                               # (4,D)
    cls_tok = jnp.concatenate([params["cls_grid"], params["cls_region"]], axis=0)

    return (wqkv, bqkv, wo, mvec, f_w1, f_w2, f_b1, f_vec,
            gate_wg, gate_wf, gate_vec, cls_tok)


def _batch_spec(shape):
    zeros = (0,) * (len(shape) - 1)
    return pl.BlockSpec((None,) + tuple(shape[1:]), lambda i: (i,) + zeros)


def _full_spec(shape):
    zeros = (0,) * len(shape)
    return pl.BlockSpec(tuple(shape), lambda i: zeros)


# ------------------------------ forward pass ---------------------------------
@jax.jit
def encoder_layer(grid_features, region_features, attention_mask, params):
    """attention_mask: bool (B, 1, 1, NR), True == masked (torch semantics)."""
    b, ng, d = grid_features.shape
    nr = region_features.shape[1]

    packed = _pack_params(params)

    # Additive key-padding biases, both layouts built in the (free) wrapper:
    #   bias_r    for keys [region tokens]
    #   bias_full for keys [region tokens, cls, middle]  (extra tokens unmasked)
    bias_r = jnp.where(attention_mask[:, 0, :, :], NEG_INF, 0.0).astype(jnp.float32)
    bias_full = jnp.concatenate(
        [bias_r, jnp.zeros((b, 1, 2), jnp.float32)], axis=-1)

    data_in = (grid_features, region_features, bias_r, bias_full)
    in_specs = ([_batch_spec(x.shape) for x in data_in]
                + [_full_spec(x.shape) for x in packed])
    out_specs = (_batch_spec((b, ng, d)), _batch_spec((b, nr, d)))

    grid_out, region_out = pl.pallas_call(
        _encoder_kernel,
        out_shape=(jax.ShapeDtypeStruct((b, ng, d), jnp.float32),
                   jax.ShapeDtypeStruct((b, nr, d), jnp.float32)),
        grid=(b,),
        in_specs=in_specs,
        out_specs=out_specs,
        compiler_params=pltpu.CompilerParams(
            dimension_semantics=("parallel",)),
    )(*data_in, *packed)
    return grid_out, region_out


# ------------------------------ parameters -----------------------------------
def _init_mha(key):
    ks = jax.random.split(key, 4)
    s = 0.02
    return dict(
        w_qkv=jax.random.normal(ks[0], (D_MODEL, 2 * _HDK + _HDV), jnp.float32) * s,
        b_qkv=jax.random.normal(ks[1], (1, 2 * _HDK + _HDV), jnp.float32) * s,
        wo=jax.random.normal(ks[2], (_HDV, D_MODEL), jnp.float32) * s,
        bo=jax.random.normal(ks[3], (1, D_MODEL), jnp.float32) * s,
        ln_g=jnp.ones((1, D_MODEL), jnp.float32),
        ln_b=jnp.zeros((1, D_MODEL), jnp.float32),
    )


def _init_ffn(key):
    ks = jax.random.split(key, 4)
    s = 0.02
    return dict(
        w1=jax.random.normal(ks[0], (D_MODEL, D_FF), jnp.float32) * s,
        b1=jax.random.normal(ks[1], (1, D_FF), jnp.float32) * s,
        w2=jax.random.normal(ks[2], (D_FF, D_MODEL), jnp.float32) * s,
        b2=jax.random.normal(ks[3], (1, D_MODEL), jnp.float32) * s,
        ln_g=jnp.ones((1, D_MODEL), jnp.float32),
        ln_b=jnp.zeros((1, D_MODEL), jnp.float32),
    )


def init_params(key):
    ks = jax.random.split(key, 16)
    return dict(
        self_grid=_init_mha(ks[0]),
        self_region=_init_mha(ks[1]),
        global_grid=_init_mha(ks[2]),
        global_region=_init_mha(ks[3]),
        golbal_cls_grid=_init_mha(ks[4]),
        golbal_cls_region=_init_mha(ks[5]),
        pwff_grid=_init_ffn(ks[6]),
        pwff_region=_init_ffn(ks[7]),
        cls_grid=jax.random.normal(ks[8], (1, D_MODEL), jnp.float32),
        cls_region=jax.random.normal(ks[9], (1, D_MODEL), jnp.float32),
        gate=dict(
            wg=jax.random.normal(ks[10], (2 * D_MODEL, 2), jnp.float32) * 0.02,
            bg=jax.random.normal(ks[11], (1, 2), jnp.float32) * 0.02,
            ln_g=jnp.ones((1, D_MODEL), jnp.float32),
            ln_b=jnp.zeros((1, D_MODEL), jnp.float32),
            wf=jax.random.normal(ks[12], (D_MODEL, D_MODEL), jnp.float32) * 0.02,
            bf=jax.random.normal(ks[13], (1, D_MODEL), jnp.float32) * 0.02,
        ),
    )


# --------------------------------- main ---------------------------------------
if __name__ == "__main__":
    B, NG, NR = 2, 16, 10

    key = jax.random.PRNGKey(0)
    k_p, k_g, k_r = jax.random.split(key, 3)

    params = init_params(k_p)
    grid_features = jax.random.normal(k_g, (B, NG, D_MODEL), jnp.float32)
    region_features = jax.random.normal(k_r, (B, NR, D_MODEL), jnp.float32)
    # True == padded/masked region token (last 2 for batch 0, last 1 for batch 1)
    valid_len = jnp.array([NR - 2, NR - 1])
    attention_mask = (jnp.arange(NR)[None, :] >= valid_len[:, None])[:, None, None, :]

    grid_out, region_out = encoder_layer(grid_features, region_features,
                                         attention_mask, params)
    jax.block_until_ready((grid_out, region_out))

    assert grid_out.shape == (B, NG, D_MODEL)
    assert region_out.shape == (B, NR, D_MODEL)
    assert bool(jnp.all(jnp.isfinite(grid_out))) and bool(jnp.all(jnp.isfinite(region_out)))
    print("KERNEL_OK")
</pallas_src>

<mosaic_0001>
module attributes {stable_mosaic.version = 11 : i64} {
  func.func @_encoder_kernel(%arg0: i32, %arg1: memref<1x16x32xf32, #tpu.memory_space<vmem>>, %arg2: memref<1x10x32xf32, #tpu.memory_space<vmem>>, %arg3: memref<1x1x10xf32, #tpu.memory_space<vmem>>, %arg4: memref<1x1x12xf32, #tpu.memory_space<vmem>>, %arg5: memref<6x32x96xbf16, #tpu.memory_space<vmem>>, %arg6: memref<6x1x96xf32, #tpu.memory_space<vmem>>, %arg7: memref<6x4x8x32xbf16, #tpu.memory_space<vmem>>, %arg8: memref<6x3x32xf32, #tpu.memory_space<vmem>>, %arg9: memref<2x32x64xbf16, #tpu.memory_space<vmem>>, %arg10: memref<2x64x32xbf16, #tpu.memory_space<vmem>>, %arg11: memref<2x1x64xf32, #tpu.memory_space<vmem>>, %arg12: memref<2x3x32xf32, #tpu.memory_space<vmem>>, %arg13: memref<64x2xf32, #tpu.memory_space<vmem>>, %arg14: memref<32x32xbf16, #tpu.memory_space<vmem>>, %arg15: memref<4x32xf32, #tpu.memory_space<vmem>>, %arg16: memref<2x32xf32, #tpu.memory_space<vmem>>, %arg17: memref<1x16x32xf32, #tpu.memory_space<vmem>>, %arg18: memref<1x10x32xf32, #tpu.memory_space<vmem>>) attributes {dimension_semantics = [#tpu.dimension_semantics<parallel>], iteration_bounds = array<i64: 2>, scalar_prefetch = 0 : i64, scratch_operands = 0 : i64, tpu.core_type = #tpu.core_type<tc>, window_params = [{transform_indices = @transform_0, window_bounds = array<i64: 1, 16, 32>}, {transform_indices = @transform_1, window_bounds = array<i64: 1, 10, 32>}, {transform_indices = @transform_2, window_bounds = array<i64: 1, 1, 10>}, {transform_indices = @transform_3, window_bounds = array<i64: 1, 1, 12>}, {pipeline_mode = #tpu.pipeline_mode<synchronous>, transform_indices = @transform_4, window_bounds = array<i64: 6, 32, 96>}, {pipeline_mode = #tpu.pipeline_mode<synchronous>, transform_indices = @transform_5, window_bounds = array<i64: 6, 1, 96>}, {pipeline_mode = #tpu.pipeline_mode<synchronous>, transform_indices = @transform_6, window_bounds = array<i64: 6, 4, 8, 32>}, {pipeline_mode = #tpu.pipeline_mode<synchronous>, transform_indices = @transform_7, window_bounds = array<i64: 6, 3, 32>}, {pipeline_mode = #tpu.pipeline_mode<synchronous>, transform_indices = @transform_8, window_bounds = array<i64: 2, 32, 64>}, {pipeline_mode = #tpu.pipeline_mode<synchronous>, transform_indices = @transform_9, window_bounds = array<i64: 2, 64, 32>}, {pipeline_mode = #tpu.pipeline_mode<synchronous>, transform_indices = @transform_10, window_bounds = array<i64: 2, 1, 64>}, {pipeline_mode = #tpu.pipeline_mode<synchronous>, transform_indices = @transform_11, window_bounds = array<i64: 2, 3, 32>}, {pipeline_mode = #tpu.pipeline_mode<synchronous>, transform_indices = @transform_12, window_bounds = array<i64: 64, 2>}, {pipeline_mode = #tpu.pipeline_mode<synchronous>, transform_indices = @transform_13, window_bounds = array<i64: 32, 32>}, {pipeline_mode = #tpu.pipeline_mode<synchronous>, transform_indices = @transform_14, window_bounds = array<i64: 4, 32>}, {pipeline_mode = #tpu.pipeline_mode<synchronous>, transform_indices = @transform_15, window_bounds = array<i64: 2, 32>}, {transform_indices = @transform_16, window_bounds = array<i64: 1, 16, 32>}, {transform_indices = @transform_17, window_bounds = array<i64: 1, 10, 32>}]} {
    %c0 = arith.constant 0 : index
    %c0_0 = arith.constant 0 : index
    %c0_1 = arith.constant 0 : index
    %0 = vector.load %arg1[%c0, %c0_0, %c0_1] : memref<1x16x32xf32, #tpu.memory_space<vmem>>, vector<1x16x32xf32>
    %1 = vector.shape_cast %0 : vector<1x16x32xf32> to vector<16x32xf32>
    %c0_2 = arith.constant 0 : index
    %c0_3 = arith.constant 0 : index
    %c0_4 = arith.constant 0 : index
    %2 = vector.load %arg2[%c0_2, %c0_3, %c0_4] : memref<1x10x32xf32, #tpu.memory_space<vmem>>, vector<1x10x32xf32>
    %3 = vector.shape_cast %2 : vector<1x10x32xf32> to vector<10x32xf32>
    %c0_5 = arith.constant 0 : index
    %c0_6 = arith.constant 0 : index
    %c0_7 = arith.constant 0 : index
    %4 = vector.load %arg3[%c0_5, %c0_6, %c0_7] : memref<1x1x10xf32, #tpu.memory_space<vmem>>, vector<1x1x10xf32>
    %5 = vector.shape_cast %4 : vector<1x1x10xf32> to vector<1x10xf32>
    %c0_8 = arith.constant 0 : index
    %c0_9 = arith.constant 0 : index
    %c0_10 = arith.constant 0 : index
    %6 = vector.load %arg4[%c0_8, %c0_9, %c0_10] : memref<1x1x12xf32, #tpu.memory_space<vmem>>, vector<1x1x12xf32>
    %7 = vector.shape_cast %6 : vector<1x1x12xf32> to vector<1x12xf32>
    %c0_11 = arith.constant 0 : index
    %c0_12 = arith.constant 0 : index
    %8 = vector.load %arg16[%c0_11, %c0_12] : memref<2x32xf32, #tpu.memory_space<vmem>>, vector<1x32xf32>
    %c1 = arith.constant 1 : index
    %c0_13 = arith.constant 0 : index
    %9 = vector.load %arg16[%c1, %c0_13] : memref<2x32xf32, #tpu.memory_space<vmem>>, vector<1x32xf32>
    %c0_14 = arith.constant 0 : index
    %c0_15 = arith.constant 0 : index
    %c0_16 = arith.constant 0 : index
    %10 = vector.load %arg5[%c0_14, %c0_15, %c0_16] : memref<6x32x96xbf16, #tpu.memory_space<vmem>>, vector<1x32x96xbf16>
    %11 = vector.shape_cast %10 : vector<1x32x96xbf16> to vector<32x96xbf16>
    %c0_17 = arith.constant 0 : index
    %c0_18 = arith.constant 0 : index
    %c0_19 = arith.constant 0 : index
    %12 = vector.load %arg6[%c0_17, %c0_18, %c0_19] : memref<6x1x96xf32, #tpu.memory_space<vmem>>, vector<1x1x96xf32>
    %13 = vector.shape_cast %12 : vector<1x1x96xf32> to vector<1x96xf32>
    %c0_20 = arith.constant 0 : index
    %c0_21 = arith.constant 0 : index
    %c0_22 = arith.constant 0 : index
    %c0_23 = arith.constant 0 : index
    %14 = vector.load %arg7[%c0_20, %c0_21, %c0_22, %c0_23] : memref<6x4x8x32xbf16, #tpu.memory_space<vmem>>, vector<1x4x8x32xbf16>
    %15 = vector.shape_cast %14 : vector<1x4x8x32xbf16> to vector<4x8x32xbf16>
    %c0_24 = arith.constant 0 : index
    %c0_25 = arith.constant 0 : index
    %c0_26 = arith.constant 0 : index
    %16 = vector.load %arg8[%c0_24, %c0_25, %c0_26] : memref<6x3x32xf32, #tpu.memory_space<vmem>>, vector<1x3x32xf32>
    %17 = vector.shape_cast %16 : vector<1x3x32xf32> to vector<3x32xf32>
    %18 = arith.truncf %8 : vector<1x32xf32> to vector<1x32xbf16>
    %19 = vector.extract_strided_slice %11 {offsets = [0, 0], sizes = [32, 32], strides = [1, 1]} : vector<32x96xbf16> to vector<32x32xbf16>
    %cst = arith.constant dense<0.000000e+00> : vector<1x32xf32>
    %20 = tpu.matmul %18, %19, %cst {dimension_numbers = #tpu.dot_dimension_numbers<[1], [0], [0], [1], [0, 0, 1, 1], [], []>} : vector<1x32xbf16>, vector<32x32xbf16>, vector<1x32xf32> -> vector<1x32xf32>
    %21 = vector.extract_strided_slice %13 {offsets = [0, 0], sizes = [1, 32], strides = [1, 1]} : vector<1x96xf32> to vector<1x32xf32>
    %22 = arith.addf %20, %21 : vector<1x32xf32>
    %23 = arith.truncf %1 : vector<16x32xf32> to vector<16x32xbf16>
    %24 = vector.extract_strided_slice %11 {offsets = [0, 32], sizes = [32, 64], strides = [1, 1]} : vector<32x96xbf16> to vector<32x64xbf16>
    %cst_27 = arith.constant dense<0.000000e+00> : vector<16x64xf32>
    %25 = tpu.matmul %23, %24, %cst_27 {dimension_numbers = #tpu.dot_dimension_numbers<[1], [0], [0], [1], [0, 0, 1, 1], [], []>} : vector<16x32xbf16>, vector<32x64xbf16>, vector<16x64xf32> -> vector<16x64xf32>
    %26 = vector.extract_strided_slice %13 {offsets = [0, 32], sizes = [1, 64], strides = [1, 1]} : vector<1x96xf32> to vector<1x64xf32>
    %27 = vector.broadcast %26 : vector<1x64xf32> to vector<16x64xf32>
    %28 = arith.addf %25, %27 : vector<16x64xf32>
    %29 = vector.extract_strided_slice %22 {offsets = [0, 0], sizes = [1, 8], strides = [1, 1]} : vector<1x32xf32> to vector<1x8xf32>
    %30 = vector.extract_strided_slice %22 {offsets = [0, 8], sizes = [1, 8], strides = [1, 1]} : vector<1x32xf32> to vector<1x8xf32>
    %31 = vector.extract_strided_slice %22 {offsets = [0, 16], sizes = [1, 8], strides = [1, 1]} : vector<1x32xf32> to vector<1x8xf32>
    %32 = vector.extract_strided_slice %22 {offsets = [0, 24], sizes = [1, 8], strides = [1, 1]} : vector<1x32xf32> to vector<1x8xf32>
    %33 = vector.shape_cast %29 : vector<1x8xf32> to vector<1x1x8xf32>
    %34 = vector.shape_cast %30 : vector<1x8xf32> to vector<1x1x8xf32>
    %35 = vector.shape_cast %31 : vector<1x8xf32> to vector<1x1x8xf32>
    %36 = vector.shape_cast %32 : vector<1x8xf32> to vector<1x1x8xf32>
    %37 = tpu.concatenate %33, %34, %35, %36 in 0 : vector<1x1x8xf32>, vector<1x1x8xf32>, vector<1x1x8xf32>, vector<1x1x8xf32> -> vector<4x1x8xf32>
    %38 = vector.extract_strided_slice %28 {offsets = [0, 0], sizes = [16, 8], strides = [1, 1]} : vector<16x64xf32> to vector<16x8xf32>
    %39 = vector.extract_strided_slice %28 {offsets = [0, 8], sizes = [16, 8], strides = [1, 1]} : vector<16x64xf32> to vector<16x8xf32>
    %40 = vector.extract_strided_slice %28 {offsets = [0, 16], sizes = [16, 8], strides = [1, 1]} : vector<16x64xf32> to vector<16x8xf32>
    %41 = vector.extract_strided_slice %28 {offsets = [0, 24], sizes = [16, 8], strides = [1, 1]} : vector<16x64xf32> to vector<16x8xf32>
    %42 = vector.extract_strided_slice %28 {offsets = [0, 32], sizes = [16, 8], strides = [1, 1]} : vector<16x64xf32> to vector<16x8xf32>
    %43 = vector.extract_strided_slice %28 {offsets = [0, 40], sizes = [16, 8], strides = [1, 1]} : vector<16x64xf32> to vector<16x8xf32>
    %44 = vector.extract_strided_slice %28 {offsets = [0, 48], sizes = [16, 8], strides = [1, 1]} : vector<16x64xf32> to vector<16x8xf32>
    %45 = vector.extract_strided_slice %28 {offsets = [0, 56], sizes = [16, 8], strides = [1, 1]} : vector<16x64xf32> to vector<16x8xf32>
    %46 = vector.shape_cast %38 : vector<16x8xf32> to vector<1x16x8xf32>
    %47 = vector.shape_cast %39 : vector<16x8xf32> to vector<1x16x8xf32>
    %48 = vector.shape_cast %40 : vector<16x8xf32> to vector<1x16x8xf32>
    %49 = vector.shape_cast %41 : vector<16x8xf32> to vector<1x16x8xf32>
    %50 = vector.shape_cast %42 : vector<16x8xf32> to vector<1x16x8xf32>
    %51 = vector.shape_cast %43 : vector<16x8xf32> to vector<1x16x8xf32>
    %52 = vector.shape_cast %44 : vector<16x8xf32> to vector<1x16x8xf32>
    %53 = vector.shape_cast %45 : vector<16x8xf32> to vector<1x16x8xf32>
    %54 = tpu.concatenate %46, %47, %48, %49, %50, %51, %52, %53 in 0 : vector<1x16x8xf32>, vector<1x16x8xf32>, vector<1x16x8xf32>, vector<1x16x8xf32>, vector<1x16x8xf32>, vector<1x16x8xf32>, vector<1x16x8xf32>, vector<1x16x8xf32> -> vector<8x16x8xf32>
    %55 = vector.extract_strided_slice %54 {offsets = [0, 0, 0], sizes = [4, 16, 8], strides = [1, 1, 1]} : vector<8x16x8xf32> to vector<4x16x8xf32>
    %56 = vector.extract_strided_slice %54 {offsets = [4, 0, 0], sizes = [4, 16, 8], strides = [1, 1, 1]} : vector<8x16x8xf32> to vector<4x16x8xf32>
    %57 = arith.truncf %37 : vector<4x1x8xf32> to vector<4x1x8xbf16>
    %58 = arith.truncf %55 : vector<4x16x8xf32> to vector<4x16x8xbf16>
    "tpu.trace_start"() <{level = 10 : i32, message = "hqd,hkd->hqk"}> : () -> ()
    %cst_28 = arith.constant dense<0.000000e+00> : vector<4x1x16xf32>
    %59 = tpu.matmul %57, %58, %cst_28 {dimension_numbers = #tpu.dot_dimension_numbers<[2], [2], [1], [1], [0, 0, 0, 1, 1, 1], [0], [0]>} : vector<4x1x8xbf16>, vector<4x16x8xbf16>, vector<4x1x16xf32> -> vector<4x1x16xf32>
    "tpu.trace_stop"() : () -> ()
    %cst_29 = arith.constant 0.353553385 : f32
    %60 = vector.broadcast %cst_29 : f32 to vector<4x1x16xf32>
    %61 = arith.mulf %59, %60 : vector<4x1x16xf32>
    %cst_30 = arith.constant dense<0xFF800000> : vector<4x1xf32>
    %62 = vector.multi_reduction <maximumf>, %61, %cst_30 [2] : vector<4x1x16xf32> to vector<4x1xf32>
    %63 = vector.shape_cast %62 : vector<4x1xf32> to vector<4x1x1xf32>
    %64 = vector.broadcast %63 : vector<4x1x1xf32> to vector<4x1x16xf32>
    %65 = arith.subf %61, %64 : vector<4x1x16xf32>
    %66 = math.exp %65 : vector<4x1x16xf32>
    %cst_31 = arith.constant dense<0.000000e+00> : vector<4x1xf32>
    %67 = vector.multi_reduction <add>, %66, %cst_31 [2] : vector<4x1x16xf32> to vector<4x1xf32>
    %68 = vector.shape_cast %67 : vector<4x1xf32> to vector<4x1x1xf32>
    %69 = tpu.reciprocal %68 {approx = true} : vector<4x1x1xf32> -> vector<4x1x1xf32>
    %70 = vector.broadcast %69 : vector<4x1x1xf32> to vector<4x1x16xf32>
    %71 = arith.mulf %66, %70 : vector<4x1x16xf32>
    %72 = arith.truncf %71 : vector<4x1x16xf32> to vector<4x1x16xbf16>
    %73 = arith.truncf %56 : vector<4x16x8xf32> to vector<4x16x8xbf16>
    "tpu.trace_start"() <{level = 10 : i32, message = "hqk,hkd->hqd"}> : () -> ()
    %cst_32 = arith.constant dense<0.000000e+00> : vector<4x1x8xf32>
    %74 = tpu.matmul %72, %73, %cst_32 {dimension_numbers = #tpu.dot_dimension_numbers<[2], [1], [1], [2], [0, 0, 0, 1, 1, 2], [0], [0]>} : vector<4x1x16xbf16>, vector<4x16x8xbf16>, vector<4x1x8xf32> -> vector<4x1x8xf32>
    "tpu.trace_stop"() : () -> ()
    %75 = arith.truncf %74 : vector<4x1x8xf32> to vector<4x1x8xbf16>
    "tpu.trace_start"() <{level = 10 : i32, message = "hqd,hdm->hqm"}> : () -> ()
    %cst_33 = arith.constant dense<0.000000e+00> : vector<4x1x32xf32>
    %76 = tpu.matmul %75, %15, %cst_33 {dimension_numbers = #tpu.dot_dimension_numbers<[2], [1], [1], [2], [0, 0, 0, 1, 1, 2], [0], [0]>} : vector<4x1x8xbf16>, vector<4x8x32xbf16>, vector<4x1x32xf32> -> vector<4x1x32xf32>
    "tpu.trace_stop"() : () -> ()
    %cst_34 = arith.constant dense<0.000000e+00> : vector<1x32xf32>
    %77 = vector.multi_reduction <add>, %76, %cst_34 [0] : vector<4x1x32xf32> to vector<1x32xf32>
    %78 = vector.extract_strided_slice %17 {offsets = [0, 0], sizes = [1, 32], strides = [1, 1]} : vector<3x32xf32> to vector<1x32xf32>
    %79 = arith.addf %77, %78 : vector<1x32xf32>
    %80 = vector.extract_strided_slice %17 {offsets = [1, 0], sizes = [1, 32], strides = [1, 1]} : vector<3x32xf32> to vector<1x32xf32>
    %81 = vector.extract_strided_slice %17 {offsets = [2, 0], sizes = [1, 32], strides = [1, 1]} : vector<3x32xf32> to vector<1x32xf32>
    %cst_35 = arith.constant dense<0.000000e+00> : vector<1xf32>
    %82 = vector.multi_reduction <add>, %79, %cst_35 [1] : vector<1x32xf32> to vector<1xf32>
    %83 = vector.shape_cast %82 : vector<1xf32> to vector<1x1xf32>
    %cst_36 = arith.constant 3.200000e+01 : f32
    %84 = vector.broadcast %cst_36 : f32 to vector<1x1xf32>
    %85 = arith.divf %83, %84 : vector<1x1xf32>
    %86 = vector.broadcast %85 : vector<1x1xf32> to vector<1x32xf32>
    %87 = arith.subf %79, %86 : vector<1x32xf32>
    %88 = arith.mulf %87, %87 : vector<1x32xf32>
    %cst_37 = arith.constant dense<0.000000e+00> : vector<1xf32>
    %89 = vector.multi_reduction <add>, %88, %cst_37 [1] : vector<1x32xf32> to vector<1xf32>
    %90 = vector.shape_cast %89 : vector<1xf32> to vector<1x1xf32>
    %cst_38 = arith.constant 3.200000e+01 : f32
    %91 = vector.broadcast %cst_38 : f32 to vector<1x1xf32>
    %92 = arith.divf %90, %91 : vector<1x1xf32>
    %93 = vector.broadcast %85 : vector<1x1xf32> to vector<1x32xf32>
    %94 = arith.subf %79, %93 : vector<1x32xf32>
    %cst_39 = arith.constant 9.99999974E-6 : f32
    %95 = vector.broadcast %cst_39 : f32 to vector<1x1xf32>
    %96 = arith.addf %92, %95 : vector<1x1xf32>
    %97 = math.rsqrt %96 : vector<1x1xf32>
    %98 = vector.broadcast %97 : vector<1x1xf32> to vector<1x32xf32>
    %99 = arith.mulf %94, %98 : vector<1x32xf32>
    %100 = arith.mulf %99, %80 : vector<1x32xf32>
    %101 = arith.addf %100, %81 : vector<1x32xf32>
    %c1_40 = arith.constant 1 : index
    %c0_41 = arith.constant 0 : index
    %c0_42 = arith.constant 0 : index
    %102 = vector.load %arg5[%c1_40, %c0_41, %c0_42] : memref<6x32x96xbf16, #tpu.memory_space<vmem>>, vector<1x32x96xbf16>
    %103 = vector.shape_cast %102 : vector<1x32x96xbf16> to vector<32x96xbf16>
    %c1_43 = arith.constant 1 : index
    %c0_44 = arith.constant 0 : index
    %c0_45 = arith.constant 0 : index
    %104 = vector.load %arg6[%c1_43, %c0_44, %c0_45] : memref<6x1x96xf32, #tpu.memory_space<vmem>>, vector<1x1x96xf32>
    %105 = vector.shape_cast %104 : vector<1x1x96xf32> to vector<1x96xf32>
    %c1_46 = arith.constant 1 : index
    %c0_47 = arith.constant 0 : index
    %c0_48 = arith.constant 0 : index
    %c0_49 = arith.constant 0 : index
    %106 = vector.load %arg7[%c1_46, %c0_47, %c0_48, %c0_49] : memref<6x4x8x32xbf16, #tpu.memory_space<vmem>>, vector<1x4x8x32xbf16>
    %107 = vector.shape_cast %106 : vector<1x4x8x32xbf16> to vector<4x8x32xbf16>
    %c1_50 = arith.constant 1 : index
    %c0_51 = arith.constant 0 : index
    %c0_52 = arith.constant 0 : index
    %108 = vector.load %arg8[%c1_50, %c0_51, %c0_52] : memref<6x3x32xf32, #tpu.memory_space<vmem>>, vector<1x3x32xf32>
    %109 = vector.shape_cast %108 : vector<1x3x32xf32> to vector<3x32xf32>
    %110 = arith.truncf %9 : vector<1x32xf32> to vector<1x32xbf16>
    %111 = vector.extract_strided_slice %103 {offsets = [0, 0], sizes = [32, 32], strides = [1, 1]} : vector<32x96xbf16> to vector<32x32xbf16>
    %cst_53 = arith.constant dense<0.000000e+00> : vector<1x32xf32>
    %112 = tpu.matmul %110, %111, %cst_53 {dimension_numbers = #tpu.dot_dimension_numbers<[1], [0], [0], [1], [0, 0, 1, 1], [], []>} : vector<1x32xbf16>, vector<32x32xbf16>, vector<1x32xf32> -> vector<1x32xf32>
    %113 = vector.extract_strided_slice %105 {offsets = [0, 0], sizes = [1, 32], strides = [1, 1]} : vector<1x96xf32> to vector<1x32xf32>
    %114 = arith.addf %112, %113 : vector<1x32xf32>
    %115 = arith.truncf %3 : vector<10x32xf32> to vector<10x32xbf16>
    %116 = vector.extract_strided_slice %103 {offsets = [0, 32], sizes = [32, 64], strides = [1, 1]} : vector<32x96xbf16> to vector<32x64xbf16>
    %cst_54 = arith.constant dense<0.000000e+00> : vector<10x64xf32>
    %117 = tpu.matmul %115, %116, %cst_54 {dimension_numbers = #tpu.dot_dimension_numbers<[1], [0], [0], [1], [0, 0, 1, 1], [], []>} : vector<10x32xbf16>, vector<32x64xbf16>, vector<10x64xf32> -> vector<10x64xf32>
    %118 = vector.extract_strided_slice %105 {offsets = [0, 32], sizes = [1, 64], strides = [1, 1]} : vector<1x96xf32> to vector<1x64xf32>
    %119 = vector.broadcast %118 : vector<1x64xf32> to vector<10x64xf32>
    %120 = arith.addf %117, %119 : vector<10x64xf32>
    %121 = vector.extract_strided_slice %114 {offsets = [0, 0], sizes = [1, 8], strides = [1, 1]} : vector<1x32xf32> to vector<1x8xf32>
    %122 = vector.extract_strided_slice %114 {offsets = [0, 8], sizes = [1, 8], strides = [1, 1]} : vector<1x32xf32> to vector<1x8xf32>
    %123 = vector.extract_strided_slice %114 {offsets = [0, 16], sizes = [1, 8], strides = [1, 1]} : vector<1x32xf32> to vector<1x8xf32>
    %124 = vector.extract_strided_slice %114 {offsets = [0, 24], sizes = [1, 8], strides = [1, 1]} : vector<1x32xf32> to vector<1x8xf32>
    %125 = vector.shape_cast %121 : vector<1x8xf32> to vector<1x1x8xf32>
    %126 = vector.shape_cast %122 : vector<1x8xf32> to vector<1x1x8xf32>
    %127 = vector.shape_cast %123 : vector<1x8xf32> to vector<1x1x8xf32>
    %128 = vector.shape_cast %124 : vector<1x8xf32> to vector<1x1x8xf32>
    %129 = tpu.concatenate %125, %126, %127, %128 in 0 : vector<1x1x8xf32>, vector<1x1x8xf32>, vector<1x1x8xf32>, vector<1x1x8xf32> -> vector<4x1x8xf32>
    %130 = vector.extract_strided_slice %120 {offsets = [0, 0], sizes = [10, 8], strides = [1, 1]} : vector<10x64xf32> to vector<10x8xf32>
    %131 = vector.extract_strided_slice %120 {offsets = [0, 8], sizes = [10, 8], strides = [1, 1]} : vector<10x64xf32> to vector<10x8xf32>
    %132 = vector.extract_strided_slice %120 {offsets = [0, 16], sizes = [10, 8], strides = [1, 1]} : vector<10x64xf32> to vector<10x8xf32>
    %133 = vector.extract_strided_slice %120 {offsets = [0, 24], sizes = [10, 8], strides = [1, 1]} : vector<10x64xf32> to vector<10x8xf32>
    %134 = vector.extract_strided_slice %120 {offsets = [0, 32], sizes = [10, 8], strides = [1, 1]} : vector<10x64xf32> to vector<10x8xf32>
    %135 = vector.extract_strided_slice %120 {offsets = [0, 40], sizes = [10, 8], strides = [1, 1]} : vector<10x64xf32> to vector<10x8xf32>
    %136 = vector.extract_strided_slice %120 {offsets = [0, 48], sizes = [10, 8], strides = [1, 1]} : vector<10x64xf32> to vector<10x8xf32>
    %137 = vector.extract_strided_slice %120 {offsets = [0, 56], sizes = [10, 8], strides = [1, 1]} : vector<10x64xf32> to vector<10x8xf32>
    %138 = vector.shape_cast %130 : vector<10x8xf32> to vector<1x10x8xf32>
    %139 = vector.shape_cast %131 : vector<10x8xf32> to vector<1x10x8xf32>
    %140 = vector.shape_cast %132 : vector<10x8xf32> to vector<1x10x8xf32>
    %141 = vector.shape_cast %133 : vector<10x8xf32> to vector<1x10x8xf32>
    %142 = vector.shape_cast %134 : vector<10x8xf32> to vector<1x10x8xf32>
    %143 = vector.shape_cast %135 : vector<10x8xf32> to vector<1x10x8xf32>
    %144 = vector.shape_cast %136 : vector<10x8xf32> to vector<1x10x8xf32>
    %145 = vector.shape_cast %137 : vector<10x8xf32> to vector<1x10x8xf32>
    %146 = tpu.concatenate %138, %139, %140, %141, %142, %143, %144, %145 in 0 : vector<1x10x8xf32>, vector<1x10x8xf32>, vector<1x10x8xf32>, vector<1x10x8xf32>, vector<1x10x8xf32>, vector<1x10x8xf32>, vector<1x10x8xf32>, vector<1x10x8xf32> -> vector<8x10x8xf32>
    %147 = vector.extract_strided_slice %146 {offsets = [0, 0, 0], sizes = [4, 10, 8], strides = [1, 1, 1]} : vector<8x10x8xf32> to vector<4x10x8xf32>
    %148 = vector.extract_strided_slice %146 {offsets = [4, 0, 0], sizes = [4, 10, 8], strides = [1, 1, 1]} : vector<8x10x8xf32> to vector<4x10x8xf32>
    %149 = arith.truncf %129 : vector<4x1x8xf32> to vector<4x1x8xbf16>
    %150 = arith.truncf %147 : vector<4x10x8xf32> to vector<4x10x8xbf16>
    "tpu.trace_start"() <{level = 10 : i32, message = "hqd,hkd->hqk"}> : () -> ()
    %cst_55 = arith.constant dense<0.000000e+00> : vector<4x1x10xf32>
    %151 = tpu.matmul %149, %150, %cst_55 {dimension_numbers = #tpu.dot_dimension_numbers<[2], [2], [1], [1], [0, 0, 0, 1, 1, 1], [0], [0]>} : vector<4x1x8xbf16>, vector<4x10x8xbf16>, vector<4x1x10xf32> -> vector<4x1x10xf32>
    "tpu.trace_stop"() : () -> ()
    %cst_56 = arith.constant 0.353553385 : f32
    %152 = vector.broadcast %cst_56 : f32 to vector<4x1x10xf32>
    %153 = arith.mulf %151, %152 : vector<4x1x10xf32>
    %154 = vector.shape_cast %5 : vector<1x10xf32> to vector<1x1x10xf32>
    %155 = vector.broadcast %154 : vector<1x1x10xf32> to vector<4x1x10xf32>
    %156 = arith.addf %153, %155 : vector<4x1x10xf32>
    %cst_57 = arith.constant dense<0xFF800000> : vector<4x1xf32>
    %157 = vector.multi_reduction <maximumf>, %156, %cst_57 [2] : vector<4x1x10xf32> to vector<4x1xf32>
    %158 = vector.shape_cast %157 : vector<4x1xf32> to vector<4x1x1xf32>
    %159 = vector.broadcast %158 : vector<4x1x1xf32> to vector<4x1x10xf32>
    %160 = arith.subf %156, %159 : vector<4x1x10xf32>
    %161 = math.exp %160 : vector<4x1x10xf32>
    %cst_58 = arith.constant dense<0.000000e+00> : vector<4x1xf32>
    %162 = vector.multi_reduction <add>, %161, %cst_58 [2] : vector<4x1x10xf32> to vector<4x1xf32>
    %163 = vector.shape_cast %162 : vector<4x1xf32> to vector<4x1x1xf32>
    %164 = tpu.reciprocal %163 {approx = true} : vector<4x1x1xf32> -> vector<4x1x1xf32>
    %165 = vector.broadcast %164 : vector<4x1x1xf32> to vector<4x1x10xf32>
    %166 = arith.mulf %161, %165 : vector<4x1x10xf32>
    %167 = arith.truncf %166 : vector<4x1x10xf32> to vector<4x1x10xbf16>
    %168 = arith.truncf %148 : vector<4x10x8xf32> to vector<4x10x8xbf16>
    "tpu.trace_start"() <{level = 10 : i32, message = "hqk,hkd->hqd"}> : () -> ()
    %cst_59 = arith.constant dense<0.000000e+00> : vector<4x1x8xf32>
    %169 = tpu.matmul %167, %168, %cst_59 {dimension_numbers = #tpu.dot_dimension_numbers<[2], [1], [1], [2], [0, 0, 0, 1, 1, 2], [0], [0]>} : vector<4x1x10xbf16>, vector<4x10x8xbf16>, vector<4x1x8xf32> -> vector<4x1x8xf32>
    "tpu.trace_stop"() : () -> ()
    %170 = arith.truncf %169 : vector<4x1x8xf32> to vector<4x1x8xbf16>
    "tpu.trace_start"() <{level = 10 : i32, message = "hqd,hdm->hqm"}> : () -> ()
    %cst_60 = arith.constant dense<0.000000e+00> : vector<4x1x32xf32>
    %171 = tpu.matmul %170, %107, %cst_60 {dimension_numbers = #tpu.dot_dimension_numbers<[2], [1], [1], [2], [0, 0, 0, 1, 1, 2], [0], [0]>} : vector<4x1x8xbf16>, vector<4x8x32xbf16>, vector<4x1x32xf32> -> vector<4x1x32xf32>
    "tpu.trace_stop"() : () -> ()
    %cst_61 = arith.constant dense<0.000000e+00> : vector<1x32xf32>
    %172 = vector.multi_reduction <add>, %171, %cst_61 [0] : vector<4x1x32xf32> to vector<1x32xf32>
    %173 = vector.extract_strided_slice %109 {offsets = [0, 0], sizes = [1, 32], strides = [1, 1]} : vector<3x32xf32> to vector<1x32xf32>
    %174 = arith.addf %172, %173 : vector<1x32xf32>
    %175 = vector.extract_strided_slice %109 {offsets = [1, 0], sizes = [1, 32], strides = [1, 1]} : vector<3x32xf32> to vector<1x32xf32>
    %176 = vector.extract_strided_slice %109 {offsets = [2, 0], sizes = [1, 32], strides = [1, 1]} : vector<3x32xf32> to vector<1x32xf32>
    %cst_62 = arith.constant dense<0.000000e+00> : vector<1xf32>
    %177 = vector.multi_reduction <add>, %174, %cst_62 [1] : vector<1x32xf32> to vector<1xf32>
    %178 = vector.shape_cast %177 : vector<1xf32> to vector<1x1xf32>
    %cst_63 = arith.constant 3.200000e+01 : f32
    %179 = vector.broadcast %cst_63 : f32 to vector<1x1xf32>
    %180 = arith.divf %178, %179 : vector<1x1xf32>
    %181 = vector.broadcast %180 : vector<1x1xf32> to vector<1x32xf32>
    %182 = arith.subf %174, %181 : vector<1x32xf32>
    %183 = arith.mulf %182, %182 : vector<1x32xf32>
    %cst_64 = arith.constant dense<0.000000e+00> : vector<1xf32>
    %184 = vector.multi_reduction <add>, %183, %cst_64 [1] : vector<1x32xf32> to vector<1xf32>
    %185 = vector.shape_cast %184 : vector<1xf32> to vector<1x1xf32>
    %cst_65 = arith.constant 3.200000e+01 : f32
    %186 = vector.broadcast %cst_65 : f32 to vector<1x1xf32>
    %187 = arith.divf %185, %186 : vector<1x1xf32>
    %188 = vector.broadcast %180 : vector<1x1xf32> to vector<1x32xf32>
    %189 = arith.subf %174, %188 : vector<1x32xf32>
    %cst_66 = arith.constant 9.99999974E-6 : f32
    %190 = vector.broadcast %cst_66 : f32 to vector<1x1xf32>
    %191 = arith.addf %187, %190 : vector<1x1xf32>
    %192 = math.rsqrt %191 : vector<1x1xf32>
    %193 = vector.broadcast %192 : vector<1x1xf32> to vector<1x32xf32>
    %194 = arith.mulf %189, %193 : vector<1x32xf32>
    %195 = arith.mulf %194, %175 : vector<1x32xf32>
    %196 = arith.addf %195, %176 : vector<1x32xf32>
    %c2 = arith.constant 2 : index
    %c0_67 = arith.constant 0 : index
    %c0_68 = arith.constant 0 : index
    %197 = vector.load %arg5[%c2, %c0_67, %c0_68] : memref<6x32x96xbf16, #tpu.memory_space<vmem>>, vector<1x32x96xbf16>
    %198 = vector.shape_cast %197 : vector<1x32x96xbf16> to vector<32x96xbf16>
    %c2_69 = arith.constant 2 : index
    %c0_70 = arith.constant 0 : index
    %c0_71 = arith.constant 0 : index
    %199 = vector.load %arg6[%c2_69, %c0_70, %c0_71] : memref<6x1x96xf32, #tpu.memory_space<vmem>>, vector<1x1x96xf32>
    %200 = vector.shape_cast %199 : vector<1x1x96xf32> to vector<1x96xf32>
    %c2_72 = arith.constant 2 : index
    %c0_73 = arith.constant 0 : index
    %c0_74 = arith.constant 0 : index
    %c0_75 = arith.constant 0 : index
    %201 = vector.load %arg7[%c2_72, %c0_73, %c0_74, %c0_75] : memref<6x4x8x32xbf16, #tpu.memory_space<vmem>>, vector<1x4x8x32xbf16>
    %202 = vector.shape_cast %201 : vector<1x4x8x32xbf16> to vector<4x8x32xbf16>
    %c2_76 = arith.constant 2 : index
    %c0_77 = arith.constant 0 : index
    %c0_78 = arith.constant 0 : index
    %203 = vector.load %arg8[%c2_76, %c0_77, %c0_78] : memref<6x3x32xf32, #tpu.memory_space<vmem>>, vector<1x3x32xf32>
    %204 = vector.shape_cast %203 : vector<1x3x32xf32> to vector<3x32xf32>
    %205 = arith.truncf %101 : vector<1x32xf32> to vector<1x32xbf16>
    %206 = vector.extract_strided_slice %198 {offsets = [0, 64], sizes = [32, 32], strides = [1, 1]} : vector<32x96xbf16> to vector<32x32xbf16>
    %cst_79 = arith.constant dense<0.000000e+00> : vector<1x32xf32>
    %207 = tpu.matmul %205, %206, %cst_79 {dimension_numbers = #tpu.dot_dimension_numbers<[1], [0], [0], [1], [0, 0, 1, 1], [], []>} : vector<1x32xbf16>, vector<32x32xbf16>, vector<1x32xf32> -> vector<1x32xf32>
    %208 = vector.extract_strided_slice %200 {offsets = [0, 64], sizes = [1, 32], strides = [1, 1]} : vector<1x96xf32> to vector<1x32xf32>
    %209 = arith.addf %207, %208 : vector<1x32xf32>
    %210 = vector.extract_strided_slice %209 {offsets = [0, 0], sizes = [1, 8], strides = [1, 1]} : vector<1x32xf32> to vector<1x8xf32>
    %211 = vector.extract_strided_slice %209 {offsets = [0, 8], sizes = [1, 8], strides = [1, 1]} : vector<1x32xf32> to vector<1x8xf32>
    %212 = vector.extract_strided_slice %209 {offsets = [0, 16], sizes = [1, 8], strides = [1, 1]} : vector<1x32xf32> to vector<1x8xf32>
    %213 = vector.extract_strided_slice %209 {offsets = [0, 24], sizes = [1, 8], strides = [1, 1]} : vector<1x32xf32> to vector<1x8xf32>
    %214 = vector.shape_cast %210 : vector<1x8xf32> to vector<1x1x8xf32>
    %215 = vector.shape_cast %211 : vector<1x8xf32> to vector<1x1x8xf32>
    %216 = vector.shape_cast %212 : vector<1x8xf32> to vector<1x1x8xf32>
    %217 = vector.shape_cast %213 : vector<1x8xf32> to vector<1x1x8xf32>
    %218 = tpu.concatenate %214, %215, %216, %217 in 0 : vector<1x1x8xf32>, vector<1x1x8xf32>, vector<1x1x8xf32>, vector<1x1x8xf32> -> vector<4x1x8xf32>
    %219 = arith.truncf %218 : vector<4x1x8xf32> to vector<4x1x8xbf16>
    "tpu.trace_start"() <{level = 10 : i32, message = "hqd,hdm->hqm"}> : () -> ()
    %cst_80 = arith.constant dense<0.000000e+00> : vector<4x1x32xf32>
    %220 = tpu.matmul %219, %202, %cst_80 {dimension_numbers = #tpu.dot_dimension_numbers<[2], [1], [1], [2], [0, 0, 0, 1, 1, 2], [0], [0]>} : vector<4x1x8xbf16>, vector<4x8x32xbf16>, vector<4x1x32xf32> -> vector<4x1x32xf32>
    "tpu.trace_stop"() : () -> ()
    %cst_81 = arith.constant dense<0.000000e+00> : vector<1x32xf32>
    %221 = vector.multi_reduction <add>, %220, %cst_81 [0] : vector<4x1x32xf32> to vector<1x32xf32>
    %222 = vector.extract_strided_slice %204 {offsets = [0, 0], sizes = [1, 32], strides = [1, 1]} : vector<3x32xf32> to vector<1x32xf32>
    %223 = arith.addf %221, %222 : vector<1x32xf32>
    %224 = vector.extract_strided_slice %204 {offsets = [1, 0], sizes = [1, 32], strides = [1, 1]} : vector<3x32xf32> to vector<1x32xf32>
    %225 = vector.extract_strided_slice %204 {offsets = [2, 0], sizes = [1, 32], strides = [1, 1]} : vector<3x32xf32> to vector<1x32xf32>
    %cst_82 = arith.constant dense<0.000000e+00> : vector<1xf32>
    %226 = vector.multi_reduction <add>, %223, %cst_82 [1] : vector<1x32xf32> to vector<1xf32>
    %227 = vector.shape_cast %226 : vector<1xf32> to vector<1x1xf32>
    %cst_83 = arith.constant 3.200000e+01 : f32
    %228 = vector.broadcast %cst_83 : f32 to vector<1x1xf32>
    %229 = arith.divf %227, %228 : vector<1x1xf32>
    %230 = vector.broadcast %229 : vector<1x1xf32> to vector<1x32xf32>
    %231 = arith.subf %223, %230 : vector<1x32xf32>
    %232 = arith.mulf %231, %231 : vector<1x32xf32>
    %cst_84 = arith.constant dense<0.000000e+00> : vector<1xf32>
    %233 = vector.multi_reduction <add>, %232, %cst_84 [1] : vector<1x32xf32> to vector<1xf32>
    %234 = vector.shape_cast %233 : vector<1xf32> to vector<1x1xf32>
    %cst_85 = arith.constant 3.200000e+01 : f32
    %235 = vector.broadcast %cst_85 : f32 to vector<1x1xf32>
    %236 = arith.divf %234, %235 : vector<1x1xf32>
    %237 = vector.broadcast %229 : vector<1x1xf32> to vector<1x32xf32>
    %238 = arith.subf %223, %237 : vector<1x32xf32>
    %cst_86 = arith.constant 9.99999974E-6 : f32
    %239 = vector.broadcast %cst_86 : f32 to vector<1x1xf32>
    %240 = arith.addf %236, %239 : vector<1x1xf32>
    %241 = math.rsqrt %240 : vector<1x1xf32>
    %242 = vector.broadcast %241 : vector<1x1xf32> to vector<1x32xf32>
    %243 = arith.mulf %238, %242 : vector<1x32xf32>
    %244 = arith.mulf %243, %224 : vector<1x32xf32>
    %245 = arith.addf %244, %225 : vector<1x32xf32>
    %c3 = arith.constant 3 : index
    %c0_87 = arith.constant 0 : index
    %c0_88 = arith.constant 0 : index
    %246 = vector.load %arg5[%c3, %c0_87, %c0_88] : memref<6x32x96xbf16, #tpu.memory_space<vmem>>, vector<1x32x96xbf16>
    %247 = vector.shape_cast %246 : vector<1x32x96xbf16> to vector<32x96xbf16>
    %c3_89 = arith.constant 3 : index
    %c0_90 = arith.constant 0 : index
    %c0_91 = arith.constant 0 : index
    %248 = vector.load %arg6[%c3_89, %c0_90, %c0_91] : memref<6x1x96xf32, #tpu.memory_space<vmem>>, vector<1x1x96xf32>
    %249 = vector.shape_cast %248 : vector<1x1x96xf32> to vector<1x96xf32>
    %c3_92 = arith.constant 3 : index
    %c0_93 = arith.constant 0 : index
    %c0_94 = arith.constant 0 : index
    %c0_95 = arith.constant 0 : index
    %250 = vector.load %arg7[%c3_92, %c0_93, %c0_94, %c0_95] : memref<6x4x8x32xbf16, #tpu.memory_space<vmem>>, vector<1x4x8x32xbf16>
    %251 = vector.shape_cast %250 : vector<1x4x8x32xbf16> to vector<4x8x32xbf16>
    %c3_96 = arith.constant 3 : index
    %c0_97 = arith.constant 0 : index
    %c0_98 = arith.constant 0 : index
    %252 = vector.load %arg8[%c3_96, %c0_97, %c0_98] : memref<6x3x32xf32, #tpu.memory_space<vmem>>, vector<1x3x32xf32>
    %253 = vector.shape_cast %252 : vector<1x3x32xf32> to vector<3x32xf32>
    %254 = arith.truncf %196 : vector<1x32xf32> to vector<1x32xbf16>
    %255 = vector.extract_strided_slice %247 {offsets = [0, 64], sizes = [32, 32], strides = [1, 1]} : vector<32x96xbf16> to vector<32x32xbf16>
    %cst_99 = arith.constant dense<0.000000e+00> : vector<1x32xf32>
    %256 = tpu.matmul %254, %255, %cst_99 {dimension_numbers = #tpu.dot_dimension_numbers<[1], [0], [0], [1], [0, 0, 1, 1], [], []>} : vector<1x32xbf16>, vector<32x32xbf16>, vector<1x32xf32> -> vector<1x32xf32>
    %257 = vector.extract_strided_slice %249 {offsets = [0, 64], sizes = [1, 32], strides = [1, 1]} : vector<1x96xf32> to vector<1x32xf32>
    %258 = arith.addf %256, %257 : vector<1x32xf32>
    %259 = vector.extract_strided_slice %258 {offsets = [0, 0], sizes = [1, 8], strides = [1, 1]} : vector<1x32xf32> to vector<1x8xf32>
    %260 = vector.extract_strided_slice %258 {offsets = [0, 8], sizes = [1, 8], strides = [1, 1]} : vector<1x32xf32> to vector<1x8xf32>
    %261 = vector.extract_strided_slice %258 {offsets = [0, 16], sizes = [1, 8], strides = [1, 1]} : vector<1x32xf32> to vector<1x8xf32>
    %262 = vector.extract_strided_slice %258 {offsets = [0, 24], sizes = [1, 8], strides = [1, 1]} : vector<1x32xf32> to vector<1x8xf32>
    %263 = vector.shape_cast %259 : vector<1x8xf32> to vector<1x1x8xf32>
    %264 = vector.shape_cast %260 : vector<1x8xf32> to vector<1x1x8xf32>
    %265 = vector.shape_cast %261 : vector<1x8xf32> to vector<1x1x8xf32>
    %266 = vector.shape_cast %262 : vector<1x8xf32> to vector<1x1x8xf32>
    %267 = tpu.concatenate %263, %264, %265, %266 in 0 : vector<1x1x8xf32>, vector<1x1x8xf32>, vector<1x1x8xf32>, vector<1x1x8xf32> -> vector<4x1x8xf32>
    %268 = arith.truncf %267 : vector<4x1x8xf32> to vector<4x1x8xbf16>
    "tpu.trace_start"() <{level = 10 : i32, message = "hqd,hdm->hqm"}> : () -> ()
    %cst_100 = arith.constant dense<0.000000e+00> : vector<4x1x32xf32>
    %269 = tpu.matmul %268, %251, %cst_100 {dimension_numbers = #tpu.dot_dimension_numbers<[2], [1], [1], [2], [0, 0, 0, 1, 1, 2], [0], [0]>} : vector<4x1x8xbf16>, vector<4x8x32xbf16>, vector<4x1x32xf32> -> vector<4x1x32xf32>
    "tpu.trace_stop"() : () -> ()
    %cst_101 = arith.constant dense<0.000000e+00> : vector<1x32xf32>
    %270 = vector.multi_reduction <add>, %269, %cst_101 [0] : vector<4x1x32xf32> to vector<1x32xf32>
    %271 = vector.extract_strided_slice %253 {offsets = [0, 0], sizes = [1, 32], strides = [1, 1]} : vector<3x32xf32> to vector<1x32xf32>
    %272 = arith.addf %270, %271 : vector<1x32xf32>
    %273 = vector.extract_strided_slice %253 {offsets = [1, 0], sizes = [1, 32], strides = [1, 1]} : vector<3x32xf32> to vector<1x32xf32>
    %274 = vector.extract_strided_slice %253 {offsets = [2, 0], sizes = [1, 32], strides = [1, 1]} : vector<3x32xf32> to vector<1x32xf32>
    %cst_102 = arith.constant dense<0.000000e+00> : vector<1xf32>
    %275 = vector.multi_reduction <add>, %272, %cst_102 [1] : vector<1x32xf32> to vector<1xf32>
    %276 = vector.shape_cast %275 : vector<1xf32> to vector<1x1xf32>
    %cst_103 = arith.constant 3.200000e+01 : f32
    %277 = vector.broadcast %cst_103 : f32 to vector<1x1xf32>
    %278 = arith.divf %276, %277 : vector<1x1xf32>
    %279 = vector.broadcast %278 : vector<1x1xf32> to vector<1x32xf32>
    %280 = arith.subf %272, %279 : vector<1x32xf32>
    %281 = arith.mulf %280, %280 : vector<1x32xf32>
    %cst_104 = arith.constant dense<0.000000e+00> : vector<1xf32>
    %282 = vector.multi_reduction <add>, %281, %cst_104 [1] : vector<1x32xf32> to vector<1xf32>
    %283 = vector.shape_cast %282 : vector<1xf32> to vector<1x1xf32>
    %cst_105 = arith.constant 3.200000e+01 : f32
    %284 = vector.broadcast %cst_105 : f32 to vector<1x1xf32>
    %285 = arith.divf %283, %284 : vector<1x1xf32>
    %286 = vector.broadcast %278 : vector<1x1xf32> to vector<1x32xf32>
    %287 = arith.subf %272, %286 : vector<1x32xf32>
    %cst_106 = arith.constant 9.99999974E-6 : f32
    %288 = vector.broadcast %cst_106 : f32 to vector<1x1xf32>
    %289 = arith.addf %285, %288 : vector<1x1xf32>
    %290 = math.rsqrt %289 : vector<1x1xf32>
    %291 = vector.broadcast %290 : vector<1x1xf32> to vector<1x32xf32>
    %292 = arith.mulf %287, %291 : vector<1x32xf32>
    %293 = arith.mulf %292, %273 : vector<1x32xf32>
    %294 = arith.addf %293, %274 : vector<1x32xf32>
    %c0_107 = arith.constant 0 : index
    %c0_108 = arith.constant 0 : index
    %295 = vector.load %arg13[%c0_107, %c0_108] : memref<64x2xf32, #tpu.memory_space<vmem>>, vector<64x2xf32>
    %c0_109 = arith.constant 0 : index
    %c0_110 = arith.constant 0 : index
    %296 = vector.load %arg15[%c0_109, %c0_110] : memref<4x32xf32, #tpu.memory_space<vmem>>, vector<4x32xf32>
    %297 = vector.extract_strided_slice %295 {offsets = [0, 0], sizes = [32, 2], strides = [1, 1]} : vector<64x2xf32> to vector<32x2xf32>
    %cst_111 = arith.constant dense<0.000000e+00> : vector<1x2xf32>
    %298 = tpu.matmul %245, %297, %cst_111 {dimension_numbers = #tpu.dot_dimension_numbers<[1], [0], [0], [1], [0, 0, 1, 1], [], []>} : vector<1x32xf32>, vector<32x2xf32>, vector<1x2xf32> -> vector<1x2xf32>
    %299 = vector.extract_strided_slice %295 {offsets = [32, 0], sizes = [32, 2], strides = [1, 1]} : vector<64x2xf32> to vector<32x2xf32>
    %cst_112 = arith.constant dense<0.000000e+00> : vector<1x2xf32>
    %300 = tpu.matmul %294, %299, %cst_112 {dimension_numbers = #tpu.dot_dimension_numbers<[1], [0], [0], [1], [0, 0, 1, 1], [], []>} : vector<1x32xf32>, vector<32x2xf32>, vector<1x2xf32> -> vector<1x2xf32>
    %301 = arith.addf %298, %300 : vector<1x2xf32>
    %302 = vector.extract_strided_slice %296 {offsets = [0, 0], sizes = [1, 2], strides = [1, 1]} : vector<4x32xf32> to vector<1x2xf32>
    %303 = arith.addf %301, %302 : vector<1x2xf32>
    %cst_113 = arith.constant dense<0xFF800000> : vector<1xf32>
    %304 = vector.multi_reduction <maximumf>, %303, %cst_113 [1] : vector<1x2xf32> to vector<1xf32>
    %305 = vector.shape_cast %304 : vector<1xf32> to vector<1x1xf32>
    %306 = vector.broadcast %305 : vector<1x1xf32> to vector<1x2xf32>
    %307 = arith.subf %303, %306 : vector<1x2xf32>
    %308 = math.exp %307 : vector<1x2xf32>
    %cst_114 = arith.constant dense<0.000000e+00> : vector<1xf32>
    %309 = vector.multi_reduction <add>, %308, %cst_114 [1] : vector<1x2xf32> to vector<1xf32>
    %310 = vector.shape_cast %309 : vector<1xf32> to vector<1x1xf32>
    %311 = vector.broadcast %310 : vector<1x1xf32> to vector<1x2xf32>
    %312 = arith.divf %308, %311 : vector<1x2xf32>
    %313 = vector.extract_strided_slice %312 {offsets = [0, 0], sizes = [1, 1], strides = [1, 1]} : vector<1x2xf32> to vector<1x1xf32>
    %314 = vector.broadcast %313 : vector<1x1xf32> to vector<1x32xf32>
    %315 = arith.mulf %314, %245 : vector<1x32xf32>
    %316 = vector.extract_strided_slice %312 {offsets = [0, 1], sizes = [1, 1], strides = [1, 1]} : vector<1x2xf32> to vector<1x1xf32>
    %317 = vector.broadcast %316 : vector<1x1xf32> to vector<1x32xf32>
    %318 = arith.mulf %317, %294 : vector<1x32xf32>
    %319 = arith.addf %315, %318 : vector<1x32xf32>
    %320 = vector.extract_strided_slice %296 {offsets = [1, 0], sizes = [1, 32], strides = [1, 1]} : vector<4x32xf32> to vector<1x32xf32>
    %321 = vector.extract_strided_slice %296 {offsets = [2, 0], sizes = [1, 32], strides = [1, 1]} : vector<4x32xf32> to vector<1x32xf32>
    %cst_115 = arith.constant dense<0.000000e+00> : vector<1xf32>
    %322 = vector.multi_reduction <add>, %319, %cst_115 [1] : vector<1x32xf32> to vector<1xf32>
    %323 = vector.shape_cast %322 : vector<1xf32> to vector<1x1xf32>
    %cst_116 = arith.constant 3.200000e+01 : f32
    %324 = vector.broadcast %cst_116 : f32 to vector<1x1xf32>
    %325 = arith.divf %323, %324 : vector<1x1xf32>
    %326 = vector.broadcast %325 : vector<1x1xf32> to vector<1x32xf32>
    %327 = arith.subf %319, %326 : vector<1x32xf32>
    %328 = arith.mulf %327, %327 : vector<1x32xf32>
    %cst_117 = arith.constant dense<0.000000e+00> : vector<1xf32>
    %329 = vector.multi_reduction <add>, %328, %cst_117 [1] : vector<1x32xf32> to vector<1xf32>
    %330 = vector.shape_cast %329 : vector<1xf32> to vector<1x1xf32>
    %cst_118 = arith.constant 3.200000e+01 : f32
    %331 = vector.broadcast %cst_118 : f32 to vector<1x1xf32>
    %332 = arith.divf %330, %331 : vector<1x1xf32>
    %333 = vector.broadcast %325 : vector<1x1xf32> to vector<1x32xf32>
    %334 = arith.subf %319, %333 : vector<1x32xf32>
    %cst_119 = arith.constant 9.99999974E-6 : f32
    %335 = vector.broadcast %cst_119 : f32 to vector<1x1xf32>
    %336 = arith.addf %332, %335 : vector<1x1xf32>
    %337 = math.rsqrt %336 : vector<1x1xf32>
    %338 = vector.broadcast %337 : vector<1x1xf32> to vector<1x32xf32>
    %339 = arith.mulf %334, %338 : vector<1x32xf32>
    %340 = arith.mulf %339, %320 : vector<1x32xf32>
    %341 = arith.addf %340, %321 : vector<1x32xf32>
    %342 = arith.truncf %341 : vector<1x32xf32> to vector<1x32xbf16>
    %c0_120 = arith.constant 0 : index
    %c0_121 = arith.constant 0 : index
    %343 = vector.load %arg14[%c0_120, %c0_121] : memref<32x32xbf16, #tpu.memory_space<vmem>>, vector<32x32xbf16>
    %cst_122 = arith.constant dense<0.000000e+00> : vector<1x32xf32>
    %344 = tpu.matmul %342, %343, %cst_122 {dimension_numbers = #tpu.dot_dimension_numbers<[1], [0], [0], [1], [0, 0, 1, 1], [], []>} : vector<1x32xbf16>, vector<32x32xbf16>, vector<1x32xf32> -> vector<1x32xf32>
    %345 = vector.extract_strided_slice %296 {offsets = [3, 0], sizes = [1, 32], strides = [1, 1]} : vector<4x32xf32> to vector<1x32xf32>
    %346 = arith.addf %344, %345 : vector<1x32xf32>
    %cst_123 = arith.constant 0.000000e+00 : f32
    %347 = vector.broadcast %cst_123 : f32 to vector<1x32xf32>
    %348 = arith.maximumf %346, %347 : vector<1x32xf32>
    %349 = tpu.concatenate %1, %101, %348 in 0 : vector<16x32xf32>, vector<1x32xf32>, vector<1x32xf32> -> vector<18x32xf32>
    %350 = tpu.concatenate %3, %196, %348 in 0 : vector<10x32xf32>, vector<1x32xf32>, vector<1x32xf32> -> vector<12x32xf32>
    %c4 = arith.constant 4 : index
    %c0_124 = arith.constant 0 : index
    %c0_125 = arith.constant 0 : index
    %351 = vector.load %arg5[%c4, %c0_124, %c0_125] : memref<6x32x96xbf16, #tpu.memory_space<vmem>>, vector<1x32x96xbf16>
    %352 = vector.shape_cast %351 : vector<1x32x96xbf16> to vector<32x96xbf16>
    %c4_126 = arith.constant 4 : index
    %c0_127 = arith.constant 0 : index
    %c0_128 = arith.constant 0 : index
    %353 = vector.load %arg6[%c4_126, %c0_127, %c0_128] : memref<6x1x96xf32, #tpu.memory_space<vmem>>, vector<1x1x96xf32>
    %354 = vector.shape_cast %353 : vector<1x1x96xf32> to vector<1x96xf32>
    %c4_129 = arith.constant 4 : index
    %c0_130 = arith.constant 0 : index
    %c0_131 = arith.constant 0 : index
    %c0_132 = arith.constant 0 : index
    %355 = vector.load %arg7[%c4_129, %c0_130, %c0_131, %c0_132] : memref<6x4x8x32xbf16, #tpu.memory_space<vmem>>, vector<1x4x8x32xbf16>
    %356 = vector.shape_cast %355 : vector<1x4x8x32xbf16> to vector<4x8x32xbf16>
    %c4_133 = arith.constant 4 : index
    %c0_134 = arith.constant 0 : index
    %c0_135 = arith.constant 0 : index
    %357 = vector.load %arg8[%c4_133, %c0_134, %c0_135] : memref<6x3x32xf32, #tpu.memory_space<vmem>>, vector<1x3x32xf32>
    %358 = vector.shape_cast %357 : vector<1x3x32xf32> to vector<3x32xf32>
    %359 = arith.truncf %349 : vector<18x32xf32> to vector<18x32xbf16>
    %cst_136 = arith.constant dense<0.000000e+00> : vector<18x96xf32>
    %360 = tpu.matmul %359, %352, %cst_136 {dimension_numbers = #tpu.dot_dimension_numbers<[1], [0], [0], [1], [0, 0, 1, 1], [], []>} : vector<18x32xbf16>, vector<32x96xbf16>, vector<18x96xf32> -> vector<18x96xf32>
    %361 = vector.broadcast %354 : vector<1x96xf32> to vector<18x96xf32>
    %362 = arith.addf %360, %361 : vector<18x96xf32>
    %363 = vector.extract_strided_slice %362 {offsets = [0, 0], sizes = [18, 8], strides = [1, 1]} : vector<18x96xf32> to vector<18x8xf32>
    %364 = vector.extract_strided_slice %362 {offsets = [0, 8], sizes = [18, 8], strides = [1, 1]} : vector<18x96xf32> to vector<18x8xf32>
    %365 = vector.extract_strided_slice %362 {offsets = [0, 16], sizes = [18, 8], strides = [1, 1]} : vector<18x96xf32> to vector<18x8xf32>
    %366 = vector.extract_strided_slice %362 {offsets = [0, 24], sizes = [18, 8], strides = [1, 1]} : vector<18x96xf32> to vector<18x8xf32>
    %367 = vector.extract_strided_slice %362 {offsets = [0, 32], sizes = [18, 8], strides = [1, 1]} : vector<18x96xf32> to vector<18x8xf32>
    %368 = vector.extract_strided_slice %362 {offsets = [0, 40], sizes = [18, 8], strides = [1, 1]} : vector<18x96xf32> to vector<18x8xf32>
    %369 = vector.extract_strided_slice %362 {offsets = [0, 48], sizes = [18, 8], strides = [1, 1]} : vector<18x96xf32> to vector<18x8xf32>
    %370 = vector.extract_strided_slice %362 {offsets = [0, 56], sizes = [18, 8], strides = [1, 1]} : vector<18x96xf32> to vector<18x8xf32>
    %371 = vector.extract_strided_slice %362 {offsets = [0, 64], sizes = [18, 8], strides = [1, 1]} : vector<18x96xf32> to vector<18x8xf32>
    %372 = vector.extract_strided_slice %362 {offsets = [0, 72], sizes = [18, 8], strides = [1, 1]} : vector<18x96xf32> to vector<18x8xf32>
    %373 = vector.extract_strided_slice %362 {offsets = [0, 80], sizes = [18, 8], strides = [1, 1]} : vector<18x96xf32> to vector<18x8xf32>
    %374 = vector.extract_strided_slice %362 {offsets = [0, 88], sizes = [18, 8], strides = [1, 1]} : vector<18x96xf32> to vector<18x8xf32>
    %375 = vector.shape_cast %363 : vector<18x8xf32> to vector<1x18x8xf32>
    %376 = vector.shape_cast %364 : vector<18x8xf32> to vector<1x18x8xf32>
    %377 = vector.shape_cast %365 : vector<18x8xf32> to vector<1x18x8xf32>
    %378 = vector.shape_cast %366 : vector<18x8xf32> to vector<1x18x8xf32>
    %379 = vector.shape_cast %367 : vector<18x8xf32> to vector<1x18x8xf32>
    %380 = vector.shape_cast %368 : vector<18x8xf32> to vector<1x18x8xf32>
    %381 = vector.shape_cast %369 : vector<18x8xf32> to vector<1x18x8xf32>
    %382 = vector.shape_cast %370 : vector<18x8xf32> to vector<1x18x8xf32>
    %383 = vector.shape_cast %371 : vector<18x8xf32> to vector<1x18x8xf32>
    %384 = vector.shape_cast %372 : vector<18x8xf32> to vector<1x18x8xf32>
    %385 = vector.shape_cast %373 : vector<18x8xf32> to vector<1x18x8xf32>
    %386 = vector.shape_cast %374 : vector<18x8xf32> to vector<1x18x8xf32>
    %387 = tpu.concatenate %375, %376, %377, %378, %379, %380, %381, %382, %383, %384, %385, %386 in 0 : vector<1x18x8xf32>, vector<1x18x8xf32>, vector<1x18x8xf32>, vector<1x18x8xf32>, vector<1x18x8xf32>, vector<1x18x8xf32>, vector<1x18x8xf32>, vector<1x18x8xf32>, vector<1x18x8xf32>, vector<1x18x8xf32>, vector<1x18x8xf32>, vector<1x18x8xf32> -> vector<12x18x8xf32>
    %388 = vector.extract_strided_slice %387 {offsets = [0, 0, 0], sizes = [4, 18, 8], strides = [1, 1, 1]} : vector<12x18x8xf32> to vector<4x18x8xf32>
    %389 = vector.extract_strided_slice %387 {offsets = [4, 0, 0], sizes = [4, 18, 8], strides = [1, 1, 1]} : vector<12x18x8xf32> to vector<4x18x8xf32>
    %390 = vector.extract_strided_slice %387 {offsets = [8, 0, 0], sizes = [4, 18, 8], strides = [1, 1, 1]} : vector<12x18x8xf32> to vector<4x18x8xf32>
    %391 = arith.truncf %388 : vector<4x18x8xf32> to vector<4x18x8xbf16>
    %392 = arith.truncf %389 : vector<4x18x8xf32> to vector<4x18x8xbf16>
    "tpu.trace_start"() <{level = 10 : i32, message = "hqd,hkd->hqk"}> : () -> ()
    %cst_137 = arith.constant dense<0.000000e+00> : vector<4x18x18xf32>
    %393 = tpu.matmul %391, %392, %cst_137 {dimension_numbers = #tpu.dot_dimension_numbers<[2], [2], [1], [1], [0, 0, 0, 1, 1, 1], [0], [0]>} : vector<4x18x8xbf16>, vector<4x18x8xbf16>, vector<4x18x18xf32> -> vector<4x18x18xf32>
    "tpu.trace_stop"() : () -> ()
    %cst_138 = arith.constant 0.353553385 : f32
    %394 = vector.broadcast %cst_138 : f32 to vector<4x18x18xf32>
    %395 = arith.mulf %393, %394 : vector<4x18x18xf32>
    %cst_139 = arith.constant dense<0xFF800000> : vector<4x18xf32>
    %396 = vector.multi_reduction <maximumf>, %395, %cst_139 [2] : vector<4x18x18xf32> to vector<4x18xf32>
    %397 = vector.shape_cast %396 : vector<4x18xf32> to vector<4x18x1xf32>
    %398 = vector.broadcast %397 : vector<4x18x1xf32> to vector<4x18x18xf32>
    %399 = arith.subf %395, %398 : vector<4x18x18xf32>
    %400 = math.exp %399 : vector<4x18x18xf32>
    %cst_140 = arith.constant dense<0.000000e+00> : vector<4x18xf32>
    %401 = vector.multi_reduction <add>, %400, %cst_140 [2] : vector<4x18x18xf32> to vector<4x18xf32>
    %402 = vector.shape_cast %401 : vector<4x18xf32> to vector<4x18x1xf32>
    %403 = tpu.reciprocal %402 {approx = true} : vector<4x18x1xf32> -> vector<4x18x1xf32>
    %404 = vector.broadcast %403 : vector<4x18x1xf32> to vector<4x18x18xf32>
    %405 = arith.mulf %400, %404 : vector<4x18x18xf32>
    %406 = arith.truncf %405 : vector<4x18x18xf32> to vector<4x18x18xbf16>
    %407 = arith.truncf %390 : vector<4x18x8xf32> to vector<4x18x8xbf16>
    "tpu.trace_start"() <{level = 10 : i32, message = "hqk,hkd->hqd"}> : () -> ()
    %cst_141 = arith.constant dense<0.000000e+00> : vector<4x18x8xf32>
    %408 = tpu.matmul %406, %407, %cst_141 {dimension_numbers = #tpu.dot_dimension_numbers<[2], [1], [1], [2], [0, 0, 0, 1, 1, 2], [0], [0]>} : vector<4x18x18xbf16>, vector<4x18x8xbf16>, vector<4x18x8xf32> -> vector<4x18x8xf32>
    "tpu.trace_stop"() : () -> ()
    %409 = arith.truncf %408 : vector<4x18x8xf32> to vector<4x18x8xbf16>
    "tpu.trace_start"() <{level = 10 : i32, message = "hqd,hdm->hqm"}> : () -> ()
    %cst_142 = arith.constant dense<0.000000e+00> : vector<4x18x32xf32>
    %410 = tpu.matmul %409, %356, %cst_142 {dimension_numbers = #tpu.dot_dimension_numbers<[2], [1], [1], [2], [0, 0, 0, 1, 1, 2], [0], [0]>} : vector<4x18x8xbf16>, vector<4x8x32xbf16>, vector<4x18x32xf32> -> vector<4x18x32xf32>
    "tpu.trace_stop"() : () -> ()
    %cst_143 = arith.constant dense<0.000000e+00> : vector<18x32xf32>
    %411 = vector.multi_reduction <add>, %410, %cst_143 [0] : vector<4x18x32xf32> to vector<18x32xf32>
    %412 = vector.extract_strided_slice %358 {offsets = [0, 0], sizes = [1, 32], strides = [1, 1]} : vector<3x32xf32> to vector<1x32xf32>
    %413 = vector.broadcast %412 : vector<1x32xf32> to vector<18x32xf32>
    %414 = arith.addf %411, %413 : vector<18x32xf32>
    %415 = arith.addf %414, %349 : vector<18x32xf32>
    %416 = vector.extract_strided_slice %358 {offsets = [1, 0], sizes = [1, 32], strides = [1, 1]} : vector<3x32xf32> to vector<1x32xf32>
    %417 = vector.extract_strided_slice %358 {offsets = [2, 0], sizes = [1, 32], strides = [1, 1]} : vector<3x32xf32> to vector<1x32xf32>
    %cst_144 = arith.constant dense<0.000000e+00> : vector<18xf32>
    %418 = vector.multi_reduction <add>, %415, %cst_144 [1] : vector<18x32xf32> to vector<18xf32>
    %419 = vector.shape_cast %418 : vector<18xf32> to vector<18x1xf32>
    %cst_145 = arith.constant 3.200000e+01 : f32
    %420 = vector.broadcast %cst_145 : f32 to vector<18x1xf32>
    %421 = arith.divf %419, %420 : vector<18x1xf32>
    %422 = vector.broadcast %421 : vector<18x1xf32> to vector<18x32xf32>
    %423 = arith.subf %415, %422 : vector<18x32xf32>
    %424 = arith.mulf %423, %423 : vector<18x32xf32>
    %cst_146 = arith.constant dense<0.000000e+00> : vector<18xf32>
    %425 = vector.multi_reduction <add>, %424, %cst_146 [1] : vector<18x32xf32> to vector<18xf32>
    %426 = vector.shape_cast %425 : vector<18xf32> to vector<18x1xf32>
    %cst_147 = arith.constant 3.200000e+01 : f32
    %427 = vector.broadcast %cst_147 : f32 to vector<18x1xf32>
    %428 = arith.divf %426, %427 : vector<18x1xf32>
    %429 = vector.broadcast %421 : vector<18x1xf32> to vector<18x32xf32>
    %430 = arith.subf %415, %429 : vector<18x32xf32>
    %cst_148 = arith.constant 9.99999974E-6 : f32
    %431 = vector.broadcast %cst_148 : f32 to vector<18x1xf32>
    %432 = arith.addf %428, %431 : vector<18x1xf32>
    %433 = math.rsqrt %432 : vector<18x1xf32>
    %434 = vector.broadcast %433 : vector<18x1xf32> to vector<18x32xf32>
    %435 = arith.mulf %430, %434 : vector<18x32xf32>
    %436 = vector.broadcast %416 : vector<1x32xf32> to vector<18x32xf32>
    %437 = arith.mulf %435, %436 : vector<18x32xf32>
    %438 = vector.broadcast %417 : vector<1x32xf32> to vector<18x32xf32>
    %439 = arith.addf %437, %438 : vector<18x32xf32>
    %c5 = arith.constant 5 : index
    %c0_149 = arith.constant 0 : index
    %c0_150 = arith.constant 0 : index
    %440 = vector.load %arg5[%c5, %c0_149, %c0_150] : memref<6x32x96xbf16, #tpu.memory_space<vmem>>, vector<1x32x96xbf16>
    %441 = vector.shape_cast %440 : vector<1x32x96xbf16> to vector<32x96xbf16>
    %c5_151 = arith.constant 5 : index
    %c0_152 = arith.constant 0 : index
    %c0_153 = arith.constant 0 : index
    %442 = vector.load %arg6[%c5_151, %c0_152, %c0_153] : memref<6x1x96xf32, #tpu.memory_space<vmem>>, vector<1x1x96xf32>
    %443 = vector.shape_cast %442 : vector<1x1x96xf32> to vector<1x96xf32>
    %c5_154 = arith.constant 5 : index
    %c0_155 = arith.constant 0 : index
    %c0_156 = arith.constant 0 : index
    %c0_157 = arith.constant 0 : index
    %444 = vector.load %arg7[%c5_154, %c0_155, %c0_156, %c0_157] : memref<6x4x8x32xbf16, #tpu.memory_space<vmem>>, vector<1x4x8x32xbf16>
    %445 = vector.shape_cast %444 : vector<1x4x8x32xbf16> to vector<4x8x32xbf16>
    %c5_158 = arith.constant 5 : index
    %c0_159 = arith.constant 0 : index
    %c0_160 = arith.constant 0 : index
    %446 = vector.load %arg8[%c5_158, %c0_159, %c0_160] : memref<6x3x32xf32, #tpu.memory_space<vmem>>, vector<1x3x32xf32>
    %447 = vector.shape_cast %446 : vector<1x3x32xf32> to vector<3x32xf32>
    %448 = arith.truncf %350 : vector<12x32xf32> to vector<12x32xbf16>
    %cst_161 = arith.constant dense<0.000000e+00> : vector<12x96xf32>
    %449 = tpu.matmul %448, %441, %cst_161 {dimension_numbers = #tpu.dot_dimension_numbers<[1], [0], [0], [1], [0, 0, 1, 1], [], []>} : vector<12x32xbf16>, vector<32x96xbf16>, vector<12x96xf32> -> vector<12x96xf32>
    %450 = vector.broadcast %443 : vector<1x96xf32> to vector<12x96xf32>
    %451 = arith.addf %449, %450 : vector<12x96xf32>
    %452 = vector.extract_strided_slice %451 {offsets = [0, 0], sizes = [12, 8], strides = [1, 1]} : vector<12x96xf32> to vector<12x8xf32>
    %453 = vector.extract_strided_slice %451 {offsets = [0, 8], sizes = [12, 8], strides = [1, 1]} : vector<12x96xf32> to vector<12x8xf32>
    %454 = vector.extract_strided_slice %451 {offsets = [0, 16], sizes = [12, 8], strides = [1, 1]} : vector<12x96xf32> to vector<12x8xf32>
    %455 = vector.extract_strided_slice %451 {offsets = [0, 24], sizes = [12, 8], strides = [1, 1]} : vector<12x96xf32> to vector<12x8xf32>
    %456 = vector.extract_strided_slice %451 {offsets = [0, 32], sizes = [12, 8], strides = [1, 1]} : vector<12x96xf32> to vector<12x8xf32>
    %457 = vector.extract_strided_slice %451 {offsets = [0, 40], sizes = [12, 8], strides = [1, 1]} : vector<12x96xf32> to vector<12x8xf32>
    %458 = vector.extract_strided_slice %451 {offsets = [0, 48], sizes = [12, 8], strides = [1, 1]} : vector<12x96xf32> to vector<12x8xf32>
    %459 = vector.extract_strided_slice %451 {offsets = [0, 56], sizes = [12, 8], strides = [1, 1]} : vector<12x96xf32> to vector<12x8xf32>
    %460 = vector.extract_strided_slice %451 {offsets = [0, 64], sizes = [12, 8], strides = [1, 1]} : vector<12x96xf32> to vector<12x8xf32>
    %461 = vector.extract_strided_slice %451 {offsets = [0, 72], sizes = [12, 8], strides = [1, 1]} : vector<12x96xf32> to vector<12x8xf32>
    %462 = vector.extract_strided_slice %451 {offsets = [0, 80], sizes = [12, 8], strides = [1, 1]} : vector<12x96xf32> to vector<12x8xf32>
    %463 = vector.extract_strided_slice %451 {offsets = [0, 88], sizes = [12, 8], strides = [1, 1]} : vector<12x96xf32> to vector<12x8xf32>
    %464 = vector.shape_cast %452 : vector<12x8xf32> to vector<1x12x8xf32>
    %465 = vector.shape_cast %453 : vector<12x8xf32> to vector<1x12x8xf32>
    %466 = vector.shape_cast %454 : vector<12x8xf32> to vector<1x12x8xf32>
    %467 = vector.shape_cast %455 : vector<12x8xf32> to vector<1x12x8xf32>
    %468 = vector.shape_cast %456 : vector<12x8xf32> to vector<1x12x8xf32>
    %469 = vector.shape_cast %457 : vector<12x8xf32> to vector<1x12x8xf32>
    %470 = vector.shape_cast %458 : vector<12x8xf32> to vector<1x12x8xf32>
    %471 = vector.shape_cast %459 : vector<12x8xf32> to vector<1x12x8xf32>
    %472 = vector.shape_cast %460 : vector<12x8xf32> to vector<1x12x8xf32>
    %473 = vector.shape_cast %461 : vector<12x8xf32> to vector<1x12x8xf32>
    %474 = vector.shape_cast %462 : vector<12x8xf32> to vector<1x12x8xf32>
    %475 = vector.shape_cast %463 : vector<12x8xf32> to vector<1x12x8xf32>
    %476 = tpu.concatenate %464, %465, %466, %467, %468, %469, %470, %471, %472, %473, %474, %475 in 0 : vector<1x12x8xf32>, vector<1x12x8xf32>, vector<1x12x8xf32>, vector<1x12x8xf32>, vector<1x12x8xf32>, vector<1x12x8xf32>, vector<1x12x8xf32>, vector<1x12x8xf32>, vector<1x12x8xf32>, vector<1x12x8xf32>, vector<1x12x8xf32>, vector<1x12x8xf32> -> vector<12x12x8xf32>
    %477 = vector.extract_strided_slice %476 {offsets = [0, 0, 0], sizes = [4, 12, 8], strides = [1, 1, 1]} : vector<12x12x8xf32> to vector<4x12x8xf32>
    %478 = vector.extract_strided_slice %476 {offsets = [4, 0, 0], sizes = [4, 12, 8], strides = [1, 1, 1]} : vector<12x12x8xf32> to vector<4x12x8xf32>
    %479 = vector.extract_strided_slice %476 {offsets = [8, 0, 0], sizes = [4, 12, 8], strides = [1, 1, 1]} : vector<12x12x8xf32> to vector<4x12x8xf32>
    %480 = arith.truncf %477 : vector<4x12x8xf32> to vector<4x12x8xbf16>
    %481 = arith.truncf %478 : vector<4x12x8xf32> to vector<4x12x8xbf16>
    "tpu.trace_start"() <{level = 10 : i32, message = "hqd,hkd->hqk"}> : () -> ()
    %cst_162 = arith.constant dense<0.000000e+00> : vector<4x12x12xf32>
    %482 = tpu.matmul %480, %481, %cst_162 {dimension_numbers = #tpu.dot_dimension_numbers<[2], [2], [1], [1], [0, 0, 0, 1, 1, 1], [0], [0]>} : vector<4x12x8xbf16>, vector<4x12x8xbf16>, vector<4x12x12xf32> -> vector<4x12x12xf32>
    "tpu.trace_stop"() : () -> ()
    %cst_163 = arith.constant 0.353553385 : f32
    %483 = vector.broadcast %cst_163 : f32 to vector<4x12x12xf32>
    %484 = arith.mulf %482, %483 : vector<4x12x12xf32>
    %485 = vector.shape_cast %7 : vector<1x12xf32> to vector<1x1x12xf32>
    %486 = vector.broadcast %485 : vector<1x1x12xf32> to vector<4x12x12xf32>
    %487 = arith.addf %484, %486 : vector<4x12x12xf32>
    %cst_164 = arith.constant dense<0xFF800000> : vector<4x12xf32>
    %488 = vector.multi_reduction <maximumf>, %487, %cst_164 [2] : vector<4x12x12xf32> to vector<4x12xf32>
    %489 = vector.shape_cast %488 : vector<4x12xf32> to vector<4x12x1xf32>
    %490 = vector.broadcast %489 : vector<4x12x1xf32> to vector<4x12x12xf32>
    %491 = arith.subf %487, %490 : vector<4x12x12xf32>
    %492 = math.exp %491 : vector<4x12x12xf32>
    %cst_165 = arith.constant dense<0.000000e+00> : vector<4x12xf32>
    %493 = vector.multi_reduction <add>, %492, %cst_165 [2] : vector<4x12x12xf32> to vector<4x12xf32>
    %494 = vector.shape_cast %493 : vector<4x12xf32> to vector<4x12x1xf32>
    %495 = tpu.reciprocal %494 {approx = true} : vector<4x12x1xf32> -> vector<4x12x1xf32>
    %496 = vector.broadcast %495 : vector<4x12x1xf32> to vector<4x12x12xf32>
    %497 = arith.mulf %492, %496 : vector<4x12x12xf32>
    %498 = arith.truncf %497 : vector<4x12x12xf32> to vector<4x12x12xbf16>
    %499 = arith.truncf %479 : vector<4x12x8xf32> to vector<4x12x8xbf16>
    "tpu.trace_start"() <{level = 10 : i32, message = "hqk,hkd->hqd"}> : () -> ()
    %cst_166 = arith.constant dense<0.000000e+00> : vector<4x12x8xf32>
    %500 = tpu.matmul %498, %499, %cst_166 {dimension_numbers = #tpu.dot_dimension_numbers<[2], [1], [1], [2], [0, 0, 0, 1, 1, 2], [0], [0]>} : vector<4x12x12xbf16>, vector<4x12x8xbf16>, vector<4x12x8xf32> -> vector<4x12x8xf32>
    "tpu.trace_stop"() : () -> ()
    %501 = arith.truncf %500 : vector<4x12x8xf32> to vector<4x12x8xbf16>
    "tpu.trace_start"() <{level = 10 : i32, message = "hqd,hdm->hqm"}> : () -> ()
    %cst_167 = arith.constant dense<0.000000e+00> : vector<4x12x32xf32>
    %502 = tpu.matmul %501, %445, %cst_167 {dimension_numbers = #tpu.dot_dimension_numbers<[2], [1], [1], [2], [0, 0, 0, 1, 1, 2], [0], [0]>} : vector<4x12x8xbf16>, vector<4x8x32xbf16>, vector<4x12x32xf32> -> vector<4x12x32xf32>
    "tpu.trace_stop"() : () -> ()
    %cst_168 = arith.constant dense<0.000000e+00> : vector<12x32xf32>
    %503 = vector.multi_reduction <add>, %502, %cst_168 [0] : vector<4x12x32xf32> to vector<12x32xf32>
    %504 = vector.extract_strided_slice %447 {offsets = [0, 0], sizes = [1, 32], strides = [1, 1]} : vector<3x32xf32> to vector<1x32xf32>
    %505 = vector.broadcast %504 : vector<1x32xf32> to vector<12x32xf32>
    %506 = arith.addf %503, %505 : vector<12x32xf32>
    %507 = arith.addf %506, %350 : vector<12x32xf32>
    %508 = vector.extract_strided_slice %447 {offsets = [1, 0], sizes = [1, 32], strides = [1, 1]} : vector<3x32xf32> to vector<1x32xf32>
    %509 = vector.extract_strided_slice %447 {offsets = [2, 0], sizes = [1, 32], strides = [1, 1]} : vector<3x32xf32> to vector<1x32xf32>
    %cst_169 = arith.constant dense<0.000000e+00> : vector<12xf32>
    %510 = vector.multi_reduction <add>, %507, %cst_169 [1] : vector<12x32xf32> to vector<12xf32>
    %511 = vector.shape_cast %510 : vector<12xf32> to vector<12x1xf32>
    %cst_170 = arith.constant 3.200000e+01 : f32
    %512 = vector.broadcast %cst_170 : f32 to vector<12x1xf32>
    %513 = arith.divf %511, %512 : vector<12x1xf32>
    %514 = vector.broadcast %513 : vector<12x1xf32> to vector<12x32xf32>
    %515 = arith.subf %507, %514 : vector<12x32xf32>
    %516 = arith.mulf %515, %515 : vector<12x32xf32>
    %cst_171 = arith.constant dense<0.000000e+00> : vector<12xf32>
    %517 = vector.multi_reduction <add>, %516, %cst_171 [1] : vector<12x32xf32> to vector<12xf32>
    %518 = vector.shape_cast %517 : vector<12xf32> to vector<12x1xf32>
    %cst_172 = arith.constant 3.200000e+01 : f32
    %519 = vector.broadcast %cst_172 : f32 to vector<12x1xf32>
    %520 = arith.divf %518, %519 : vector<12x1xf32>
    %521 = vector.broadcast %513 : vector<12x1xf32> to vector<12x32xf32>
    %522 = arith.subf %507, %521 : vector<12x32xf32>
    %cst_173 = arith.constant 9.99999974E-6 : f32
    %523 = vector.broadcast %cst_173 : f32 to vector<12x1xf32>
    %524 = arith.addf %520, %523 : vector<12x1xf32>
    %525 = math.rsqrt %524 : vector<12x1xf32>
    %526 = vector.broadcast %525 : vector<12x1xf32> to vector<12x32xf32>
    %527 = arith.mulf %522, %526 : vector<12x32xf32>
    %528 = vector.broadcast %508 : vector<1x32xf32> to vector<12x32xf32>
    %529 = arith.mulf %527, %528 : vector<12x32xf32>
    %530 = vector.broadcast %509 : vector<1x32xf32> to vector<12x32xf32>
    %531 = arith.addf %529, %530 : vector<12x32xf32>
    %c0_174 = arith.constant 0 : index
    %c0_175 = arith.constant 0 : index
    %c0_176 = arith.constant 0 : index
    %532 = vector.load %arg9[%c0_174, %c0_175, %c0_176] : memref<2x32x64xbf16, #tpu.memory_space<vmem>>, vector<1x32x64xbf16>
    %533 = vector.shape_cast %532 : vector<1x32x64xbf16> to vector<32x64xbf16>
    %c0_177 = arith.constant 0 : index
    %c0_178 = arith.constant 0 : index
    %c0_179 = arith.constant 0 : index
    %534 = vector.load %arg10[%c0_177, %c0_178, %c0_179] : memref<2x64x32xbf16, #tpu.memory_space<vmem>>, vector<1x64x32xbf16>
    %535 = vector.shape_cast %534 : vector<1x64x32xbf16> to vector<64x32xbf16>
    %c0_180 = arith.constant 0 : index
    %c0_181 = arith.constant 0 : index
    %c0_182 = arith.constant 0 : index
    %536 = vector.load %arg11[%c0_180, %c0_181, %c0_182] : memref<2x1x64xf32, #tpu.memory_space<vmem>>, vector<1x1x64xf32>
    %537 = vector.shape_cast %536 : vector<1x1x64xf32> to vector<1x64xf32>
    %c0_183 = arith.constant 0 : index
    %c0_184 = arith.constant 0 : index
    %c0_185 = arith.constant 0 : index
    %538 = vector.load %arg12[%c0_183, %c0_184, %c0_185] : memref<2x3x32xf32, #tpu.memory_space<vmem>>, vector<1x3x32xf32>
    %539 = vector.shape_cast %538 : vector<1x3x32xf32> to vector<3x32xf32>
    %540 = arith.truncf %439 : vector<18x32xf32> to vector<18x32xbf16>
    %cst_186 = arith.constant dense<0.000000e+00> : vector<18x64xf32>
    %541 = tpu.matmul %540, %533, %cst_186 {dimension_numbers = #tpu.dot_dimension_numbers<[1], [0], [0], [1], [0, 0, 1, 1], [], []>} : vector<18x32xbf16>, vector<32x64xbf16>, vector<18x64xf32> -> vector<18x64xf32>
    %542 = vector.broadcast %537 : vector<1x64xf32> to vector<18x64xf32>
    %543 = arith.addf %541, %542 : vector<18x64xf32>
    %cst_187 = arith.constant 0.000000e+00 : f32
    %544 = vector.broadcast %cst_187 : f32 to vector<18x64xf32>
    %545 = arith.maximumf %543, %544 : vector<18x64xf32>
    %546 = arith.truncf %545 : vector<18x64xf32> to vector<18x64xbf16>
    %cst_188 = arith.constant dense<0.000000e+00> : vector<18x32xf32>
    %547 = tpu.matmul %546, %535, %cst_188 {dimension_numbers = #tpu.dot_dimension_numbers<[1], [0], [0], [1], [0, 0, 1, 1], [], []>} : vector<18x64xbf16>, vector<64x32xbf16>, vector<18x32xf32> -> vector<18x32xf32>
    %548 = vector.extract_strided_slice %539 {offsets = [0, 0], sizes = [1, 32], strides = [1, 1]} : vector<3x32xf32> to vector<1x32xf32>
    %549 = vector.broadcast %548 : vector<1x32xf32> to vector<18x32xf32>
    %550 = arith.addf %547, %549 : vector<18x32xf32>
    %551 = arith.addf %550, %439 : vector<18x32xf32>
    %552 = vector.extract_strided_slice %539 {offsets = [1, 0], sizes = [1, 32], strides = [1, 1]} : vector<3x32xf32> to vector<1x32xf32>
    %553 = vector.extract_strided_slice %539 {offsets = [2, 0], sizes = [1, 32], strides = [1, 1]} : vector<3x32xf32> to vector<1x32xf32>
    %cst_189 = arith.constant dense<0.000000e+00> : vector<18xf32>
    %554 = vector.multi_reduction <add>, %551, %cst_189 [1] : vector<18x32xf32> to vector<18xf32>
    %555 = vector.shape_cast %554 : vector<18xf32> to vector<18x1xf32>
    %cst_190 = arith.constant 3.200000e+01 : f32
    %556 = vector.broadcast %cst_190 : f32 to vector<18x1xf32>
    %557 = arith.divf %555, %556 : vector<18x1xf32>
    %558 = vector.broadcast %557 : vector<18x1xf32> to vector<18x32xf32>
    %559 = arith.subf %551, %558 : vector<18x32xf32>
    %560 = arith.mulf %559, %559 : vector<18x32xf32>
    %cst_191 = arith.constant dense<0.000000e+00> : vector<18xf32>
    %561 = vector.multi_reduction <add>, %560, %cst_191 [1] : vector<18x32xf32> to vector<18xf32>
    %562 = vector.shape_cast %561 : vector<18xf32> to vector<18x1xf32>
    %cst_192 = arith.constant 3.200000e+01 : f32
    %563 = vector.broadcast %cst_192 : f32 to vector<18x1xf32>
    %564 = arith.divf %562, %563 : vector<18x1xf32>
    %565 = vector.broadcast %557 : vector<18x1xf32> to vector<18x32xf32>
    %566 = arith.subf %551, %565 : vector<18x32xf32>
    %cst_193 = arith.constant 9.99999974E-6 : f32
    %567 = vector.broadcast %cst_193 : f32 to vector<18x1xf32>
    %568 = arith.addf %564, %567 : vector<18x1xf32>
    %569 = math.rsqrt %568 : vector<18x1xf32>
    %570 = vector.broadcast %569 : vector<18x1xf32> to vector<18x32xf32>
    %571 = arith.mulf %566, %570 : vector<18x32xf32>
    %572 = vector.broadcast %552 : vector<1x32xf32> to vector<18x32xf32>
    %573 = arith.mulf %571, %572 : vector<18x32xf32>
    %574 = vector.broadcast %553 : vector<1x32xf32> to vector<18x32xf32>
    %575 = arith.addf %573, %574 : vector<18x32xf32>
    %576 = vector.extract_strided_slice %575 {offsets = [0, 0], sizes = [16, 32], strides = [1, 1]} : vector<18x32xf32> to vector<16x32xf32>
    %c0_194 = arith.constant 0 : index
    %c0_195 = arith.constant 0 : index
    %c0_196 = arith.constant 0 : index
    %577 = vector.load %arg17[%c0_194, %c0_195, %c0_196] : memref<1x16x32xf32, #tpu.memory_space<vmem>>, vector<1x16x32xf32>
    %578 = vector.shape_cast %577 : vector<1x16x32xf32> to vector<16x32xf32>
    %579 = vector.shape_cast %576 : vector<16x32xf32> to vector<1x16x32xf32>
    tpu.vector_store %arg17[%c0_194, %c0_195, %c0_196], %579 {strides = array<i32>} : memref<1x16x32xf32, #tpu.memory_space<vmem>>, vector<1x16x32xf32>,
    %c1_197 = arith.constant 1 : index
    %c0_198 = arith.constant 0 : index
    %c0_199 = arith.constant 0 : index
    %580 = vector.load %arg9[%c1_197, %c0_198, %c0_199] : memref<2x32x64xbf16, #tpu.memory_space<vmem>>, vector<1x32x64xbf16>
    %581 = vector.shape_cast %580 : vector<1x32x64xbf16> to vector<32x64xbf16>
    %c1_200 = arith.constant 1 : index
    %c0_201 = arith.constant 0 : index
    %c0_202 = arith.constant 0 : index
    %582 = vector.load %arg10[%c1_200, %c0_201, %c0_202] : memref<2x64x32xbf16, #tpu.memory_space<vmem>>, vector<1x64x32xbf16>
    %583 = vector.shape_cast %582 : vector<1x64x32xbf16> to vector<64x32xbf16>
    %c1_203 = arith.constant 1 : index
    %c0_204 = arith.constant 0 : index
    %c0_205 = arith.constant 0 : index
    %584 = vector.load %arg11[%c1_203, %c0_204, %c0_205] : memref<2x1x64xf32, #tpu.memory_space<vmem>>, vector<1x1x64xf32>
    %585 = vector.shape_cast %584 : vector<1x1x64xf32> to vector<1x64xf32>
    %c1_206 = arith.constant 1 : index
    %c0_207 = arith.constant 0 : index
    %c0_208 = arith.constant 0 : index
    %586 = vector.load %arg12[%c1_206, %c0_207, %c0_208] : memref<2x3x32xf32, #tpu.memory_space<vmem>>, vector<1x3x32xf32>
    %587 = vector.shape_cast %586 : vector<1x3x32xf32> to vector<3x32xf32>
    %588 = arith.truncf %531 : vector<12x32xf32> to vector<12x32xbf16>
    %cst_209 = arith.constant dense<0.000000e+00> : vector<12x64xf32>
    %589 = tpu.matmul %588, %581, %cst_209 {dimension_numbers = #tpu.dot_dimension_numbers<[1], [0], [0], [1], [0, 0, 1, 1], [], []>} : vector<12x32xbf16>, vector<32x64xbf16>, vector<12x64xf32> -> vector<12x64xf32>
    %590 = vector.broadcast %585 : vector<1x64xf32> to vector<12x64xf32>
    %591 = arith.addf %589, %590 : vector<12x64xf32>
    %cst_210 = arith.constant 0.000000e+00 : f32
    %592 = vector.broadcast %cst_210 : f32 to vector<12x64xf32>
    %593 = arith.maximumf %591, %592 : vector<12x64xf32>
    %594 = arith.truncf %593 : vector<12x64xf32> to vector<12x64xbf16>
    %cst_211 = arith.constant dense<0.000000e+00> : vector<12x32xf32>
    %595 = tpu.matmul %594, %583, %cst_211 {dimension_numbers = #tpu.dot_dimension_numbers<[1], [0], [0], [1], [0, 0, 1, 1], [], []>} : vector<12x64xbf16>, vector<64x32xbf16>, vector<12x32xf32> -> vector<12x32xf32>
    %596 = vector.extract_strided_slice %587 {offsets = [0, 0], sizes = [1, 32], strides = [1, 1]} : vector<3x32xf32> to vector<1x32xf32>
    %597 = vector.broadcast %596 : vector<1x32xf32> to vector<12x32xf32>
    %598 = arith.addf %595, %597 : vector<12x32xf32>
    %599 = arith.addf %598, %531 : vector<12x32xf32>
    %600 = vector.extract_strided_slice %587 {offsets = [1, 0], sizes = [1, 32], strides = [1, 1]} : vector<3x32xf32> to vector<1x32xf32>
    %601 = vector.extract_strided_slice %587 {offsets = [2, 0], sizes = [1, 32], strides = [1, 1]} : vector<3x32xf32> to vector<1x32xf32>
    %cst_212 = arith.constant dense<0.000000e+00> : vector<12xf32>
    %602 = vector.multi_reduction <add>, %599, %cst_212 [1] : vector<12x32xf32> to vector<12xf32>
    %603 = vector.shape_cast %602 : vector<12xf32> to vector<12x1xf32>
    %cst_213 = arith.constant 3.200000e+01 : f32
    %604 = vector.broadcast %cst_213 : f32 to vector<12x1xf32>
    %605 = arith.divf %603, %604 : vector<12x1xf32>
    %606 = vector.broadcast %605 : vector<12x1xf32> to vector<12x32xf32>
    %607 = arith.subf %599, %606 : vector<12x32xf32>
    %608 = arith.mulf %607, %607 : vector<12x32xf32>
    %cst_214 = arith.constant dense<0.000000e+00> : vector<12xf32>
    %609 = vector.multi_reduction <add>, %608, %cst_214 [1] : vector<12x32xf32> to vector<12xf32>
    %610 = vector.shape_cast %609 : vector<12xf32> to vector<12x1xf32>
    %cst_215 = arith.constant 3.200000e+01 : f32
    %611 = vector.broadcast %cst_215 : f32 to vector<12x1xf32>
    %612 = arith.divf %610, %611 : vector<12x1xf32>
    %613 = vector.broadcast %605 : vector<12x1xf32> to vector<12x32xf32>
    %614 = arith.subf %599, %613 : vector<12x32xf32>
    %cst_216 = arith.constant 9.99999974E-6 : f32
    %615 = vector.broadcast %cst_216 : f32 to vector<12x1xf32>
    %616 = arith.addf %612, %615 : vector<12x1xf32>
    %617 = math.rsqrt %616 : vector<12x1xf32>
    %618 = vector.broadcast %617 : vector<12x1xf32> to vector<12x32xf32>
    %619 = arith.mulf %614, %618 : vector<12x32xf32>
    %620 = vector.broadcast %600 : vector<1x32xf32> to vector<12x32xf32>
    %621 = arith.mulf %619, %620 : vector<12x32xf32>
    %622 = vector.broadcast %601 : vector<1x32xf32> to vector<12x32xf32>
    %623 = arith.addf %621, %622 : vector<12x32xf32>
    %624 = vector.extract_strided_slice %623 {offsets = [0, 0], sizes = [10, 32], strides = [1, 1]} : vector<12x32xf32> to vector<10x32xf32>
    %c0_217 = arith.constant 0 : index
    %c0_218 = arith.constant 0 : index
    %c0_219 = arith.constant 0 : index
    %625 = vector.load %arg18[%c0_217, %c0_218, %c0_219] : memref<1x10x32xf32, #tpu.memory_space<vmem>>, vector<1x10x32xf32>
    %626 = vector.shape_cast %625 : vector<1x10x32xf32> to vector<10x32xf32>
    %627 = vector.shape_cast %624 : vector<10x32xf32> to vector<1x10x32xf32>
    tpu.vector_store %arg18[%c0_217, %c0_218, %c0_219], %627 {strides = array<i32>} : memref<1x10x32xf32, #tpu.memory_space<vmem>>, vector<1x10x32xf32>,
    return
  }
  func.func @transform_0(%arg0: i32) -> (i32, i32, i32) {
    %c0_i32 = arith.constant 0 : i32
    %c0_i32_0 = arith.constant 0 : i32
    %c0_i32_1 = arith.constant 0 : i32
    return %arg0, %c0_i32, %c0_i32_0 : i32, i32, i32
  }
  func.func @transform_1(%arg0: i32) -> (i32, i32, i32) {
    %c0_i32 = arith.constant 0 : i32
    %c0_i32_0 = arith.constant 0 : i32
    %c0_i32_1 = arith.constant 0 : i32
    return %arg0, %c0_i32, %c0_i32_0 : i32, i32, i32
  }
  func.func @transform_2(%arg0: i32) -> (i32, i32, i32) {
    %c0_i32 = arith.constant 0 : i32
    %c0_i32_0 = arith.constant 0 : i32
    %c0_i32_1 = arith.constant 0 : i32
    return %arg0, %c0_i32, %c0_i32_0 : i32, i32, i32
  }
  func.func @transform_3(%arg0: i32) -> (i32, i32, i32) {
    %c0_i32 = arith.constant 0 : i32
    %c0_i32_0 = arith.constant 0 : i32
    %c0_i32_1 = arith.constant 0 : i32
    return %arg0, %c0_i32, %c0_i32_0 : i32, i32, i32
  }
  func.func @transform_4(%arg0: i32) -> (i32, i32, i32) {
    %c0_i32 = arith.constant 0 : i32
    %c0_i32_0 = arith.constant 0 : i32
    %c0_i32_1 = arith.constant 0 : i32
    %c0_i32_2 = arith.constant 0 : i32
    return %c0_i32, %c0_i32_0, %c0_i32_1 : i32, i32, i32
  }
  func.func @transform_5(%arg0: i32) -> (i32, i32, i32) {
    %c0_i32 = arith.constant 0 : i32
    %c0_i32_0 = arith.constant 0 : i32
    %c0_i32_1 = arith.constant 0 : i32
    %c0_i32_2 = arith.constant 0 : i32
    return %c0_i32, %c0_i32_0, %c0_i32_1 : i32, i32, i32
  }
  func.func @transform_6(%arg0: i32) -> (i32, i32, i32, i32) {
    %c0_i32 = arith.constant 0 : i32
    %c0_i32_0 = arith.constant 0 : i32
    %c0_i32_1 = arith.constant 0 : i32
    %c0_i32_2 = arith.constant 0 : i32
    %c0_i32_3 = arith.constant 0 : i32
    return %c0_i32, %c0_i32_0, %c0_i32_1, %c0_i32_2 : i32, i32, i32, i32
  }
  func.func @transform_7(%arg0: i32) -> (i32, i32, i32) {
    %c0_i32 = arith.constant 0 : i32
    %c0_i32_0 = arith.constant 0 : i32
    %c0_i32_1 = arith.constant 0 : i32
    %c0_i32_2 = arith.constant 0 : i32
    return %c0_i32, %c0_i32_0, %c0_i32_1 : i32, i32, i32
  }
  func.func @transform_8(%arg0: i32) -> (i32, i32, i32) {
    %c0_i32 = arith.constant 0 : i32
    %c0_i32_0 = arith.constant 0 : i32
    %c0_i32_1 = arith.constant 0 : i32
    %c0_i32_2 = arith.constant 0 : i32
    return %c0_i32, %c0_i32_0, %c0_i32_1 : i32, i32, i32
  }
  func.func @transform_9(%arg0: i32) -> (i32, i32, i32) {
    %c0_i32 = arith.constant 0 : i32
    %c0_i32_0 = arith.constant 0 : i32
    %c0_i32_1 = arith.constant 0 : i32
    %c0_i32_2 = arith.constant 0 : i32
    return %c0_i32, %c0_i32_0, %c0_i32_1 : i32, i32, i32
  }
  func.func @transform_10(%arg0: i32) -> (i32, i32, i32) {
    %c0_i32 = arith.constant 0 : i32
    %c0_i32_0 = arith.constant 0 : i32
    %c0_i32_1 = arith.constant 0 : i32
    %c0_i32_2 = arith.constant 0 : i32
    return %c0_i32, %c0_i32_0, %c0_i32_1 : i32, i32, i32
  }
  func.func @transform_11(%arg0: i32) -> (i32, i32, i32) {
    %c0_i32 = arith.constant 0 : i32
    %c0_i32_0 = arith.constant 0 : i32
    %c0_i32_1 = arith.constant 0 : i32
    %c0_i32_2 = arith.constant 0 : i32
    return %c0_i32, %c0_i32_0, %c0_i32_1 : i32, i32, i32
  }
  func.func @transform_12(%arg0: i32) -> (i32, i32) {
    %c0_i32 = arith.constant 0 : i32
    %c0_i32_0 = arith.constant 0 : i32
    %c0_i32_1 = arith.constant 0 : i32
    return %c0_i32, %c0_i32_0 : i32, i32
  }
  func.func @transform_13(%arg0: i32) -> (i32, i32) {
    %c0_i32 = arith.constant 0 : i32
    %c0_i32_0 = arith.constant 0 : i32
    %c0_i32_1 = arith.constant 0 : i32
    return %c0_i32, %c0_i32_0 : i32, i32
  }
  func.func @transform_14(%arg0: i32) -> (i32, i32) {
    %c0_i32 = arith.constant 0 : i32
    %c0_i32_0 = arith.constant 0 : i32
    %c0_i32_1 = arith.constant 0 : i32
    return %c0_i32, %c0_i32_0 : i32, i32
  }
  func.func @transform_15(%arg0: i32) -> (i32, i32) {
    %c0_i32 = arith.constant 0 : i32
    %c0_i32_0 = arith.constant 0 : i32
    %c0_i32_1 = arith.constant 0 : i32
    return %c0_i32, %c0_i32_0 : i32, i32
  }
  func.func @transform_16(%arg0: i32) -> (i32, i32, i32) {
    %c0_i32 = arith.constant 0 : i32
    %c0_i32_0 = arith.constant 0 : i32
    %c0_i32_1 = arith.constant 0 : i32
    return %arg0, %c0_i32, %c0_i32_0 : i32, i32, i32
  }
  func.func @transform_17(%arg0: i32) -> (i32, i32, i32) {
    %c0_i32 = arith.constant 0 : i32
    %c0_i32_0 = arith.constant 0 : i32
    %c0_i32_1 = arith.constant 0 : i32
    return %arg0, %c0_i32, %c0_i32_0 : i32, i32, i32
  }
}

</mosaic_0001>

<llo_original>
// kernel: encoder_layer.1
$region0: #{encoder_layer.1}
  #allocation0 [shape = 'u32[]', space=smem, size = 0x4, offset = 0x4, fixed_abs, tag = 'smem constant byte address 0x4 - core index']
  #allocation1 [shape = 'u32[144,128]{1,0:T(1,128)}', space=vmem, size = 0x12000, scoped, tag = 'internal scratch']
  %s0 = inlined_call_operand.vmem [shape: f32[2,16,32], index: 0, kind: input, shape index: {}]
  %s1 = inlined_call_operand.vmem [shape: f32[2,10,32], index: 1, kind: input, shape index: {}]
  %s2 = inlined_call_operand.vmem [shape: f32[2,1,10], index: 2, kind: input, shape index: {}]
  %s3 = inlined_call_operand.vmem [shape: f32[2,1,12], index: 3, kind: input, shape index: {}]
  %s4 = inlined_call_operand.vmem [shape: bf16[6,32,96], index: 4, kind: input, shape index: {}]
  %s5 = inlined_call_operand.vmem [shape: f32[6,1,96], index: 5, kind: input, shape index: {}]
  %s6 = inlined_call_operand.vmem [shape: bf16[6,4,8,32], index: 6, kind: input, shape index: {}]
  %s7 = inlined_call_operand.vmem [shape: f32[6,3,32], index: 7, kind: input, shape index: {}]
  %s8 = inlined_call_operand.vmem [shape: bf16[2,32,64], index: 8, kind: input, shape index: {}]
  %s9 = inlined_call_operand.vmem [shape: bf16[2,64,32], index: 9, kind: input, shape index: {}]
  %s10 = inlined_call_operand.vmem [shape: f32[2,1,64], index: 10, kind: input, shape index: {}]
  %s11 = inlined_call_operand.vmem [shape: f32[2,3,32], index: 11, kind: input, shape index: {}]
  %s12 = inlined_call_operand.vmem [shape: f32[64,2], index: 12, kind: input, shape index: {}]
  %s13 = inlined_call_operand.vmem [shape: bf16[32,32], index: 13, kind: input, shape index: {}]
  %s14 = inlined_call_operand.vmem [shape: f32[4,32], index: 14, kind: input, shape index: {}]
  %s15 = inlined_call_operand.vmem [shape: f32[2,32], index: 15, kind: input, shape index: {}]
  %s16 = inlined_call_operand.hbm [shape: f32[2,16,32], index: 16, kind: output, shape index: {0}]
  %s17 = inlined_call_operand.vmem [shape: f32[2,10,32], index: 17, kind: output, shape index: {1}]
  %18 = xla_tuple %s16, %s17
  %s19 = sld [smem:[#allocation0]]
  $region105: #{encoder_layer.1} parent=0
    _
  %s21 = ssub.s32 1, %s19
  %s22 = scalar_select 0, %s21, %s19
  $region1: #{encoder_layer.1} parent=0
    #allocation2 [shape = 'u8[16384]{0}', space=vmem, size = 0x4000, scoped, tag = 'output window, operand 0']
    #allocation3 [shape = 's32[2]{0}', space=sflag, size = 0x8, scoped, tag = 'scoped memory for encoder_layer.1']
    %23 = vsyncpa [#allocation3], 0
    %s24 = scalar_lea.sflag [#allocation3], 1
    %25 = vsyncpa %s24, 0
    loop: start=0, step=1, limit=4
    $region2: #{encoder_layer.1} parent=1 // loop_pre_header
      _
    $region3: #{encoder_layer.1} parent=1 // loop_header
      %s27 = sphi 0, %s31
      %p28 = scmp.ge.s32.totalorder %s27, 4
      %s37 = sphi 0, %s39
      %s40 = sphi 0, %s37
      %s41 = sphi 0, %s40
      %s57 = sphi 0, %s41
      %s63 = sphi 0, %s65
      %s66 = sphi 0, %s63
      %s67 = sphi 0, %s66
      %s83 = sphi 0, %s67
      %s89 = sphi 0, %s91
      %s92 = sphi 0, %s89
      %s93 = sphi 0, %s92
      %s109 = sphi 0, %s93
      %s115 = sphi 0, %s117
      %s118 = sphi 0, %s115
      %s119 = sphi 0, %s118
      %s135 = sphi 0, %s119
      %s139 = sphi 0, %s139
      %s141 = sphi 0, %s139
      %s142 = sphi 0, %s141
      %s156 = sphi 0, %s142
      %s160 = sphi 0, %s160
      %s162 = sphi 0, %s160
      %s163 = sphi 0, %s162
      %s177 = sphi 0, %s163
      %s181 = sphi 0, %s181
      %s183 = sphi 0, %s181
      %s184 = sphi 0, %s183
      %s198 = sphi 0, %s184
      %s202 = sphi 0, %s202
      %s204 = sphi 0, %s202
      %s205 = sphi 0, %s204
      %s219 = sphi 0, %s205
      %s223 = sphi 0, %s223
      %s225 = sphi 0, %s223
      %s226 = sphi 0, %s225
      %s240 = sphi 0, %s226
      %s244 = sphi 0, %s244
      %s246 = sphi 0, %s244
      %s247 = sphi 0, %s246
      %s261 = sphi 0, %s247
      %s265 = sphi 0, %s265
      %s267 = sphi 0, %s265
      %s268 = sphi 0, %s267
      %s282 = sphi 0, %s268
      %s286 = sphi 0, %s286
      %s288 = sphi 0, %s286
      %s289 = sphi 0, %s288
      %s303 = sphi 0, %s289
      %s307 = sphi 0, %s307
      %s309 = sphi 0, %s307
      %s310 = sphi 0, %s309
      %s324 = sphi 0, %s310
      %s328 = sphi 0, %s328
      %s330 = sphi 0, %s328
      %s331 = sphi 0, %s330
      %s345 = sphi 0, %s331
      %s349 = sphi 0, %s349
      %s351 = sphi 0, %s349
      %s352 = sphi 0, %s351
      %s366 = sphi 0, %s352
      %s370 = sphi 0, %s370
      %s372 = sphi 0, %s370
      %s373 = sphi 0, %s372
      %s387 = sphi 0, %s373
      %s393 = sphi 0, %s395
      %s396 = sphi 0, %s393
      %s397 = sphi 0, %s396
      %s413 = sphi 0, %s397
      %s419 = sphi 0, %s421
      %s422 = sphi 0, %s419
      %s423 = sphi 0, %s422
      %s439 = sphi 0, %s423
    $region4: #{encoder_layer.1} parent=1 // loop_header_branch
      %30 = sbr.rel (%p28) target = $region8
    $region5: #{encoder_layer.1} parent=1 // loop_body
      %s32 = ssub.s32 %s27, 1
      %s33 = ssub.s32 %s27, 2
      %s34 = sadd.s32 %s27, 1
      %s35 = ssub.s32 %s27, %s34
      %p36 = scmp.eq.s32.totalorder %s35, 0
      %s38 = sadd.s32 %s37, 1
      %s39 = scalar_select %p36, %s37, %s38
      %p42 = pneg %p36
      %p43 = scmp.eq.s32.totalorder %s27, 1
      %p44 = por %p42, %p43
      %p45 = scmp.ne.s32.totalorder %s37, %s40
      %p46 = scmp.eq.s32.totalorder %s27, 0
      %p47 = por %p45, %p46
      %p48 = scmp.ne.s32.totalorder %s37, %s40
      %p49 = scmp.eq.s32.totalorder %s32, 1
      %p50 = por %p48, %p49
      %p51 = scmp.ne.s32.totalorder %s40, %s41
      %p52 = scmp.eq.s32.totalorder %s32, 0
      %p53 = por %p51, %p52
      %p54 = scmp.ne.s32.totalorder %s40, %s41
      %p55 = scmp.eq.s32.totalorder %s33, 1
      %p56 = por %p54, %p55
      %p58 = scmp.ne.s32.totalorder %s41, %s57
      %p59 = scmp.eq.s32.totalorder %s33, 0
      %p60 = por %p58, %p59
      %s61 = ssub.s32 %s27, %s34
      %p62 = scmp.eq.s32.totalorder %s61, 0
      %s64 = sadd.s32 %s63, 1
      %s65 = scalar_select %p62, %s63, %s64
      %p68 = pneg %p62
      %p69 = scmp.eq.s32.totalorder %s27, 1
      %p70 = por %p68, %p69
      %p71 = scmp.ne.s32.totalorder %s63, %s66
      %p72 = scmp.eq.s32.totalorder %s27, 0
      %p73 = por %p71, %p72
      %p74 = scmp.ne.s32.totalorder %s63, %s66
      %p75 = scmp.eq.s32.totalorder %s32, 1
      %p76 = por %p74, %p75
      %p77 = scmp.ne.s32.totalorder %s66, %s67
      %p78 = scmp.eq.s32.totalorder %s32, 0
      %p79 = por %p77, %p78
      %p80 = scmp.ne.s32.totalorder %s66, %s67
      %p81 = scmp.eq.s32.totalorder %s33, 1
      %p82 = por %p80, %p81
      %p84 = scmp.ne.s32.totalorder %s67, %s83
      %p85 = scmp.eq.s32.totalorder %s33, 0
      %p86 = por %p84, %p85
      %s87 = ssub.s32 %s27, %s34
      %p88 = scmp.eq.s32.totalorder %s87, 0
      %s90 = sadd.s32 %s89, 1
      %s91 = scalar_select %p88, %s89, %s90
      %p94 = pneg %p88
      %p95 = scmp.eq.s32.totalorder %s27, 1
      %p96 = por %p94, %p95
      %p97 = scmp.ne.s32.totalorder %s89, %s92
      %p98 = scmp.eq.s32.totalorder %s27, 0
      %p99 = por %p97, %p98
      %p100 = scmp.ne.s32.totalorder %s89, %s92
      %p101 = scmp.eq.s32.totalorder %s32, 1
      %p102 = por %p100, %p101
      %p103 = scmp.ne.s32.totalorder %s92, %s93
      %p104 = scmp.eq.s32.totalorder %s32, 0
      %p105 = por %p103, %p104
      %p106 = scmp.ne.s32.totalorder %s92, %s93
      %p107 = scmp.eq.s32.totalorder %s33, 1
      %p108 = por %p106, %p107
      %p110 = scmp.ne.s32.totalorder %s93, %s109
      %p111 = scmp.eq.s32.totalorder %s33, 0
      %p112 = por %p110, %p111
      %s113 = ssub.s32 %s27, %s34
      %p114 = scmp.eq.s32.totalorder %s113, 0
      %s116 = sadd.s32 %s115, 1
      %s117 = scalar_select %p114, %s115, %s116
      %p120 = pneg %p114
      %p121 = scmp.eq.s32.totalorder %s27, 1
      %p122 = por %p120, %p121
      %p123 = scmp.ne.s32.totalorder %s115, %s118
      %p124 = scmp.eq.s32.totalorder %s27, 0
      %p125 = por %p123, %p124
      %p126 = scmp.ne.s32.totalorder %s115, %s118
      %p127 = scmp.eq.s32.totalorder %s32, 1
      %p128 = por %p126, %p127
      %p129 = scmp.ne.s32.totalorder %s118, %s119
      %p130 = scmp.eq.s32.totalorder %s32, 0
      %p131 = por %p129, %p130
      %p132 = scmp.ne.s32.totalorder %s118, %s119
      %p133 = scmp.eq.s32.totalorder %s33, 1
      %p134 = por %p132, %p133
      %p136 = scmp.ne.s32.totalorder %s119, %s135
      %p137 = scmp.eq.s32.totalorder %s33, 0
      %p138 = por %p136, %p137
      %s140 = sadd.s32 %s139, 1
      %p143 = scmp.eq.s32.totalorder %s27, 1
      %p144 = scmp.ne.s32.totalorder %s139, %s141
      %p145 = scmp.eq.s32.totalorder %s27, 0
      %p146 = por %p144, %p145
      %p147 = scmp.ne.s32.totalorder %s139, %s141
      %p148 = scmp.eq.s32.totalorder %s32, 1
      %p149 = por %p147, %p148
      %p150 = scmp.ne.s32.totalorder %s141, %s142
      %p151 = scmp.eq.s32.totalorder %s32, 0
      %p152 = por %p150, %p151
      %p153 = scmp.ne.s32.totalorder %s141, %s142
      %p154 = scmp.eq.s32.totalorder %s33, 1
      %p155 = por %p153, %p154
      %p157 = scmp.ne.s32.totalorder %s142, %s156
      %p158 = scmp.eq.s32.totalorder %s33, 0
      %p159 = por %p157, %p158
      %s161 = sadd.s32 %s160, 1
      %p164 = scmp.eq.s32.totalorder %s27, 1
      %p165 = scmp.ne.s32.totalorder %s160, %s162
      %p166 = scmp.eq.s32.totalorder %s27, 0
      %p167 = por %p165, %p166
      %p168 = scmp.ne.s32.totalorder %s160, %s162
      %p169 = scmp.eq.s32.totalorder %s32, 1
      %p170 = por %p168, %p169
      %p171 = scmp.ne.s32.totalorder %s162, %s163
      %p172 = scmp.eq.s32.totalorder %s32, 0
      %p173 = por %p171, %p172
      %p174 = scmp.ne.s32.totalorder %s162, %s163
      %p175 = scmp.eq.s32.totalorder %s33, 1
      %p176 = por %p174, %p175
      %p178 = scmp.ne.s32.totalorder %s163, %s177
      %p179 = scmp.eq.s32.totalorder %s33, 0
      %p180 = por %p178, %p179
      %s182 = sadd.s32 %s181, 1
      %p185 = scmp.eq.s32.totalorder %s27, 1
      %p186 = scmp.ne.s32.totalorder %s181, %s183
      %p187 = scmp.eq.s32.totalorder %s27, 0
      %p188 = por %p186, %p187
      %p189 = scmp.ne.s32.totalorder %s181, %s183
      %p190 = scmp.eq.s32.totalorder %s32, 1
      %p191 = por %p189, %p190
      %p192 = scmp.ne.s32.totalorder %s183, %s184
      %p193 = scmp.eq.s32.totalorder %s32, 0
      %p194 = por %p192, %p193
      %p195 = scmp.ne.s32.totalorder %s183, %s184
      %p196 = scmp.eq.s32.totalorder %s33, 1
      %p197 = por %p195, %p196
      %p199 = scmp.ne.s32.totalorder %s184, %s198
      %p200 = scmp.eq.s32.totalorder %s33, 0
      %p201 = por %p199, %p200
      %s203 = sadd.s32 %s202, 1
      %p206 = scmp.eq.s32.totalorder %s27, 1
      %p207 = scmp.ne.s32.totalorder %s202, %s204
      %p208 = scmp.eq.s32.totalorder %s27, 0
      %p209 = por %p207, %p208
      %p210 = scmp.ne.s32.totalorder %s202, %s204
      %p211 = scmp.eq.s32.totalorder %s32, 1
      %p212 = por %p210, %p211
      %p213 = scmp.ne.s32.totalorder %s204, %s205
      %p214 = scmp.eq.s32.totalorder %s32, 0
      %p215 = por %p213, %p214
      %p216 = scmp.ne.s32.totalorder %s204, %s205
      %p217 = scmp.eq.s32.totalorder %s33, 1
      %p218 = por %p216, %p217
      %p220 = scmp.ne.s32.totalorder %s205, %s219
      %p221 = scmp.eq.s32.totalorder %s33, 0
      %p222 = por %p220, %p221
      %s224 = sadd.s32 %s223, 1
      %p227 = scmp.eq.s32.totalorder %s27, 1
      %p228 = scmp.ne.s32.totalorder %s223, %s225
      %p229 = scmp.eq.s32.totalorder %s27, 0
      %p230 = por %p228, %p229
      %p231 = scmp.ne.s32.totalorder %s223, %s225
      %p232 = scmp.eq.s32.totalorder %s32, 1
      %p233 = por %p231, %p232
      %p234 = scmp.ne.s32.totalorder %s225, %s226
      %p235 = scmp.eq.s32.totalorder %s32, 0
      %p236 = por %p234, %p235
      %p237 = scmp.ne.s32.totalorder %s225, %s226
      %p238 = scmp.eq.s32.totalorder %s33, 1
      %p239 = por %p237, %p238
      %p241 = scmp.ne.s32.totalorder %s226, %s240
      %p242 = scmp.eq.s32.totalorder %s33, 0
      %p243 = por %p241, %p242
      %s245 = sadd.s32 %s244, 1
      %p248 = scmp.eq.s32.totalorder %s27, 1
      %p249 = scmp.ne.s32.totalorder %s244, %s246
      %p250 = scmp.eq.s32.totalorder %s27, 0
      %p251 = por %p249, %p250
      %p252 = scmp.ne.s32.totalorder %s244, %s246
      %p253 = scmp.eq.s32.totalorder %s32, 1
      %p254 = por %p252, %p253
      %p255 = scmp.ne.s32.totalorder %s246, %s247
      %p256 = scmp.eq.s32.totalorder %s32, 0
      %p257 = por %p255, %p256
      %p258 = scmp.ne.s32.totalorder %s246, %s247
      %p259 = scmp.eq.s32.totalorder %s33, 1
      %p260 = por %p258, %p259
      %p262 = scmp.ne.s32.totalorder %s247, %s261
      %p263 = scmp.eq.s32.totalorder %s33, 0
      %p264 = por %p262, %p263
      %s266 = sadd.s32 %s265, 1
      %p269 = scmp.eq.s32.totalorder %s27, 1
      %p270 = scmp.ne.s32.totalorder %s265, %s267
      %p271 = scmp.eq.s32.totalorder %s27, 0
      %p272 = por %p270, %p271
      %p273 = scmp.ne.s32.totalorder %s265, %s267
      %p274 = scmp.eq.s32.totalorder %s32, 1
      %p275 = por %p273, %p274
      %p276 = scmp.ne.s32.totalorder %s267, %s268
      %p277 = scmp.eq.s32.totalorder %s32, 0
      %p278 = por %p276, %p277
      %p279 = scmp.ne.s32.totalorder %s267, %s268
      %p280 = scmp.eq.s32.totalorder %s33, 1
      %p281 = por %p279, %p280
      %p283 = scmp.ne.s32.totalorder %s268, %s282
      %p284 = scmp.eq.s32.totalorder %s33, 0
      %p285 = por %p283, %p284
      %s287 = sadd.s32 %s286, 1
      %p290 = scmp.eq.s32.totalorder %s27, 1
      %p291 = scmp.ne.s32.totalorder %s286, %s288
      %p292 = scmp.eq.s32.totalorder %s27, 0
      %p293 = por %p291, %p292
      %p294 = scmp.ne.s32.totalorder %s286, %s288
      %p295 = scmp.eq.s32.totalorder %s32, 1
      %p296 = por %p294, %p295
      %p297 = scmp.ne.s32.totalorder %s288, %s289
      %p298 = scmp.eq.s32.totalorder %s32, 0
      %p299 = por %p297, %p298
      %p300 = scmp.ne.s32.totalorder %s288, %s289
      %p301 = scmp.eq.s32.totalorder %s33, 1
      %p302 = por %p300, %p301
      %p304 = scmp.ne.s32.totalorder %s289, %s303
      %p305 = scmp.eq.s32.totalorder %s33, 0
      %p306 = por %p304, %p305
      %s308 = sadd.s32 %s307, 1
      %p311 = scmp.eq.s32.totalorder %s27, 1
      %p312 = scmp.ne.s32.totalorder %s307, %s309
      %p313 = scmp.eq.s32.totalorder %s27, 0
      %p314 = por %p312, %p313
      %p315 = scmp.ne.s32.totalorder %s307, %s309
      %p316 = scmp.eq.s32.totalorder %s32, 1
      %p317 = por %p315, %p316
      %p318 = scmp.ne.s32.totalorder %s309, %s310
      %p319 = scmp.eq.s32.totalorder %s32, 0
      %p320 = por %p318, %p319
      %p321 = scmp.ne.s32.totalorder %s309, %s310
      %p322 = scmp.eq.s32.totalorder %s33, 1
      %p323 = por %p321, %p322
      %p325 = scmp.ne.s32.totalorder %s310, %s324
      %p326 = scmp.eq.s32.totalorder %s33, 0
      %p327 = por %p325, %p326
      %s329 = sadd.s32 %s328, 1
      %p332 = scmp.eq.s32.totalorder %s27, 1
      %p333 = scmp.ne.s32.totalorder %s328, %s330
      %p334 = scmp.eq.s32.totalorder %s27, 0
      %p335 = por %p333, %p334
      %p336 = scmp.ne.s32.totalorder %s328, %s330
      %p337 = scmp.eq.s32.totalorder %s32, 1
      %p338 = por %p336, %p337
      %p339 = scmp.ne.s32.totalorder %s330, %s331
      %p340 = scmp.eq.s32.totalorder %s32, 0
      %p341 = por %p339, %p340
      %p342 = scmp.ne.s32.totalorder %s330, %s331
      %p343 = scmp.eq.s32.totalorder %s33, 1
      %p344 = por %p342, %p343
      %p346 = scmp.ne.s32.totalorder %s331, %s345
      %p347 = scmp.eq.s32.totalorder %s33, 0
      %p348 = por %p346, %p347
      %s350 = sadd.s32 %s349, 1
      %p353 = scmp.eq.s32.totalorder %s27, 1
      %p354 = scmp.ne.s32.totalorder %s349, %s351
      %p355 = scmp.eq.s32.totalorder %s27, 0
      %p356 = por %p354, %p355
      %p357 = scmp.ne.s32.totalorder %s349, %s351
      %p358 = scmp.eq.s32.totalorder %s32, 1
      %p359 = por %p357, %p358
      %p360 = scmp.ne.s32.totalorder %s351, %s352
      %p361 = scmp.eq.s32.totalorder %s32, 0
      %p362 = por %p360, %p361
      %p363 = scmp.ne.s32.totalorder %s351, %s352
      %p364 = scmp.eq.s32.totalorder %s33, 1
      %p365 = por %p363, %p364
      %p367 = scmp.ne.s32.totalorder %s352, %s366
      %p368 = scmp.eq.s32.totalorder %s33, 0
      %p369 = por %p367, %p368
      %s371 = sadd.s32 %s370, 1
      %p374 = scmp.eq.s32.totalorder %s27, 1
      %p375 = scmp.ne.s32.totalorder %s370, %s372
      %p376 = scmp.eq.s32.totalorder %s27, 0
      %p377 = por %p375, %p376
      %p378 = scmp.ne.s32.totalorder %s370, %s372
      %p379 = scmp.eq.s32.totalorder %s32, 1
      %p380 = por %p378, %p379
      %p381 = scmp.ne.s32.totalorder %s372, %s373
      %p382 = scmp.eq.s32.totalorder %s32, 0
      %p383 = por %p381, %p382
      %p384 = scmp.ne.s32.totalorder %s372, %s373
      %p385 = scmp.eq.s32.totalorder %s33, 1
      %p386 = por %p384, %p385
      %p388 = scmp.ne.s32.totalorder %s373, %s387
      %p389 = scmp.eq.s32.totalorder %s33, 0
      %p390 = por %p388, %p389
      %s391 = ssub.s32 %s27, %s34
      %p392 = scmp.eq.s32.totalorder %s391, 0
      %s394 = sadd.s32 %s393, 1
      %s395 = scalar_select %p392, %s393, %s394
      %p398 = pneg %p392
      %p399 = scmp.eq.s32.totalorder %s27, 1
      %p400 = por %p398, %p399
      %p401 = scmp.ne.s32.totalorder %s393, %s396
      %p402 = scmp.eq.s32.totalorder %s27, 0
      %p403 = por %p401, %p402
      %p404 = scmp.ne.s32.totalorder %s393, %s396
      %p405 = scmp.eq.s32.totalorder %s32, 1
      %p406 = por %p404, %p405
      %p407 = scmp.ne.s32.totalorder %s396, %s397
      %p408 = scmp.eq.s32.totalorder %s32, 0
      %p409 = por %p407, %p408
      %p410 = scmp.ne.s32.totalorder %s396, %s397
      %p411 = scmp.eq.s32.totalorder %s33, 1
      %p412 = por %p410, %p411
      %p414 = scmp.ne.s32.totalorder %s397, %s413
      %p415 = scmp.eq.s32.totalorder %s33, 0
      %p416 = por %p414, %p415
      %s417 = ssub.s32 %s27, %s34
      %p418 = scmp.eq.s32.totalorder %s417, 0
      %s420 = sadd.s32 %s419, 1
      %s421 = scalar_select %p418, %s419, %s420
      %p424 = pneg %p418
      %p425 = scmp.eq.s32.totalorder %s27, 1
      %p426 = por %p424, %p425
      %p427 = scmp.ne.s32.totalorder %s419, %s422
      %p428 = scmp.eq.s32.totalorder %s27, 0
      %p429 = por %p427, %p428
      %p430 = scmp.ne.s32.totalorder %s419, %s422
      %p431 = scmp.eq.s32.totalorder %s32, 1
      %p432 = por %p430, %p431
      %p433 = scmp.ne.s32.totalorder %s422, %s423
      %p434 = scmp.eq.s32.totalorder %s32, 0
      %p435 = por %p433, %p434
      %p436 = scmp.ne.s32.totalorder %s422, %s423
      %p437 = scmp.eq.s32.totalorder %s33, 1
      %p438 = por %p436, %p437
      %p440 = scmp.ne.s32.totalorder %s423, %s439
      %p441 = scmp.eq.s32.totalorder %s33, 0
      %p442 = por %p440, %p441
      %p443 = scmp.le.s32.totalorder 1, %s27
      %p444 = scmp.lt.s32.totalorder %s27, 3
      %p445 = pnand %p443, %p444
      %p446 = pneg %p445
      // Predicated region
      $region9: #{encoder_layer.1} parent=5 // pred_check
        _
      $region10: #{encoder_layer.1} parent=5 // pred_check_branch
        %448 = sbr.rel (%p445) target = $region12
      $region11: #{encoder_layer.1} parent=5 // pred_region
        %s449 = ssub.s32 %s27, 1
        // Predicated region
        $region13: #{encoder_layer.1} parent=11 // pred_check
          %p450 = pneg %p152
        $region14: #{encoder_layer.1} parent=11 // pred_check_branch
          %452 = sbr.rel (%p450) target = $region16
        $region15: #{encoder_layer.1} parent=11 // pred_region
          _
        $region16: #{encoder_layer.1} parent=11 // pred_fallthru
          _
        // Predicated region
        $region17: #{encoder_layer.1} parent=11 // pred_check
          %p453 = pneg %p173
        $region18: #{encoder_layer.1} parent=11 // pred_check_branch
          %455 = sbr.rel (%p453) target = $region20
        $region19: #{encoder_layer.1} parent=11 // pred_region
          _
        $region20: #{encoder_layer.1} parent=11 // pred_fallthru
          _
        // Predicated region
        $region21: #{encoder_layer.1} parent=11 // pred_check
          %p456 = pneg %p194
        $region22: #{encoder_layer.1} parent=11 // pred_check_branch
          %458 = sbr.rel (%p456) target = $region24
        $region23: #{encoder_layer.1} parent=11 // pred_region
          _
        $region24: #{encoder_layer.1} parent=11 // pred_fallthru
          _
        // Predicated region
        $region25: #{encoder_layer.1} parent=11 // pred_check
          %p459 = pneg %p215
        $region26: #{encoder_layer.1} parent=11 // pred_check_branch
          %461 = sbr.rel (%p459) target = $region28
        $region27: #{encoder_layer.1} parent=11 // pred_region
          _
        $region28: #{encoder_layer.1} parent=11 // pred_fallthru
          _
        // Predicated region
        $region29: #{encoder_layer.1} parent=11 // pred_check
          %p462 = pneg %p236
        $region30: #{encoder_layer.1} parent=11 // pred_check_branch
          %464 = sbr.rel (%p462) target = $region32
        $region31: #{encoder_layer.1} parent=11 // pred_region
          _
        $region32: #{encoder_layer.1} parent=11 // pred_fallthru
          _
        // Predicated region
        $region33: #{encoder_layer.1} parent=11 // pred_check
          %p465 = pneg %p257
        $region34: #{encoder_layer.1} parent=11 // pred_check_branch
          %467 = sbr.rel (%p465) target = $region36
        $region35: #{encoder_layer.1} parent=11 // pred_region
          _
        $region36: #{encoder_layer.1} parent=11 // pred_fallthru
          _
        // Predicated region
        $region37: #{encoder_layer.1} parent=11 // pred_check
          %p468 = pneg %p278
        $region38: #{encoder_layer.1} parent=11 // pred_check_branch
          %470 = sbr.rel (%p468) target = $region40
        $region39: #{encoder_layer.1} parent=11 // pred_region
          _
        $region40: #{encoder_layer.1} parent=11 // pred_fallthru
          _
        // Predicated region
        $region41: #{encoder_layer.1} parent=11 // pred_check
          %p471 = pneg %p299
        $region42: #{encoder_layer.1} parent=11 // pred_check_branch
          %473 = sbr.rel (%p471) target = $region44
        $region43: #{encoder_layer.1} parent=11 // pred_region
          _
        $region44: #{encoder_layer.1} parent=11 // pred_fallthru
          _
        // Predicated region
        $region45: #{encoder_layer.1} parent=11 // pred_check
          %p474 = pneg %p320
        $region46: #{encoder_layer.1} parent=11 // pred_check_branch
          %476 = sbr.rel (%p474) target = $region48
        $region47: #{encoder_layer.1} parent=11 // pred_region
          _
        $region48: #{encoder_layer.1} parent=11 // pred_fallthru
          _
        // Predicated region
        $region49: #{encoder_layer.1} parent=11 // pred_check
          %p477 = pneg %p341
        $region50: #{encoder_layer.1} parent=11 // pred_check_branch
          %479 = sbr.rel (%p477) target = $region52
        $region51: #{encoder_layer.1} parent=11 // pred_region
          _
        $region52: #{encoder_layer.1} parent=11 // pred_fallthru
          _
        // Predicated region
        $region53: #{encoder_layer.1} parent=11 // pred_check
          %p480 = pneg %p362
        $region54: #{encoder_layer.1} parent=11 // pred_check_branch
          %482 = sbr.rel (%p480) target = $region56
        $region55: #{encoder_layer.1} parent=11 // pred_region
          _
        $region56: #{encoder_layer.1} parent=11 // pred_fallthru
          _
        // Predicated region
        $region57: #{encoder_layer.1} parent=11 // pred_check
          %p483 = pneg %p383
        $region58: #{encoder_layer.1} parent=11 // pred_check_branch
          %485 = sbr.rel (%p483) target = $region60
        $region59: #{encoder_layer.1} parent=11 // pred_region
          _
        $region60: #{encoder_layer.1} parent=11 // pred_fallthru
          _
      $region12: #{encoder_layer.1} parent=5 // pred_fallthru
        _
      %p486 = scmp.lt.s32.totalorder %s27, 2
      // Predicated region
      $region61: #{encoder_layer.1} parent=5 // pred_check
        %p487 = pneg %p486
      $region62: #{encoder_layer.1} parent=5 // pred_check_branch
        %489 = sbr.rel (%p487) target = $region64
      $region63: #{encoder_layer.1} parent=5 // pred_region
        // Predicated region
        $region65: #{encoder_layer.1} parent=63 // pred_check
          %p490 = pneg %p47
        $region66: #{encoder_layer.1} parent=63 // pred_check_branch
          %492 = sbr.rel (%p490) target = $region68
        $region67: #{encoder_layer.1} parent=63 // pred_region
          %p493 = scmp.lt.s32.totalorder %s27, 1
          %s494 = scalar_select %p493, %s27, 1
          %s495 = smul.addr %s494, 2
          %s496 = smul.addr %s495, 8
          %s497 = scalar_lea.vmem %s0, %s496
        $region68: #{encoder_layer.1} parent=63 // pred_fallthru
          _
        // Predicated region
        $region69: #{encoder_layer.1} parent=63 // pred_check
          %p498 = pneg %p73
        $region70: #{encoder_layer.1} parent=63 // pred_check_branch
          %500 = sbr.rel (%p498) target = $region72
        $region71: #{encoder_layer.1} parent=63 // pred_region
          %p501 = scmp.lt.s32.totalorder %s27, 1
          %s502 = scalar_select %p501, %s27, 1
          %s503 = smul.addr %s502, 2
          %s504 = smul.addr %s503, 8
          %s505 = scalar_lea.vmem %s1, %s504
        $region72: #{encoder_layer.1} parent=63 // pred_fallthru
          _
        // Predicated region
        $region73: #{encoder_layer.1} parent=63 // pred_check
          %p506 = pneg %p99
        $region74: #{encoder_layer.1} parent=63 // pred_check_branch
          %508 = sbr.rel (%p506) target = $region76
        $region75: #{encoder_layer.1} parent=63 // pred_region
          %p509 = scmp.lt.s32.totalorder %s27, 1
          %s510 = scalar_select %p509, %s27, 1
          %s511 = scalar_lea.vmem %s2, %s510
        $region76: #{encoder_layer.1} parent=63 // pred_fallthru
          _
        // Predicated region
        $region77: #{encoder_layer.1} parent=63 // pred_check
          %p512 = pneg %p125
        $region78: #{encoder_layer.1} parent=63 // pred_check_branch
          %514 = sbr.rel (%p512) target = $region80
        $region79: #{encoder_layer.1} parent=63 // pred_region
          %p515 = scmp.lt.s32.totalorder %s27, 1
          %s516 = scalar_select %p515, %s27, 1
          %s517 = scalar_lea.vmem %s3, %s516
        $region80: #{encoder_layer.1} parent=63 // pred_fallthru
          _
      $region64: #{encoder_layer.1} parent=5 // pred_fallthru
        _
      %p518 = scmp.le.s32.totalorder 1, %s27
      %p519 = scmp.lt.s32.totalorder %s27, 3
      %p520 = pnand %p518, %p519
      %p521 = pneg %p520
      // Predicated region
      $region81: #{encoder_layer.1} parent=5 // pred_check
        _
      $region82: #{encoder_layer.1} parent=5 // pred_check_branch
        %523 = sbr.rel (%p520) target = $region84
      $region83: #{encoder_layer.1} parent=5 // pred_region
        %s524 = ssub.s32 %s27, 1
        %p525 = scmp.lt.s32.totalorder %s32, 1
        %s526 = scalar_select %p525, %s32, 1
        %s527 = smul.addr %s526, 2
        %s528 = smul.addr %s527, 8
        %s529 = scalar_lea.vmem %s0, %s528
        %p530 = pneg %p53
        %p531 = pneg %p50
        %p532 = scmp.lt.s32.totalorder %s32, 1
        %s533 = scalar_select %p532, %s32, 1
        %s534 = smul.addr %s533, 2
        %s535 = smul.addr %s534, 8
        %s536 = scalar_lea.vmem %s1, %s535
        %p537 = pneg %p79
        %p538 = pneg %p76
        %p539 = scmp.lt.s32.totalorder %s32, 1
        %s540 = scalar_select %p539, %s32, 1
        %s541 = scalar_lea.vmem %s2, %s540
        %p542 = pneg %p105
        %p543 = pneg %p102
        %p544 = scmp.lt.s32.totalorder %s32, 1
        %s545 = scalar_select %p544, %s32, 1
        %s546 = scalar_lea.vmem %s3, %s545
        %p547 = pneg %p131
        %p548 = pneg %p128
        %p549 = pneg %p152
        %p550 = pneg %p149
        %p551 = pneg %p173
        %p552 = pneg %p170
        %p553 = pneg %p194
        %p554 = pneg %p191
        %p555 = pneg %p215
        %p556 = pneg %p212
        %p557 = pneg %p236
        %p558 = pneg %p233
        %p559 = pneg %p257
        %p560 = pneg %p254
        %p561 = pneg %p278
        %p562 = pneg %p275
        %p563 = pneg %p299
        %p564 = pneg %p296
        %p565 = pneg %p320
        %p566 = pneg %p317
        %p567 = pneg %p341
        %p568 = pneg %p338
        %p569 = pneg %p362
        %p570 = pneg %p359
        %p571 = pneg %p383
        %p572 = pneg %p380
        %p573 = pneg %p409
        %p574 = pneg %p406
        %s575 = sand.u32 %s396, 1
        %s576 = scalar_lea.sflag [#allocation3], %s575
        %s577 = sand.u32 %s396, 1
        %s578 = smul.addr %s577, 16
        %s579 = scalar_lea.vmem [#allocation2], %s578
        %p580 = pneg %p435
        %p581 = pneg %p432
        %p582 = scmp.lt.s32.totalorder %s32, 1
        %s583 = scalar_select %p582, %s32, 1
        %s584 = smul.addr %s583, 2
        %s585 = smul.addr %s584, 8
        %s586 = scalar_lea.vmem %s17, %s585
        %p587 = scmp.lt.s32.totalorder %s32, 1
        %s588 = scalar_select %p587, %s32, 1
        %s589 = smul.addr %s588, 2
        %s590 = smul.addr %s589, 8
        %s591 = scalar_lea.vmem %s0, %s590
        %p592 = scmp.lt.s32.totalorder %s32, 1
        %s593 = scalar_select %p592, %s32, 1
        %s594 = smul.addr %s593, 2
        %s595 = smul.addr %s594, 8
        %s596 = scalar_lea.vmem %s1, %s595
        %p597 = scmp.lt.s32.totalorder %s32, 1
        %s598 = scalar_select %p597, %s32, 1
        %s599 = scalar_lea.vmem %s2, %s598
        %p600 = scmp.lt.s32.totalorder %s32, 1
        %s601 = scalar_select %p600, %s32, 1
        %s602 = scalar_lea.vmem %s3, %s601
        %p603 = scmp.lt.s32.totalorder %s32, 1
        %s604 = scalar_select %p603, %s32, 1
        %s605 = smul.addr %s604, 2
        %s606 = smul.addr %s605, 8
        %s607 = scalar_lea.vmem %s17, %s606
        %v609 = vld [vmem:[%s591] sm:$0xff]
        %v610 = vld [vmem:[%s591 + $0x8] sm:$0xff]
        %v611 = vld [vmem:[%s596] sm:$0xff]
        %v612 = vld [vmem:[%s596 + $0x8] sm:$0x3]
        %v613 = vld [vmem:[%s599] sm:$0x1]
        %v614 = vld [vmem:[%s602] sm:$0x1]
        %v615 = vld [vmem:[%s15] sm:$0x1]
        %v616 = vld [vmem:[%s15 + $0x1] sm:$0x1]
        %v617 = vld [vmem:[%s4] sm:$0xf]
        %v618 = vld [vmem:[%s4 + $0x4] sm:$0xf]
        %v619 = vld [vmem:[%s4 + $0x8] sm:$0xf]
        %v620 = vld [vmem:[%s4 + $0xc] sm:$0xf]
        %v621 = vld [vmem:[%s5] sm:$0x1]
        %v622 = vld [vmem:[%s6] sm:$0xf]
        %v623 = vld [vmem:[%s6 + $0x4] sm:$0xf]
        %v624 = vld [vmem:[%s6 + $0x8] sm:$0xf]
        %v625 = vld [vmem:[%s6 + $0xc] sm:$0xf]
        %v626 = vld [vmem:[%s7] sm:$0x7]
        %v627 = vpack.c.bf16 %v615, %v615
        %v632 = vunpack.c.l.b16 %v617
        %v633 = vunpack.c.l.b16 %v618
        %v634 = vunpack.c.l.b16 %v619
        %v635 = vunpack.c.l.b16 %v620
        %v636 = vpack.c.b16 %v633, %v632
        %v637 = vpack.c.b16 %v635, %v634
        %vm640 = vcmask 261120
        %v642 = vsel %vm640, %v627, 0
        %644 = vmatprep.subr.bf16.mxu0 0
        %645 = vmatpush1.bf16.msra.mxu0 %v636
        %646 = vmatprep.subr.bf16.mxu0 0
        %647 = vmatpush1.bf16.msra.mxu0 %v637
        %648 = vmatprep.subr.bf16.mxu0 0
        %649 = vmatpush1.bf16.msra.mxu0 0
        %650 = vmatprep.subr.bf16.mxu0 0
        %651 = vmatpush1.bf16.msra.mxu0 0
        %652 = vmatprep.subr.bf16.mxu0 0
        %653 = vmatpush1.bf16.msra.mxu0 0
        %654 = vmatprep.subr.bf16.mxu0 0
        %655 = vmatpush1.bf16.msra.mxu0 0
        %656 = vmatprep.subr.bf16.mxu0 0
        %657 = vmatpush1.bf16.msra.mxu0 0
        %658 = vmatprep.subr.bf16.mxu0 0
        %659 = vmatpush1.bf16.msra.mxu0 0
        %660 = vmatprep.subr.bf16.mxu0 0
        %661 = vmatpush1.bf16.msra.mxu0 0
        %662 = vmatprep.subr.bf16.mxu0 0
        %663 = vmatpush1.bf16.msra.mxu0 0
        %664 = vmatprep.subr.bf16.mxu0 0
        %665 = vmatpush1.bf16.msra.mxu0 0
        %666 = vmatprep.subr.bf16.mxu0 0
        %667 = vmatpush1.bf16.msra.mxu0 0
        %668 = vmatprep.subr.bf16.mxu0 0
        %669 = vmatpush1.bf16.msra.mxu0 0
        %670 = vmatprep.subr.bf16.mxu0 0
        %671 = vmatpush1.bf16.msra.mxu0 0
        %672 = vmatprep.subr.bf16.mxu0 0
        %673 = vmatpush1.bf16.msra.mxu0 0
        %674 = vmatprep.subr.bf16.mxu0 0
        %675 = vmatpush1.bf16.msra.mxu0 0
        %676 = vmatprep.mubr.bf16.mxu0 0
        %677 = vmatmul.mubr.bf16.gmra.mrb[0].mxu0 %v642
        %v678 = vpop.f32.mrb[0].mxu0
        %v679 = vadd.f32 %v621, %v678
        %v680 = vpop.f32.mrb[0].mxu0
        %v681 = vpop.f32.mrb[0].mxu0
        %v682 = vpop.f32.mrb[0].mxu0
        %683 = vdwg.mxu0
        %v684 = vpack.c.bf16 %v610, %v609
        %v686 = vlaneseq
        %v687 = vshrl.u32 %v686, 7
        %v688 = vsub.s32 0, %v687
        %v689 = vrot.slane %v621, %v688
        %690 = vrot.lane.b32.xlu0 %v636, 96
        %v691 = vpop.permute.xlu0 %690
        %692 = vrot.lane.b32.xlu0 %v637, 96
        %v693 = vpop.permute.xlu0 %692
        %696 = vrot.lane.b32.xlu0 %v689, 96
        %v697 = vpop.permute.xlu0 %696
        %v700 = vsel %vm640, %v684, 0
        %702 = vmatprep.subr.bf16.mxu0 0
        %703 = vmatpush1.bf16.msra.mxu0 %v691
        %704 = vmatprep.subr.bf16.mxu0 0
        %705 = vmatpush1.bf16.msra.mxu0 %v693
        %706 = vmatprep.subr.bf16.mxu0 0
        %707 = vmatpush1.bf16.msra.mxu0 0
        %708 = vmatprep.subr.bf16.mxu0 0
        %709 = vmatpush1.bf16.msra.mxu0 0
        %710 = vmatprep.subr.bf16.mxu0 0
        %711 = vmatpush1.bf16.msra.mxu0 0
        %712 = vmatprep.subr.bf16.mxu0 0
        %713 = vmatpush1.bf16.msra.mxu0 0
        %714 = vmatprep.subr.bf16.mxu0 0
        %715 = vmatpush1.bf16.msra.mxu0 0
        %716 = vmatprep.subr.bf16.mxu0 0
        %717 = vmatpush1.bf16.msra.mxu0 0
        %718 = vmatprep.subr.bf16.mxu0 0
        %719 = vmatpush1.bf16.msra.mxu0 0
        %720 = vmatprep.subr.bf16.mxu0 0
        %721 = vmatpush1.bf16.msra.mxu0 0
        %722 = vmatprep.subr.bf16.mxu0 0
        %723 = vmatpush1.bf16.msra.mxu0 0
        %724 = vmatprep.subr.bf16.mxu0 0
        %725 = vmatpush1.bf16.msra.mxu0 0
        %726 = vmatprep.subr.bf16.mxu0 0
        %727 = vmatpush1.bf16.msra.mxu0 0
        %728 = vmatprep.subr.bf16.mxu0 0
        %729 = vmatpush1.bf16.msra.mxu0 0
        %730 = vmatprep.subr.bf16.mxu0 0
        %731 = vmatpush1.bf16.msra.mxu0 0
        %732 = vmatprep.subr.bf16.mxu0 0
        %733 = vmatpush1.bf16.msra.mxu0 0
        %734 = vmatprep.mubr.bf16.mxu0 0
        %735 = vmatmul.mubr.bf16.gmra.mrb[0].mxu0 %v700
        %v736 = vpop.f32.mrb[0].mxu0
        %v737 = vadd.f32 %v697, %v736
        %v738 = vpop.f32.mrb[0].mxu0
        %v739 = vpop.f32.mrb[0].mxu0
        %v740 = vadd.f32 %v697, %v739
        %v741 = vpop.f32.mrb[0].mxu0
        %742 = vdwg.mxu0
        %744 = vrot.lane.b32.xlu0 %v679, 120
        %v745 = vpop.permute.xlu0 %744
        %747 = vrot.lane.b32.xlu0 %v679, 112
        %v748 = vpop.permute.xlu0 %747
        %750 = vrot.lane.b32.xlu0 %v679, 104
        %v751 = vpop.permute.xlu0 %750
        %755 = vrot.lane.b32.xlu0 %v737, 120
        %v756 = vpop.permute.xlu0 %755
        %757 = vrot.lane.b32.xlu0 %v740, 120
        %v758 = vpop.permute.xlu0 %757
        %761 = vrot.lane.b32.xlu0 %v737, 112
        %v762 = vpop.permute.xlu0 %761
        %763 = vrot.lane.b32.xlu0 %v740, 112
        %v764 = vpop.permute.xlu0 %763
        %767 = vrot.lane.b32.xlu0 %v737, 104
        %v768 = vpop.permute.xlu0 %767
        %769 = vrot.lane.b32.xlu0 %v740, 104
        %v770 = vpop.permute.xlu0 %769
        %773 = vrot.lane.b32.xlu0 %v737, 96
        %v774 = vpop.permute.xlu0 %773
        %775 = vrot.lane.b32.xlu0 %v740, 96
        %v776 = vpop.permute.xlu0 %775
        %779 = vrot.lane.b32.xlu0 %v737, 88
        %v780 = vpop.permute.xlu0 %779
        %781 = vrot.lane.b32.xlu0 %v740, 88
        %v782 = vpop.permute.xlu0 %781
        %785 = vrot.lane.b32.xlu0 %v737, 80
        %v786 = vpop.permute.xlu0 %785
        %787 = vrot.lane.b32.xlu0 %v740, 80
        %v788 = vpop.permute.xlu0 %787
        %791 = vrot.lane.b32.xlu0 %v737, 72
        %v792 = vpop.permute.xlu0 %791
        %793 = vrot.lane.b32.xlu0 %v740, 72
        %v794 = vpop.permute.xlu0 %793
        %v797 = vpack.c.bf16 %v679, %v679
        %v798 = vpack.c.bf16 %v745, %v745
        %v799 = vpack.c.bf16 %v748, %v748
        %v800 = vpack.c.bf16 %v751, %v751
        %v801 = vpack.c.bf16 %v740, %v737
        %v802 = vpack.c.bf16 %v758, %v756
        %v803 = vpack.c.bf16 %v764, %v762
        %v804 = vpack.c.bf16 %v770, %v768
        %vm805 = vcmask 64512
        %v807 = vsel %vm805, %v797, 0
        %v810 = vsel %vm805, %v801, 0
        %812 = vmatprep.subr.bf16.mxu0 0
        %813 = vmatpush1.bf16.xpose.msra.mxu0 %v810
        %814 = vmatprep.subr.bf16.mxu0 0
        %815 = vmatpush1.bf16.xpose.msra.mxu0 0
        %816 = vmatprep.subr.bf16.mxu0 0
        %817 = vmatpush1.bf16.xpose.msra.mxu0 0
        %818 = vmatprep.subr.bf16.mxu0 0
        %819 = vmatpush1.bf16.xpose.msra.mxu0 0
        %820 = vmatprep.subr.bf16.mxu0 0
        %821 = vmatpush1.bf16.xpose.msra.mxu0 0
        %822 = vmatprep.subr.bf16.mxu0 0
        %823 = vmatpush1.bf16.xpose.msra.mxu0 0
        %824 = vmatprep.subr.bf16.mxu0 0
        %825 = vmatpush1.bf16.xpose.msra.mxu0 0
        %826 = vmatprep.subr.bf16.mxu0 0
        %827 = vmatpush1.bf16.xpose.msra.mxu0 0
        %828 = vmatprep.subr.bf16.mxu0 0
        %829 = vmatpush1.bf16.xpose.msra.mxu0 0
        %830 = vmatprep.subr.bf16.mxu0 0
        %831 = vmatpush1.bf16.xpose.msra.mxu0 0
        %832 = vmatprep.subr.bf16.mxu0 0
        %833 = vmatpush1.bf16.xpose.msra.mxu0 0
        %834 = vmatprep.subr.bf16.mxu0 0
        %835 = vmatpush1.bf16.xpose.msra.mxu0 0
        %836 = vmatprep.subr.bf16.mxu0 0
        %837 = vmatpush1.bf16.xpose.msra.mxu0 0
        %838 = vmatprep.subr.bf16.mxu0 0
        %839 = vmatpush1.bf16.xpose.msra.mxu0 0
        %840 = vmatprep.subr.bf16.mxu0 0
        %841 = vmatpush1.bf16.xpose.msra.mxu0 0
        %842 = vmatprep.subr.bf16.mxu0 0
        %843 = vmatpush1.bf16.xpose.msra.mxu0 0
        %844 = vmatprep.mubr.bf16.mxu0 0
        %845 = vmatmul.mubr.bf16.gmra.mrb[0].mxu0 %v807
        %v846 = vpop.f32.mrb[0].mxu0
        %v847 = vadd.f32 0.0, %v846
        %v848 = vpop.f32.mrb[0].mxu0
        %v849 = vpop.f32.mrb[0].mxu0
        %v850 = vpop.f32.mrb[0].mxu0
        %851 = vdwg.mxu0
        %v853 = vsel %vm805, %v798, 0
        %v856 = vsel %vm805, %v802, 0
        %858 = vmatprep.subr.bf16.mxu0 0
        %859 = vmatpush1.bf16.xpose.msra.mxu0 %v856
        %860 = vmatprep.subr.bf16.mxu0 0
        %861 = vmatpush1.bf16.xpose.msra.mxu0 0
        %862 = vmatprep.subr.bf16.mxu0 0
        %863 = vmatpush1.bf16.xpose.msra.mxu0 0
        %864 = vmatprep.subr.bf16.mxu0 0
        %865 = vmatpush1.bf16.xpose.msra.mxu0 0
        %866 = vmatprep.subr.bf16.mxu0 0
        %867 = vmatpush1.bf16.xpose.msra.mxu0 0
        %868 = vmatprep.subr.bf16.mxu0 0
        %869 = vmatpush1.bf16.xpose.msra.mxu0 0
        %870 = vmatprep.subr.bf16.mxu0 0
        %871 = vmatpush1.bf16.xpose.msra.mxu0 0
        %872 = vmatprep.subr.bf16.mxu0 0
        %873 = vmatpush1.bf16.xpose.msra.mxu0 0
        %874 = vmatprep.subr.bf16.mxu0 0
        %875 = vmatpush1.bf16.xpose.msra.mxu0 0
        %876 = vmatprep.subr.bf16.mxu0 0
        %877 = vmatpush1.bf16.xpose.msra.mxu0 0
        %878 = vmatprep.subr.bf16.mxu0 0
        %879 = vmatpush1.bf16.xpose.msra.mxu0 0
        %880 = vmatprep.subr.bf16.mxu0 0
        %881 = vmatpush1.bf16.xpose.msra.mxu0 0
        %882 = vmatprep.subr.bf16.mxu0 0
        %883 = vmatpush1.bf16.xpose.msra.mxu0 0
        %884 = vmatprep.subr.bf16.mxu0 0
        %885 = vmatpush1.bf16.xpose.msra.mxu0 0
        %886 = vmatprep.subr.bf16.mxu0 0
        %887 = vmatpush1.bf16.xpose.msra.mxu0 0
        %888 = vmatprep.subr.bf16.mxu0 0
        %889 = vmatpush1.bf16.xpose.msra.mxu0 0
        %890 = vmatprep.mubr.bf16.mxu0 0
        %891 = vmatmul.mubr.bf16.gmra.mrb[0].mxu0 %v853
        %v892 = vpop.f32.mrb[0].mxu0
        %v893 = vadd.f32 0.0, %v892
        %v894 = vpop.f32.mrb[0].mxu0
        %v895 = vpop.f32.mrb[0].mxu0
        %v896 = vpop.f32.mrb[0].mxu0
        %897 = vdwg.mxu0
        %v899 = vsel %vm805, %v799, 0
        %v902 = vsel %vm805, %v803, 0
        %904 = vmatprep.subr.bf16.mxu0 0
        %905 = vmatpush1.bf16.xpose.msra.mxu0 %v902
        %906 = vmatprep.subr.bf16.mxu0 0
        %907 = vmatpush1.bf16.xpose.msra.mxu0 0
        %908 = vmatprep.subr.bf16.mxu0 0
        %909 = vmatpush1.bf16.xpose.msra.mxu0 0
        %910 = vmatprep.subr.bf16.mxu0 0
        %911 = vmatpush1.bf16.xpose.msra.mxu0 0
        %912 = vmatprep.subr.bf16.mxu0 0
        %913 = vmatpush1.bf16.xpose.msra.mxu0 0
        %914 = vmatprep.subr.bf16.mxu0 0
        %915 = vmatpush1.bf16.xpose.msra.mxu0 0
        %916 = vmatprep.subr.bf16.mxu0 0
        %917 = vmatpush1.bf16.xpose.msra.mxu0 0
        %918 = vmatprep.subr.bf16.mxu0 0
        %919 = vmatpush1.bf16.xpose.msra.mxu0 0
        %920 = vmatprep.subr.bf16.mxu0 0
        %921 = vmatpush1.bf16.xpose.msra.mxu0 0
        %922 = vmatprep.subr.bf16.mxu0 0
        %923 = vmatpush1.bf16.xpose.msra.mxu0 0
        %924 = vmatprep.subr.bf16.mxu0 0
        %925 = vmatpush1.bf16.xpose.msra.mxu0 0
        %926 = vmatprep.subr.bf16.mxu0 0
        %927 = vmatpush1.bf16.xpose.msra.mxu0 0
        %928 = vmatprep.subr.bf16.mxu0 0
        %929 = vmatpush1.bf16.xpose.msra.mxu0 0
        %930 = vmatprep.subr.bf16.mxu0 0
        %931 = vmatpush1.bf16.xpose.msra.mxu0 0
        %932 = vmatprep.subr.bf16.mxu0 0
        %933 = vmatpush1.bf16.xpose.msra.mxu0 0
        %934 = vmatprep.subr.bf16.mxu0 0
        %935 = vmatpush1.bf16.xpose.msra.mxu0 0
        %936 = vmatprep.mubr.bf16.mxu0 0
        %937 = vmatmul.mubr.bf16.gmra.mrb[0].mxu0 %v899
        %v938 = vpop.f32.mrb[0].mxu0
        %v939 = vadd.f32 0.0, %v938
        %v940 = vpop.f32.mrb[0].mxu0
        %v941 = vpop.f32.mrb[0].mxu0
        %v942 = vpop.f32.mrb[0].mxu0
        %943 = vdwg.mxu0
        %v945 = vsel %vm805, %v800, 0
        %v948 = vsel %vm805, %v804, 0
        %950 = vmatprep.subr.bf16.mxu0 0
        %951 = vmatpush1.bf16.xpose.msra.mxu0 %v948
        %952 = vmatprep.subr.bf16.mxu0 0
        %953 = vmatpush1.bf16.xpose.msra.mxu0 0
        %954 = vmatprep.subr.bf16.mxu0 0
        %955 = vmatpush1.bf16.xpose.msra.mxu0 0
        %956 = vmatprep.subr.bf16.mxu0 0
        %957 = vmatpush1.bf16.xpose.msra.mxu0 0
        %958 = vmatprep.subr.bf16.mxu0 0
        %959 = vmatpush1.bf16.xpose.msra.mxu0 0
        %960 = vmatprep.subr.bf16.mxu0 0
        %961 = vmatpush1.bf16.xpose.msra.mxu0 0
        %962 = vmatprep.subr.bf16.mxu0 0
        %963 = vmatpush1.bf16.xpose.msra.mxu0 0
        %964 = vmatprep.subr.bf16.mxu0 0
        %965 = vmatpush1.bf16.xpose.msra.mxu0 0
        %966 = vmatprep.subr.bf16.mxu0 0
        %967 = vmatpush1.bf16.xpose.msra.mxu0 0
        %968 = vmatprep.subr.bf16.mxu0 0
        %969 = vmatpush1.bf16.xpose.msra.mxu0 0
        %970 = vmatprep.subr.bf16.mxu0 0
        %971 = vmatpush1.bf16.xpose.msra.mxu0 0
        %972 = vmatprep.subr.bf16.mxu0 0
        %973 = vmatpush1.bf16.xpose.msra.mxu0 0
        %974 = vmatprep.subr.bf16.mxu0 0
        %975 = vmatpush1.bf16.xpose.msra.mxu0 0
        %976 = vmatprep.subr.bf16.mxu0 0
        %977 = vmatpush1.bf16.xpose.msra.mxu0 0
        %978 = vmatprep.subr.bf16.mxu0 0
        %979 = vmatpush1.bf16.xpose.msra.mxu0 0
        %980 = vmatprep.subr.bf16.mxu0 0
        %981 = vmatpush1.bf16.xpose.msra.mxu0 0
        %982 = vmatprep.mubr.bf16.mxu0 0
        %983 = vmatmul.mubr.bf16.gmra.mrb[0].mxu0 %v945
        %v984 = vpop.f32.mrb[0].mxu0
        %v985 = vadd.f32 0.0, %v984
        %v986 = vpop.f32.mrb[0].mxu0
        %v987 = vpop.f32.mrb[0].mxu0
        %v988 = vpop.f32.mrb[0].mxu0
        %989 = vdwg.mxu0
        %v990 = vmul.f32 %v847, 0.35355338
        %v991 = vmul.f32 %v893, 0.35355338
        %v992 = vmul.f32 %v939, 0.35355338
        %v993 = vmul.f32 %v985, 0.35355338
        %vm994 = vcmask 122880
        %v995 = vsel %vm994, %v990, -inf
        %996 = vmax.xlane.f32.xlu0 %v995
        %v997 = vpop.xlane.xlu0 %996
        %v998 = vsel %vm994, %v991, -inf
        %999 = vmax.xlane.f32.xlu0 %v998
        %v1000 = vpop.xlane.xlu0 %999
        %v1001 = vsel %vm994, %v992, -inf
        %1002 = vmax.xlane.f32.xlu0 %v1001
        %v1003 = vpop.xlane.xlu0 %1002
        %v1004 = vsel %vm994, %v993, -inf
        %1005 = vmax.xlane.f32.xlu0 %v1004
        %v1006 = vpop.xlane.xlu0 %1005
        %v1007 = vsub.f32 %v990, %v997
        %v1008 = vsub.f32 %v991, %v1000
        %v1009 = vsub.f32 %v992, %v1003
        %v1010 = vsub.f32 %v993, %v1006
        %v1011 = vmul.f32 %v1007, 1.442695
        %v1012 = vpow.pop %v1011
        %v1013 = vmul.f32 %v1008, 1.442695
        %v1014 = vpow.pop %v1013
        %v1015 = vmul.f32 %v1009, 1.442695
        %v1016 = vpow.pop %v1015
        %v1017 = vmul.f32 %v1010, 1.442695
        %v1018 = vpow.pop %v1017
        %v1019 = vsel %vm994, %v1012, 0.0
        %1020 = vadd.xlane.f32.xlu0 %v1019
        %v1021 = vpop.xlane.xlu0 %1020
        %v1022 = vsel %vm994, %v1014, 0.0
        %1023 = vadd.xlane.f32.xlu0 %v1022
        %v1024 = vpop.xlane.xlu0 %1023
        %v1025 = vsel %vm994, %v1016, 0.0
        %1026 = vadd.xlane.f32.xlu0 %v1025
        %v1027 = vpop.xlane.xlu0 %1026
        %v1028 = vsel %vm994, %v1018, 0.0
        %1029 = vadd.xlane.f32.xlu0 %v1028
        %v1030 = vpop.xlane.xlu0 %1029
        %v1031 = vrcp.pop %v1021
        %v1032 = vrcp.pop %v1024
        %v1033 = vrcp.pop %v1027
        %v1034 = vrcp.pop %v1030
        %v1035 = vmul.f32 %v1012, %v1031
        %v1036 = vmul.f32 %v1014, %v1032
        %v1037 = vmul.f32 %v1016, %v1033
        %v1038 = vmul.f32 %v1018, %v1034
        %v1039 = vpack.c.bf16 %v1035, %v1035
        %v1040 = vpack.c.bf16 %v1036, %v1036
        %v1041 = vpack.c.bf16 %v1037, %v1037
        %v1042 = vpack.c.bf16 %v1038, %v1038
        %v1043 = vpack.c.bf16 %v776, %v774
        %v1044 = vpack.c.bf16 %v782, %v780
        %v1045 = vpack.c.bf16 %v788, %v786
        %v1046 = vpack.c.bf16 %v794, %v792
        %vm1047 = vcmask 130048
        %v1049 = vsel %vm1047, %v1039, 0
        %1051 = vmatprep.subr.bf16.mxu0 0
        %1052 = vmatpush1.bf16.msra.mxu0 %v1043
        %1053 = vmatprep.subr.bf16.mxu0 0
        %1054 = vmatpush1.bf16.msra.mxu0 0
        %1055 = vmatprep.subr.bf16.mxu0 0
        %1056 = vmatpush1.bf16.msra.mxu0 0
        %1057 = vmatprep.subr.bf16.mxu0 0
        %1058 = vmatpush1.bf16.msra.mxu0 0
        %1059 = vmatprep.subr.bf16.mxu0 0
        %1060 = vmatpush1.bf16.msra.mxu0 0
        %1061 = vmatprep.subr.bf16.mxu0 0
        %1062 = vmatpush1.bf16.msra.mxu0 0
        %1063 = vmatprep.subr.bf16.mxu0 0
        %1064 = vmatpush1.bf16.msra.mxu0 0
        %1065 = vmatprep.subr.bf16.mxu0 0
        %1066 = vmatpush1.bf16.msra.mxu0 0
        %1067 = vmatprep.subr.bf16.mxu0 0
        %1068 = vmatpush1.bf16.msra.mxu0 0
        %1069 = vmatprep.subr.bf16.mxu0 0
        %1070 = vmatpush1.bf16.msra.mxu0 0
        %1071 = vmatprep.subr.bf16.mxu0 0
        %1072 = vmatpush1.bf16.msra.mxu0 0
        %1073 = vmatprep.subr.bf16.mxu0 0
        %1074 = vmatpush1.bf16.msra.mxu0 0
        %1075 = vmatprep.subr.bf16.mxu0 0
        %1076 = vmatpush1.bf16.msra.mxu0 0
        %1077 = vmatprep.subr.bf16.mxu0 0
        %1078 = vmatpush1.bf16.msra.mxu0 0
        %1079 = vmatprep.subr.bf16.mxu0 0
        %1080 = vmatpush1.bf16.msra.mxu0 0
        %1081 = vmatprep.subr.bf16.mxu0 0
        %1082 = vmatpush1.bf16.msra.mxu0 0
        %1083 = vmatprep.mubr.bf16.mxu0 0
        %1084 = vmatmul.mubr.bf16.gmra.mrb[0].mxu0 %v1049
        %v1085 = vpop.f32.mrb[0].mxu0
        %v1086 = vadd.f32 0.0, %v1085
        %v1087 = vpop.f32.mrb[0].mxu0
        %v1088 = vpop.f32.mrb[0].mxu0
        %v1089 = vpop.f32.mrb[0].mxu0
        %1090 = vdwg.mxu0
        %v1092 = vsel %vm1047, %v1040, 0
        %1094 = vmatprep.subr.bf16.mxu0 0
        %1095 = vmatpush1.bf16.msra.mxu0 %v1044
        %1096 = vmatprep.subr.bf16.mxu0 0
        %1097 = vmatpush1.bf16.msra.mxu0 0
        %1098 = vmatprep.subr.bf16.mxu0 0
        %1099 = vmatpush1.bf16.msra.mxu0 0
        %1100 = vmatprep.subr.bf16.mxu0 0
        %1101 = vmatpush1.bf16.msra.mxu0 0
        %1102 = vmatprep.subr.bf16.mxu0 0
        %1103 = vmatpush1.bf16.msra.mxu0 0
        %1104 = vmatprep.subr.bf16.mxu0 0
        %1105 = vmatpush1.bf16.msra.mxu0 0
        %1106 = vmatprep.subr.bf16.mxu0 0
        %1107 = vmatpush1.bf16.msra.mxu0 0
        %1108 = vmatprep.subr.bf16.mxu0 0
        %1109 = vmatpush1.bf16.msra.mxu0 0
        %1110 = vmatprep.subr.bf16.mxu0 0
        %1111 = vmatpush1.bf16.msra.mxu0 0
        %1112 = vmatprep.subr.bf16.mxu0 0
        %1113 = vmatpush1.bf16.msra.mxu0 0
        %1114 = vmatprep.subr.bf16.mxu0 0
        %1115 = vmatpush1.bf16.msra.mxu0 0
        %1116 = vmatprep.subr.bf16.mxu0 0
        %1117 = vmatpush1.bf16.msra.mxu0 0
        %1118 = vmatprep.subr.bf16.mxu0 0
        %1119 = vmatpush1.bf16.msra.mxu0 0
        %1120 = vmatprep.subr.bf16.mxu0 0
        %1121 = vmatpush1.bf16.msra.mxu0 0
        %1122 = vmatprep.subr.bf16.mxu0 0
        %1123 = vmatpush1.bf16.msra.mxu0 0
        %1124 = vmatprep.subr.bf16.mxu0 0
        %1125 = vmatpush1.bf16.msra.mxu0 0
        %1126 = vmatprep.mubr.bf16.mxu0 0
        %1127 = vmatmul.mubr.bf16.gmra.mrb[0].mxu0 %v1092
        %v1128 = vpop.f32.mrb[0].mxu0
        %v1129 = vadd.f32 0.0, %v1128
        %v1130 = vpop.f32.mrb[0].mxu0
        %v1131 = vpop.f32.mrb[0].mxu0
        %v1132 = vpop.f32.mrb[0].mxu0
        %1133 = vdwg.mxu0
        %v1135 = vsel %vm1047, %v1041, 0
        %1137 = vmatprep.subr.bf16.mxu0 0
        %1138 = vmatpush1.bf16.msra.mxu0 %v1045
        %1139 = vmatprep.subr.bf16.mxu0 0
        %1140 = vmatpush1.bf16.msra.mxu0 0
        %1141 = vmatprep.subr.bf16.mxu0 0
        %1142 = vmatpush1.bf16.msra.mxu0 0
        %1143 = vmatprep.subr.bf16.mxu0 0
        %1144 = vmatpush1.bf16.msra.mxu0 0
        %1145 = vmatprep.subr.bf16.mxu0 0
        %1146 = vmatpush1.bf16.msra.mxu0 0
        %1147 = vmatprep.subr.bf16.mxu0 0
        %1148 = vmatpush1.bf16.msra.mxu0 0
        %1149 = vmatprep.subr.bf16.mxu0 0
        %1150 = vmatpush1.bf16.msra.mxu0 0
        %1151 = vmatprep.subr.bf16.mxu0 0
        %1152 = vmatpush1.bf16.msra.mxu0 0
        %1153 = vmatprep.subr.bf16.mxu0 0
        %1154 = vmatpush1.bf16.msra.mxu0 0
        %1155 = vmatprep.subr.bf16.mxu0 0
        %1156 = vmatpush1.bf16.msra.mxu0 0
        %1157 = vmatprep.subr.bf16.mxu0 0
        %1158 = vmatpush1.bf16.msra.mxu0 0
        %1159 = vmatprep.subr.bf16.mxu0 0
        %1160 = vmatpush1.bf16.msra.mxu0 0
        %1161 = vmatprep.subr.bf16.mxu0 0
        %1162 = vmatpush1.bf16.msra.mxu0 0
        %1163 = vmatprep.subr.bf16.mxu0 0
        %1164 = vmatpush1.bf16.msra.mxu0 0
        %1165 = vmatprep.subr.bf16.mxu0 0
        %1166 = vmatpush1.bf16.msra.mxu0 0
        %1167 = vmatprep.subr.bf16.mxu0 0
        %1168 = vmatpush1.bf16.msra.mxu0 0
        %1169 = vmatprep.mubr.bf16.mxu0 0
        %1170 = vmatmul.mubr.bf16.gmra.mrb[0].mxu0 %v1135
        %v1171 = vpop.f32.mrb[0].mxu0
        %v1172 = vadd.f32 0.0, %v1171
        %v1173 = vpop.f32.mrb[0].mxu0
        %v1174 = vpop.f32.mrb[0].mxu0
        %v1175 = vpop.f32.mrb[0].mxu0
        %1176 = vdwg.mxu0
        %v1178 = vsel %vm1047, %v1042, 0
        %1180 = vmatprep.subr.bf16.mxu0 0
        %1181 = vmatpush1.bf16.msra.mxu0 %v1046
        %1182 = vmatprep.subr.bf16.mxu0 0
        %1183 = vmatpush1.bf16.msra.mxu0 0
        %1184 = vmatprep.subr.bf16.mxu0 0
        %1185 = vmatpush1.bf16.msra.mxu0 0
        %1186 = vmatprep.subr.bf16.mxu0 0
        %1187 = vmatpush1.bf16.msra.mxu0 0
        %1188 = vmatprep.subr.bf16.mxu0 0
        %1189 = vmatpush1.bf16.msra.mxu0 0
        %1190 = vmatprep.subr.bf16.mxu0 0
        %1191 = vmatpush1.bf16.msra.mxu0 0
        %1192 = vmatprep.subr.bf16.mxu0 0
        %1193 = vmatpush1.bf16.msra.mxu0 0
        %1194 = vmatprep.subr.bf16.mxu0 0
        %1195 = vmatpush1.bf16.msra.mxu0 0
        %1196 = vmatprep.subr.bf16.mxu0 0
        %1197 = vmatpush1.bf16.msra.mxu0 0
        %1198 = vmatprep.subr.bf16.mxu0 0
        %1199 = vmatpush1.bf16.msra.mxu0 0
        %1200 = vmatprep.subr.bf16.mxu0 0
        %1201 = vmatpush1.bf16.msra.mxu0 0
        %1202 = vmatprep.subr.bf16.mxu0 0
        %1203 = vmatpush1.bf16.msra.mxu0 0
        %1204 = vmatprep.subr.bf16.mxu0 0
        %1205 = vmatpush1.bf16.msra.mxu0 0
        %1206 = vmatprep.subr.bf16.mxu0 0
        %1207 = vmatpush1.bf16.msra.mxu0 0
        %1208 = vmatprep.subr.bf16.mxu0 0
        %1209 = vmatpush1.bf16.msra.mxu0 0
        %1210 = vmatprep.subr.bf16.mxu0 0
        %1211 = vmatpush1.bf16.msra.mxu0 0
        %1212 = vmatprep.mubr.bf16.mxu0 0
        %1213 = vmatmul.mubr.bf16.gmra.mrb[0].mxu0 %v1178
        %v1214 = vpop.f32.mrb[0].mxu0
        %v1215 = vadd.f32 0.0, %v1214
        %v1216 = vpop.f32.mrb[0].mxu0
        %v1217 = vpop.f32.mrb[0].mxu0
        %v1218 = vpop.f32.mrb[0].mxu0
        %1219 = vdwg.mxu0
        %v1220 = vpack.c.bf16 %v1086, %v1086
        %v1221 = vpack.c.bf16 %v1129, %v1129
        %v1222 = vpack.c.bf16 %v1172, %v1172
        %v1223 = vpack.c.bf16 %v1215, %v1215
        %v1225 = vsel %vm805, %v1220, 0
        %vm1227 = vcmask 1043456
        %v1229 = vsel %vm1227, %v622, 0
        %1231 = vmatprep.subr.bf16.mxu0 0
        %1232 = vmatpush1.bf16.msra.mxu0 %v1229
        %1233 = vmatprep.subr.bf16.mxu0 0
        %1234 = vmatpush1.bf16.msra.mxu0 0
        %1235 = vmatprep.subr.bf16.mxu0 0
        %1236 = vmatpush1.bf16.msra.mxu0 0
        %1237 = vmatprep.subr.bf16.mxu0 0
        %1238 = vmatpush1.bf16.msra.mxu0 0
        %1239 = vmatprep.subr.bf16.mxu0 0
        %1240 = vmatpush1.bf16.msra.mxu0 0
        %1241 = vmatprep.subr.bf16.mxu0 0
        %1242 = vmatpush1.bf16.msra.mxu0 0
        %1243 = vmatprep.subr.bf16.mxu0 0
        %1244 = vmatpush1.bf16.msra.mxu0 0
        %1245 = vmatprep.subr.bf16.mxu0 0
        %1246 = vmatpush1.bf16.msra.mxu0 0
        %1247 = vmatprep.subr.bf16.mxu0 0
        %1248 = vmatpush1.bf16.msra.mxu0 0
        %1249 = vmatprep.subr.bf16.mxu0 0
        %1250 = vmatpush1.bf16.msra.mxu0 0
        %1251 = vmatprep.subr.bf16.mxu0 0
        %1252 = vmatpush1.bf16.msra.mxu0 0
        %1253 = vmatprep.subr.bf16.mxu0 0
        %1254 = vmatpush1.bf16.msra.mxu0 0
        %1255 = vmatprep.subr.bf16.mxu0 0
        %1256 = vmatpush1.bf16.msra.mxu0 0
        %1257 = vmatprep.subr.bf16.mxu0 0
        %1258 = vmatpush1.bf16.msra.mxu0 0
        %1259 = vmatprep.subr.bf16.mxu0 0
        %1260 = vmatpush1.bf16.msra.mxu0 0
        %1261 = vmatprep.subr.bf16.mxu0 0
        %1262 = vmatpush1.bf16.msra.mxu0 0
        %1263 = vmatprep.mubr.bf16.mxu0 0
        %1264 = vmatmul.mubr.bf16.gmra.mrb[0].mxu0 %v1225
        %v1265 = vpop.f32.mrb[0].mxu0
        %v1266 = vadd.f32 0.0, %v1265
        %v1267 = vpop.f32.mrb[0].mxu0
        %v1268 = vpop.f32.mrb[0].mxu0
        %v1269 = vpop.f32.mrb[0].mxu0
        %1270 = vdwg.mxu0
        %v1272 = vsel %vm805, %v1221, 0
        %v1275 = vsel %vm1227, %v623, 0
        %1277 = vmatprep.subr.bf16.mxu0 0
        %1278 = vmatpush1.bf16.msra.mxu0 %v1275
        %1279 = vmatprep.subr.bf16.mxu0 0
        %1280 = vmatpush1.bf16.msra.mxu0 0
        %1281 = vmatprep.subr.bf16.mxu0 0
        %1282 = vmatpush1.bf16.msra.mxu0 0
        %1283 = vmatprep.subr.bf16.mxu0 0
        %1284 = vmatpush1.bf16.msra.mxu0 0
        %1285 = vmatprep.subr.bf16.mxu0 0
        %1286 = vmatpush1.bf16.msra.mxu0 0
        %1287 = vmatprep.subr.bf16.mxu0 0
        %1288 = vmatpush1.bf16.msra.mxu0 0
        %1289 = vmatprep.subr.bf16.mxu0 0
        %1290 = vmatpush1.bf16.msra.mxu0 0
        %1291 = vmatprep.subr.bf16.mxu0 0
        %1292 = vmatpush1.bf16.msra.mxu0 0
        %1293 = vmatprep.subr.bf16.mxu0 0
        %1294 = vmatpush1.bf16.msra.mxu0 0
        %1295 = vmatprep.subr.bf16.mxu0 0
        %1296 = vmatpush1.bf16.msra.mxu0 0
        %1297 = vmatprep.subr.bf16.mxu0 0
        %1298 = vmatpush1.bf16.msra.mxu0 0
        %1299 = vmatprep.subr.bf16.mxu0 0
        %1300 = vmatpush1.bf16.msra.mxu0 0
        %1301 = vmatprep.subr.bf16.mxu0 0
        %1302 = vmatpush1.bf16.msra.mxu0 0
        %1303 = vmatprep.subr.bf16.mxu0 0
        %1304 = vmatpush1.bf16.msra.mxu0 0
        %1305 = vmatprep.subr.bf16.mxu0 0
        %1306 = vmatpush1.bf16.msra.mxu0 0
        %1307 = vmatprep.subr.bf16.mxu0 0
        %1308 = vmatpush1.bf16.msra.mxu0 0
        %1309 = vmatprep.mubr.bf16.mxu0 0
        %1310 = vmatmul.mubr.bf16.gmra.mrb[0].mxu0 %v1272
        %v1311 = vpop.f32.mrb[0].mxu0
        %v1312 = vadd.f32 0.0, %v1311
        %v1313 = vpop.f32.mrb[0].mxu0
        %v1314 = vpop.f32.mrb[0].mxu0
        %v1315 = vpop.f32.mrb[0].mxu0
        %1316 = vdwg.mxu0
        %v1318 = vsel %vm805, %v1222, 0
        %v1321 = vsel %vm1227, %v624, 0
        %1323 = vmatprep.subr.bf16.mxu0 0
        %1324 = vmatpush1.bf16.msra.mxu0 %v1321
        %1325 = vmatprep.subr.bf16.mxu0 0
        %1326 = vmatpush1.bf16.msra.mxu0 0
        %1327 = vmatprep.subr.bf16.mxu0 0
        %1328 = vmatpush1.bf16.msra.mxu0 0
        %1329 = vmatprep.subr.bf16.mxu0 0
        %1330 = vmatpush1.bf16.msra.mxu0 0
        %1331 = vmatprep.subr.bf16.mxu0 0
        %1332 = vmatpush1.bf16.msra.mxu0 0
        %1333 = vmatprep.subr.bf16.mxu0 0
        %1334 = vmatpush1.bf16.msra.mxu0 0
        %1335 = vmatprep.subr.bf16.mxu0 0
        %1336 = vmatpush1.bf16.msra.mxu0 0
        %1337 = vmatprep.subr.bf16.mxu0 0
        %1338 = vmatpush1.bf16.msra.mxu0 0
        %1339 = vmatprep.subr.bf16.mxu0 0
        %1340 = vmatpush1.bf16.msra.mxu0 0
        %1341 = vmatprep.subr.bf16.mxu0 0
        %1342 = vmatpush1.bf16.msra.mxu0 0
        %1343 = vmatprep.subr.bf16.mxu0 0
        %1344 = vmatpush1.bf16.msra.mxu0 0
        %1345 = vmatprep.subr.bf16.mxu0 0
        %1346 = vmatpush1.bf16.msra.mxu0 0
        %1347 = vmatprep.subr.bf16.mxu0 0
        %1348 = vmatpush1.bf16.msra.mxu0 0
        %1349 = vmatprep.subr.bf16.mxu0 0
        %1350 = vmatpush1.bf16.msra.mxu0 0
        %1351 = vmatprep.subr.bf16.mxu0 0
        %1352 = vmatpush1.bf16.msra.mxu0 0
        %1353 = vmatprep.subr.bf16.mxu0 0
        %1354 = vmatpush1.bf16.msra.mxu0 0
        %1355 = vmatprep.mubr.bf16.mxu0 0
        %1356 = vmatmul.mubr.bf16.gmra.mrb[0].mxu0 %v1318
        %v1357 = vpop.f32.mrb[0].mxu0
        %v1358 = vadd.f32 0.0, %v1357
        %v1359 = vpop.f32.mrb[0].mxu0
        %v1360 = vpop.f32.mrb[0].mxu0
        %v1361 = vpop.f32.mrb[0].mxu0
        %1362 = vdwg.mxu0
        %v1364 = vsel %vm805, %v1223, 0
        %v1367 = vsel %vm1227, %v625, 0
        %1369 = vmatprep.subr.bf16.mxu0 0
        %1370 = vmatpush1.bf16.msra.mxu0 %v1367
        %1371 = vmatprep.subr.bf16.mxu0 0
        %1372 = vmatpush1.bf16.msra.mxu0 0
        %1373 = vmatprep.subr.bf16.mxu0 0
        %1374 = vmatpush1.bf16.msra.mxu0 0
        %1375 = vmatprep.subr.bf16.mxu0 0
        %1376 = vmatpush1.bf16.msra.mxu0 0
        %1377 = vmatprep.subr.bf16.mxu0 0
        %1378 = vmatpush1.bf16.msra.mxu0 0
        %1379 = vmatprep.subr.bf16.mxu0 0
        %1380 = vmatpush1.bf16.msra.mxu0 0
        %1381 = vmatprep.subr.bf16.mxu0 0
        %1382 = vmatpush1.bf16.msra.mxu0 0
        %1383 = vmatprep.subr.bf16.mxu0 0
        %1384 = vmatpush1.bf16.msra.mxu0 0
        %1385 = vmatprep.subr.bf16.mxu0 0
        %1386 = vmatpush1.bf16.msra.mxu0 0
        %1387 = vmatprep.subr.bf16.mxu0 0
        %1388 = vmatpush1.bf16.msra.mxu0 0
        %1389 = vmatprep.subr.bf16.mxu0 0
        %1390 = vmatpush1.bf16.msra.mxu0 0
        %1391 = vmatprep.subr.bf16.mxu0 0
        %1392 = vmatpush1.bf16.msra.mxu0 0
        %1393 = vmatprep.subr.bf16.mxu0 0
        %1394 = vmatpush1.bf16.msra.mxu0 0
        %1395 = vmatprep.subr.bf16.mxu0 0
        %1396 = vmatpush1.bf16.msra.mxu0 0
        %1397 = vmatprep.subr.bf16.mxu0 0
        %1398 = vmatpush1.bf16.msra.mxu0 0
        %1399 = vmatprep.subr.bf16.mxu0 0
        %1400 = vmatpush1.bf16.msra.mxu0 0
        %1401 = vmatprep.mubr.bf16.mxu0 0
        %1402 = vmatmul.mubr.bf16.gmra.mrb[0].mxu0 %v1364
        %v1403 = vpop.f32.mrb[0].mxu0
        %v1404 = vadd.f32 0.0, %v1403
        %v1405 = vpop.f32.mrb[0].mxu0
        %v1406 = vpop.f32.mrb[0].mxu0
        %v1407 = vpop.f32.mrb[0].mxu0
        %1408 = vdwg.mxu0
        %vm1409 = vcmask 253952
        %v1410 = vsel %vm1409, %v1266, 0.0
        %v1411 = vsel %vm1409, %v1312, 0.0
        %v1412 = vadd.f32 %v1410, %v1411
        %v1413 = vsel %vm1409, %v1358, 0.0
        %v1414 = vadd.f32 %v1412, %v1413
        %v1415 = vsel %vm1409, %v1404, 0.0
        %v1416 = vadd.f32 %v1414, %v1415
        %v1417 = vadd.f32 %v1416, %v626
        %v1418 = vsel %vm1409, %v1417, 0.0
        %1419 = vadd.xlane.f32.xlu0 %v1418
        %v1420 = vpop.xlane.xlu0 %1419
        %v1421 = vrcp.pop 32.0
        %v1422 = vmul.f32 %v1420, %v1421
        %v1423 = vsub.f32 %v1417, %v1422
        %v1424 = vmul.f32 %v1423, %v1423
        %v1425 = vsel %vm1409, %v1424, 0.0
        %1426 = vadd.xlane.f32.xlu0 %v1425
        %v1427 = vpop.xlane.xlu0 %1426
        %v1428 = vmul.f32 %v1427, %v1421
        %v1429 = vadd.f32 %v1428, 1e-05
        %v1430 = vrsqrt.pop %v1429
        %v1431 = vmul.f32 %v1423, %v1430
        %v1433 = vrot.slane %v626, 1
        %v1435 = vmul.f32 %v1431, %v1433
        %v1436 = vrot.slane %v626, 2
        %v1438 = vadd.f32 %v1435, %v1436
        %s1439 = scalar_lea.vmem %s4, 16
        %v1440 = vld [vmem:[%s1439] sm:$0xf]
        %v1441 = vld [vmem:[%s1439 + $0x4] sm:$0xf]
        %v1442 = vld [vmem:[%s1439 + $0x8] sm:$0xf]
        %v1443 = vld [vmem:[%s1439 + $0xc] sm:$0xf]
        %s1444 = scalar_lea.vmem %s5, 1
        %v1445 = vld [vmem:[%s1444] sm:$0x1]
        %s1446 = scalar_lea.vmem %s6, 16
        %v1447 = vld [vmem:[%s1446] sm:$0xf]
        %v1448 = vld [vmem:[%s1446 + $0x4] sm:$0xf]
        %v1449 = vld [vmem:[%s1446 + $0x8] sm:$0xf]
        %v1450 = vld [vmem:[%s1446 + $0xc] sm:$0xf]
        %s1451 = scalar_lea.vmem %s7, 4
        %v1452 = vld [vmem:[%s1451] sm:$0x7]
        %v1453 = vpack.c.bf16 %v616, %v616
        %v1458 = vunpack.c.l.b16 %v1440
        %v1459 = vunpack.c.l.b16 %v1441
        %v1460 = vunpack.c.l.b16 %v1442
        %v1461 = vunpack.c.l.b16 %v1443
        %v1462 = vpack.c.b16 %v1459, %v1458
        %v1463 = vpack.c.b16 %v1461, %v1460
        %v1467 = vsel %vm640, %v1453, 0
        %1469 = vmatprep.subr.bf16.mxu0 0
        %1470 = vmatpush1.bf16.msra.mxu0 %v1462
        %1471 = vmatprep.subr.bf16.mxu0 0
        %1472 = vmatpush1.bf16.msra.mxu0 %v1463
        %1473 = vmatprep.subr.bf16.mxu0 0
        %1474 = vmatpush1.bf16.msra.mxu0 0
        %1475 = vmatprep.subr.bf16.mxu0 0
        %1476 = vmatpush1.bf16.msra.mxu0 0
        %1477 = vmatprep.subr.bf16.mxu0 0
        %1478 = vmatpush1.bf16.msra.mxu0 0
        %1479 = vmatprep.subr.bf16.mxu0 0
        %1480 = vmatpush1.bf16.msra.mxu0 0
        %1481 = vmatprep.subr.bf16.mxu0 0
        %1482 = vmatpush1.bf16.msra.mxu0 0
        %1483 = vmatprep.subr.bf16.mxu0 0
        %1484 = vmatpush1.bf16.msra.mxu0 0
        %1485 = vmatprep.subr.bf16.mxu0 0
        %1486 = vmatpush1.bf16.msra.mxu0 0
        %1487 = vmatprep.subr.bf16.mxu0 0
        %1488 = vmatpush1.bf16.msra.mxu0 0
        %1489 = vmatprep.subr.bf16.mxu0 0
        %1490 = vmatpush1.bf16.msra.mxu0 0
        %1491 = vmatprep.subr.bf16.mxu0 0
        %1492 = vmatpush1.bf16.msra.mxu0 0
        %1493 = vmatprep.subr.bf16.mxu0 0
        %1494 = vmatpush1.bf16.msra.mxu0 0
        %1495 = vmatprep.subr.bf16.mxu0 0
        %1496 = vmatpush1.bf16.msra.mxu0 0
        %1497 = vmatprep.subr.bf16.mxu0 0
        %1498 = vmatpush1.bf16.msra.mxu0 0
        %1499 = vmatprep.subr.bf16.mxu0 0
        %1500 = vmatpush1.bf16.msra.mxu0 0
        %1501 = vmatprep.mubr.bf16.mxu0 0
        %1502 = vmatmul.mubr.bf16.gmra.mrb[0].mxu0 %v1467
        %v1503 = vpop.f32.mrb[0].mxu0
        %v1504 = vadd.f32 %v1445, %v1503
        %v1505 = vpop.f32.mrb[0].mxu0
        %v1506 = vpop.f32.mrb[0].mxu0
        %v1507 = vpop.f32.mrb[0].mxu0
        %1508 = vdwg.mxu0
        %v1509 = vpack.c.bf16 %v612, %v611
        %v1511 = vlaneseq
        %v1512 = vshrl.u32 %v1511, 7
        %v1513 = vsub.s32 0, %v1512
        %v1514 = vrot.slane %v1445, %v1513
        %1515 = vrot.lane.b32.xlu0 %v1462, 96
        %v1516 = vpop.permute.xlu0 %1515
        %1517 = vrot.lane.b32.xlu0 %v1463, 96
        %v1518 = vpop.permute.xlu0 %1517
        %1521 = vrot.lane.b32.xlu0 %v1514, 96
        %v1522 = vpop.permute.xlu0 %1521
        %v1525 = vsel %vm640, %v1509, 0
        %1527 = vmatprep.subr.bf16.mxu0 0
        %1528 = vmatpush1.bf16.msra.mxu0 %v1516
        %1529 = vmatprep.subr.bf16.mxu0 0
        %1530 = vmatpush1.bf16.msra.mxu0 %v1518
        %1531 = vmatprep.subr.bf16.mxu0 0
        %1532 = vmatpush1.bf16.msra.mxu0 0
        %1533 = vmatprep.subr.bf16.mxu0 0
        %1534 = vmatpush1.bf16.msra.mxu0 0
        %1535 = vmatprep.subr.bf16.mxu0 0
        %1536 = vmatpush1.bf16.msra.mxu0 0
        %1537 = vmatprep.subr.bf16.mxu0 0
        %1538 = vmatpush1.bf16.msra.mxu0 0
        %1539 = vmatprep.subr.bf16.mxu0 0
        %1540 = vmatpush1.bf16.msra.mxu0 0
        %1541 = vmatprep.subr.bf16.mxu0 0
        %1542 = vmatpush1.bf16.msra.mxu0 0
        %1543 = vmatprep.subr.bf16.mxu0 0
        %1544 = vmatpush1.bf16.msra.mxu0 0
        %1545 = vmatprep.subr.bf16.mxu0 0
        %1546 = vmatpush1.bf16.msra.mxu0 0
        %1547 = vmatprep.subr.bf16.mxu0 0
        %1548 = vmatpush1.bf16.msra.mxu0 0
        %1549 = vmatprep.subr.bf16.mxu0 0
        %1550 = vmatpush1.bf16.msra.mxu0 0
        %1551 = vmatprep.subr.bf16.mxu0 0
        %1552 = vmatpush1.bf16.msra.mxu0 0
        %1553 = vmatprep.subr.bf16.mxu0 0
        %1554 = vmatpush1.bf16.msra.mxu0 0
        %1555 = vmatprep.subr.bf16.mxu0 0
        %1556 = vmatpush1.bf16.msra.mxu0 0
        %1557 = vmatprep.subr.bf16.mxu0 0
        %1558 = vmatpush1.bf16.msra.mxu0 0
        %1559 = vmatprep.mubr.bf16.mxu0 0
        %1560 = vmatmul.mubr.bf16.gmra.mrb[0].mxu0 %v1525
        %v1561 = vpop.f32.mrb[0].mxu0
        %v1562 = vadd.f32 %v1522, %v1561
        %v1563 = vpop.f32.mrb[0].mxu0
        %v1564 = vpop.f32.mrb[0].mxu0
        %v1565 = vadd.f32 %v1522, %v1564
        %v1566 = vpop.f32.mrb[0].mxu0
        %1567 = vdwg.mxu0
        %1569 = vrot.lane.b32.xlu0 %v1504, 120
        %v1570 = vpop.permute.xlu0 %1569
        %1572 = vrot.lane.b32.xlu0 %v1504, 112
        %v1573 = vpop.permute.xlu0 %1572
        %1575 = vrot.lane.b32.xlu0 %v1504, 104
        %v1576 = vpop.permute.xlu0 %1575
        %1580 = vrot.lane.b32.xlu0 %v1562, 120
        %v1581 = vpop.permute.xlu0 %1580
        %1582 = vrot.lane.b32.xlu0 %v1565, 120
        %v1583 = vpop.permute.xlu0 %1582
        %1586 = vrot.lane.b32.xlu0 %v1562, 112
        %v1587 = vpop.permute.xlu0 %1586
        %1588 = vrot.lane.b32.xlu0 %v1565, 112
        %v1589 = vpop.permute.xlu0 %1588
        %1592 = vrot.lane.b32.xlu0 %v1562, 104
        %v1593 = vpop.permute.xlu0 %1592
        %1594 = vrot.lane.b32.xlu0 %v1565, 104
        %v1595 = vpop.permute.xlu0 %1594
        %1598 = vrot.lane.b32.xlu0 %v1562, 96
        %v1599 = vpop.permute.xlu0 %1598
        %1600 = vrot.lane.b32.xlu0 %v1565, 96
        %v1601 = vpop.permute.xlu0 %1600
        %1604 = vrot.lane.b32.xlu0 %v1562, 88
        %v1605 = vpop.permute.xlu0 %1604
        %1606 = vrot.lane.b32.xlu0 %v1565, 88
        %v1607 = vpop.permute.xlu0 %1606
        %1610 = vrot.lane.b32.xlu0 %v1562, 80
        %v1611 = vpop.permute.xlu0 %1610
        %1612 = vrot.lane.b32.xlu0 %v1565, 80
        %v1613 = vpop.permute.xlu0 %1612
        %1616 = vrot.lane.b32.xlu0 %v1562, 72
        %v1617 = vpop.permute.xlu0 %1616
        %1618 = vrot.lane.b32.xlu0 %v1565, 72
        %v1619 = vpop.permute.xlu0 %1618
        %v1622 = vpack.c.bf16 %v1504, %v1504
        %v1623 = vpack.c.bf16 %v1570, %v1570
        %v1624 = vpack.c.bf16 %v1573, %v1573
        %v1625 = vpack.c.bf16 %v1576, %v1576
        %v1626 = vpack.c.bf16 %v1565, %v1562
        %v1627 = vpack.c.bf16 %v1583, %v1581
        %v1628 = vpack.c.bf16 %v1589, %v1587
        %v1629 = vpack.c.bf16 %v1595, %v1593
        %v1631 = vsel %vm805, %v1622, 0
        %v1634 = vsel %vm805, %v1626, 0
        %1636 = vmatprep.subr.bf16.mxu0 0
        %1637 = vmatpush1.bf16.xpose.msra.mxu0 %v1634
        %1638 = vmatprep.subr.bf16.mxu0 0
        %1639 = vmatpush1.bf16.xpose.msra.mxu0 0
        %1640 = vmatprep.subr.bf16.mxu0 0
        %1641 = vmatpush1.bf16.xpose.msra.mxu0 0
        %1642 = vmatprep.subr.bf16.mxu0 0
        %1643 = vmatpush1.bf16.xpose.msra.mxu0 0
        %1644 = vmatprep.subr.bf16.mxu0 0
        %1645 = vmatpush1.bf16.xpose.msra.mxu0 0
        %1646 = vmatprep.subr.bf16.mxu0 0
        %1647 = vmatpush1.bf16.xpose.msra.mxu0 0
        %1648 = vmatprep.subr.bf16.mxu0 0
        %1649 = vmatpush1.bf16.xpose.msra.mxu0 0
        %1650 = vmatprep.subr.bf16.mxu0 0
        %1651 = vmatpush1.bf16.xpose.msra.mxu0 0
        %1652 = vmatprep.subr.bf16.mxu0 0
        %1653 = vmatpush1.bf16.xpose.msra.mxu0 0
        %1654 = vmatprep.subr.bf16.mxu0 0
        %1655 = vmatpush1.bf16.xpose.msra.mxu0 0
        %1656 = vmatprep.subr.bf16.mxu0 0
        %1657 = vmatpush1.bf16.xpose.msra.mxu0 0
        %1658 = vmatprep.subr.bf16.mxu0 0
        %1659 = vmatpush1.bf16.xpose.msra.mxu0 0
        %1660 = vmatprep.subr.bf16.mxu0 0
        %1661 = vmatpush1.bf16.xpose.msra.mxu0 0
        %1662 = vmatprep.subr.bf16.mxu0 0
        %1663 = vmatpush1.bf16.xpose.msra.mxu0 0
        %1664 = vmatprep.subr.bf16.mxu0 0
        %1665 = vmatpush1.bf16.xpose.msra.mxu0 0
        %1666 = vmatprep.subr.bf16.mxu0 0
        %1667 = vmatpush1.bf16.xpose.msra.mxu0 0
        %1668 = vmatprep.mubr.bf16.mxu0 0
        %1669 = vmatmul.mubr.bf16.gmra.mrb[0].mxu0 %v1631
        %v1670 = vpop.f32.mrb[0].mxu0
        %v1671 = vadd.f32 0.0, %v1670
        %v1672 = vpop.f32.mrb[0].mxu0
        %v1673 = vpop.f32.mrb[0].mxu0
        %v1674 = vpop.f32.mrb[0].mxu0
        %1675 = vdwg.mxu0
        %v1677 = vsel %vm805, %v1623, 0
        %v1680 = vsel %vm805, %v1627, 0
        %1682 = vmatprep.subr.bf16.mxu0 0
        %1683 = vmatpush1.bf16.xpose.msra.mxu0 %v1680
        %1684 = vmatprep.subr.bf16.mxu0 0
        %1685 = vmatpush1.bf16.xpose.msra.mxu0 0
        %1686 = vmatprep.subr.bf16.mxu0 0
        %1687 = vmatpush1.bf16.xpose.msra.mxu0 0
        %1688 = vmatprep.subr.bf16.mxu0 0
        %1689 = vmatpush1.bf16.xpose.msra.mxu0 0
        %1690 = vmatprep.subr.bf16.mxu0 0
        %1691 = vmatpush1.bf16.xpose.msra.mxu0 0
        %1692 = vmatprep.subr.bf16.mxu0 0
        %1693 = vmatpush1.bf16.xpose.msra.mxu0 0
        %1694 = vmatprep.subr.bf16.mxu0 0
        %1695 = vmatpush1.bf16.xpose.msra.mxu0 0
        %1696 = vmatprep.subr.bf16.mxu0 0
        %1697 = vmatpush1.bf16.xpose.msra.mxu0 0
        %1698 = vmatprep.subr.bf16.mxu0 0
        %1699 = vmatpush1.bf16.xpose.msra.mxu0 0
        %1700 = vmatprep.subr.bf16.mxu0 0
        %1701 = vmatpush1.bf16.xpose.msra.mxu0 0
        %1702 = vmatprep.subr.bf16.mxu0 0
        %1703 = vmatpush1.bf16.xpose.msra.mxu0 0
        %1704 = vmatprep.subr.bf16.mxu0 0
        %1705 = vmatpush1.bf16.xpose.msra.mxu0 0
        %1706 = vmatprep.subr.bf16.mxu0 0
        %1707 = vmatpush1.bf16.xpose.msra.mxu0 0
        %1708 = vmatprep.subr.bf16.mxu0 0
        %1709 = vmatpush1.bf16.xpose.msra.mxu0 0
        %1710 = vmatprep.subr.bf16.mxu0 0
        %1711 = vmatpush1.bf16.xpose.msra.mxu0 0
        %1712 = vmatprep.subr.bf16.mxu0 0
        %1713 = vmatpush1.bf16.xpose.msra.mxu0 0
        %1714 = vmatprep.mubr.bf16.mxu0 0
        %1715 = vmatmul.mubr.bf16.gmra.mrb[0].mxu0 %v1677
        %v1716 = vpop.f32.mrb[0].mxu0
        %v1717 = vadd.f32 0.0, %v1716
        %v1718 = vpop.f32.mrb[0].mxu0
        %v1719 = vpop.f32.mrb[0].mxu0
        %v1720 = vpop.f32.mrb[0].mxu0
        %1721 = vdwg.mxu0
        %v1723 = vsel %vm805, %v1624, 0
        %v1726 = vsel %vm805, %v1628, 0
        %1728 = vmatprep.subr.bf16.mxu0 0
        %1729 = vmatpush1.bf16.xpose.msra.mxu0 %v1726
        %1730 = vmatprep.subr.bf16.mxu0 0
        %1731 = vmatpush1.bf16.xpose.msra.mxu0 0
        %1732 = vmatprep.subr.bf16.mxu0 0
        %1733 = vmatpush1.bf16.xpose.msra.mxu0 0
        %1734 = vmatprep.subr.bf16.mxu0 0
        %1735 = vmatpush1.bf16.xpose.msra.mxu0 0
        %1736 = vmatprep.subr.bf16.mxu0 0
        %1737 = vmatpush1.bf16.xpose.msra.mxu0 0
        %1738 = vmatprep.subr.bf16.mxu0 0
        %1739 = vmatpush1.bf16.xpose.msra.mxu0 0
        %1740 = vmatprep.subr.bf16.mxu0 0
        %1741 = vmatpush1.bf16.xpose.msra.mxu0 0
        %1742 = vmatprep.subr.bf16.mxu0 0
        %1743 = vmatpush1.bf16.xpose.msra.mxu0 0
        %1744 = vmatprep.subr.bf16.mxu0 0
        %1745 = vmatpush1.bf16.xpose.msra.mxu0 0
        %1746 = vmatprep.subr.bf16.mxu0 0
        %1747 = vmatpush1.bf16.xpose.msra.mxu0 0
        %1748 = vmatprep.subr.bf16.mxu0 0
        %1749 = vmatpush1.bf16.xpose.msra.mxu0 0
        %1750 = vmatprep.subr.bf16.mxu0 0
        %1751 = vmatpush1.bf16.xpose.msra.mxu0 0
        %1752 = vmatprep.subr.bf16.mxu0 0
        %1753 = vmatpush1.bf16.xpose.msra.mxu0 0
        %1754 = vmatprep.subr.bf16.mxu0 0
        %1755 = vmatpush1.bf16.xpose.msra.mxu0 0
        %1756 = vmatprep.subr.bf16.mxu0 0
        %1757 = vmatpush1.bf16.xpose.msra.mxu0 0
        %1758 = vmatprep.subr.bf16.mxu0 0
        %1759 = vmatpush1.bf16.xpose.msra.mxu0 0
        %1760 = vmatprep.mubr.bf16.mxu0 0
        %1761 = vmatmul.mubr.bf16.gmra.mrb[0].mxu0 %v1723
        %v1762 = vpop.f32.mrb[0].mxu0
        %v1763 = vadd.f32 0.0, %v1762
        %v1764 = vpop.f32.mrb[0].mxu0
        %v1765 = vpop.f32.mrb[0].mxu0
        %v1766 = vpop.f32.mrb[0].mxu0
        %1767 = vdwg.mxu0
        %v1769 = vsel %vm805, %v1625, 0
        %v1772 = vsel %vm805, %v1629, 0
        %1774 = vmatprep.subr.bf16.mxu0 0
        %1775 = vmatpush1.bf16.xpose.msra.mxu0 %v1772
        %1776 = vmatprep.subr.bf16.mxu0 0
        %1777 = vmatpush1.bf16.xpose.msra.mxu0 0
        %1778 = vmatprep.subr.bf16.mxu0 0
        %1779 = vmatpush1.bf16.xpose.msra.mxu0 0
        %1780 = vmatprep.subr.bf16.mxu0 0
        %1781 = vmatpush1.bf16.xpose.msra.mxu0 0
        %1782 = vmatprep.subr.bf16.mxu0 0
        %1783 = vmatpush1.bf16.xpose.msra.mxu0 0
        %1784 = vmatprep.subr.bf16.mxu0 0
        %1785 = vmatpush1.bf16.xpose.msra.mxu0 0
        %1786 = vmatprep.subr.bf16.mxu0 0
        %1787 = vmatpush1.bf16.xpose.msra.mxu0 0
        %1788 = vmatprep.subr.bf16.mxu0 0
        %1789 = vmatpush1.bf16.xpose.msra.mxu0 0
        %1790 = vmatprep.subr.bf16.mxu0 0
        %1791 = vmatpush1.bf16.xpose.msra.mxu0 0
        %1792 = vmatprep.subr.bf16.mxu0 0
        %1793 = vmatpush1.bf16.xpose.msra.mxu0 0
        %1794 = vmatprep.subr.bf16.mxu0 0
        %1795 = vmatpush1.bf16.xpose.msra.mxu0 0
        %1796 = vmatprep.subr.bf16.mxu0 0
        %1797 = vmatpush1.bf16.xpose.msra.mxu0 0
        %1798 = vmatprep.subr.bf16.mxu0 0
        %1799 = vmatpush1.bf16.xpose.msra.mxu0 0
        %1800 = vmatprep.subr.bf16.mxu0 0
        %1801 = vmatpush1.bf16.xpose.msra.mxu0 0
        %1802 = vmatprep.subr.bf16.mxu0 0
        %1803 = vmatpush1.bf16.xpose.msra.mxu0 0
        %1804 = vmatprep.subr.bf16.mxu0 0
        %1805 = vmatpush1.bf16.xpose.msra.mxu0 0
        %1806 = vmatprep.mubr.bf16.mxu0 0
        %1807 = vmatmul.mubr.bf16.gmra.mrb[0].mxu0 %v1769
        %v1808 = vpop.f32.mrb[0].mxu0
        %v1809 = vadd.f32 0.0, %v1808
        %v1810 = vpop.f32.mrb[0].mxu0
        %v1811 = vpop.f32.mrb[0].mxu0
        %v1812 = vpop.f32.mrb[0].mxu0
        %1813 = vdwg.mxu0
        %v1814 = vmul.f32 %v1671, 0.35355338
        %v1815 = vmul.f32 %v1717, 0.35355338
        %v1816 = vmul.f32 %v1763, 0.35355338
        %v1817 = vmul.f32 %v1809, 0.35355338
        %v1818 = vadd.f32 %v1814, %v613
        %v1819 = vadd.f32 %v1815, %v613
        %v1820 = vadd.f32 %v1816, %v613
        %v1821 = vadd.f32 %v1817, %v613
        %vm1822 = vcmask 73728
        %v1823 = vsel %vm1822, %v1818, -inf
        %1824 = vmax.xlane.f32.xlu0 %v1823
        %v1825 = vpop.xlane.xlu0 %1824
        %v1826 = vsel %vm1822, %v1819, -inf
        %1827 = vmax.xlane.f32.xlu0 %v1826
        %v1828 = vpop.xlane.xlu0 %1827
        %v1829 = vsel %vm1822, %v1820, -inf
        %1830 = vmax.xlane.f32.xlu0 %v1829
        %v1831 = vpop.xlane.xlu0 %1830
        %v1832 = vsel %vm1822, %v1821, -inf
        %1833 = vmax.xlane.f32.xlu0 %v1832
        %v1834 = vpop.xlane.xlu0 %1833
        %v1835 = vsub.f32 %v1818, %v1825
        %v1836 = vsub.f32 %v1819, %v1828
        %v1837 = vsub.f32 %v1820, %v1831
        %v1838 = vsub.f32 %v1821, %v1834
        %v1839 = vmul.f32 %v1835, 1.442695
        %v1840 = vpow.pop %v1839
        %v1841 = vmul.f32 %v1836, 1.442695
        %v1842 = vpow.pop %v1841
        %v1843 = vmul.f32 %v1837, 1.442695
        %v1844 = vpow.pop %v1843
        %v1845 = vmul.f32 %v1838, 1.442695
        %v1846 = vpow.pop %v1845
        %v1847 = vsel %vm1822, %v1840, 0.0
        %1848 = vadd.xlane.f32.xlu0 %v1847
        %v1849 = vpop.xlane.xlu0 %1848
        %v1850 = vsel %vm1822, %v1842, 0.0
        %1851 = vadd.xlane.f32.xlu0 %v1850
        %v1852 = vpop.xlane.xlu0 %1851
        %v1853 = vsel %vm1822, %v1844, 0.0
        %1854 = vadd.xlane.f32.xlu0 %v1853
        %v1855 = vpop.xlane.xlu0 %1854
        %v1856 = vsel %vm1822, %v1846, 0.0
        %1857 = vadd.xlane.f32.xlu0 %v1856
        %v1858 = vpop.xlane.xlu0 %1857
        %v1859 = vrcp.pop %v1849
        %v1860 = vrcp.pop %v1852
        %v1861 = vrcp.pop %v1855
        %v1862 = vrcp.pop %v1858
        %v1863 = vmul.f32 %v1840, %v1859
        %v1864 = vmul.f32 %v1842, %v1860
        %v1865 = vmul.f32 %v1844, %v1861
        %v1866 = vmul.f32 %v1846, %v1862
        %v1867 = vpack.c.bf16 %v1863, %v1863
        %v1868 = vpack.c.bf16 %v1864, %v1864
        %v1869 = vpack.c.bf16 %v1865, %v1865
        %v1870 = vpack.c.bf16 %v1866, %v1866
        %v1871 = vpack.c.bf16 %v1601, %v1599
        %v1872 = vpack.c.bf16 %v1607, %v1605
        %v1873 = vpack.c.bf16 %v1613, %v1611
        %v1874 = vpack.c.bf16 %v1619, %v1617
        %vm1875 = vcmask 80896
        %v1877 = vsel %vm1875, %v1867, 0
        %vm1879 = vcmask 1044480
        %v1881 = vsel %vm1879, %v1871, 0
        %1883 = vmatprep.subr.bf16.mxu0 0
        %1884 = vmatpush1.bf16.msra.mxu0 %v1881
        %1885 = vmatprep.subr.bf16.mxu0 0
        %1886 = vmatpush1.bf16.msra.mxu0 0
        %1887 = vmatprep.subr.bf16.mxu0 0
        %1888 = vmatpush1.bf16.msra.mxu0 0
        %1889 = vmatprep.subr.bf16.mxu0 0
        %1890 = vmatpush1.bf16.msra.mxu0 0
        %1891 = vmatprep.subr.bf16.mxu0 0
        %1892 = vmatpush1.bf16.msra.mxu0 0
        %1893 = vmatprep.subr.bf16.mxu0 0
        %1894 = vmatpush1.bf16.msra.mxu0 0
        %1895 = vmatprep.subr.bf16.mxu0 0
        %1896 = vmatpush1.bf16.msra.mxu0 0
        %1897 = vmatprep.subr.bf16.mxu0 0
        %1898 = vmatpush1.bf16.msra.mxu0 0
        %1899 = vmatprep.subr.bf16.mxu0 0
        %1900 = vmatpush1.bf16.msra.mxu0 0
        %1901 = vmatprep.subr.bf16.mxu0 0
        %1902 = vmatpush1.bf16.msra.mxu0 0
        %1903 = vmatprep.subr.bf16.mxu0 0
        %1904 = vmatpush1.bf16.msra.mxu0 0
        %1905 = vmatprep.subr.bf16.mxu0 0
        %1906 = vmatpush1.bf16.msra.mxu0 0
        %1907 = vmatprep.subr.bf16.mxu0 0
        %1908 = vmatpush1.bf16.msra.mxu0 0
        %1909 = vmatprep.subr.bf16.mxu0 0
        %1910 = vmatpush1.bf16.msra.mxu0 0
        %1911 = vmatprep.subr.bf16.mxu0 0
        %1912 = vmatpush1.bf16.msra.mxu0 0
        %1913 = vmatprep.subr.bf16.mxu0 0
        %1914 = vmatpush1.bf16.msra.mxu0 0
        %1915 = vmatprep.mubr.bf16.mxu0 0
        %1916 = vmatmul.mubr.bf16.gmra.mrb[0].mxu0 %v1877
        %v1917 = vpop.f32.mrb[0].mxu0
        %v1918 = vadd.f32 0.0, %v1917
        %v1919 = vpop.f32.mrb[0].mxu0
        %v1920 = vpop.f32.mrb[0].mxu0
        %v1921 = vpop.f32.mrb[0].mxu0
        %1922 = vdwg.mxu0
        %v1924 = vsel %vm1875, %v1868, 0
        %v1927 = vsel %vm1879, %v1872, 0
        %1929 = vmatprep.subr.bf16.mxu0 0
        %1930 = vmatpush1.bf16.msra.mxu0 %v1927
        %1931 = vmatprep.subr.bf16.mxu0 0
        %1932 = vmatpush1.bf16.msra.mxu0 0
        %1933 = vmatprep.subr.bf16.mxu0 0
        %1934 = vmatpush1.bf16.msra.mxu0 0
        %1935 = vmatprep.subr.bf16.mxu0 0
        %1936 = vmatpush1.bf16.msra.mxu0 0
        %1937 = vmatprep.subr.bf16.mxu0 0
        %1938 = vmatpush1.bf16.msra.mxu0 0
        %1939 = vmatprep.subr.bf16.mxu0 0
        %1940 = vmatpush1.bf16.msra.mxu0 0
        %1941 = vmatprep.subr.bf16.mxu0 0
        %1942 = vmatpush1.bf16.msra.mxu0 0
        %1943 = vmatprep.subr.bf16.mxu0 0
        %1944 = vmatpush1.bf16.msra.mxu0 0
        %1945 = vmatprep.subr.bf16.mxu0 0
        %1946 = vmatpush1.bf16.msra.mxu0 0
        %1947 = vmatprep.subr.bf16.mxu0 0
        %1948 = vmatpush1.bf16.msra.mxu0 0
        %1949 = vmatprep.subr.bf16.mxu0 0
        %1950 = vmatpush1.bf16.msra.mxu0 0
        %1951 = vmatprep.subr.bf16.mxu0 0
        %1952 = vmatpush1.bf16.msra.mxu0 0
        %1953 = vmatprep.subr.bf16.mxu0 0
        %1954 = vmatpush1.bf16.msra.mxu0 0
        %1955 = vmatprep.subr.bf16.mxu0 0
        %1956 = vmatpush1.bf16.msra.mxu0 0
        %1957 = vmatprep.subr.bf16.mxu0 0
        %1958 = vmatpush1.bf16.msra.mxu0 0
        %1959 = vmatprep.subr.bf16.mxu0 0
        %1960 = vmatpush1.bf16.msra.mxu0 0
        %1961 = vmatprep.mubr.bf16.mxu0 0
        %1962 = vmatmul.mubr.bf16.gmra.mrb[0].mxu0 %v1924
        %v1963 = vpop.f32.mrb[0].mxu0
        %v1964 = vadd.f32 0.0, %v1963
        %v1965 = vpop.f32.mrb[0].mxu0
        %v1966 = vpop.f32.mrb[0].mxu0
        %v1967 = vpop.f32.mrb[0].mxu0
        %1968 = vdwg.mxu0
        %v1970 = vsel %vm1875, %v1869, 0
        %v1973 = vsel %vm1879, %v1873, 0
        %1975 = vmatprep.subr.bf16.mxu0 0
        %1976 = vmatpush1.bf16.msra.mxu0 %v1973
        %1977 = vmatprep.subr.bf16.mxu0 0
        %1978 = vmatpush1.bf16.msra.mxu0 0
        %1979 = vmatprep.subr.bf16.mxu0 0
        %1980 = vmatpush1.bf16.msra.mxu0 0
        %1981 = vmatprep.subr.bf16.mxu0 0
        %1982 = vmatpush1.bf16.msra.mxu0 0
        %1983 = vmatprep.subr.bf16.mxu0 0
        %1984 = vmatpush1.bf16.msra.mxu0 0
        %1985 = vmatprep.subr.bf16.mxu0 0
        %1986 = vmatpush1.bf16.msra.mxu0 0
        %1987 = vmatprep.subr.bf16.mxu0 0
        %1988 = vmatpush1.bf16.msra.mxu0 0
        %1989 = vmatprep.subr.bf16.mxu0 0
        %1990 = vmatpush1.bf16.msra.mxu0 0
        %1991 = vmatprep.subr.bf16.mxu0 0
        %1992 = vmatpush1.bf16.msra.mxu0 0
        %1993 = vmatprep.subr.bf16.mxu0 0
        %1994 = vmatpush1.bf16.msra.mxu0 0
        %1995 = vmatprep.subr.bf16.mxu0 0
        %1996 = vmatpush1.bf16.msra.mxu0 0
        %1997 = vmatprep.subr.bf16.mxu0 0
        %1998 = vmatpush1.bf16.msra.mxu0 0
        %1999 = vmatprep.subr.bf16.mxu0 0
        %2000 = vmatpush1.bf16.msra.mxu0 0
        %2001 = vmatprep.subr.bf16.mxu0 0
        %2002 = vmatpush1.bf16.msra.mxu0 0
        %2003 = vmatprep.subr.bf16.mxu0 0
        %2004 = vmatpush1.bf16.msra.mxu0 0
        %2005 = vmatprep.subr.bf16.mxu0 0
        %2006 = vmatpush1.bf16.msra.mxu0 0
        %2007 = vmatprep.mubr.bf16.mxu0 0
        %2008 = vmatmul.mubr.bf16.gmra.mrb[0].mxu0 %v1970
        %v2009 = vpop.f32.mrb[0].mxu0
        %v2010 = vadd.f32 0.0, %v2009
        %v2011 = vpop.f32.mrb[0].mxu0
        %v2012 = vpop.f32.mrb[0].mxu0
        %v2013 = vpop.f32.mrb[0].mxu0
        %2014 = vdwg.mxu0
        %v2016 = vsel %vm1875, %v1870, 0
        %v2019 = vsel %vm1879, %v1874, 0
        %2021 = vmatprep.subr.bf16.mxu0 0
        %2022 = vmatpush1.bf16.msra.mxu0 %v2019
        %2023 = vmatprep.subr.bf16.mxu0 0
        %2024 = vmatpush1.bf16.msra.mxu0 0
        %2025 = vmatprep.subr.bf16.mxu0 0
        %2026 = vmatpush1.bf16.msra.mxu0 0
        %2027 = vmatprep.subr.bf16.mxu0 0
        %2028 = vmatpush1.bf16.msra.mxu0 0
        %2029 = vmatprep.subr.bf16.mxu0 0
        %2030 = vmatpush1.bf16.msra.mxu0 0
        %2031 = vmatprep.subr.bf16.mxu0 0
        %2032 = vmatpush1.bf16.msra.mxu0 0
        %2033 = vmatprep.subr.bf16.mxu0 0
        %2034 = vmatpush1.bf16.msra.mxu0 0
        %2035 = vmatprep.subr.bf16.mxu0 0
        %2036 = vmatpush1.bf16.msra.mxu0 0
        %2037 = vmatprep.subr.bf16.mxu0 0
        %2038 = vmatpush1.bf16.msra.mxu0 0
        %2039 = vmatprep.subr.bf16.mxu0 0
        %2040 = vmatpush1.bf16.msra.mxu0 0
        %2041 = vmatprep.subr.bf16.mxu0 0
        %2042 = vmatpush1.bf16.msra.mxu0 0
        %2043 = vmatprep.subr.bf16.mxu0 0
        %2044 = vmatpush1.bf16.msra.mxu0 0
        %2045 = vmatprep.subr.bf16.mxu0 0
        %2046 = vmatpush1.bf16.msra.mxu0 0
        %2047 = vmatprep.subr.bf16.mxu0 0
        %2048 = vmatpush1.bf16.msra.mxu0 0
        %2049 = vmatprep.subr.bf16.mxu0 0
        %2050 = vmatpush1.bf16.msra.mxu0 0
        %2051 = vmatprep.subr.bf16.mxu0 0
        %2052 = vmatpush1.bf16.msra.mxu0 0
        %2053 = vmatprep.mubr.bf16.mxu0 0
        %2054 = vmatmul.mubr.bf16.gmra.mrb[0].mxu0 %v2016
        %v2055 = vpop.f32.mrb[0].mxu0
        %v2056 = vadd.f32 0.0, %v2055
        %v2057 = vpop.f32.mrb[0].mxu0
        %v2058 = vpop.f32.mrb[0].mxu0
        %v2059 = vpop.f32.mrb[0].mxu0
        %2060 = vdwg.mxu0
        %v2061 = vpack.c.bf16 %v1918, %v1918
        %v2062 = vpack.c.bf16 %v1964, %v1964
        %v2063 = vpack.c.bf16 %v2010, %v2010
        %v2064 = vpack.c.bf16 %v2056, %v2056
        %v2066 = vsel %vm805, %v2061, 0
        %v2069 = vsel %vm1227, %v1447, 0
        %2071 = vmatprep.subr.bf16.mxu0 0
        %2072 = vmatpush1.bf16.msra.mxu0 %v2069
        %2073 = vmatprep.subr.bf16.mxu0 0
        %2074 = vmatpush1.bf16.msra.mxu0 0
        %2075 = vmatprep.subr.bf16.mxu0 0
        %2076 = vmatpush1.bf16.msra.mxu0 0
        %2077 = vmatprep.subr.bf16.mxu0 0
        %2078 = vmatpush1.bf16.msra.mxu0 0
        %2079 = vmatprep.subr.bf16.mxu0 0
        %2080 = vmatpush1.bf16.msra.mxu0 0
        %2081 = vmatprep.subr.bf16.mxu0 0
        %2082 = vmatpush1.bf16.msra.mxu0 0
        %2083 = vmatprep.subr.bf16.mxu0 0
        %2084 = vmatpush1.bf16.msra.mxu0 0
        %2085 = vmatprep.subr.bf16.mxu0 0
        %2086 = vmatpush1.bf16.msra.mxu0 0
        %2087 = vmatprep.subr.bf16.mxu0 0
        %2088 = vmatpush1.bf16.msra.mxu0 0
        %2089 = vmatprep.subr.bf16.mxu0 0
        %2090 = vmatpush1.bf16.msra.mxu0 0
        %2091 = vmatprep.subr.bf16.mxu0 0
        %2092 = vmatpush1.bf16.msra.mxu0 0
        %2093 = vmatprep.subr.bf16.mxu0 0
        %2094 = vmatpush1.bf16.msra.mxu0 0
        %2095 = vmatprep.subr.bf16.mxu0 0
        %2096 = vmatpush1.bf16.msra.mxu0 0
        %2097 = vmatprep.subr.bf16.mxu0 0
        %2098 = vmatpush1.bf16.msra.mxu0 0
        %2099 = vmatprep.subr.bf16.mxu0 0
        %2100 = vmatpush1.bf16.msra.mxu0 0
        %2101 = vmatprep.subr.bf16.mxu0 0
        %2102 = vmatpush1.bf16.msra.mxu0 0
        %2103 = vmatprep.mubr.bf16.mxu0 0
        %2104 = vmatmul.mubr.bf16.gmra.mrb[0].mxu0 %v2066
        %v2105 = vpop.f32.mrb[0].mxu0
        %v2106 = vadd.f32 0.0, %v2105
        %v2107 = vpop.f32.mrb[0].mxu0
        %v2108 = vpop.f32.mrb[0].mxu0
        %v2109 = vpop.f32.mrb[0].mxu0
        %2110 = vdwg.mxu0
        %v2112 = vsel %vm805, %v2062, 0
        %v2115 = vsel %vm1227, %v1448, 0
        %2117 = vmatprep.subr.bf16.mxu0 0
        %2118 = vmatpush1.bf16.msra.mxu0 %v2115
        %2119 = vmatprep.subr.bf16.mxu0 0
        %2120 = vmatpush1.bf16.msra.mxu0 0
        %2121 = vmatprep.subr.bf16.mxu0 0
        %2122 = vmatpush1.bf16.msra.mxu0 0
        %2123 = vmatprep.subr.bf16.mxu0 0
        %2124 = vmatpush1.bf16.msra.mxu0 0
        %2125 = vmatprep.subr.bf16.mxu0 0
        %2126 = vmatpush1.bf16.msra.mxu0 0
        %2127 = vmatprep.subr.bf16.mxu0 0
        %2128 = vmatpush1.bf16.msra.mxu0 0
        %2129 = vmatprep.subr.bf16.mxu0 0
        %2130 = vmatpush1.bf16.msra.mxu0 0
        %2131 = vmatprep.subr.bf16.mxu0 0
        %2132 = vmatpush1.bf16.msra.mxu0 0
        %2133 = vmatprep.subr.bf16.mxu0 0
        %2134 = vmatpush1.bf16.msra.mxu0 0
        %2135 = vmatprep.subr.bf16.mxu0 0
        %2136 = vmatpush1.bf16.msra.mxu0 0
        %2137 = vmatprep.subr.bf16.mxu0 0
        %2138 = vmatpush1.bf16.msra.mxu0 0
        %2139 = vmatprep.subr.bf16.mxu0 0
        %2140 = vmatpush1.bf16.msra.mxu0 0
        %2141 = vmatprep.subr.bf16.mxu0 0
        %2142 = vmatpush1.bf16.msra.mxu0 0
        %2143 = vmatprep.subr.bf16.mxu0 0
        %2144 = vmatpush1.bf16.msra.mxu0 0
        %2145 = vmatprep.subr.bf16.mxu0 0
        %2146 = vmatpush1.bf16.msra.mxu0 0
        %2147 = vmatprep.subr.bf16.mxu0 0
        %2148 = vmatpush1.bf16.msra.mxu0 0
        %2149 = vmatprep.mubr.bf16.mxu0 0
        %2150 = vmatmul.mubr.bf16.gmra.mrb[0].mxu0 %v2112
        %v2151 = vpop.f32.mrb[0].mxu0
        %v2152 = vadd.f32 0.0, %v2151
        %v2153 = vpop.f32.mrb[0].mxu0
        %v2154 = vpop.f32.mrb[0].mxu0
        %v2155 = vpop.f32.mrb[0].mxu0
        %2156 = vdwg.mxu0
        %v2158 = vsel %vm805, %v2063, 0
        %v2161 = vsel %vm1227, %v1449, 0
        %2163 = vmatprep.subr.bf16.mxu0 0
        %2164 = vmatpush1.bf16.msra.mxu0 %v2161
        %2165 = vmatprep.subr.bf16.mxu0 0
        %2166 = vmatpush1.bf16.msra.mxu0 0
        %2167 = vmatprep.subr.bf16.mxu0 0
        %2168 = vmatpush1.bf16.msra.mxu0 0
        %2169 = vmatprep.subr.bf16.mxu0 0
        %2170 = vmatpush1.bf16.msra.mxu0 0
        %2171 = vmatprep.subr.bf16.mxu0 0
        %2172 = vmatpush1.bf16.msra.mxu0 0
        %2173 = vmatprep.subr.bf16.mxu0 0
        %2174 = vmatpush1.bf16.msra.mxu0 0
        %2175 = vmatprep.subr.bf16.mxu0 0
        %2176 = vmatpush1.bf16.msra.mxu0 0
        %2177 = vmatprep.subr.bf16.mxu0 0
        %2178 = vmatpush1.bf16.msra.mxu0 0
        %2179 = vmatprep.subr.bf16.mxu0 0
        %2180 = vmatpush1.bf16.msra.mxu0 0
        %2181 = vmatprep.subr.bf16.mxu0 0
        %2182 = vmatpush1.bf16.msra.mxu0 0
        %2183 = vmatprep.subr.bf16.mxu0 0
        %2184 = vmatpush1.bf16.msra.mxu0 0
        %2185 = vmatprep.subr.bf16.mxu0 0
        %2186 = vmatpush1.bf16.msra.mxu0 0
        %2187 = vmatprep.subr.bf16.mxu0 0
        %2188 = vmatpush1.bf16.msra.mxu0 0
        %2189 = vmatprep.subr.bf16.mxu0 0
        %2190 = vmatpush1.bf16.msra.mxu0 0
        %2191 = vmatprep.subr.bf16.mxu0 0
        %2192 = vmatpush1.bf16.msra.mxu0 0
        %2193 = vmatprep.subr.bf16.mxu0 0
        %2194 = vmatpush1.bf16.msra.mxu0 0
        %2195 = vmatprep.mubr.bf16.mxu0 0
        %2196 = vmatmul.mubr.bf16.gmra.mrb[0].mxu0 %v2158
        %v2197 = vpop.f32.mrb[0].mxu0
        %v2198 = vadd.f32 0.0, %v2197
        %v2199 = vpop.f32.mrb[0].mxu0
        %v2200 = vpop.f32.mrb[0].mxu0
        %v2201 = vpop.f32.mrb[0].mxu0
        %2202 = vdwg.mxu0
        %v2204 = vsel %vm805, %v2064, 0
        %v2207 = vsel %vm1227, %v1450, 0
        %2209 = vmatprep.subr.bf16.mxu0 0
        %2210 = vmatpush1.bf16.msra.mxu0 %v2207
        %2211 = vmatprep.subr.bf16.mxu0 0
        %2212 = vmatpush1.bf16.msra.mxu0 0
        %2213 = vmatprep.subr.bf16.mxu0 0
        %2214 = vmatpush1.bf16.msra.mxu0 0
        %2215 = vmatprep.subr.bf16.mxu0 0
        %2216 = vmatpush1.bf16.msra.mxu0 0
        %2217 = vmatprep.subr.bf16.mxu0 0
        %2218 = vmatpush1.bf16.msra.mxu0 0
        %2219 = vmatprep.subr.bf16.mxu0 0
        %2220 = vmatpush1.bf16.msra.mxu0 0
        %2221 = vmatprep.subr.bf16.mxu0 0
        %2222 = vmatpush1.bf16.msra.mxu0 0
        %2223 = vmatprep.subr.bf16.mxu0 0
        %2224 = vmatpush1.bf16.msra.mxu0 0
        %2225 = vmatprep.subr.bf16.mxu0 0
        %2226 = vmatpush1.bf16.msra.mxu0 0
        %2227 = vmatprep.subr.bf16.mxu0 0
        %2228 = vmatpush1.bf16.msra.mxu0 0
        %2229 = vmatprep.subr.bf16.mxu0 0
        %2230 = vmatpush1.bf16.msra.mxu0 0
        %2231 = vmatprep.subr.bf16.mxu0 0
        %2232 = vmatpush1.bf16.msra.mxu0 0
        %2233 = vmatprep.subr.bf16.mxu0 0
        %2234 = vmatpush1.bf16.msra.mxu0 0
        %2235 = vmatprep.subr.bf16.mxu0 0
        %2236 = vmatpush1.bf16.msra.mxu0 0
        %2237 = vmatprep.subr.bf16.mxu0 0
        %2238 = vmatpush1.bf16.msra.mxu0 0
        %2239 = vmatprep.subr.bf16.mxu0 0
        %2240 = vmatpush1.bf16.msra.mxu0 0
        %2241 = vmatprep.mubr.bf16.mxu0 0
        %2242 = vmatmul.mubr.bf16.gmra.mrb[0].mxu0 %v2204
        %v2243 = vpop.f32.mrb[0].mxu0
        %v2244 = vadd.f32 0.0, %v2243
        %v2245 = vpop.f32.mrb[0].mxu0
        %v2246 = vpop.f32.mrb[0].mxu0
        %v2247 = vpop.f32.mrb[0].mxu0
        %2248 = vdwg.mxu0
        %v2249 = vsel %vm1409, %v2106, 0.0
        %v2250 = vsel %vm1409, %v2152, 0.0
        %v2251 = vadd.f32 %v2249, %v2250
        %v2252 = vsel %vm1409, %v2198, 0.0
        %v2253 = vadd.f32 %v2251, %v2252
        %v2254 = vsel %vm1409, %v2244, 0.0
        %v2255 = vadd.f32 %v2253, %v2254
        %v2256 = vadd.f32 %v2255, %v1452
        %v2257 = vsel %vm1409, %v2256, 0.0
        %2258 = vadd.xlane.f32.xlu0 %v2257
        %v2259 = vpop.xlane.xlu0 %2258
        %v2260 = vmul.f32 %v2259, %v1421
        %v2261 = vsub.f32 %v2256, %v2260
        %v2262 = vmul.f32 %v2261, %v2261
        %v2263 = vsel %vm1409, %v2262, 0.0
        %2264 = vadd.xlane.f32.xlu0 %v2263
        %v2265 = vpop.xlane.xlu0 %2264
        %v2266 = vmul.f32 %v2265, %v1421
        %v2267 = vadd.f32 %v2266, 1e-05
        %v2268 = vrsqrt.pop %v2267
        %v2269 = vmul.f32 %v2261, %v2268
        %v2271 = vrot.slane %v1452, 1
        %v2273 = vmul.f32 %v2269, %v2271
        %v2274 = vrot.slane %v1452, 2
        %v2276 = vadd.f32 %v2273, %v2274
        %s2277 = scalar_lea.vmem %s4, 32
        %v2278 = vld [vmem:[%s2277] sm:$0xf]
        %v2279 = vld [vmem:[%s2277 + $0x4] sm:$0xf]
        %v2280 = vld [vmem:[%s2277 + $0x8] sm:$0xf]
        %v2281 = vld [vmem:[%s2277 + $0xc] sm:$0xf]
        %s2282 = scalar_lea.vmem %s5, 2
        %v2283 = vld [vmem:[%s2282] sm:$0x1]
        %s2284 = scalar_lea.vmem %s6, 32
        %v2285 = vld [vmem:[%s2284] sm:$0xf]
        %v2286 = vld [vmem:[%s2284 + $0x4] sm:$0xf]
        %v2287 = vld [vmem:[%s2284 + $0x8] sm:$0xf]
        %v2288 = vld [vmem:[%s2284 + $0xc] sm:$0xf]
        %s2289 = scalar_lea.vmem %s7, 8
        %v2290 = vld [vmem:[%s2289] sm:$0x7]
        %v2291 = vpack.c.bf16 %v1438, %v1438
        %v2296 = vunpack.c.l.b16 %v2278
        %v2297 = vunpack.c.l.b16 %v2279
        %v2298 = vunpack.c.l.b16 %v2280
        %v2299 = vunpack.c.l.b16 %v2281
        %v2300 = vpack.c.b16 %v2297, %v2296
        %v2301 = vpack.c.b16 %v2299, %v2298
        %2302 = vrot.lane.b32.xlu0 %v2300, 64
        %v2303 = vpop.permute.xlu0 %2302
        %2304 = vrot.lane.b32.xlu0 %v2301, 64
        %v2305 = vpop.permute.xlu0 %2304
        %v2309 = vlaneseq
        %v2310 = vshrl.u32 %v2309, 7
        %v2311 = vsub.s32 0, %v2310
        %v2312 = vrot.slane %v2283, %v2311
        %2313 = vrot.lane.b32.xlu0 %v2312, 64
        %v2314 = vpop.permute.xlu0 %2313
        %v2317 = vsel %vm640, %v2291, 0
        %2319 = vmatprep.subr.bf16.mxu0 0
        %2320 = vmatpush1.bf16.msra.mxu0 %v2303
        %2321 = vmatprep.subr.bf16.mxu0 0
        %2322 = vmatpush1.bf16.msra.mxu0 %v2305
        %2323 = vmatprep.subr.bf16.mxu0 0
        %2324 = vmatpush1.bf16.msra.mxu0 0
        %2325 = vmatprep.subr.bf16.mxu0 0
        %2326 = vmatpush1.bf16.msra.mxu0 0
        %2327 = vmatprep.subr.bf16.mxu0 0
        %2328 = vmatpush1.bf16.msra.mxu0 0
        %2329 = vmatprep.subr.bf16.mxu0 0
        %2330 = vmatpush1.bf16.msra.mxu0 0
        %2331 = vmatprep.subr.bf16.mxu0 0
        %2332 = vmatpush1.bf16.msra.mxu0 0
        %2333 = vmatprep.subr.bf16.mxu0 0
        %2334 = vmatpush1.bf16.msra.mxu0 0
        %2335 = vmatprep.subr.bf16.mxu0 0
        %2336 = vmatpush1.bf16.msra.mxu0 0
        %2337 = vmatprep.subr.bf16.mxu0 0
        %2338 = vmatpush1.bf16.msra.mxu0 0
        %2339 = vmatprep.subr.bf16.mxu0 0
        %2340 = vmatpush1.bf16.msra.mxu0 0
        %2341 = vmatprep.subr.bf16.mxu0 0
        %2342 = vmatpush1.bf16.msra.mxu0 0
        %2343 = vmatprep.subr.bf16.mxu0 0
        %2344 = vmatpush1.bf16.msra.mxu0 0
        %2345 = vmatprep.subr.bf16.mxu0 0
        %2346 = vmatpush1.bf16.msra.mxu0 0
        %2347 = vmatprep.subr.bf16.mxu0 0
        %2348 = vmatpush1.bf16.msra.mxu0 0
        %2349 = vmatprep.subr.bf16.mxu0 0
        %2350 = vmatpush1.bf16.msra.mxu0 0
        %2351 = vmatprep.mubr.bf16.mxu0 0
        %2352 = vmatmul.mubr.bf16.gmra.mrb[0].mxu0 %v2317
        %v2353 = vpop.f32.mrb[0].mxu0
        %v2354 = vadd.f32 %v2314, %v2353
        %v2355 = vpop.f32.mrb[0].mxu0
        %v2356 = vpop.f32.mrb[0].mxu0
        %v2357 = vpop.f32.mrb[0].mxu0
        %2358 = vdwg.mxu0
        %2360 = vrot.lane.b32.xlu0 %v2354, 120
        %v2361 = vpop.permute.xlu0 %2360
        %2363 = vrot.lane.b32.xlu0 %v2354, 112
        %v2364 = vpop.permute.xlu0 %2363
        %2366 = vrot.lane.b32.xlu0 %v2354, 104
        %v2367 = vpop.permute.xlu0 %2366
        %v2369 = vpack.c.bf16 %v2354, %v2354
        %v2370 = vpack.c.bf16 %v2361, %v2361
        %v2371 = vpack.c.bf16 %v2364, %v2364
        %v2372 = vpack.c.bf16 %v2367, %v2367
        %v2374 = vsel %vm805, %v2369, 0
        %v2377 = vsel %vm1227, %v2285, 0
        %2379 = vmatprep.subr.bf16.mxu0 0
        %2380 = vmatpush1.bf16.msra.mxu0 %v2377
        %2381 = vmatprep.subr.bf16.mxu0 0
        %2382 = vmatpush1.bf16.msra.mxu0 0
        %2383 = vmatprep.subr.bf16.mxu0 0
        %2384 = vmatpush1.bf16.msra.mxu0 0
        %2385 = vmatprep.subr.bf16.mxu0 0
        %2386 = vmatpush1.bf16.msra.mxu0 0
        %2387 = vmatprep.subr.bf16.mxu0 0
        %2388 = vmatpush1.bf16.msra.mxu0 0
        %2389 = vmatprep.subr.bf16.mxu0 0
        %2390 = vmatpush1.bf16.msra.mxu0 0
        %2391 = vmatprep.subr.bf16.mxu0 0
        %2392 = vmatpush1.bf16.msra.mxu0 0
        %2393 = vmatprep.subr.bf16.mxu0 0
        %2394 = vmatpush1.bf16.msra.mxu0 0
        %2395 = vmatprep.subr.bf16.mxu0 0
        %2396 = vmatpush1.bf16.msra.mxu0 0
        %2397 = vmatprep.subr.bf16.mxu0 0
        %2398 = vmatpush1.bf16.msra.mxu0 0
        %2399 = vmatprep.subr.bf16.mxu0 0
        %2400 = vmatpush1.bf16.msra.mxu0 0
        %2401 = vmatprep.subr.bf16.mxu0 0
        %2402 = vmatpush1.bf16.msra.mxu0 0
        %2403 = vmatprep.subr.bf16.mxu0 0
        %2404 = vmatpush1.bf16.msra.mxu0 0
        %2405 = vmatprep.subr.bf16.mxu0 0
        %2406 = vmatpush1.bf16.msra.mxu0 0
        %2407 = vmatprep.subr.bf16.mxu0 0
        %2408 = vmatpush1.bf16.msra.mxu0 0
        %2409 = vmatprep.subr.bf16.mxu0 0
        %2410 = vmatpush1.bf16.msra.mxu0 0
        %2411 = vmatprep.mubr.bf16.mxu0 0
        %2412 = vmatmul.mubr.bf16.gmra.mrb[0].mxu0 %v2374
        %v2413 = vpop.f32.mrb[0].mxu0
        %v2414 = vadd.f32 0.0, %v2413
        %v2415 = vpop.f32.mrb[0].mxu0
        %v2416 = vpop.f32.mrb[0].mxu0
        %v2417 = vpop.f32.mrb[0].mxu0
        %2418 = vdwg.mxu0
        %v2420 = vsel %vm805, %v2370, 0
        %v2423 = vsel %vm1227, %v2286, 0
        %2425 = vmatprep.subr.bf16.mxu0 0
        %2426 = vmatpush1.bf16.msra.mxu0 %v2423
        %2427 = vmatprep.subr.bf16.mxu0 0
        %2428 = vmatpush1.bf16.msra.mxu0 0
        %2429 = vmatprep.subr.bf16.mxu0 0
        %2430 = vmatpush1.bf16.msra.mxu0 0
        %2431 = vmatprep.subr.bf16.mxu0 0
        %2432 = vmatpush1.bf16.msra.mxu0 0
        %2433 = vmatprep.subr.bf16.mxu0 0
        %2434 = vmatpush1.bf16.msra.mxu0 0
        %2435 = vmatprep.subr.bf16.mxu0 0
        %2436 = vmatpush1.bf16.msra.mxu0 0
        %2437 = vmatprep.subr.bf16.mxu0 0
        %2438 = vmatpush1.bf16.msra.mxu0 0
        %2439 = vmatprep.subr.bf16.mxu0 0
        %2440 = vmatpush1.bf16.msra.mxu0 0
        %2441 = vmatprep.subr.bf16.mxu0 0
        %2442 = vmatpush1.bf16.msra.mxu0 0
        %2443 = vmatprep.subr.bf16.mxu0 0
        %2444 = vmatpush1.bf16.msra.mxu0 0
        %2445 = vmatprep.subr.bf16.mxu0 0
        %2446 = vmatpush1.bf16.msra.mxu0 0
        %2447 = vmatprep.subr.bf16.mxu0 0
        %2448 = vmatpush1.bf16.msra.mxu0 0
        %2449 = vmatprep.subr.bf16.mxu0 0
        %2450 = vmatpush1.bf16.msra.mxu0 0
        %2451 = vmatprep.subr.bf16.mxu0 0
        %2452 = vmatpush1.bf16.msra.mxu0 0
        %2453 = vmatprep.subr.bf16.mxu0 0
        %2454 = vmatpush1.bf16.msra.mxu0 0
        %2455 = vmatprep.subr.bf16.mxu0 0
        %2456 = vmatpush1.bf16.msra.mxu0 0
        %2457 = vmatprep.mubr.bf16.mxu0 0
        %2458 = vmatmul.mubr.bf16.gmra.mrb[0].mxu0 %v2420
        %v2459 = vpop.f32.mrb[0].mxu0
        %v2460 = vadd.f32 0.0, %v2459
        %v2461 = vpop.f32.mrb[0].mxu0
        %v2462 = vpop.f32.mrb[0].mxu0
        %v2463 = vpop.f32.mrb[0].mxu0
        %2464 = vdwg.mxu0
        %v2466 = vsel %vm805, %v2371, 0
        %v2469 = vsel %vm1227, %v2287, 0
        %2471 = vmatprep.subr.bf16.mxu0 0
        %2472 = vmatpush1.bf16.msra.mxu0 %v2469
        %2473 = vmatprep.subr.bf16.mxu0 0
        %2474 = vmatpush1.bf16.msra.mxu0 0
        %2475 = vmatprep.subr.bf16.mxu0 0
        %2476 = vmatpush1.bf16.msra.mxu0 0
        %2477 = vmatprep.subr.bf16.mxu0 0
        %2478 = vmatpush1.bf16.msra.mxu0 0
        %2479 = vmatprep.subr.bf16.mxu0 0
        %2480 = vmatpush1.bf16.msra.mxu0 0
        %2481 = vmatprep.subr.bf16.mxu0 0
        %2482 = vmatpush1.bf16.msra.mxu0 0
        %2483 = vmatprep.subr.bf16.mxu0 0
        %2484 = vmatpush1.bf16.msra.mxu0 0
        %2485 = vmatprep.subr.bf16.mxu0 0
        %2486 = vmatpush1.bf16.msra.mxu0 0
        %2487 = vmatprep.subr.bf16.mxu0 0
        %2488 = vmatpush1.bf16.msra.mxu0 0
        %2489 = vmatprep.subr.bf16.mxu0 0
        %2490 = vmatpush1.bf16.msra.mxu0 0
        %2491 = vmatprep.subr.bf16.mxu0 0
        %2492 = vmatpush1.bf16.msra.mxu0 0
        %2493 = vmatprep.subr.bf16.mxu0 0
        %2494 = vmatpush1.bf16.msra.mxu0 0
        %2495 = vmatprep.subr.bf16.mxu0 0
        %2496 = vmatpush1.bf16.msra.mxu0 0
        %2497 = vmatprep.subr.bf16.mxu0 0
        %2498 = vmatpush1.bf16.msra.mxu0 0
        %2499 = vmatprep.subr.bf16.mxu0 0
        %2500 = vmatpush1.bf16.msra.mxu0 0
        %2501 = vmatprep.subr.bf16.mxu0 0
        %2502 = vmatpush1.bf16.msra.mxu0 0
        %2503 = vmatprep.mubr.bf16.mxu0 0
        %2504 = vmatmul.mubr.bf16.gmra.mrb[0].mxu0 %v2466
        %v2505 = vpop.f32.mrb[0].mxu0
        %v2506 = vadd.f32 0.0, %v2505
        %v2507 = vpop.f32.mrb[0].mxu0
        %v2508 = vpop.f32.mrb[0].mxu0
        %v2509 = vpop.f32.mrb[0].mxu0
        %2510 = vdwg.mxu0
        %v2512 = vsel %vm805, %v2372, 0
        %v2515 = vsel %vm1227, %v2288, 0
        %2517 = vmatprep.subr.bf16.mxu0 0
        %2518 = vmatpush1.bf16.msra.mxu0 %v2515
        %2519 = vmatprep.subr.bf16.mxu0 0
        %2520 = vmatpush1.bf16.msra.mxu0 0
        %2521 = vmatprep.subr.bf16.mxu0 0
        %2522 = vmatpush1.bf16.msra.mxu0 0
        %2523 = vmatprep.subr.bf16.mxu0 0
        %2524 = vmatpush1.bf16.msra.mxu0 0
        %2525 = vmatprep.subr.bf16.mxu0 0
        %2526 = vmatpush1.bf16.msra.mxu0 0
        %2527 = vmatprep.subr.bf16.mxu0 0
        %2528 = vmatpush1.bf16.msra.mxu0 0
        %2529 = vmatprep.subr.bf16.mxu0 0
        %2530 = vmatpush1.bf16.msra.mxu0 0
        %2531 = vmatprep.subr.bf16.mxu0 0
        %2532 = vmatpush1.bf16.msra.mxu0 0
        %2533 = vmatprep.subr.bf16.mxu0 0
        %2534 = vmatpush1.bf16.msra.mxu0 0
        %2535 = vmatprep.subr.bf16.mxu0 0
        %2536 = vmatpush1.bf16.msra.mxu0 0
        %2537 = vmatprep.subr.bf16.mxu0 0
        %2538 = vmatpush1.bf16.msra.mxu0 0
        %2539 = vmatprep.subr.bf16.mxu0 0
        %2540 = vmatpush1.bf16.msra.mxu0 0
        %2541 = vmatprep.subr.bf16.mxu0 0
        %2542 = vmatpush1.bf16.msra.mxu0 0
        %2543 = vmatprep.subr.bf16.mxu0 0
        %2544 = vmatpush1.bf16.msra.mxu0 0
        %2545 = vmatprep.subr.bf16.mxu0 0
        %2546 = vmatpush1.bf16.msra.mxu0 0
        %2547 = vmatprep.subr.bf16.mxu0 0
        %2548 = vmatpush1.bf16.msra.mxu0 0
        %2549 = vmatprep.mubr.bf16.mxu0 0
        %2550 = vmatmul.mubr.bf16.gmra.mrb[0].mxu0 %v2512
        %v2551 = vpop.f32.mrb[0].mxu0
        %v2552 = vadd.f32 0.0, %v2551
        %v2553 = vpop.f32.mrb[0].mxu0
        %v2554 = vpop.f32.mrb[0].mxu0
        %v2555 = vpop.f32.mrb[0].mxu0
        %2556 = vdwg.mxu0
        %v2557 = vsel %vm1409, %v2414, 0.0
        %v2558 = vsel %vm1409, %v2460, 0.0
        %v2559 = vadd.f32 %v2557, %v2558
        %v2560 = vsel %vm1409, %v2506, 0.0
        %v2561 = vadd.f32 %v2559, %v2560
        %v2562 = vsel %vm1409, %v2552, 0.0
        %v2563 = vadd.f32 %v2561, %v2562
        %v2564 = vadd.f32 %v2563, %v2290
        %v2565 = vsel %vm1409, %v2564, 0.0
        %2566 = vadd.xlane.f32.xlu0 %v2565
        %v2567 = vpop.xlane.xlu0 %2566
        %v2568 = vmul.f32 %v2567, %v1421
        %v2569 = vsub.f32 %v2564, %v2568
        %v2570 = vmul.f32 %v2569, %v2569
        %v2571 = vsel %vm1409, %v2570, 0.0
        %2572 = vadd.xlane.f32.xlu0 %v2571
        %v2573 = vpop.xlane.xlu0 %2572
        %v2574 = vmul.f32 %v2573, %v1421
        %v2575 = vadd.f32 %v2574, 1e-05
        %v2576 = vrsqrt.pop %v2575
        %v2577 = vmul.f32 %v2569, %v2576
        %v2579 = vrot.slane %v2290, 1
        %v2581 = vmul.f32 %v2577, %v2579
        %v2582 = vrot.slane %v2290, 2
        %v2584 = vadd.f32 %v2581, %v2582
        %s2585 = scalar_lea.vmem %s4, 48
        %v2586 = vld [vmem:[%s2585] sm:$0xf]
        %v2587 = vld [vmem:[%s2585 + $0x4] sm:$0xf]
        %v2588 = vld [vmem:[%s2585 + $0x8] sm:$0xf]
        %v2589 = vld [vmem:[%s2585 + $0xc] sm:$0xf]
        %s2590 = scalar_lea.vmem %s5, 3
        %v2591 = vld [vmem:[%s2590] sm:$0x1]
        %s2592 = scalar_lea.vmem %s6, 48
        %v2593 = vld [vmem:[%s2592] sm:$0xf]
        %v2594 = vld [vmem:[%s2592 + $0x4] sm:$0xf]
        %v2595 = vld [vmem:[%s2592 + $0x8] sm:$0xf]
        %v2596 = vld [vmem:[%s2592 + $0xc] sm:$0xf]
        %s2597 = scalar_lea.vmem %s7, 12
        %v2598 = vld [vmem:[%s2597] sm:$0x7]
        %v2599 = vpack.c.bf16 %v2276, %v2276
        %v2604 = vunpack.c.l.b16 %v2586
        %v2605 = vunpack.c.l.b16 %v2587
        %v2606 = vunpack.c.l.b16 %v2588
        %v2607 = vunpack.c.l.b16 %v2589
        %v2608 = vpack.c.b16 %v2605, %v2604
        %v2609 = vpack.c.b16 %v2607, %v2606
        %2610 = vrot.lane.b32.xlu0 %v2608, 64
        %v2611 = vpop.permute.xlu0 %2610
        %2612 = vrot.lane.b32.xlu0 %v2609, 64
        %v2613 = vpop.permute.xlu0 %2612
        %v2617 = vlaneseq
        %v2618 = vshrl.u32 %v2617, 7
        %v2619 = vsub.s32 0, %v2618
        %v2620 = vrot.slane %v2591, %v2619
        %2621 = vrot.lane.b32.xlu0 %v2620, 64
        %v2622 = vpop.permute.xlu0 %2621
        %v2625 = vsel %vm640, %v2599, 0
        %2627 = vmatprep.subr.bf16.mxu0 0
        %2628 = vmatpush1.bf16.msra.mxu0 %v2611
        %2629 = vmatprep.subr.bf16.mxu0 0
        %2630 = vmatpush1.bf16.msra.mxu0 %v2613
        %2631 = vmatprep.subr.bf16.mxu0 0
        %2632 = vmatpush1.bf16.msra.mxu0 0
        %2633 = vmatprep.subr.bf16.mxu0 0
        %2634 = vmatpush1.bf16.msra.mxu0 0
        %2635 = vmatprep.subr.bf16.mxu0 0
        %2636 = vmatpush1.bf16.msra.mxu0 0
        %2637 = vmatprep.subr.bf16.mxu0 0
        %2638 = vmatpush1.bf16.msra.mxu0 0
        %2639 = vmatprep.subr.bf16.mxu0 0
        %2640 = vmatpush1.bf16.msra.mxu0 0
        %2641 = vmatprep.subr.bf16.mxu0 0
        %2642 = vmatpush1.bf16.msra.mxu0 0
        %2643 = vmatprep.subr.bf16.mxu0 0
        %2644 = vmatpush1.bf16.msra.mxu0 0
        %2645 = vmatprep.subr.bf16.mxu0 0
        %2646 = vmatpush1.bf16.msra.mxu0 0
        %2647 = vmatprep.subr.bf16.mxu0 0
        %2648 = vmatpush1.bf16.msra.mxu0 0
        %2649 = vmatprep.subr.bf16.mxu0 0
        %2650 = vmatpush1.bf16.msra.mxu0 0
        %2651 = vmatprep.subr.bf16.mxu0 0
        %2652 = vmatpush1.bf16.msra.mxu0 0
        %2653 = vmatprep.subr.bf16.mxu0 0
        %2654 = vmatpush1.bf16.msra.mxu0 0
        %2655 = vmatprep.subr.bf16.mxu0 0
        %2656 = vmatpush1.bf16.msra.mxu0 0
        %2657 = vmatprep.subr.bf16.mxu0 0
        %2658 = vmatpush1.bf16.msra.mxu0 0
        %2659 = vmatprep.mubr.bf16.mxu0 0
        %2660 = vmatmul.mubr.bf16.gmra.mrb[0].mxu0 %v2625
        %v2661 = vpop.f32.mrb[0].mxu0
        %v2662 = vadd.f32 %v2622, %v2661
        %v2663 = vpop.f32.mrb[0].mxu0
        %v2664 = vpop.f32.mrb[0].mxu0
        %v2665 = vpop.f32.mrb[0].mxu0
        %2666 = vdwg.mxu0
        %2668 = vrot.lane.b32.xlu0 %v2662, 120
        %v2669 = vpop.permute.xlu0 %2668
        %2671 = vrot.lane.b32.xlu0 %v2662, 112
        %v2672 = vpop.permute.xlu0 %2671
        %2674 = vrot.lane.b32.xlu0 %v2662, 104
        %v2675 = vpop.permute.xlu0 %2674
        %v2677 = vpack.c.bf16 %v2662, %v2662
        %v2678 = vpack.c.bf16 %v2669, %v2669
        %v2679 = vpack.c.bf16 %v2672, %v2672
        %v2680 = vpack.c.bf16 %v2675, %v2675
        %v2682 = vsel %vm805, %v2677, 0
        %v2685 = vsel %vm1227, %v2593, 0
        %2687 = vmatprep.subr.bf16.mxu0 0
        %2688 = vmatpush1.bf16.msra.mxu0 %v2685
        %2689 = vmatprep.subr.bf16.mxu0 0
        %2690 = vmatpush1.bf16.msra.mxu0 0
        %2691 = vmatprep.subr.bf16.mxu0 0
        %2692 = vmatpush1.bf16.msra.mxu0 0
        %2693 = vmatprep.subr.bf16.mxu0 0
        %2694 = vmatpush1.bf16.msra.mxu0 0
        %2695 = vmatprep.subr.bf16.mxu0 0
        %2696 = vmatpush1.bf16.msra.mxu0 0
        %2697 = vmatprep.subr.bf16.mxu0 0
        %2698 = vmatpush1.bf16.msra.mxu0 0
        %2699 = vmatprep.subr.bf16.mxu0 0
        %2700 = vmatpush1.bf16.msra.mxu0 0
        %2701 = vmatprep.subr.bf16.mxu0 0
        %2702 = vmatpush1.bf16.msra.mxu0 0
        %2703 = vmatprep.subr.bf16.mxu0 0
        %2704 = vmatpush1.bf16.msra.mxu0 0
        %2705 = vmatprep.subr.bf16.mxu0 0
        %2706 = vmatpush1.bf16.msra.mxu0 0
        %2707 = vmatprep.subr.bf16.mxu0 0
        %2708 = vmatpush1.bf16.msra.mxu0 0
        %2709 = vmatprep.subr.bf16.mxu0 0
        %2710 = vmatpush1.bf16.msra.mxu0 0
        %2711 = vmatprep.subr.bf16.mxu0 0
        %2712 = vmatpush1.bf16.msra.mxu0 0
        %2713 = vmatprep.subr.bf16.mxu0 0
        %2714 = vmatpush1.bf16.msra.mxu0 0
        %2715 = vmatprep.subr.bf16.mxu0 0
        %2716 = vmatpush1.bf16.msra.mxu0 0
        %2717 = vmatprep.subr.bf16.mxu0 0
        %2718 = vmatpush1.bf16.msra.mxu0 0
        %2719 = vmatprep.mubr.bf16.mxu0 0
        %2720 = vmatmul.mubr.bf16.gmra.mrb[0].mxu0 %v2682
        %v2721 = vpop.f32.mrb[0].mxu0
        %v2722 = vadd.f32 0.0, %v2721
        %v2723 = vpop.f32.mrb[0].mxu0
        %v2724 = vpop.f32.mrb[0].mxu0
        %v2725 = vpop.f32.mrb[0].mxu0
        %2726 = vdwg.mxu0
        %v2728 = vsel %vm805, %v2678, 0
        %v2731 = vsel %vm1227, %v2594, 0
        %2733 = vmatprep.subr.bf16.mxu0 0
        %2734 = vmatpush1.bf16.msra.mxu0 %v2731
        %2735 = vmatprep.subr.bf16.mxu0 0
        %2736 = vmatpush1.bf16.msra.mxu0 0
        %2737 = vmatprep.subr.bf16.mxu0 0
        %2738 = vmatpush1.bf16.msra.mxu0 0
        %2739 = vmatprep.subr.bf16.mxu0 0
        %2740 = vmatpush1.bf16.msra.mxu0 0
        %2741 = vmatprep.subr.bf16.mxu0 0
        %2742 = vmatpush1.bf16.msra.mxu0 0
        %2743 = vmatprep.subr.bf16.mxu0 0
        %2744 = vmatpush1.bf16.msra.mxu0 0
        %2745 = vmatprep.subr.bf16.mxu0 0
        %2746 = vmatpush1.bf16.msra.mxu0 0
        %2747 = vmatprep.subr.bf16.mxu0 0
        %2748 = vmatpush1.bf16.msra.mxu0 0
        %2749 = vmatprep.subr.bf16.mxu0 0
        %2750 = vmatpush1.bf16.msra.mxu0 0
        %2751 = vmatprep.subr.bf16.mxu0 0
        %2752 = vmatpush1.bf16.msra.mxu0 0
        %2753 = vmatprep.subr.bf16.mxu0 0
        %2754 = vmatpush1.bf16.msra.mxu0 0
        %2755 = vmatprep.subr.bf16.mxu0 0
        %2756 = vmatpush1.bf16.msra.mxu0 0
        %2757 = vmatprep.subr.bf16.mxu0 0
        %2758 = vmatpush1.bf16.msra.mxu0 0
        %2759 = vmatprep.subr.bf16.mxu0 0
        %2760 = vmatpush1.bf16.msra.mxu0 0
        %2761 = vmatprep.subr.bf16.mxu0 0
        %2762 = vmatpush1.bf16.msra.mxu0 0
        %2763 = vmatprep.subr.bf16.mxu0 0
        %2764 = vmatpush1.bf16.msra.mxu0 0
        %2765 = vmatprep.mubr.bf16.mxu0 0
        %2766 = vmatmul.mubr.bf16.gmra.mrb[0].mxu0 %v2728
        %v2767 = vpop.f32.mrb[0].mxu0
        %v2768 = vadd.f32 0.0, %v2767
        %v2769 = vpop.f32.mrb[0].mxu0
        %v2770 = vpop.f32.mrb[0].mxu0
        %v2771 = vpop.f32.mrb[0].mxu0
        %2772 = vdwg.mxu0
        %v2774 = vsel %vm805, %v2679, 0
        %v2777 = vsel %vm1227, %v2595, 0
        %2779 = vmatprep.subr.bf16.mxu0 0
        %2780 = vmatpush1.bf16.msra.mxu0 %v2777
        %2781 = vmatprep.subr.bf16.mxu0 0
        %2782 = vmatpush1.bf16.msra.mxu0 0
        %2783 = vmatprep.subr.bf16.mxu0 0
        %2784 = vmatpush1.bf16.msra.mxu0 0
        %2785 = vmatprep.subr.bf16.mxu0 0
        %2786 = vmatpush1.bf16.msra.mxu0 0
        %2787 = vmatprep.subr.bf16.mxu0 0
        %2788 = vmatpush1.bf16.msra.mxu0 0
        %2789 = vmatprep.subr.bf16.mxu0 0
        %2790 = vmatpush1.bf16.msra.mxu0 0
        %2791 = vmatprep.subr.bf16.mxu0 0
        %2792 = vmatpush1.bf16.msra.mxu0 0
        %2793 = vmatprep.subr.bf16.mxu0 0
        %2794 = vmatpush1.bf16.msra.mxu0 0
        %2795 = vmatprep.subr.bf16.mxu0 0
        %2796 = vmatpush1.bf16.msra.mxu0 0
        %2797 = vmatprep.subr.bf16.mxu0 0
        %2798 = vmatpush1.bf16.msra.mxu0 0
        %2799 = vmatprep.subr.bf16.mxu0 0
        %2800 = vmatpush1.bf16.msra.mxu0 0
        %2801 = vmatprep.subr.bf16.mxu0 0
        %2802 = vmatpush1.bf16.msra.mxu0 0
        %2803 = vmatprep.subr.bf16.mxu0 0
        %2804 = vmatpush1.bf16.msra.mxu0 0
        %2805 = vmatprep.subr.bf16.mxu0 0
        %2806 = vmatpush1.bf16.msra.mxu0 0
        %2807 = vmatprep.subr.bf16.mxu0 0
        %2808 = vmatpush1.bf16.msra.mxu0 0
        %2809 = vmatprep.subr.bf16.mxu0 0
        %2810 = vmatpush1.bf16.msra.mxu0 0
        %2811 = vmatprep.mubr.bf16.mxu0 0
        %2812 = vmatmul.mubr.bf16.gmra.mrb[0].mxu0 %v2774
        %v2813 = vpop.f32.mrb[0].mxu0
        %v2814 = vadd.f32 0.0, %v2813
        %v2815 = vpop.f32.mrb[0].mxu0
        %v2816 = vpop.f32.mrb[0].mxu0
        %v2817 = vpop.f32.mrb[0].mxu0
        %2818 = vdwg.mxu0
        %v2820 = vsel %vm805, %v2680, 0
        %v2823 = vsel %vm1227, %v2596, 0
        %2825 = vmatprep.subr.bf16.mxu0 0
        %2826 = vmatpush1.bf16.msra.mxu0 %v2823
        %2827 = vmatprep.subr.bf16.mxu0 0
        %2828 = vmatpush1.bf16.msra.mxu0 0
        %2829 = vmatprep.subr.bf16.mxu0 0
        %2830 = vmatpush1.bf16.msra.mxu0 0
        %2831 = vmatprep.subr.bf16.mxu0 0
        %2832 = vmatpush1.bf16.msra.mxu0 0
        %2833 = vmatprep.subr.bf16.mxu0 0
        %2834 = vmatpush1.bf16.msra.mxu0 0
        %2835 = vmatprep.subr.bf16.mxu0 0
        %2836 = vmatpush1.bf16.msra.mxu0 0
        %2837 = vmatprep.subr.bf16.mxu0 0
        %2838 = vmatpush1.bf16.msra.mxu0 0
        %2839 = vmatprep.subr.bf16.mxu0 0
        %2840 = vmatpush1.bf16.msra.mxu0 0
        %2841 = vmatprep.subr.bf16.mxu0 0
        %2842 = vmatpush1.bf16.msra.mxu0 0
        %2843 = vmatprep.subr.bf16.mxu0 0
        %2844 = vmatpush1.bf16.msra.mxu0 0
        %2845 = vmatprep.subr.bf16.mxu0 0
        %2846 = vmatpush1.bf16.msra.mxu0 0
        %2847 = vmatprep.subr.bf16.mxu0 0
        %2848 = vmatpush1.bf16.msra.mxu0 0
        %2849 = vmatprep.subr.bf16.mxu0 0
        %2850 = vmatpush1.bf16.msra.mxu0 0
        %2851 = vmatprep.subr.bf16.mxu0 0
        %2852 = vmatpush1.bf16.msra.mxu0 0
        %2853 = vmatprep.subr.bf16.mxu0 0
        %2854 = vmatpush1.bf16.msra.mxu0 0
        %2855 = vmatprep.subr.bf16.mxu0 0
        %2856 = vmatpush1.bf16.msra.mxu0 0
        %2857 = vmatprep.mubr.bf16.mxu0 0
        %2858 = vmatmul.mubr.bf16.gmra.mrb[0].mxu0 %v2820
        %v2859 = vpop.f32.mrb[0].mxu0
        %v2860 = vadd.f32 0.0, %v2859
        %v2861 = vpop.f32.mrb[0].mxu0
        %v2862 = vpop.f32.mrb[0].mxu0
        %v2863 = vpop.f32.mrb[0].mxu0
        %2864 = vdwg.mxu0
        %v2865 = vsel %vm1409, %v2722, 0.0
        %v2866 = vsel %vm1409, %v2768, 0.0
        %v2867 = vadd.f32 %v2865, %v2866
        %v2868 = vsel %vm1409, %v2814, 0.0
        %v2869 = vadd.f32 %v2867, %v2868
        %v2870 = vsel %vm1409, %v2860, 0.0
        %v2871 = vadd.f32 %v2869, %v2870
        %v2872 = vadd.f32 %v2871, %v2598
        %v2873 = vsel %vm1409, %v2872, 0.0
        %2874 = vadd.xlane.f32.xlu0 %v2873
        %v2875 = vpop.xlane.xlu0 %2874
        %v2876 = vmul.f32 %v2875, %v1421
        %v2877 = vsub.f32 %v2872, %v2876
        %v2878 = vmul.f32 %v2877, %v2877
        %v2879 = vsel %vm1409, %v2878, 0.0
        %2880 = vadd.xlane.f32.xlu0 %v2879
        %v2881 = vpop.xlane.xlu0 %2880
        %v2882 = vmul.f32 %v2881, %v1421
        %v2883 = vadd.f32 %v2882, 1e-05
        %v2884 = vrsqrt.pop %v2883
        %v2885 = vmul.f32 %v2877, %v2884
        %v2887 = vrot.slane %v2598, 1
        %v2889 = vmul.f32 %v2885, %v2887
        %v2890 = vrot.slane %v2598, 2
        %v2892 = vadd.f32 %v2889, %v2890
        %v2893 = vld [vmem:[%s12] sm:$0xff]
        %v2894 = vld [vmem:[%s12 + $0x8] sm:$0xff]
        %v2895 = vld [vmem:[%s12 + $0x10] sm:$0xff]
        %v2896 = vld [vmem:[%s12 + $0x18] sm:$0xff]
        %v2897 = vld [vmem:[%s12 + $0x20] sm:$0xff]
        %v2898 = vld [vmem:[%s12 + $0x28] sm:$0xff]
        %v2899 = vld [vmem:[%s12 + $0x30] sm:$0xff]
        %v2900 = vld [vmem:[%s12 + $0x38] sm:$0xff]
        %v2901 = vld [vmem:[%s14] sm:$0xf]
        %v2903 = vsel %vm640, %v2892, 0
        %2905 = vmatprep.subr.mxu0 0.0
        %2906 = vmatpush1.msra.mxu0 %v2897
        %2907 = vmatprep.subr.mxu0 0.0
        %2908 = vmatpush1.msra.mxu0 %v2898
        %2909 = vmatprep.subr.mxu0 0.0
        %2910 = vmatpush1.msra.mxu0 %v2899
        %2911 = vmatprep.subr.mxu0 0.0
        %2912 = vmatpush1.msra.mxu0 %v2900
        %2913 = vmatprep.subr.mxu0 0.0
        %2914 = vmatpush1.msra.mxu0 0.0
        %2915 = vmatprep.subr.mxu0 0.0
        %2916 = vmatpush1.msra.mxu0 0.0
        %2917 = vmatprep.subr.mxu0 0.0
        %2918 = vmatpush1.msra.mxu0 0.0
        %2919 = vmatprep.subr.mxu0 0.0
        %2920 = vmatpush1.msra.mxu0 0.0
        %2921 = vmatprep.subr.mxu0 0.0
        %2922 = vmatpush1.msra.mxu0 0.0
        %2923 = vmatprep.subr.mxu0 0.0
        %2924 = vmatpush1.msra.mxu0 0.0
        %2925 = vmatprep.subr.mxu0 0.0
        %2926 = vmatpush1.msra.mxu0 0.0
        %2927 = vmatprep.subr.mxu0 0.0
        %2928 = vmatpush1.msra.mxu0 0.0
        %2929 = vmatprep.subr.mxu0 0.0
        %2930 = vmatpush1.msra.mxu0 0.0
        %2931 = vmatprep.subr.mxu0 0.0
        %2932 = vmatpush1.msra.mxu0 0.0
        %2933 = vmatprep.subr.mxu0 0.0
        %2934 = vmatpush1.msra.mxu0 0.0
        %2935 = vmatprep.subr.mxu0 0.0
        %2936 = vmatpush1.msra.mxu0 0.0
        %2937 = vmatprep.subr.mxu0 0.0
        %2938 = vmatpush1.msra.mxu0 0.0
        %2939 = vmatprep.subr.mxu0 0.0
        %2940 = vmatpush1.msra.mxu0 0.0
        %2941 = vmatprep.subr.mxu0 0.0
        %2942 = vmatpush1.msra.mxu0 0.0
        %2943 = vmatprep.subr.mxu0 0.0
        %2944 = vmatpush1.msra.mxu0 0.0
        %2945 = vmatprep.subr.mxu0 0.0
        %2946 = vmatpush1.msra.mxu0 0.0
        %2947 = vmatprep.subr.mxu0 0.0
        %2948 = vmatpush1.msra.mxu0 0.0
        %2949 = vmatprep.subr.mxu0 0.0
        %2950 = vmatpush1.msra.mxu0 0.0
        %2951 = vmatprep.subr.mxu0 0.0
        %2952 = vmatpush1.msra.mxu0 0.0
        %2953 = vmatprep.subr.mxu0 0.0
        %2954 = vmatpush1.msra.mxu0 0.0
        %2955 = vmatprep.subr.mxu0 0.0
        %2956 = vmatpush1.msra.mxu0 0.0
        %2957 = vmatprep.subr.mxu0 0.0
        %2958 = vmatpush1.msra.mxu0 0.0
        %2959 = vmatprep.subr.mxu0 0.0
        %2960 = vmatpush1.msra.mxu0 0.0
        %2961 = vmatprep.subr.mxu0 0.0
        %2962 = vmatpush1.msra.mxu0 0.0
        %2963 = vmatprep.subr.mxu0 0.0
        %2964 = vmatpush1.msra.mxu0 0.0
        %2965 = vmatprep.subr.mxu0 0.0
        %2966 = vmatpush1.msra.mxu0 0.0
        %2967 = vmatprep.subr.mxu0 0.0
        %2968 = vmatpush1.msra.mxu0 0.0
        %2969 = vmatprep.mubr.f32.mxu0 0.0
        %2970 = vmatmul.mubr.f32.gmra.mrb[0].mxu0 %v2903
        %v2971 = vpop.f32.mrb[0].mxu0
        %v2972 = vadd.f32 0.0, %v2971
        %v2973 = vpop.f32.mrb[0].mxu0
        %2974 = vdwg.mxu0
        %v2976 = vsel %vm640, %v2584, 0
        %2978 = vmatprep.subr.mxu0 0.0
        %2979 = vmatpush1.msra.mxu0 %v2893
        %2980 = vmatprep.subr.mxu0 0.0
        %2981 = vmatpush1.msra.mxu0 %v2894
        %2982 = vmatprep.subr.mxu0 0.0
        %2983 = vmatpush1.msra.mxu0 %v2895
        %2984 = vmatprep.subr.mxu0 0.0
        %2985 = vmatpush1.msra.mxu0 %v2896
        %2986 = vmatprep.subr.mxu0 0.0
        %2987 = vmatpush1.msra.mxu0 0.0
        %2988 = vmatprep.subr.mxu0 0.0
        %2989 = vmatpush1.msra.mxu0 0.0
        %2990 = vmatprep.subr.mxu0 0.0
        %2991 = vmatpush1.msra.mxu0 0.0
        %2992 = vmatprep.subr.mxu0 0.0
        %2993 = vmatpush1.msra.mxu0 0.0
        %2994 = vmatprep.subr.mxu0 0.0
        %2995 = vmatpush1.msra.mxu0 0.0
        %2996 = vmatprep.subr.mxu0 0.0
        %2997 = vmatpush1.msra.mxu0 0.0
        %2998 = vmatprep.subr.mxu0 0.0
        %2999 = vmatpush1.msra.mxu0 0.0
        %3000 = vmatprep.subr.mxu0 0.0
        %3001 = vmatpush1.msra.mxu0 0.0
        %3002 = vmatprep.subr.mxu0 0.0
        %3003 = vmatpush1.msra.mxu0 0.0
        %3004 = vmatprep.subr.mxu0 0.0
        %3005 = vmatpush1.msra.mxu0 0.0
        %3006 = vmatprep.subr.mxu0 0.0
        %3007 = vmatpush1.msra.mxu0 0.0
        %3008 = vmatprep.subr.mxu0 0.0
        %3009 = vmatpush1.msra.mxu0 0.0
        %3010 = vmatprep.subr.mxu0 0.0
        %3011 = vmatpush1.msra.mxu0 0.0
        %3012 = vmatprep.subr.mxu0 0.0
        %3013 = vmatpush1.msra.mxu0 0.0
        %3014 = vmatprep.subr.mxu0 0.0
        %3015 = vmatpush1.msra.mxu0 0.0
        %3016 = vmatprep.subr.mxu0 0.0
        %3017 = vmatpush1.msra.mxu0 0.0
        %3018 = vmatprep.subr.mxu0 0.0
        %3019 = vmatpush1.msra.mxu0 0.0
        %3020 = vmatprep.subr.mxu0 0.0
        %3021 = vmatpush1.msra.mxu0 0.0
        %3022 = vmatprep.subr.mxu0 0.0
        %3023 = vmatpush1.msra.mxu0 0.0
        %3024 = vmatprep.subr.mxu0 0.0
        %3025 = vmatpush1.msra.mxu0 0.0
        %3026 = vmatprep.subr.mxu0 0.0
        %3027 = vmatpush1.msra.mxu0 0.0
        %3028 = vmatprep.subr.mxu0 0.0
        %3029 = vmatpush1.msra.mxu0 0.0
        %3030 = vmatprep.subr.mxu0 0.0
        %3031 = vmatpush1.msra.mxu0 0.0
        %3032 = vmatprep.subr.mxu0 0.0
        %3033 = vmatpush1.msra.mxu0 0.0
        %3034 = vmatprep.subr.mxu0 0.0
        %3035 = vmatpush1.msra.mxu0 0.0
        %3036 = vmatprep.subr.mxu0 0.0
        %3037 = vmatpush1.msra.mxu0 0.0
        %3038 = vmatprep.subr.mxu0 0.0
        %3039 = vmatpush1.msra.mxu0 0.0
        %3040 = vmatprep.subr.mxu0 0.0
        %3041 = vmatpush1.msra.mxu0 0.0
        %3042 = vmatprep.mubr.f32.mxu0 0.0
        %3043 = vmatmul.mubr.f32.gmra.mrb[0].mxu0 %v2976
        %v3044 = vpop.f32.mrb[0].mxu0
        %v3045 = vadd.f32 %v2972, %v3044
        %v3046 = vpop.f32.mrb[0].mxu0
        %3047 = vdwg.mxu0
        %v3048 = vadd.f32 %v3045, %v2901
        %vm3049 = vcmask 8192
        %v3050 = vsel %vm3049, %v3048, -inf
        %3051 = vmax.xlane.f32.xlu0 %v3050
        %v3052 = vpop.xlane.xlu0 %3051
        %v3053 = vsub.f32 %v3048, %v3052
        %v3054 = vmul.f32 %v3053, 1.442695
        %v3055 = vpow.pop %v3054
        %v3056 = vsel %vm3049, %v3055, 0.0
        %3057 = vadd.xlane.f32.xlu0 %v3056
        %v3058 = vpop.xlane.xlu0 %3057
        %v3059 = vrcp.pop %v3058
        %v3060 = vmul.f32 %v3055, %v3059
        %3062 = vset.pattern.permute.xlu0 0
        %3063 = vperm.xlu0 %3062, %v3060
        %v3064 = vpop.permute.xlu0 %3063
        %v3066 = vmul.f32 %v3064, %v2584
        %3067 = vset.pattern.permute.xlu0 1
        %3068 = vperm.xlu0 %3067, %v3060
        %v3069 = vpop.permute.xlu0 %3068
        %v3071 = vmul.f32 %v3069, %v2892
        %v3072 = vadd.f32 %v3066, %v3071
        %v3073 = vsel %vm1409, %v3072, 0.0
        %3074 = vadd.xlane.f32.xlu0 %v3073
        %v3075 = vpop.xlane.xlu0 %3074
        %v3076 = vmul.f32 %v3075, %v1421
        %v3077 = vsub.f32 %v3072, %v3076
        %v3078 = vmul.f32 %v3077, %v3077
        %v3079 = vsel %vm1409, %v3078, 0.0
        %3080 = vadd.xlane.f32.xlu0 %v3079
        %v3081 = vpop.xlane.xlu0 %3080
        %v3082 = vmul.f32 %v3081, %v1421
        %v3083 = vadd.f32 %v3082, 1e-05
        %v3084 = vrsqrt.pop %v3083
        %v3085 = vmul.f32 %v3077, %v3084
        %v3087 = vrot.slane %v2901, 1
        %v3089 = vmul.f32 %v3085, %v3087
        %v3090 = vrot.slane %v2901, 2
        %v3092 = vadd.f32 %v3089, %v3090
        %v3093 = vpack.c.bf16 %v3092, %v3092
        %v3094 = vld [vmem:[%s13] sm:$0xf]
        %v3095 = vld [vmem:[%s13 + $0x4] sm:$0xf]
        %v3096 = vld [vmem:[%s13 + $0x8] sm:$0xf]
        %v3097 = vld [vmem:[%s13 + $0xc] sm:$0xf]
        %v3102 = vunpack.c.l.b16 %v3094
        %v3103 = vunpack.c.l.b16 %v3095
        %v3104 = vunpack.c.l.b16 %v3096
        %v3105 = vunpack.c.l.b16 %v3097
        %v3106 = vpack.c.b16 %v3103, %v3102
        %v3107 = vpack.c.b16 %v3105, %v3104
        %v3110 = vrot.slane %v2901, 3
        %v3113 = vsel %vm640, %v3093, 0
        %3115 = vmatprep.subr.bf16.mxu0 0
        %3116 = vmatpush1.bf16.msra.mxu0 %v3106
        %3117 = vmatprep.subr.bf16.mxu0 0
        %3118 = vmatpush1.bf16.msra.mxu0 %v3107
        %3119 = vmatprep.subr.bf16.mxu0 0
        %3120 = vmatpush1.bf16.msra.mxu0 0
        %3121 = vmatprep.subr.bf16.mxu0 0
        %3122 = vmatpush1.bf16.msra.mxu0 0
        %3123 = vmatprep.subr.bf16.mxu0 0
        %3124 = vmatpush1.bf16.msra.mxu0 0
        %3125 = vmatprep.subr.bf16.mxu0 0
        %3126 = vmatpush1.bf16.msra.mxu0 0
        %3127 = vmatprep.subr.bf16.mxu0 0
        %3128 = vmatpush1.bf16.msra.mxu0 0
        %3129 = vmatprep.subr.bf16.mxu0 0
        %3130 = vmatpush1.bf16.msra.mxu0 0
        %3131 = vmatprep.subr.bf16.mxu0 0
        %3132 = vmatpush1.bf16.msra.mxu0 0
        %3133 = vmatprep.subr.bf16.mxu0 0
        %3134 = vmatpush1.bf16.msra.mxu0 0
        %3135 = vmatprep.subr.bf16.mxu0 0
        %3136 = vmatpush1.bf16.msra.mxu0 0
        %3137 = vmatprep.subr.bf16.mxu0 0
        %3138 = vmatpush1.bf16.msra.mxu0 0
        %3139 = vmatprep.subr.bf16.mxu0 0
        %3140 = vmatpush1.bf16.msra.mxu0 0
        %3141 = vmatprep.subr.bf16.mxu0 0
        %3142 = vmatpush1.bf16.msra.mxu0 0
        %3143 = vmatprep.subr.bf16.mxu0 0
        %3144 = vmatpush1.bf16.msra.mxu0 0
        %3145 = vmatprep.subr.bf16.mxu0 0
        %3146 = vmatpush1.bf16.msra.mxu0 0
        %3147 = vmatprep.mubr.bf16.mxu0 0
        %3148 = vmatmul.mubr.bf16.gmra.mrb[0].mxu0 %v3113
        %v3149 = vpop.f32.mrb[0].mxu0
        %v3150 = vadd.f32 %v3110, %v3149
        %v3151 = vpop.f32.mrb[0].mxu0
        %v3152 = vpop.f32.mrb[0].mxu0
        %v3153 = vpop.f32.mrb[0].mxu0
        %3154 = vdwg.mxu0
        %v3155 = vmax.f32 %v3150, 0.0
        %v3157 = vrot.slane %v3155, 7
        %vm3159 = vcmask 1040384
        %v3160 = vsel %vm3159, %v1438, %v3157
        %v3162 = vrot.slane %v2276, 6
        %v3164 = vrot.slane %v3155, 5
        %vm3166 = vcmask 1041408
        %v3167 = vsel %vm3166, %v612, %v3162
        %vm3168 = vcmask 1042432
        %v3169 = vsel %vm3168, %v3167, %v3164
        %s3170 = scalar_lea.vmem %s4, 64
        %v3171 = vld [vmem:[%s3170] sm:$0xf]
        %v3172 = vld [vmem:[%s3170 + $0x4] sm:$0xf]
        %v3173 = vld [vmem:[%s3170 + $0x8] sm:$0xf]
        %v3174 = vld [vmem:[%s3170 + $0xc] sm:$0xf]
        %s3175 = scalar_lea.vmem %s5, 4
        %v3176 = vld [vmem:[%s3175] sm:$0x1]
        %s3177 = scalar_lea.vmem %s6, 64
        %v3178 = vld [vmem:[%s3177] sm:$0xf]
        %v3179 = vld [vmem:[%s3177 + $0x4] sm:$0xf]
        %v3180 = vld [vmem:[%s3177 + $0x8] sm:$0xf]
        %v3181 = vld [vmem:[%s3177 + $0xc] sm:$0xf]
        %s3182 = scalar_lea.vmem %s7, 16
        %v3183 = vld [vmem:[%s3182] sm:$0x7]
        %v3184 = vpack.c.bf16 %v3160, %v3160
        %v3186 = vlaneseq
        %v3187 = vshrl.u32 %v3186, 7
        %v3188 = vsub.s32 0, %v3187
        %v3189 = vrot.slane %v3176, %v3188
        %v3195 = vunpack.c.l.b16 %v3171
        %v3196 = vunpack.c.l.b16 %v3172
        %v3197 = vunpack.c.l.b16 %v3173
        %v3198 = vunpack.c.l.b16 %v3174
        %v3199 = vpack.c.b16 %v3196, %v3195
        %v3200 = vpack.c.b16 %v3198, %v3197
        %v3204 = vsel %vm640, %v3184, 0
        %3206 = vmatprep.subr.bf16.mxu0 0
        %3207 = vmatpush1.bf16.msra.mxu0 %v3199
        %3208 = vmatprep.subr.bf16.mxu0 0
        %3209 = vmatpush1.bf16.msra.mxu0 %v3200
        %3210 = vmatprep.subr.bf16.mxu0 0
        %3211 = vmatpush1.bf16.msra.mxu0 0
        %3212 = vmatprep.subr.bf16.mxu0 0
        %3213 = vmatpush1.bf16.msra.mxu0 0
        %3214 = vmatprep.subr.bf16.mxu0 0
        %3215 = vmatpush1.bf16.msra.mxu0 0
        %3216 = vmatprep.subr.bf16.mxu0 0
        %3217 = vmatpush1.bf16.msra.mxu0 0
        %3218 = vmatprep.subr.bf16.mxu0 0
        %3219 = vmatpush1.bf16.msra.mxu0 0
        %3220 = vmatprep.subr.bf16.mxu0 0
        %3221 = vmatpush1.bf16.msra.mxu0 0
        %3222 = vmatprep.subr.bf16.mxu0 0
        %3223 = vmatpush1.bf16.msra.mxu0 0
        %3224 = vmatprep.subr.bf16.mxu0 0
        %3225 = vmatpush1.bf16.msra.mxu0 0
        %3226 = vmatprep.subr.bf16.mxu0 0
        %3227 = vmatpush1.bf16.msra.mxu0 0
        %3228 = vmatprep.subr.bf16.mxu0 0
        %3229 = vmatpush1.bf16.msra.mxu0 0
        %3230 = vmatprep.subr.bf16.mxu0 0
        %3231 = vmatpush1.bf16.msra.mxu0 0
        %3232 = vmatprep.subr.bf16.mxu0 0
        %3233 = vmatpush1.bf16.msra.mxu0 0
        %3234 = vmatprep.subr.bf16.mxu0 0
        %3235 = vmatpush1.bf16.msra.mxu0 0
        %3236 = vmatprep.subr.bf16.mxu0 0
        %3237 = vmatpush1.bf16.msra.mxu0 0
        %3238 = vmatprep.mubr.bf16.mxu0 0
        %3239 = vmatmul.mubr.bf16.gmra.mrb[0].mxu0 %v700
        %v3240 = vpop.f32.mrb[0].mxu0
        %v3241 = vadd.f32 %v3189, %v3240
        %v3242 = vpop.f32.mrb[0].mxu0
        %v3243 = vpop.f32.mrb[0].mxu0
        %v3244 = vadd.f32 %v3189, %v3243
        %v3245 = vpop.f32.mrb[0].mxu0
        %3246 = vmatprep.mubr.bf16.mxu0 0
        %3247 = vmatmul.mubr.bf16.gmra.mrb[0].mxu0 %v3204
        %v3248 = vpop.f32.mrb[0].mxu0
        %v3249 = vadd.f32 %v3189, %v3248
        %v3250 = vpop.f32.mrb[0].mxu0
        %v3251 = vpop.f32.mrb[0].mxu0
        %v3252 = vpop.f32.mrb[0].mxu0
        %3253 = vdwg.mxu0
        %3257 = vrot.lane.b32.xlu0 %v3241, 120
        %v3258 = vpop.permute.xlu0 %3257
        %3259 = vrot.lane.b32.xlu0 %v3244, 120
        %v3260 = vpop.permute.xlu0 %3259
        %3261 = vrot.lane.b32.xlu0 %v3249, 120
        %v3262 = vpop.permute.xlu0 %3261
        %3266 = vrot.lane.b32.xlu0 %v3241, 112
        %v3267 = vpop.permute.xlu0 %3266
        %3268 = vrot.lane.b32.xlu0 %v3244, 112
        %v3269 = vpop.permute.xlu0 %3268
        %3270 = vrot.lane.b32.xlu0 %v3249, 112
        %v3271 = vpop.permute.xlu0 %3270
        %3275 = vrot.lane.b32.xlu0 %v3241, 104
        %v3276 = vpop.permute.xlu0 %3275
        %3277 = vrot.lane.b32.xlu0 %v3244, 104
        %v3278 = vpop.permute.xlu0 %3277
        %3279 = vrot.lane.b32.xlu0 %v3249, 104
        %v3280 = vpop.permute.xlu0 %3279
        %3284 = vrot.lane.b32.xlu0 %v3241, 96
        %v3285 = vpop.permute.xlu0 %3284
        %3286 = vrot.lane.b32.xlu0 %v3244, 96
        %v3287 = vpop.permute.xlu0 %3286
        %3288 = vrot.lane.b32.xlu0 %v3249, 96
        %v3289 = vpop.permute.xlu0 %3288
        %3293 = vrot.lane.b32.xlu0 %v3241, 88
        %v3294 = vpop.permute.xlu0 %3293
        %3295 = vrot.lane.b32.xlu0 %v3244, 88
        %v3296 = vpop.permute.xlu0 %3295
        %3297 = vrot.lane.b32.xlu0 %v3249, 88
        %v3298 = vpop.permute.xlu0 %3297
        %3302 = vrot.lane.b32.xlu0 %v3241, 80
        %v3303 = vpop.permute.xlu0 %3302
        %3304 = vrot.lane.b32.xlu0 %v3244, 80
        %v3305 = vpop.permute.xlu0 %3304
        %3306 = vrot.lane.b32.xlu0 %v3249, 80
        %v3307 = vpop.permute.xlu0 %3306
        %3311 = vrot.lane.b32.xlu0 %v3241, 72
        %v3312 = vpop.permute.xlu0 %3311
        %3313 = vrot.lane.b32.xlu0 %v3244, 72
        %v3314 = vpop.permute.xlu0 %3313
        %3315 = vrot.lane.b32.xlu0 %v3249, 72
        %v3316 = vpop.permute.xlu0 %3315
        %3320 = vrot.lane.b32.xlu0 %v3241, 64
        %v3321 = vpop.permute.xlu0 %3320
        %3322 = vrot.lane.b32.xlu0 %v3244, 64
        %v3323 = vpop.permute.xlu0 %3322
        %3324 = vrot.lane.b32.xlu0 %v3249, 64
        %v3325 = vpop.permute.xlu0 %3324
        %3329 = vrot.lane.b32.xlu0 %v3241, 56
        %v3330 = vpop.permute.xlu0 %3329
        %3331 = vrot.lane.b32.xlu0 %v3244, 56
        %v3332 = vpop.permute.xlu0 %3331
        %3333 = vrot.lane.b32.xlu0 %v3249, 56
        %v3334 = vpop.permute.xlu0 %3333
        %3338 = vrot.lane.b32.xlu0 %v3241, 48
        %v3339 = vpop.permute.xlu0 %3338
        %3340 = vrot.lane.b32.xlu0 %v3244, 48
        %v3341 = vpop.permute.xlu0 %3340
        %3342 = vrot.lane.b32.xlu0 %v3249, 48
        %v3343 = vpop.permute.xlu0 %3342
        %3347 = vrot.lane.b32.xlu0 %v3241, 40
        %v3348 = vpop.permute.xlu0 %3347
        %3349 = vrot.lane.b32.xlu0 %v3244, 40
        %v3350 = vpop.permute.xlu0 %3349
        %3351 = vrot.lane.b32.xlu0 %v3249, 40
        %v3352 = vpop.permute.xlu0 %3351
        %v3356 = vpack.c.bf16 %v3244, %v3241
        %v3357 = vpack.c.bf16 %v3249, %v3249
        %v3358 = vpack.c.bf16 %v3260, %v3258
        %v3359 = vpack.c.bf16 %v3262, %v3262
        %v3360 = vpack.c.bf16 %v3269, %v3267
        %v3361 = vpack.c.bf16 %v3271, %v3271
        %v3362 = vpack.c.bf16 %v3278, %v3276
        %v3363 = vpack.c.bf16 %v3280, %v3280
        %v3364 = vpack.c.bf16 %v3287, %v3285
        %v3365 = vpack.c.bf16 %v3289, %v3289
        %v3366 = vpack.c.bf16 %v3296, %v3294
        %v3367 = vpack.c.bf16 %v3298, %v3298
        %v3368 = vpack.c.bf16 %v3305, %v3303
        %v3369 = vpack.c.bf16 %v3307, %v3307
        %v3370 = vpack.c.bf16 %v3314, %v3312
        %v3371 = vpack.c.bf16 %v3316, %v3316
        %v3373 = vsel %vm805, %v3356, 0
        %v3376 = vsel %vm805, %v3357, 0
        %v3379 = vsel %vm805, %v3364, 0
        %v3382 = vsel %vm805, %v3365, 0
        %3384 = vmatprep.subr.bf16.mxu0 0
        %3385 = vmatpush1.bf16.xpose.msra.mxu0 %v3379
        %3386 = vmatprep.subr.bf16.mxu0 0
        %3387 = vmatpush1.bf16.xpose.msra.mxu0 %v3382
        %3388 = vmatprep.subr.bf16.mxu0 0
        %3389 = vmatpush1.bf16.xpose.msra.mxu0 0
        %3390 = vmatprep.subr.bf16.mxu0 0
        %3391 = vmatpush1.bf16.xpose.msra.mxu0 0
        %3392 = vmatprep.subr.bf16.mxu0 0
        %3393 = vmatpush1.bf16.xpose.msra.mxu0 0
        %3394 = vmatprep.subr.bf16.mxu0 0
        %3395 = vmatpush1.bf16.xpose.msra.mxu0 0
        %3396 = vmatprep.subr.bf16.mxu0 0
        %3397 = vmatpush1.bf16.xpose.msra.mxu0 0
        %3398 = vmatprep.subr.bf16.mxu0 0
        %3399 = vmatpush1.bf16.xpose.msra.mxu0 0
        %3400 = vmatprep.subr.bf16.mxu0 0
        %3401 = vmatpush1.bf16.xpose.msra.mxu0 0
        %3402 = vmatprep.subr.bf16.mxu0 0
        %3403 = vmatpush1.bf16.xpose.msra.mxu0 0
        %3404 = vmatprep.subr.bf16.mxu0 0
        %3405 = vmatpush1.bf16.xpose.msra.mxu0 0
        %3406 = vmatprep.subr.bf16.mxu0 0
        %3407 = vmatpush1.bf16.xpose.msra.mxu0 0
        %3408 = vmatprep.subr.bf16.mxu0 0
        %3409 = vmatpush1.bf16.xpose.msra.mxu0 0
        %3410 = vmatprep.subr.bf16.mxu0 0
        %3411 = vmatpush1.bf16.xpose.msra.mxu0 0
        %3412 = vmatprep.subr.bf16.mxu0 0
        %3413 = vmatpush1.bf16.xpose.msra.mxu0 0
        %3414 = vmatprep.subr.bf16.mxu0 0
        %3415 = vmatpush1.bf16.xpose.msra.mxu0 0
        %3416 = vmatprep.mubr.bf16.mxu0 0
        %3417 = vmatmul.mubr.bf16.gmra.mrb[0].mxu0 %v3373
        %v3418 = vpop.f32.mrb[0].mxu0
        %v3419 = vadd.f32 0.0, %v3418
        %v3420 = vpop.f32.mrb[0].mxu0
        %v3421 = vpop.f32.mrb[0].mxu0
        %v3422 = vadd.f32 0.0, %v3421
        %v3423 = vpop.f32.mrb[0].mxu0
        %3424 = vmatprep.mubr.bf16.mxu0 0
        %3425 = vmatmul.mubr.bf16.gmra.mrb[0].mxu0 %v3376
        %v3426 = vpop.f32.mrb[0].mxu0
        %v3427 = vadd.f32 0.0, %v3426
        %v3428 = vpop.f32.mrb[0].mxu0
        %v3429 = vpop.f32.mrb[0].mxu0
        %v3430 = vpop.f32.mrb[0].mxu0
        %3431 = vdwg.mxu0
        %v3433 = vsel %vm805, %v3358, 0
        %v3436 = vsel %vm805, %v3359, 0
        %v3439 = vsel %vm805, %v3366, 0
        %v3442 = vsel %vm805, %v3367, 0
        %3444 = vmatprep.subr.bf16.mxu0 0
        %3445 = vmatpush1.bf16.xpose.msra.mxu0 %v3439
        %3446 = vmatprep.subr.bf16.mxu0 0
        %3447 = vmatpush1.bf16.xpose.msra.mxu0 %v3442
        %3448 = vmatprep.subr.bf16.mxu0 0
        %3449 = vmatpush1.bf16.xpose.msra.mxu0 0
        %3450 = vmatprep.subr.bf16.mxu0 0
        %3451 = vmatpush1.bf16.xpose.msra.mxu0 0
        %3452 = vmatprep.subr.bf16.mxu0 0
        %3453 = vmatpush1.bf16.xpose.msra.mxu0 0
        %3454 = vmatprep.subr.bf16.mxu0 0
        %3455 = vmatpush1.bf16.xpose.msra.mxu0 0
        %3456 = vmatprep.subr.bf16.mxu0 0
        %3457 = vmatpush1.bf16.xpose.msra.mxu0 0
        %3458 = vmatprep.subr.bf16.mxu0 0
        %3459 = vmatpush1.bf16.xpose.msra.mxu0 0
        %3460 = vmatprep.subr.bf16.mxu0 0
        %3461 = vmatpush1.bf16.xpose.msra.mxu0 0
        %3462 = vmatprep.subr.bf16.mxu0 0
        %3463 = vmatpush1.bf16.xpose.msra.mxu0 0
        %3464 = vmatprep.subr.bf16.mxu0 0
        %3465 = vmatpush1.bf16.xpose.msra.mxu0 0
        %3466 = vmatprep.subr.bf16.mxu0 0
        %3467 = vmatpush1.bf16.xpose.msra.mxu0 0
        %3468 = vmatprep.subr.bf16.mxu0 0
        %3469 = vmatpush1.bf16.xpose.msra.mxu0 0
        %3470 = vmatprep.subr.bf16.mxu0 0
        %3471 = vmatpush1.bf16.xpose.msra.mxu0 0
        %3472 = vmatprep.subr.bf16.mxu0 0
        %3473 = vmatpush1.bf16.xpose.msra.mxu0 0
        %3474 = vmatprep.subr.bf16.mxu0 0
        %3475 = vmatpush1.bf16.xpose.msra.mxu0 0
        %3476 = vmatprep.mubr.bf16.mxu0 0
        %3477 = vmatmul.mubr.bf16.gmra.mrb[0].mxu0 %v3433
        %v3478 = vpop.f32.mrb[0].mxu0
        %v3479 = vadd.f32 0.0, %v3478
        %v3480 = vpop.f32.mrb[0].mxu0
        %v3481 = vpop.f32.mrb[0].mxu0
        %v3482 = vadd.f32 0.0, %v3481
        %v3483 = vpop.f32.mrb[0].mxu0
        %3484 = vmatprep.mubr.bf16.mxu0 0
        %3485 = vmatmul.mubr.bf16.gmra.mrb[0].mxu0 %v3436
        %v3486 = vpop.f32.mrb[0].mxu0
        %v3487 = vadd.f32 0.0, %v3486
        %v3488 = vpop.f32.mrb[0].mxu0
        %v3489 = vpop.f32.mrb[0].mxu0
        %v3490 = vpop.f32.mrb[0].mxu0
        %3491 = vdwg.mxu0
        %v3493 = vsel %vm805, %v3360, 0
        %v3496 = vsel %vm805, %v3361, 0
        %v3499 = vsel %vm805, %v3368, 0
        %v3502 = vsel %vm805, %v3369, 0
        %3504 = vmatprep.subr.bf16.mxu0 0
        %3505 = vmatpush1.bf16.xpose.msra.mxu0 %v3499
        %3506 = vmatprep.subr.bf16.mxu0 0
        %3507 = vmatpush1.bf16.xpose.msra.mxu0 %v3502
        %3508 = vmatprep.subr.bf16.mxu0 0
        %3509 = vmatpush1.bf16.xpose.msra.mxu0 0
        %3510 = vmatprep.subr.bf16.mxu0 0
        %3511 = vmatpush1.bf16.xpose.msra.mxu0 0
        %3512 = vmatprep.subr.bf16.mxu0 0
        %3513 = vmatpush1.bf16.xpose.msra.mxu0 0
        %3514 = vmatprep.subr.bf16.mxu0 0
        %3515 = vmatpush1.bf16.xpose.msra.mxu0 0
        %3516 = vmatprep.subr.bf16.mxu0 0
        %3517 = vmatpush1.bf16.xpose.msra.mxu0 0
        %3518 = vmatprep.subr.bf16.mxu0 0
        %3519 = vmatpush1.bf16.xpose.msra.mxu0 0
        %3520 = vmatprep.subr.bf16.mxu0 0
        %3521 = vmatpush1.bf16.xpose.msra.mxu0 0
        %3522 = vmatprep.subr.bf16.mxu0 0
        %3523 = vmatpush1.bf16.xpose.msra.mxu0 0
        %3524 = vmatprep.subr.bf16.mxu0 0
        %3525 = vmatpush1.bf16.xpose.msra.mxu0 0
        %3526 = vmatprep.subr.bf16.mxu0 0
        %3527 = vmatpush1.bf16.xpose.msra.mxu0 0
        %3528 = vmatprep.subr.bf16.mxu0 0
        %3529 = vmatpush1.bf16.xpose.msra.mxu0 0
        %3530 = vmatprep.subr.bf16.mxu0 0
        %3531 = vmatpush1.bf16.xpose.msra.mxu0 0
        %3532 = vmatprep.subr.bf16.mxu0 0
        %3533 = vmatpush1.bf16.xpose.msra.mxu0 0
        %3534 = vmatprep.subr.bf16.mxu0 0
        %3535 = vmatpush1.bf16.xpose.msra.mxu0 0
        %3536 = vmatprep.mubr.bf16.mxu0 0
        %3537 = vmatmul.mubr.bf16.gmra.mrb[0].mxu0 %v3493
        %v3538 = vpop.f32.mrb[0].mxu0
        %v3539 = vadd.f32 0.0, %v3538
        %v3540 = vpop.f32.mrb[0].mxu0
        %v3541 = vpop.f32.mrb[0].mxu0
        %v3542 = vadd.f32 0.0, %v3541
        %v3543 = vpop.f32.mrb[0].mxu0
        %3544 = vmatprep.mubr.bf16.mxu0 0
        %3545 = vmatmul.mubr.bf16.gmra.mrb[0].mxu0 %v3496
        %v3546 = vpop.f32.mrb[0].mxu0
        %v3547 = vadd.f32 0.0, %v3546
        %v3548 = vpop.f32.mrb[0].mxu0
        %v3549 = vpop.f32.mrb[0].mxu0
        %v3550 = vpop.f32.mrb[0].mxu0
        %3551 = vdwg.mxu0
        %v3553 = vsel %vm805, %v3362, 0
        %v3556 = vsel %vm805, %v3363, 0
        %v3559 = vsel %vm805, %v3370, 0
        %v3562 = vsel %vm805, %v3371, 0
        %3564 = vmatprep.subr.bf16.mxu0 0
        %3565 = vmatpush1.bf16.xpose.msra.mxu0 %v3559
        %3566 = vmatprep.subr.bf16.mxu0 0
        %3567 = vmatpush1.bf16.xpose.msra.mxu0 %v3562
        %3568 = vmatprep.subr.bf16.mxu0 0
        %3569 = vmatpush1.bf16.xpose.msra.mxu0 0
        %3570 = vmatprep.subr.bf16.mxu0 0
        %3571 = vmatpush1.bf16.xpose.msra.mxu0 0
        %3572 = vmatprep.subr.bf16.mxu0 0
        %3573 = vmatpush1.bf16.xpose.msra.mxu0 0
        %3574 = vmatprep.subr.bf16.mxu0 0
        %3575 = vmatpush1.bf16.xpose.msra.mxu0 0
        %3576 = vmatprep.subr.bf16.mxu0 0
        %3577 = vmatpush1.bf16.xpose.msra.mxu0 0
        %3578 = vmatprep.subr.bf16.mxu0 0
        %3579 = vmatpush1.bf16.xpose.msra.mxu0 0
        %3580 = vmatprep.subr.bf16.mxu0 0
        %3581 = vmatpush1.bf16.xpose.msra.mxu0 0
        %3582 = vmatprep.subr.bf16.mxu0 0
        %3583 = vmatpush1.bf16.xpose.msra.mxu0 0
        %3584 = vmatprep.subr.bf16.mxu0 0
        %3585 = vmatpush1.bf16.xpose.msra.mxu0 0
        %3586 = vmatprep.subr.bf16.mxu0 0
        %3587 = vmatpush1.bf16.xpose.msra.mxu0 0
        %3588 = vmatprep.subr.bf16.mxu0 0
        %3589 = vmatpush1.bf16.xpose.msra.mxu0 0
        %3590 = vmatprep.subr.bf16.mxu0 0
        %3591 = vmatpush1.bf16.xpose.msra.mxu0 0
        %3592 = vmatprep.subr.bf16.mxu0 0
        %3593 = vmatpush1.bf16.xpose.msra.mxu0 0
        %3594 = vmatprep.subr.bf16.mxu0 0
        %3595 = vmatpush1.bf16.xpose.msra.mxu0 0
        %3596 = vmatprep.mubr.bf16.mxu0 0
        %3597 = vmatmul.mubr.bf16.gmra.mrb[0].mxu0 %v3553
        %v3598 = vpop.f32.mrb[0].mxu0
        %v3599 = vadd.f32 0.0, %v3598
        %v3600 = vpop.f32.mrb[0].mxu0
        %v3601 = vpop.f32.mrb[0].mxu0
        %v3602 = vadd.f32 0.0, %v3601
        %v3603 = vpop.f32.mrb[0].mxu0
        %3604 = vmatprep.mubr.bf16.mxu0 0
        %3605 = vmatmul.mubr.bf16.gmra.mrb[0].mxu0 %v3556
        %v3606 = vpop.f32.mrb[0].mxu0
        %v3607 = vadd.f32 0.0, %v3606
        %v3608 = vpop.f32.mrb[0].mxu0
        %v3609 = vpop.f32.mrb[0].mxu0
        %v3610 = vpop.f32.mrb[0].mxu0
        %3611 = vdwg.mxu0
        %v3612 = vmul.f32 %v3419, 0.35355338
        %v3613 = vmul.f32 %v3422, 0.35355338
        %v3614 = vmul.f32 %v3427, 0.35355338
        %v3615 = vmul.f32 %v3479, 0.35355338
        %v3616 = vmul.f32 %v3482, 0.35355338
        %v3617 = vmul.f32 %v3487, 0.35355338
        %v3618 = vmul.f32 %v3539, 0.35355338
        %v3619 = vmul.f32 %v3542, 0.35355338
        %v3620 = vmul.f32 %v3547, 0.35355338
        %v3621 = vmul.f32 %v3599, 0.35355338
        %v3622 = vmul.f32 %v3602, 0.35355338
        %v3623 = vmul.f32 %v3607, 0.35355338
        %vm3624 = vcmask 146432
        %v3625 = vsel %vm3624, %v3612, -inf
        %3626 = vmax.xlane.f32.xlu0 %v3625
        %v3627 = vpop.xlane.xlu0 %3626
        %v3628 = vsel %vm3624, %v3613, -inf
        %3629 = vmax.xlane.f32.xlu0 %v3628
        %v3630 = vpop.xlane.xlu0 %3629
        %vm3631 = vcmask 140288
        %v3632 = vsel %vm3631, %v3614, -inf
        %3633 = vmax.xlane.f32.xlu0 %v3632
        %v3634 = vpop.xlane.xlu0 %3633
        %v3635 = vsel %vm3624, %v3615, -inf
        %3636 = vmax.xlane.f32.xlu0 %v3635
        %v3637 = vpop.xlane.xlu0 %3636
        %v3638 = vsel %vm3624, %v3616, -inf
        %3639 = vmax.xlane.f32.xlu0 %v3638
        %v3640 = vpop.xlane.xlu0 %3639
        %v3641 = vsel %vm3631, %v3617, -inf
        %3642 = vmax.xlane.f32.xlu0 %v3641
        %v3643 = vpop.xlane.xlu0 %3642
        %v3644 = vsel %vm3624, %v3618, -inf
        %3645 = vmax.xlane.f32.xlu0 %v3644
        %v3646 = vpop.xlane.xlu0 %3645
        %v3647 = vsel %vm3624, %v3619, -inf
        %3648 = vmax.xlane.f32.xlu0 %v3647
        %v3649 = vpop.xlane.xlu0 %3648
        %v3650 = vsel %vm3631, %v3620, -inf
        %3651 = vmax.xlane.f32.xlu0 %v3650
        %v3652 = vpop.xlane.xlu0 %3651
        %v3653 = vsel %vm3624, %v3621, -inf
        %3654 = vmax.xlane.f32.xlu0 %v3653
        %v3655 = vpop.xlane.xlu0 %3654
        %v3656 = vsel %vm3624, %v3622, -inf
        %3657 = vmax.xlane.f32.xlu0 %v3656
        %v3658 = vpop.xlane.xlu0 %3657
        %v3659 = vsel %vm3631, %v3623, -inf
        %3660 = vmax.xlane.f32.xlu0 %v3659
        %v3661 = vpop.xlane.xlu0 %3660
        %v3662 = vsub.f32 %v3612, %v3627
        %v3663 = vsub.f32 %v3613, %v3630
        %v3664 = vsub.f32 %v3614, %v3634
        %v3665 = vsub.f32 %v3615, %v3637
        %v3666 = vsub.f32 %v3616, %v3640
        %v3667 = vsub.f32 %v3617, %v3643
        %v3668 = vsub.f32 %v3618, %v3646
        %v3669 = vsub.f32 %v3619, %v3649
        %v3670 = vsub.f32 %v3620, %v3652
        %v3671 = vsub.f32 %v3621, %v3655
        %v3672 = vsub.f32 %v3622, %v3658
        %v3673 = vsub.f32 %v3623, %v3661
        %v3674 = vmul.f32 %v3662, 1.442695
        %v3675 = vpow.pop %v3674
        %v3676 = vmul.f32 %v3663, 1.442695
        %v3677 = vpow.pop %v3676
        %v3678 = vmul.f32 %v3664, 1.442695
        %v3679 = vpow.pop %v3678
        %v3680 = vmul.f32 %v3665, 1.442695
        %v3681 = vpow.pop %v3680
        %v3682 = vmul.f32 %v3666, 1.442695
        %v3683 = vpow.pop %v3682
        %v3684 = vmul.f32 %v3667, 1.442695
        %v3685 = vpow.pop %v3684
        %v3686 = vmul.f32 %v3668, 1.442695
        %v3687 = vpow.pop %v3686
        %v3688 = vmul.f32 %v3669, 1.442695
        %v3689 = vpow.pop %v3688
        %v3690 = vmul.f32 %v3670, 1.442695
        %v3691 = vpow.pop %v3690
        %v3692 = vmul.f32 %v3671, 1.442695
        %v3693 = vpow.pop %v3692
        %v3694 = vmul.f32 %v3672, 1.442695
        %v3695 = vpow.pop %v3694
        %v3696 = vmul.f32 %v3673, 1.442695
        %v3697 = vpow.pop %v3696
        %v3698 = vsel %vm3624, %v3675, 0.0
        %3699 = vadd.xlane.f32.xlu0 %v3698
        %v3700 = vpop.xlane.xlu0 %3699
        %v3701 = vsel %vm3624, %v3677, 0.0
        %3702 = vadd.xlane.f32.xlu0 %v3701
        %v3703 = vpop.xlane.xlu0 %3702
        %v3704 = vsel %vm3631, %v3679, 0.0
        %3705 = vadd.xlane.f32.xlu0 %v3704
        %v3706 = vpop.xlane.xlu0 %3705
        %v3707 = vsel %vm3624, %v3681, 0.0
        %3708 = vadd.xlane.f32.xlu0 %v3707
        %v3709 = vpop.xlane.xlu0 %3708
        %v3710 = vsel %vm3624, %v3683, 0.0
        %3711 = vadd.xlane.f32.xlu0 %v3710
        %v3712 = vpop.xlane.xlu0 %3711
        %v3713 = vsel %vm3631, %v3685, 0.0
        %3714 = vadd.xlane.f32.xlu0 %v3713
        %v3715 = vpop.xlane.xlu0 %3714
        %v3716 = vsel %vm3624, %v3687, 0.0
        %3717 = vadd.xlane.f32.xlu0 %v3716
        %v3718 = vpop.xlane.xlu0 %3717
        %v3719 = vsel %vm3624, %v3689, 0.0
        %3720 = vadd.xlane.f32.xlu0 %v3719
        %v3721 = vpop.xlane.xlu0 %3720
        %v3722 = vsel %vm3631, %v3691, 0.0
        %3723 = vadd.xlane.f32.xlu0 %v3722
        %v3724 = vpop.xlane.xlu0 %3723
        %v3725 = vsel %vm3624, %v3693, 0.0
        %3726 = vadd.xlane.f32.xlu0 %v3725
        %v3727 = vpop.xlane.xlu0 %3726
        %v3728 = vsel %vm3624, %v3695, 0.0
        %3729 = vadd.xlane.f32.xlu0 %v3728
        %v3730 = vpop.xlane.xlu0 %3729
        %v3731 = vsel %vm3631, %v3697, 0.0
        %3732 = vadd.xlane.f32.xlu0 %v3731
        %v3733 = vpop.xlane.xlu0 %3732
        %v3734 = vrcp.pop %v3700
        %v3735 = vrcp.pop %v3703
        %v3736 = vrcp.pop %v3706
        %v3737 = vrcp.pop %v3709
        %v3738 = vrcp.pop %v3712
        %v3739 = vrcp.pop %v3715
        %v3740 = vrcp.pop %v3718
        %v3741 = vrcp.pop %v3721
        %v3742 = vrcp.pop %v3724
        %v3743 = vrcp.pop %v3727
        %v3744 = vrcp.pop %v3730
        %v3745 = vrcp.pop %v3733
        %v3746 = vmul.f32 %v3675, %v3734
        %v3747 = vmul.f32 %v3677, %v3735
        %v3748 = vmul.f32 %v3679, %v3736
        %v3749 = vmul.f32 %v3681, %v3737
        %v3750 = vmul.f32 %v3683, %v3738
        %v3751 = vmul.f32 %v3685, %v3739
        %v3752 = vmul.f32 %v3687, %v3740
        %v3753 = vmul.f32 %v3689, %v3741
        %v3754 = vmul.f32 %v3691, %v3742
        %v3755 = vmul.f32 %v3693, %v3743
        %v3756 = vmul.f32 %v3695, %v3744
        %v3757 = vmul.f32 %v3697, %v3745
        %v3758 = vpack.c.bf16 %v3747, %v3746
        %v3759 = vpack.c.bf16 %v3748, %v3748
        %v3760 = vpack.c.bf16 %v3750, %v3749
        %v3761 = vpack.c.bf16 %v3751, %v3751
        %v3762 = vpack.c.bf16 %v3753, %v3752
        %v3763 = vpack.c.bf16 %v3754, %v3754
        %v3764 = vpack.c.bf16 %v3756, %v3755
        %v3765 = vpack.c.bf16 %v3757, %v3757
        %v3766 = vpack.c.bf16 %v3323, %v3321
        %v3767 = vpack.c.bf16 %v3325, %v3325
        %v3768 = vpack.c.bf16 %v3332, %v3330
        %v3769 = vpack.c.bf16 %v3334, %v3334
        %v3770 = vpack.c.bf16 %v3341, %v3339
        %v3771 = vpack.c.bf16 %v3343, %v3343
        %v3772 = vpack.c.bf16 %v3350, %v3348
        %v3773 = vpack.c.bf16 %v3352, %v3352
        %v3775 = vsel %vm3624, %v3758, 0
        %v3778 = vsel %vm3624, %v3759, 0
        %v3781 = vsel %vm3159, %v3767, 0
        %3783 = vmatprep.subr.bf16.mxu0 0
        %3784 = vmatpush1.bf16.msra.mxu0 %v3766
        %3785 = vmatprep.subr.bf16.mxu0 0
        %3786 = vmatpush1.bf16.msra.mxu0 %v3781
        %3787 = vmatprep.subr.bf16.mxu0 0
        %3788 = vmatpush1.bf16.msra.mxu0 0
        %3789 = vmatprep.subr.bf16.mxu0 0
        %3790 = vmatpush1.bf16.msra.mxu0 0
        %3791 = vmatprep.subr.bf16.mxu0 0
        %3792 = vmatpush1.bf16.msra.mxu0 0
        %3793 = vmatprep.subr.bf16.mxu0 0
        %3794 = vmatpush1.bf16.msra.mxu0 0
        %3795 = vmatprep.subr.bf16.mxu0 0
        %3796 = vmatpush1.bf16.msra.mxu0 0
        %3797 = vmatprep.subr.bf16.mxu0 0
        %3798 = vmatpush1.bf16.msra.mxu0 0
        %3799 = vmatprep.subr.bf16.mxu0 0
        %3800 = vmatpush1.bf16.msra.mxu0 0
        %3801 = vmatprep.subr.bf16.mxu0 0
        %3802 = vmatpush1.bf16.msra.mxu0 0
        %3803 = vmatprep.subr.bf16.mxu0 0
        %3804 = vmatpush1.bf16.msra.mxu0 0
        %3805 = vmatprep.subr.bf16.mxu0 0
        %3806 = vmatpush1.bf16.msra.mxu0 0
        %3807 = vmatprep.subr.bf16.mxu0 0
        %3808 = vmatpush1.bf16.msra.mxu0 0
        %3809 = vmatprep.subr.bf16.mxu0 0
        %3810 = vmatpush1.bf16.msra.mxu0 0
        %3811 = vmatprep.subr.bf16.mxu0 0
        %3812 = vmatpush1.bf16.msra.mxu0 0
        %3813 = vmatprep.subr.bf16.mxu0 0
        %3814 = vmatpush1.bf16.msra.mxu0 0
        %3815 = vmatprep.mubr.bf16.mxu0 0
        %3816 = vmatmul.mubr.bf16.gmra.mrb[0].mxu0 %v3775
        %v3817 = vpop.f32.mrb[0].mxu0
        %v3818 = vadd.f32 0.0, %v3817
        %v3819 = vpop.f32.mrb[0].mxu0
        %v3820 = vpop.f32.mrb[0].mxu0
        %v3821 = vadd.f32 0.0, %v3820
        %v3822 = vpop.f32.mrb[0].mxu0
        %3823 = vmatprep.mubr.bf16.mxu0 0
        %3824 = vmatmul.mubr.bf16.gmra.mrb[0].mxu0 %v3778
        %v3825 = vpop.f32.mrb[0].mxu0
        %v3826 = vadd.f32 0.0, %v3825
        %v3827 = vpop.f32.mrb[0].mxu0
        %v3828 = vpop.f32.mrb[0].mxu0
        %v3829 = vpop.f32.mrb[0].mxu0
        %3830 = vdwg.mxu0
        %v3832 = vsel %vm3624, %v3760, 0
        %v3835 = vsel %vm3624, %v3761, 0
        %v3838 = vsel %vm3159, %v3769, 0
        %3840 = vmatprep.subr.bf16.mxu0 0
        %3841 = vmatpush1.bf16.msra.mxu0 %v3768
        %3842 = vmatprep.subr.bf16.mxu0 0
        %3843 = vmatpush1.bf16.msra.mxu0 %v3838
        %3844 = vmatprep.subr.bf16.mxu0 0
        %3845 = vmatpush1.bf16.msra.mxu0 0
        %3846 = vmatprep.subr.bf16.mxu0 0
        %3847 = vmatpush1.bf16.msra.mxu0 0
        %3848 = vmatprep.subr.bf16.mxu0 0
        %3849 = vmatpush1.bf16.msra.mxu0 0
        %3850 = vmatprep.subr.bf16.mxu0 0
        %3851 = vmatpush1.bf16.msra.mxu0 0
        %3852 = vmatprep.subr.bf16.mxu0 0
        %3853 = vmatpush1.bf16.msra.mxu0 0
        %3854 = vmatprep.subr.bf16.mxu0 0
        %3855 = vmatpush1.bf16.msra.mxu0 0
        %3856 = vmatprep.subr.bf16.mxu0 0
        %3857 = vmatpush1.bf16.msra.mxu0 0
        %3858 = vmatprep.subr.bf16.mxu0 0
        %3859 = vmatpush1.bf16.msra.mxu0 0
        %3860 = vmatprep.subr.bf16.mxu0 0
        %3861 = vmatpush1.bf16.msra.mxu0 0
        %3862 = vmatprep.subr.bf16.mxu0 0
        %3863 = vmatpush1.bf16.msra.mxu0 0
        %3864 = vmatprep.subr.bf16.mxu0 0
        %3865 = vmatpush1.bf16.msra.mxu0 0
        %3866 = vmatprep.subr.bf16.mxu0 0
        %3867 = vmatpush1.bf16.msra.mxu0 0
        %3868 = vmatprep.subr.bf16.mxu0 0
        %3869 = vmatpush1.bf16.msra.mxu0 0
        %3870 = vmatprep.subr.bf16.mxu0 0
        %3871 = vmatpush1.bf16.msra.mxu0 0
        %3872 = vmatprep.mubr.bf16.mxu0 0
        %3873 = vmatmul.mubr.bf16.gmra.mrb[0].mxu0 %v3832
        %v3874 = vpop.f32.mrb[0].mxu0
        %v3875 = vadd.f32 0.0, %v3874
        %v3876 = vpop.f32.mrb[0].mxu0
        %v3877 = vpop.f32.mrb[0].mxu0
        %v3878 = vadd.f32 0.0, %v3877
        %v3879 = vpop.f32.mrb[0].mxu0
        %3880 = vmatprep.mubr.bf16.mxu0 0
        %3881 = vmatmul.mubr.bf16.gmra.mrb[0].mxu0 %v3835
        %v3882 = vpop.f32.mrb[0].mxu0
        %v3883 = vadd.f32 0.0, %v3882
        %v3884 = vpop.f32.mrb[0].mxu0
        %v3885 = vpop.f32.mrb[0].mxu0
        %v3886 = vpop.f32.mrb[0].mxu0
        %3887 = vdwg.mxu0
        %v3889 = vsel %vm3624, %v3762, 0
        %v3892 = vsel %vm3624, %v3763, 0
        %v3895 = vsel %vm3159, %v3771, 0
        %3897 = vmatprep.subr.bf16.mxu0 0
        %3898 = vmatpush1.bf16.msra.mxu0 %v3770
        %3899 = vmatprep.subr.bf16.mxu0 0
        %3900 = vmatpush1.bf16.msra.mxu0 %v3895
        %3901 = vmatprep.subr.bf16.mxu0 0
        %3902 = vmatpush1.bf16.msra.mxu0 0
        %3903 = vmatprep.subr.bf16.mxu0 0
        %3904 = vmatpush1.bf16.msra.mxu0 0
        %3905 = vmatprep.subr.bf16.mxu0 0
        %3906 = vmatpush1.bf16.msra.mxu0 0
        %3907 = vmatprep.subr.bf16.mxu0 0
        %3908 = vmatpush1.bf16.msra.mxu0 0
        %3909 = vmatprep.subr.bf16.mxu0 0
        %3910 = vmatpush1.bf16.msra.mxu0 0
        %3911 = vmatprep.subr.bf16.mxu0 0
        %3912 = vmatpush1.bf16.msra.mxu0 0
        %3913 = vmatprep.subr.bf16.mxu0 0
        %3914 = vmatpush1.bf16.msra.mxu0 0
        %3915 = vmatprep.subr.bf16.mxu0 0
        %3916 = vmatpush1.bf16.msra.mxu0 0
        %3917 = vmatprep.subr.bf16.mxu0 0
        %3918 = vmatpush1.bf16.msra.mxu0 0
        %3919 = vmatprep.subr.bf16.mxu0 0
        %3920 = vmatpush1.bf16.msra.mxu0 0
        %3921 = vmatprep.subr.bf16.mxu0 0
        %3922 = vmatpush1.bf16.msra.mxu0 0
        %3923 = vmatprep.subr.bf16.mxu0 0
        %3924 = vmatpush1.bf16.msra.mxu0 0
        %3925 = vmatprep.subr.bf16.mxu0 0
        %3926 = vmatpush1.bf16.msra.mxu0 0
        %3927 = vmatprep.subr.bf16.mxu0 0
        %3928 = vmatpush1.bf16.msra.mxu0 0
        %3929 = vmatprep.mubr.bf16.mxu0 0
        %3930 = vmatmul.mubr.bf16.gmra.mrb[0].mxu0 %v3889
        %v3931 = vpop.f32.mrb[0].mxu0
        %v3932 = vadd.f32 0.0, %v3931
        %v3933 = vpop.f32.mrb[0].mxu0
        %v3934 = vpop.f32.mrb[0].mxu0
        %v3935 = vadd.f32 0.0, %v3934
        %v3936 = vpop.f32.mrb[0].mxu0
        %3937 = vmatprep.mubr.bf16.mxu0 0
        %3938 = vmatmul.mubr.bf16.gmra.mrb[0].mxu0 %v3892
        %v3939 = vpop.f32.mrb[0].mxu0
        %v3940 = vadd.f32 0.0, %v3939
        %v3941 = vpop.f32.mrb[0].mxu0
        %v3942 = vpop.f32.mrb[0].mxu0
        %v3943 = vpop.f32.mrb[0].mxu0
        %3944 = vdwg.mxu0
        %v3946 = vsel %vm3624, %v3764, 0
        %v3949 = vsel %vm3624, %v3765, 0
        %v3952 = vsel %vm3159, %v3773, 0
        %3954 = vmatprep.subr.bf16.mxu0 0
        %3955 = vmatpush1.bf16.msra.mxu0 %v3772
        %3956 = vmatprep.subr.bf16.mxu0 0
        %3957 = vmatpush1.bf16.msra.mxu0 %v3952
        %3958 = vmatprep.subr.bf16.mxu0 0
        %3959 = vmatpush1.bf16.msra.mxu0 0
        %3960 = vmatprep.subr.bf16.mxu0 0
        %3961 = vmatpush1.bf16.msra.mxu0 0
        %3962 = vmatprep.subr.bf16.mxu0 0
        %3963 = vmatpush1.bf16.msra.mxu0 0
        %3964 = vmatprep.subr.bf16.mxu0 0
        %3965 = vmatpush1.bf16.msra.mxu0 0
        %3966 = vmatprep.subr.bf16.mxu0 0
        %3967 = vmatpush1.bf16.msra.mxu0 0
        %3968 = vmatprep.subr.bf16.mxu0 0
        %3969 = vmatpush1.bf16.msra.mxu0 0
        %3970 = vmatprep.subr.bf16.mxu0 0
        %3971 = vmatpush1.bf16.msra.mxu0 0
        %3972 = vmatprep.subr.bf16.mxu0 0
        %3973 = vmatpush1.bf16.msra.mxu0 0
        %3974 = vmatprep.subr.bf16.mxu0 0
        %3975 = vmatpush1.bf16.msra.mxu0 0
        %3976 = vmatprep.subr.bf16.mxu0 0
        %3977 = vmatpush1.bf16.msra.mxu0 0
        %3978 = vmatprep.subr.bf16.mxu0 0
        %3979 = vmatpush1.bf16.msra.mxu0 0
        %3980 = vmatprep.subr.bf16.mxu0 0
        %3981 = vmatpush1.bf16.msra.mxu0 0
        %3982 = vmatprep.subr.bf16.mxu0 0
        %3983 = vmatpush1.bf16.msra.mxu0 0
        %3984 = vmatprep.subr.bf16.mxu0 0
        %3985 = vmatpush1.bf16.msra.mxu0 0
        %3986 = vmatprep.mubr.bf16.mxu0 0
        %3987 = vmatmul.mubr.bf16.gmra.mrb[0].mxu0 %v3946
        %v3988 = vpop.f32.mrb[0].mxu0
        %v3989 = vadd.f32 0.0, %v3988
        %v3990 = vpop.f32.mrb[0].mxu0
        %v3991 = vpop.f32.mrb[0].mxu0
        %v3992 = vadd.f32 0.0, %v3991
        %v3993 = vpop.f32.mrb[0].mxu0
        %3994 = vmatprep.mubr.bf16.mxu0 0
        %3995 = vmatmul.mubr.bf16.gmra.mrb[0].mxu0 %v3949
        %v3996 = vpop.f32.mrb[0].mxu0
        %v3997 = vadd.f32 0.0, %v3996
        %v3998 = vpop.f32.mrb[0].mxu0
        %v3999 = vpop.f32.mrb[0].mxu0
        %v4000 = vpop.f32.mrb[0].mxu0
        %4001 = vdwg.mxu0
        %v4002 = vpack.c.bf16 %v3821, %v3818
        %v4003 = vpack.c.bf16 %v3826, %v3826
        %v4004 = vpack.c.bf16 %v3878, %v3875
        %v4005 = vpack.c.bf16 %v3883, %v3883
        %v4006 = vpack.c.bf16 %v3935, %v3932
        %v4007 = vpack.c.bf16 %v3940, %v3940
        %v4008 = vpack.c.bf16 %v3992, %v3989
        %v4009 = vpack.c.bf16 %v3997, %v3997
        %v4011 = vsel %vm805, %v4002, 0
        %v4014 = vsel %vm805, %v4003, 0
        %v4017 = vsel %vm1227, %v3178, 0
        %4019 = vmatprep.subr.bf16.mxu0 0
        %4020 = vmatpush1.bf16.msra.mxu0 %v4017
        %4021 = vmatprep.subr.bf16.mxu0 0
        %4022 = vmatpush1.bf16.msra.mxu0 0
        %4023 = vmatprep.subr.bf16.mxu0 0
        %4024 = vmatpush1.bf16.msra.mxu0 0
        %4025 = vmatprep.subr.bf16.mxu0 0
        %4026 = vmatpush1.bf16.msra.mxu0 0
        %4027 = vmatprep.subr.bf16.mxu0 0
        %4028 = vmatpush1.bf16.msra.mxu0 0
        %4029 = vmatprep.subr.bf16.mxu0 0
        %4030 = vmatpush1.bf16.msra.mxu0 0
        %4031 = vmatprep.subr.bf16.mxu0 0
        %4032 = vmatpush1.bf16.msra.mxu0 0
        %4033 = vmatprep.subr.bf16.mxu0 0
        %4034 = vmatpush1.bf16.msra.mxu0 0
        %4035 = vmatprep.subr.bf16.mxu0 0
        %4036 = vmatpush1.bf16.msra.mxu0 0
        %4037 = vmatprep.subr.bf16.mxu0 0
        %4038 = vmatpush1.bf16.msra.mxu0 0
        %4039 = vmatprep.subr.bf16.mxu0 0
        %4040 = vmatpush1.bf16.msra.mxu0 0
        %4041 = vmatprep.subr.bf16.mxu0 0
        %4042 = vmatpush1.bf16.msra.mxu0 0
        %4043 = vmatprep.subr.bf16.mxu0 0
        %4044 = vmatpush1.bf16.msra.mxu0 0
        %4045 = vmatprep.subr.bf16.mxu0 0
        %4046 = vmatpush1.bf16.msra.mxu0 0
        %4047 = vmatprep.subr.bf16.mxu0 0
        %4048 = vmatpush1.bf16.msra.mxu0 0
        %4049 = vmatprep.subr.bf16.mxu0 0
        %4050 = vmatpush1.bf16.msra.mxu0 0
        %4051 = vmatprep.mubr.bf16.mxu0 0
        %4052 = vmatmul.mubr.bf16.gmra.mrb[0].mxu0 %v4011
        %v4053 = vpop.f32.mrb[0].mxu0
        %v4054 = vadd.f32 0.0, %v4053
        %v4055 = vpop.f32.mrb[0].mxu0
        %v4056 = vpop.f32.mrb[0].mxu0
        %v4057 = vadd.f32 0.0, %v4056
        %v4058 = vpop.f32.mrb[0].mxu0
        %4059 = vmatprep.mubr.bf16.mxu0 0
        %4060 = vmatmul.mubr.bf16.gmra.mrb[0].mxu0 %v4014
        %v4061 = vpop.f32.mrb[0].mxu0
        %v4062 = vadd.f32 0.0, %v4061
        %v4063 = vpop.f32.mrb[0].mxu0
        %v4064 = vpop.f32.mrb[0].mxu0
        %v4065 = vpop.f32.mrb[0].mxu0
        %4066 = vdwg.mxu0
        %v4068 = vsel %vm805, %v4004, 0
        %v4071 = vsel %vm805, %v4005, 0
        %v4074 = vsel %vm1227, %v3179, 0
        %4076 = vmatprep.subr.bf16.mxu0 0
        %4077 = vmatpush1.bf16.msra.mxu0 %v4074
        %4078 = vmatprep.subr.bf16.mxu0 0
        %4079 = vmatpush1.bf16.msra.mxu0 0
        %4080 = vmatprep.subr.bf16.mxu0 0
        %4081 = vmatpush1.bf16.msra.mxu0 0
        %4082 = vmatprep.subr.bf16.mxu0 0
        %4083 = vmatpush1.bf16.msra.mxu0 0
        %4084 = vmatprep.subr.bf16.mxu0 0
        %4085 = vmatpush1.bf16.msra.mxu0 0
        %4086 = vmatprep.subr.bf16.mxu0 0
        %4087 = vmatpush1.bf16.msra.mxu0 0
        %4088 = vmatprep.subr.bf16.mxu0 0
        %4089 = vmatpush1.bf16.msra.mxu0 0
        %4090 = vmatprep.subr.bf16.mxu0 0
        %4091 = vmatpush1.bf16.msra.mxu0 0
        %4092 = vmatprep.subr.bf16.mxu0 0
        %4093 = vmatpush1.bf16.msra.mxu0 0
        %4094 = vmatprep.subr.bf16.mxu0 0
        %4095 = vmatpush1.bf16.msra.mxu0 0
        %4096 = vmatprep.subr.bf16.mxu0 0
        %4097 = vmatpush1.bf16.msra.mxu0 0
        %4098 = vmatprep.subr.bf16.mxu0 0
        %4099 = vmatpush1.bf16.msra.mxu0 0
        %4100 = vmatprep.subr.bf16.mxu0 0
        %4101 = vmatpush1.bf16.msra.mxu0 0
        %4102 = vmatprep.subr.bf16.mxu0 0
        %4103 = vmatpush1.bf16.msra.mxu0 0
        %4104 = vmatprep.subr.bf16.mxu0 0
        %4105 = vmatpush1.bf16.msra.mxu0 0
        %4106 = vmatprep.subr.bf16.mxu0 0
        %4107 = vmatpush1.bf16.msra.mxu0 0
        %4108 = vmatprep.mubr.bf16.mxu0 0
        %4109 = vmatmul.mubr.bf16.gmra.mrb[0].mxu0 %v4068
        %v4110 = vpop.f32.mrb[0].mxu0
        %v4111 = vadd.f32 0.0, %v4110
        %v4112 = vpop.f32.mrb[0].mxu0
        %v4113 = vpop.f32.mrb[0].mxu0
        %v4114 = vadd.f32 0.0, %v4113
        %v4115 = vpop.f32.mrb[0].mxu0
        %4116 = vmatprep.mubr.bf16.mxu0 0
        %4117 = vmatmul.mubr.bf16.gmra.mrb[0].mxu0 %v4071
        %v4118 = vpop.f32.mrb[0].mxu0
        %v4119 = vadd.f32 0.0, %v4118
        %v4120 = vpop.f32.mrb[0].mxu0
        %v4121 = vpop.f32.mrb[0].mxu0
        %v4122 = vpop.f32.mrb[0].mxu0
        %4123 = vdwg.mxu0
        %v4125 = vsel %vm805, %v4006, 0
        %v4128 = vsel %vm805, %v4007, 0
        %v4131 = vsel %vm1227, %v3180, 0
        %4133 = vmatprep.subr.bf16.mxu0 0
        %4134 = vmatpush1.bf16.msra.mxu0 %v4131
        %4135 = vmatprep.subr.bf16.mxu0 0
        %4136 = vmatpush1.bf16.msra.mxu0 0
        %4137 = vmatprep.subr.bf16.mxu0 0
        %4138 = vmatpush1.bf16.msra.mxu0 0
        %4139 = vmatprep.subr.bf16.mxu0 0
        %4140 = vmatpush1.bf16.msra.mxu0 0
        %4141 = vmatprep.subr.bf16.mxu0 0
        %4142 = vmatpush1.bf16.msra.mxu0 0
        %4143 = vmatprep.subr.bf16.mxu0 0
        %4144 = vmatpush1.bf16.msra.mxu0 0
        %4145 = vmatprep.subr.bf16.mxu0 0
        %4146 = vmatpush1.bf16.msra.mxu0 0
        %4147 = vmatprep.subr.bf16.mxu0 0
        %4148 = vmatpush1.bf16.msra.mxu0 0
        %4149 = vmatprep.subr.bf16.mxu0 0
        %4150 = vmatpush1.bf16.msra.mxu0 0
        %4151 = vmatprep.subr.bf16.mxu0 0
        %4152 = vmatpush1.bf16.msra.mxu0 0
        %4153 = vmatprep.subr.bf16.mxu0 0
        %4154 = vmatpush1.bf16.msra.mxu0 0
        %4155 = vmatprep.subr.bf16.mxu0 0
        %4156 = vmatpush1.bf16.msra.mxu0 0
        %4157 = vmatprep.subr.bf16.mxu0 0
        %4158 = vmatpush1.bf16.msra.mxu0 0
        %4159 = vmatprep.subr.bf16.mxu0 0
        %4160 = vmatpush1.bf16.msra.mxu0 0
        %4161 = vmatprep.subr.bf16.mxu0 0
        %4162 = vmatpush1.bf16.msra.mxu0 0
        %4163 = vmatprep.subr.bf16.mxu0 0
        %4164 = vmatpush1.bf16.msra.mxu0 0
        %4165 = vmatprep.mubr.bf16.mxu0 0
        %4166 = vmatmul.mubr.bf16.gmra.mrb[0].mxu0 %v4125
        %v4167 = vpop.f32.mrb[0].mxu0
        %v4168 = vadd.f32 0.0, %v4167
        %v4169 = vpop.f32.mrb[0].mxu0
        %v4170 = vpop.f32.mrb[0].mxu0
        %v4171 = vadd.f32 0.0, %v4170
        %v4172 = vpop.f32.mrb[0].mxu0
        %4173 = vmatprep.mubr.bf16.mxu0 0
        %4174 = vmatmul.mubr.bf16.gmra.mrb[0].mxu0 %v4128
        %v4175 = vpop.f32.mrb[0].mxu0
        %v4176 = vadd.f32 0.0, %v4175
        %v4177 = vpop.f32.mrb[0].mxu0
        %v4178 = vpop.f32.mrb[0].mxu0
        %v4179 = vpop.f32.mrb[0].mxu0
        %4180 = vdwg.mxu0
        %v4182 = vsel %vm805, %v4008, 0
        %v4185 = vsel %vm805, %v4009, 0
        %v4188 = vsel %vm1227, %v3181, 0
        %4190 = vmatprep.subr.bf16.mxu0 0
        %4191 = vmatpush1.bf16.msra.mxu0 %v4188
        %4192 = vmatprep.subr.bf16.mxu0 0
        %4193 = vmatpush1.bf16.msra.mxu0 0
        %4194 = vmatprep.subr.bf16.mxu0 0
        %4195 = vmatpush1.bf16.msra.mxu0 0
        %4196 = vmatprep.subr.bf16.mxu0 0
        %4197 = vmatpush1.bf16.msra.mxu0 0
        %4198 = vmatprep.subr.bf16.mxu0 0
        %4199 = vmatpush1.bf16.msra.mxu0 0
        %4200 = vmatprep.subr.bf16.mxu0 0
        %4201 = vmatpush1.bf16.msra.mxu0 0
        %4202 = vmatprep.subr.bf16.mxu0 0
        %4203 = vmatpush1.bf16.msra.mxu0 0
        %4204 = vmatprep.subr.bf16.mxu0 0
        %4205 = vmatpush1.bf16.msra.mxu0 0
        %4206 = vmatprep.subr.bf16.mxu0 0
        %4207 = vmatpush1.bf16.msra.mxu0 0
        %4208 = vmatprep.subr.bf16.mxu0 0
        %4209 = vmatpush1.bf16.msra.mxu0 0
        %4210 = vmatprep.subr.bf16.mxu0 0
        %4211 = vmatpush1.bf16.msra.mxu0 0
        %4212 = vmatprep.subr.bf16.mxu0 0
        %4213 = vmatpush1.bf16.msra.mxu0 0
        %4214 = vmatprep.subr.bf16.mxu0 0
        %4215 = vmatpush1.bf16.msra.mxu0 0
        %4216 = vmatprep.subr.bf16.mxu0 0
        %4217 = vmatpush1.bf16.msra.mxu0 0
        %4218 = vmatprep.subr.bf16.mxu0 0
        %4219 = vmatpush1.bf16.msra.mxu0 0
        %4220 = vmatprep.subr.bf16.mxu0 0
        %4221 = vmatpush1.bf16.msra.mxu0 0
        %4222 = vmatprep.mubr.bf16.mxu0 0
        %4223 = vmatmul.mubr.bf16.gmra.mrb[0].mxu0 %v4182
        %v4224 = vpop.f32.mrb[0].mxu0
        %v4225 = vadd.f32 0.0, %v4224
        %v4226 = vpop.f32.mrb[0].mxu0
        %v4227 = vpop.f32.mrb[0].mxu0
        %v4228 = vadd.f32 0.0, %v4227
        %v4229 = vpop.f32.mrb[0].mxu0
        %4230 = vmatprep.mubr.bf16.mxu0 0
        %4231 = vmatmul.mubr.bf16.gmra.mrb[0].mxu0 %v4185
        %v4232 = vpop.f32.mrb[0].mxu0
        %v4233 = vadd.f32 0.0, %v4232
        %v4234 = vpop.f32.mrb[0].mxu0
        %v4235 = vpop.f32.mrb[0].mxu0
        %v4236 = vpop.f32.mrb[0].mxu0
        %4237 = vdwg.mxu0
        %v4238 = vsel %vm640, %v4054, 0.0
        %v4239 = vsel %vm640, %v4111, 0.0
        %v4240 = vadd.f32 %v4238, %v4239
        %v4241 = vsel %vm640, %v4168, 0.0
        %v4242 = vadd.f32 %v4240, %v4241
        %v4243 = vsel %vm640, %v4225, 0.0
        %v4244 = vadd.f32 %v4242, %v4243
        %v4245 = vsel %vm640, %v4057, 0.0
        %v4246 = vsel %vm640, %v4114, 0.0
        %v4247 = vadd.f32 %v4245, %v4246
        %v4248 = vsel %vm640, %v4171, 0.0
        %v4249 = vadd.f32 %v4247, %v4248
        %v4250 = vsel %vm640, %v4228, 0.0
        %v4251 = vadd.f32 %v4249, %v4250
        %vm4252 = vcmask 254976
        %v4253 = vsel %vm4252, %v4062, 0.0
        %v4254 = vsel %vm4252, %v4119, 0.0
        %v4255 = vadd.f32 %v4253, %v4254
        %v4256 = vsel %vm4252, %v4176, 0.0
        %v4257 = vadd.f32 %v4255, %v4256
        %v4258 = vsel %vm4252, %v4233, 0.0
        %v4259 = vadd.f32 %v4257, %v4258
        %v4260 = vlaneseq
        %v4261 = vshrl.u32 %v4260, 7
        %v4262 = vsub.s32 0, %v4261
        %v4263 = vrot.slane %v3183, %v4262
        %v4264 = vadd.f32 %v4244, %v4263
        %v4265 = vadd.f32 %v4251, %v4263
        %v4266 = vadd.f32 %v4259, %v4263
        %v4267 = vadd.f32 %v4264, %v609
        %v4268 = vadd.f32 %v4265, %v610
        %v4269 = vadd.f32 %v4266, %v3160
        %v4270 = vsel %vm640, %v4267, 0.0
        %4271 = vadd.xlane.f32.xlu0 %v4270
        %v4272 = vpop.xlane.xlu0 %4271
        %v4273 = vsel %vm640, %v4268, 0.0
        %4274 = vadd.xlane.f32.xlu0 %v4273
        %v4275 = vpop.xlane.xlu0 %4274
        %v4276 = vsel %vm4252, %v4269, 0.0
        %4277 = vadd.xlane.f32.xlu0 %v4276
        %v4278 = vpop.xlane.xlu0 %4277
        %v4279 = vmul.f32 %v4272, %v1421
        %v4280 = vmul.f32 %v4275, %v1421
        %v4281 = vmul.f32 %v4278, %v1421
        %v4282 = vsub.f32 %v4267, %v4279
        %v4283 = vsub.f32 %v4268, %v4280
        %v4284 = vsub.f32 %v4269, %v4281
        %v4285 = vmul.f32 %v4282, %v4282
        %v4286 = vmul.f32 %v4283, %v4283
        %v4287 = vmul.f32 %v4284, %v4284
        %v4288 = vsel %vm640, %v4285, 0.0
        %4289 = vadd.xlane.f32.xlu0 %v4288
        %v4290 = vpop.xlane.xlu0 %4289
        %v4291 = vsel %vm640, %v4286, 0.0
        %4292 = vadd.xlane.f32.xlu0 %v4291
        %v4293 = vpop.xlane.xlu0 %4292
        %v4294 = vsel %vm4252, %v4287, 0.0
        %4295 = vadd.xlane.f32.xlu0 %v4294
        %v4296 = vpop.xlane.xlu0 %4295
        %v4297 = vmul.f32 %v4290, %v1421
        %v4298 = vmul.f32 %v4293, %v1421
        %v4299 = vmul.f32 %v4296, %v1421
        %v4300 = vadd.f32 %v4297, 1e-05
        %v4301 = vadd.f32 %v4298, 1e-05
        %v4302 = vadd.f32 %v4299, 1e-05
        %v4303 = vrsqrt.pop %v4300
        %v4304 = vrsqrt.pop %v4301
        %v4305 = vrsqrt.pop %v4302
        %v4306 = vmul.f32 %v4282, %v4303
        %v4307 = vmul.f32 %v4283, %v4304
        %v4308 = vmul.f32 %v4284, %v4305
        %v4309 = vlaneseq
        %v4310 = vshrl.u32 %v4309, 7
        %v4311 = vsub.s32 1, %v4310
        %v4312 = vrot.slane %v3183, %v4311
        %v4313 = vmul.f32 %v4306, %v4312
        %v4314 = vmul.f32 %v4307, %v4312
        %v4315 = vmul.f32 %v4308, %v4312
        %v4316 = vlaneseq
        %v4317 = vshrl.u32 %v4316, 7
        %v4318 = vsub.s32 2, %v4317
        %v4319 = vrot.slane %v3183, %v4318
        %v4320 = vadd.f32 %v4313, %v4319
        %v4321 = vadd.f32 %v4314, %v4319
        %v4322 = vadd.f32 %v4315, %v4319
        %s4323 = scalar_lea.vmem %s4, 80
        %v4324 = vld [vmem:[%s4323] sm:$0xf]
        %v4325 = vld [vmem:[%s4323 + $0x4] sm:$0xf]
        %v4326 = vld [vmem:[%s4323 + $0x8] sm:$0xf]
        %v4327 = vld [vmem:[%s4323 + $0xc] sm:$0xf]
        %s4328 = scalar_lea.vmem %s5, 5
        %v4329 = vld [vmem:[%s4328] sm:$0x1]
        %s4330 = scalar_lea.vmem %s6, 80
        %v4331 = vld [vmem:[%s4330] sm:$0xf]
        %v4332 = vld [vmem:[%s4330 + $0x4] sm:$0xf]
        %v4333 = vld [vmem:[%s4330 + $0x8] sm:$0xf]
        %v4334 = vld [vmem:[%s4330 + $0xc] sm:$0xf]
        %s4335 = scalar_lea.vmem %s7, 20
        %v4336 = vld [vmem:[%s4335] sm:$0x7]
        %v4337 = vpack.c.bf16 %v3169, %v611
        %v4339 = vlaneseq
        %v4340 = vshrl.u32 %v4339, 7
        %v4341 = vsub.s32 0, %v4340
        %v4342 = vrot.slane %v4329, %v4341
        %v4348 = vunpack.c.l.b16 %v4324
        %v4349 = vunpack.c.l.b16 %v4325
        %v4350 = vunpack.c.l.b16 %v4326
        %v4351 = vunpack.c.l.b16 %v4327
        %v4352 = vpack.c.b16 %v4349, %v4348
        %v4353 = vpack.c.b16 %v4351, %v4350
        %v4357 = vsel %vm640, %v4337, 0
        %4359 = vmatprep.subr.bf16.mxu0 0
        %4360 = vmatpush1.bf16.msra.mxu0 %v4352
        %4361 = vmatprep.subr.bf16.mxu0 0
        %4362 = vmatpush1.bf16.msra.mxu0 %v4353
        %4363 = vmatprep.subr.bf16.mxu0 0
        %4364 = vmatpush1.bf16.msra.mxu0 0
        %4365 = vmatprep.subr.bf16.mxu0 0
        %4366 = vmatpush1.bf16.msra.mxu0 0
        %4367 = vmatprep.subr.bf16.mxu0 0
        %4368 = vmatpush1.bf16.msra.mxu0 0
        %4369 = vmatprep.subr.bf16.mxu0 0
        %4370 = vmatpush1.bf16.msra.mxu0 0
        %4371 = vmatprep.subr.bf16.mxu0 0
        %4372 = vmatpush1.bf16.msra.mxu0 0
        %4373 = vmatprep.subr.bf16.mxu0 0
        %4374 = vmatpush1.bf16.msra.mxu0 0
        %4375 = vmatprep.subr.bf16.mxu0 0
        %4376 = vmatpush1.bf16.msra.mxu0 0
        %4377 = vmatprep.subr.bf16.mxu0 0
        %4378 = vmatpush1.bf16.msra.mxu0 0
        %4379 = vmatprep.subr.bf16.mxu0 0
        %4380 = vmatpush1.bf16.msra.mxu0 0
        %4381 = vmatprep.subr.bf16.mxu0 0
        %4382 = vmatpush1.bf16.msra.mxu0 0
        %4383 = vmatprep.subr.bf16.mxu0 0
        %4384 = vmatpush1.bf16.msra.mxu0 0
        %4385 = vmatprep.subr.bf16.mxu0 0
        %4386 = vmatpush1.bf16.msra.mxu0 0
        %4387 = vmatprep.subr.bf16.mxu0 0
        %4388 = vmatpush1.bf16.msra.mxu0 0
        %4389 = vmatprep.subr.bf16.mxu0 0
        %4390 = vmatpush1.bf16.msra.mxu0 0
        %4391 = vmatprep.mubr.bf16.mxu0 0
        %4392 = vmatmul.mubr.bf16.gmra.mrb[0].mxu0 %v4357
        %v4393 = vpop.f32.mrb[0].mxu0
        %v4394 = vadd.f32 %v4342, %v4393
        %v4395 = vpop.f32.mrb[0].mxu0
        %v4396 = vpop.f32.mrb[0].mxu0
        %v4397 = vadd.f32 %v4342, %v4396
        %v4398 = vpop.f32.mrb[0].mxu0
        %4399 = vdwg.mxu0
        %4402 = vrot.lane.b32.xlu0 %v4394, 120
        %v4403 = vpop.permute.xlu0 %4402
        %4404 = vrot.lane.b32.xlu0 %v4397, 120
        %v4405 = vpop.permute.xlu0 %4404
        %4408 = vrot.lane.b32.xlu0 %v4394, 112
        %v4409 = vpop.permute.xlu0 %4408
        %4410 = vrot.lane.b32.xlu0 %v4397, 112
        %v4411 = vpop.permute.xlu0 %4410
        %4414 = vrot.lane.b32.xlu0 %v4394, 104
        %v4415 = vpop.permute.xlu0 %4414
        %4416 = vrot.lane.b32.xlu0 %v4397, 104
        %v4417 = vpop.permute.xlu0 %4416
        %4420 = vrot.lane.b32.xlu0 %v4394, 96
        %v4421 = vpop.permute.xlu0 %4420
        %4422 = vrot.lane.b32.xlu0 %v4397, 96
        %v4423 = vpop.permute.xlu0 %4422
        %4426 = vrot.lane.b32.xlu0 %v4394, 88
        %v4427 = vpop.permute.xlu0 %4426
        %4428 = vrot.lane.b32.xlu0 %v4397, 88
        %v4429 = vpop.permute.xlu0 %4428
        %4432 = vrot.lane.b32.xlu0 %v4394, 80
        %v4433 = vpop.permute.xlu0 %4432
        %4434 = vrot.lane.b32.xlu0 %v4397, 80
        %v4435 = vpop.permute.xlu0 %4434
        %4438 = vrot.lane.b32.xlu0 %v4394, 72
        %v4439 = vpop.permute.xlu0 %4438
        %4440 = vrot.lane.b32.xlu0 %v4397, 72
        %v4441 = vpop.permute.xlu0 %4440
        %4444 = vrot.lane.b32.xlu0 %v4394, 64
        %v4445 = vpop.permute.xlu0 %4444
        %4446 = vrot.lane.b32.xlu0 %v4397, 64
        %v4447 = vpop.permute.xlu0 %4446
        %4450 = vrot.lane.b32.xlu0 %v4394, 56
        %v4451 = vpop.permute.xlu0 %4450
        %4452 = vrot.lane.b32.xlu0 %v4397, 56
        %v4453 = vpop.permute.xlu0 %4452
        %4456 = vrot.lane.b32.xlu0 %v4394, 48
        %v4457 = vpop.permute.xlu0 %4456
        %4458 = vrot.lane.b32.xlu0 %v4397, 48
        %v4459 = vpop.permute.xlu0 %4458
        %4462 = vrot.lane.b32.xlu0 %v4394, 40
        %v4463 = vpop.permute.xlu0 %4462
        %4464 = vrot.lane.b32.xlu0 %v4397, 40
        %v4465 = vpop.permute.xlu0 %4464
        %v4468 = vpack.c.bf16 %v4397, %v4394
        %v4469 = vpack.c.bf16 %v4405, %v4403
        %v4470 = vpack.c.bf16 %v4411, %v4409
        %v4471 = vpack.c.bf16 %v4417, %v4415
        %v4472 = vpack.c.bf16 %v4423, %v4421
        %v4473 = vpack.c.bf16 %v4429, %v4427
        %v4474 = vpack.c.bf16 %v4435, %v4433
        %v4475 = vpack.c.bf16 %v4441, %v4439
        %v4477 = vsel %vm805, %v4468, 0
        %v4480 = vsel %vm805, %v4472, 0
        %4482 = vmatprep.subr.bf16.mxu0 0
        %4483 = vmatpush1.bf16.xpose.msra.mxu0 %v4480
        %4484 = vmatprep.subr.bf16.mxu0 0
        %4485 = vmatpush1.bf16.xpose.msra.mxu0 0
        %4486 = vmatprep.subr.bf16.mxu0 0
        %4487 = vmatpush1.bf16.xpose.msra.mxu0 0
        %4488 = vmatprep.subr.bf16.mxu0 0
        %4489 = vmatpush1.bf16.xpose.msra.mxu0 0
        %4490 = vmatprep.subr.bf16.mxu0 0
        %4491 = vmatpush1.bf16.xpose.msra.mxu0 0
        %4492 = vmatprep.subr.bf16.mxu0 0
        %4493 = vmatpush1.bf16.xpose.msra.mxu0 0
        %4494 = vmatprep.subr.bf16.mxu0 0
        %4495 = vmatpush1.bf16.xpose.msra.mxu0 0
        %4496 = vmatprep.subr.bf16.mxu0 0
        %4497 = vmatpush1.bf16.xpose.msra.mxu0 0
        %4498 = vmatprep.subr.bf16.mxu0 0
        %4499 = vmatpush1.bf16.xpose.msra.mxu0 0
        %4500 = vmatprep.subr.bf16.mxu0 0
        %4501 = vmatpush1.bf16.xpose.msra.mxu0 0
        %4502 = vmatprep.subr.bf16.mxu0 0
        %4503 = vmatpush1.bf16.xpose.msra.mxu0 0
        %4504 = vmatprep.subr.bf16.mxu0 0
        %4505 = vmatpush1.bf16.xpose.msra.mxu0 0
        %4506 = vmatprep.subr.bf16.mxu0 0
        %4507 = vmatpush1.bf16.xpose.msra.mxu0 0
        %4508 = vmatprep.subr.bf16.mxu0 0
        %4509 = vmatpush1.bf16.xpose.msra.mxu0 0
        %4510 = vmatprep.subr.bf16.mxu0 0
        %4511 = vmatpush1.bf16.xpose.msra.mxu0 0
        %4512 = vmatprep.subr.bf16.mxu0 0
        %4513 = vmatpush1.bf16.xpose.msra.mxu0 0
        %4514 = vmatprep.mubr.bf16.mxu0 0
        %4515 = vmatmul.mubr.bf16.gmra.mrb[0].mxu0 %v4477
        %v4516 = vpop.f32.mrb[0].mxu0
        %v4517 = vadd.f32 0.0, %v4516
        %v4518 = vpop.f32.mrb[0].mxu0
        %v4519 = vpop.f32.mrb[0].mxu0
        %v4520 = vadd.f32 0.0, %v4519
        %v4521 = vpop.f32.mrb[0].mxu0
        %4522 = vdwg.mxu0
        %v4524 = vsel %vm805, %v4469, 0
        %v4527 = vsel %vm805, %v4473, 0
        %4529 = vmatprep.subr.bf16.mxu0 0
        %4530 = vmatpush1.bf16.xpose.msra.mxu0 %v4527
        %4531 = vmatprep.subr.bf16.mxu0 0
        %4532 = vmatpush1.bf16.xpose.msra.mxu0 0
        %4533 = vmatprep.subr.bf16.mxu0 0
        %4534 = vmatpush1.bf16.xpose.msra.mxu0 0
        %4535 = vmatprep.subr.bf16.mxu0 0
        %4536 = vmatpush1.bf16.xpose.msra.mxu0 0
        %4537 = vmatprep.subr.bf16.mxu0 0
        %4538 = vmatpush1.bf16.xpose.msra.mxu0 0
        %4539 = vmatprep.subr.bf16.mxu0 0
        %4540 = vmatpush1.bf16.xpose.msra.mxu0 0
        %4541 = vmatprep.subr.bf16.mxu0 0
        %4542 = vmatpush1.bf16.xpose.msra.mxu0 0
        %4543 = vmatprep.subr.bf16.mxu0 0
        %4544 = vmatpush1.bf16.xpose.msra.mxu0 0
        %4545 = vmatprep.subr.bf16.mxu0 0
        %4546 = vmatpush1.bf16.xpose.msra.mxu0 0
        %4547 = vmatprep.subr.bf16.mxu0 0
        %4548 = vmatpush1.bf16.xpose.msra.mxu0 0
        %4549 = vmatprep.subr.bf16.mxu0 0
        %4550 = vmatpush1.bf16.xpose.msra.mxu0 0
        %4551 = vmatprep.subr.bf16.mxu0 0
        %4552 = vmatpush1.bf16.xpose.msra.mxu0 0
        %4553 = vmatprep.subr.bf16.mxu0 0
        %4554 = vmatpush1.bf16.xpose.msra.mxu0 0
        %4555 = vmatprep.subr.bf16.mxu0 0
        %4556 = vmatpush1.bf16.xpose.msra.mxu0 0
        %4557 = vmatprep.subr.bf16.mxu0 0
        %4558 = vmatpush1.bf16.xpose.msra.mxu0 0
        %4559 = vmatprep.subr.bf16.mxu0 0
        %4560 = vmatpush1.bf16.xpose.msra.mxu0 0
        %4561 = vmatprep.mubr.bf16.mxu0 0
        %4562 = vmatmul.mubr.bf16.gmra.mrb[0].mxu0 %v4524
        %v4563 = vpop.f32.mrb[0].mxu0
        %v4564 = vadd.f32 0.0, %v4563
        %v4565 = vpop.f32.mrb[0].mxu0
        %v4566 = vpop.f32.mrb[0].mxu0
        %v4567 = vadd.f32 0.0, %v4566
        %v4568 = vpop.f32.mrb[0].mxu0
        %4569 = vdwg.mxu0
        %v4571 = vsel %vm805, %v4470, 0
        %v4574 = vsel %vm805, %v4474, 0
        %4576 = vmatprep.subr.bf16.mxu0 0
        %4577 = vmatpush1.bf16.xpose.msra.mxu0 %v4574
        %4578 = vmatprep.subr.bf16.mxu0 0
        %4579 = vmatpush1.bf16.xpose.msra.mxu0 0
        %4580 = vmatprep.subr.bf16.mxu0 0
        %4581 = vmatpush1.bf16.xpose.msra.mxu0 0
        %4582 = vmatprep.subr.bf16.mxu0 0
        %4583 = vmatpush1.bf16.xpose.msra.mxu0 0
        %4584 = vmatprep.subr.bf16.mxu0 0
        %4585 = vmatpush1.bf16.xpose.msra.mxu0 0
        %4586 = vmatprep.subr.bf16.mxu0 0
        %4587 = vmatpush1.bf16.xpose.msra.mxu0 0
        %4588 = vmatprep.subr.bf16.mxu0 0
        %4589 = vmatpush1.bf16.xpose.msra.mxu0 0
        %4590 = vmatprep.subr.bf16.mxu0 0
        %4591 = vmatpush1.bf16.xpose.msra.mxu0 0
        %4592 = vmatprep.subr.bf16.mxu0 0
        %4593 = vmatpush1.bf16.xpose.msra.mxu0 0
        %4594 = vmatprep.subr.bf16.mxu0 0
        %4595 = vmatpush1.bf16.xpose.msra.mxu0 0
        %4596 = vmatprep.subr.bf16.mxu0 0
        %4597 = vmatpush1.bf16.xpose.msra.mxu0 0
        %4598 = vmatprep.subr.bf16.mxu0 0
        %4599 = vmatpush1.bf16.xpose.msra.mxu0 0
        %4600 = vmatprep.subr.bf16.mxu0 0
        %4601 = vmatpush1.bf16.xpose.msra.mxu0 0
        %4602 = vmatprep.subr.bf16.mxu0 0
        %4603 = vmatpush1.bf16.xpose.msra.mxu0 0
        %4604 = vmatprep.subr.bf16.mxu0 0
        %4605 = vmatpush1.bf16.xpose.msra.mxu0 0
        %4606 = vmatprep.subr.bf16.mxu0 0
        %4607 = vmatpush1.bf16.xpose.msra.mxu0 0
        %4608 = vmatprep.mubr.bf16.mxu0 0
        %4609 = vmatmul.mubr.bf16.gmra.mrb[0].mxu0 %v4571
        %v4610 = vpop.f32.mrb[0].mxu0
        %v4611 = vadd.f32 0.0, %v4610
        %v4612 = vpop.f32.mrb[0].mxu0
        %v4613 = vpop.f32.mrb[0].mxu0
        %v4614 = vadd.f32 0.0, %v4613
        %v4615 = vpop.f32.mrb[0].mxu0
        %4616 = vdwg.mxu0
        %v4618 = vsel %vm805, %v4471, 0
        %v4621 = vsel %vm805, %v4475, 0
        %4623 = vmatprep.subr.bf16.mxu0 0
        %4624 = vmatpush1.bf16.xpose.msra.mxu0 %v4621
        %4625 = vmatprep.subr.bf16.mxu0 0
        %4626 = vmatpush1.bf16.xpose.msra.mxu0 0
        %4627 = vmatprep.subr.bf16.mxu0 0
        %4628 = vmatpush1.bf16.xpose.msra.mxu0 0
        %4629 = vmatprep.subr.bf16.mxu0 0
        %4630 = vmatpush1.bf16.xpose.msra.mxu0 0
        %4631 = vmatprep.subr.bf16.mxu0 0
        %4632 = vmatpush1.bf16.xpose.msra.mxu0 0
        %4633 = vmatprep.subr.bf16.mxu0 0
        %4634 = vmatpush1.bf16.xpose.msra.mxu0 0
        %4635 = vmatprep.subr.bf16.mxu0 0
        %4636 = vmatpush1.bf16.xpose.msra.mxu0 0
        %4637 = vmatprep.subr.bf16.mxu0 0
        %4638 = vmatpush1.bf16.xpose.msra.mxu0 0
        %4639 = vmatprep.subr.bf16.mxu0 0
        %4640 = vmatpush1.bf16.xpose.msra.mxu0 0
        %4641 = vmatprep.subr.bf16.mxu0 0
        %4642 = vmatpush1.bf16.xpose.msra.mxu0 0
        %4643 = vmatprep.subr.bf16.mxu0 0
        %4644 = vmatpush1.bf16.xpose.msra.mxu0 0
        %4645 = vmatprep.subr.bf16.mxu0 0
        %4646 = vmatpush1.bf16.xpose.msra.mxu0 0
        %4647 = vmatprep.subr.bf16.mxu0 0
        %4648 = vmatpush1.bf16.xpose.msra.mxu0 0
        %4649 = vmatprep.subr.bf16.mxu0 0
        %4650 = vmatpush1.bf16.xpose.msra.mxu0 0
        %4651 = vmatprep.subr.bf16.mxu0 0
        %4652 = vmatpush1.bf16.xpose.msra.mxu0 0
        %4653 = vmatprep.subr.bf16.mxu0 0
        %4654 = vmatpush1.bf16.xpose.msra.mxu0 0
        %4655 = vmatprep.mubr.bf16.mxu0 0
        %4656 = vmatmul.mubr.bf16.gmra.mrb[0].mxu0 %v4618
        %v4657 = vpop.f32.mrb[0].mxu0
        %v4658 = vadd.f32 0.0, %v4657
        %v4659 = vpop.f32.mrb[0].mxu0
        %v4660 = vpop.f32.mrb[0].mxu0
        %v4661 = vadd.f32 0.0, %v4660
        %v4662 = vpop.f32.mrb[0].mxu0
        %4663 = vdwg.mxu0
        %v4664 = vmul.f32 %v4517, 0.35355338
        %v4665 = vmul.f32 %v4520, 0.35355338
        %v4666 = vmul.f32 %v4564, 0.35355338
        %v4667 = vmul.f32 %v4567, 0.35355338
        %v4668 = vmul.f32 %v4611, 0.35355338
        %v4669 = vmul.f32 %v4614, 0.35355338
        %v4670 = vmul.f32 %v4658, 0.35355338
        %v4671 = vmul.f32 %v4661, 0.35355338
        %v4673 = vlaneseq
        %v4674 = vshrl.u32 %v4673, 7
        %v4675 = vsub.s32 0, %v4674
        %v4676 = vrot.slane %v614, %v4675
        %v4678 = vadd.f32 %v4664, %v4676
        %v4679 = vadd.f32 %v4665, %v4676
        %v4680 = vadd.f32 %v4666, %v4676
        %v4681 = vadd.f32 %v4667, %v4676
        %v4682 = vadd.f32 %v4668, %v4676
        %v4683 = vadd.f32 %v4669, %v4676
        %v4684 = vadd.f32 %v4670, %v4676
        %v4685 = vadd.f32 %v4671, %v4676
        %vm4686 = vcmask 97280
        %v4687 = vsel %vm4686, %v4678, -inf
        %4688 = vmax.xlane.f32.xlu0 %v4687
        %v4689 = vpop.xlane.xlu0 %4688
        %vm4690 = vcmask 93184
        %v4691 = vsel %vm4690, %v4679, -inf
        %4692 = vmax.xlane.f32.xlu0 %v4691
        %v4693 = vpop.xlane.xlu0 %4692
        %v4694 = vsel %vm4686, %v4680, -inf
        %4695 = vmax.xlane.f32.xlu0 %v4694
        %v4696 = vpop.xlane.xlu0 %4695
        %v4697 = vsel %vm4690, %v4681, -inf
        %4698 = vmax.xlane.f32.xlu0 %v4697
        %v4699 = vpop.xlane.xlu0 %4698
        %v4700 = vsel %vm4686, %v4682, -inf
        %4701 = vmax.xlane.f32.xlu0 %v4700
        %v4702 = vpop.xlane.xlu0 %4701
        %v4703 = vsel %vm4690, %v4683, -inf
        %4704 = vmax.xlane.f32.xlu0 %v4703
        %v4705 = vpop.xlane.xlu0 %4704
        %v4706 = vsel %vm4686, %v4684, -inf
        %4707 = vmax.xlane.f32.xlu0 %v4706
        %v4708 = vpop.xlane.xlu0 %4707
        %v4709 = vsel %vm4690, %v4685, -inf
        %4710 = vmax.xlane.f32.xlu0 %v4709
        %v4711 = vpop.xlane.xlu0 %4710
        %v4712 = vsub.f32 %v4678, %v4689
        %v4713 = vsub.f32 %v4679, %v4693
        %v4714 = vsub.f32 %v4680, %v4696
        %v4715 = vsub.f32 %v4681, %v4699
        %v4716 = vsub.f32 %v4682, %v4702
        %v4717 = vsub.f32 %v4683, %v4705
        %v4718 = vsub.f32 %v4684, %v4708
        %v4719 = vsub.f32 %v4685, %v4711
        %v4720 = vmul.f32 %v4712, 1.442695
        %v4721 = vpow.pop %v4720
        %v4722 = vmul.f32 %v4713, 1.442695
        %v4723 = vpow.pop %v4722
        %v4724 = vmul.f32 %v4714, 1.442695
        %v4725 = vpow.pop %v4724
        %v4726 = vmul.f32 %v4715, 1.442695
        %v4727 = vpow.pop %v4726
        %v4728 = vmul.f32 %v4716, 1.442695
        %v4729 = vpow.pop %v4728
        %v4730 = vmul.f32 %v4717, 1.442695
        %v4731 = vpow.pop %v4730
        %v4732 = vmul.f32 %v4718, 1.442695
        %v4733 = vpow.pop %v4732
        %v4734 = vmul.f32 %v4719, 1.442695
        %v4735 = vpow.pop %v4734
        %v4736 = vsel %vm4686, %v4721, 0.0
        %4737 = vadd.xlane.f32.xlu0 %v4736
        %v4738 = vpop.xlane.xlu0 %4737
        %v4739 = vsel %vm4690, %v4723, 0.0
        %4740 = vadd.xlane.f32.xlu0 %v4739
        %v4741 = vpop.xlane.xlu0 %4740
        %v4742 = vsel %vm4686, %v4725, 0.0
        %4743 = vadd.xlane.f32.xlu0 %v4742
        %v4744 = vpop.xlane.xlu0 %4743
        %v4745 = vsel %vm4690, %v4727, 0.0
        %4746 = vadd.xlane.f32.xlu0 %v4745
        %v4747 = vpop.xlane.xlu0 %4746
        %v4748 = vsel %vm4686, %v4729, 0.0
        %4749 = vadd.xlane.f32.xlu0 %v4748
        %v4750 = vpop.xlane.xlu0 %4749
        %v4751 = vsel %vm4690, %v4731, 0.0
        %4752 = vadd.xlane.f32.xlu0 %v4751
        %v4753 = vpop.xlane.xlu0 %4752
        %v4754 = vsel %vm4686, %v4733, 0.0
        %4755 = vadd.xlane.f32.xlu0 %v4754
        %v4756 = vpop.xlane.xlu0 %4755
        %v4757 = vsel %vm4690, %v4735, 0.0
        %4758 = vadd.xlane.f32.xlu0 %v4757
        %v4759 = vpop.xlane.xlu0 %4758
        %v4760 = vrcp.pop %v4738
        %v4761 = vrcp.pop %v4741
        %v4762 = vrcp.pop %v4744
        %v4763 = vrcp.pop %v4747
        %v4764 = vrcp.pop %v4750
        %v4765 = vrcp.pop %v4753
        %v4766 = vrcp.pop %v4756
        %v4767 = vrcp.pop %v4759
        %v4768 = vmul.f32 %v4721, %v4760
        %v4769 = vmul.f32 %v4723, %v4761
        %v4770 = vmul.f32 %v4725, %v4762
        %v4771 = vmul.f32 %v4727, %v4763
        %v4772 = vmul.f32 %v4729, %v4764
        %v4773 = vmul.f32 %v4731, %v4765
        %v4774 = vmul.f32 %v4733, %v4766
        %v4775 = vmul.f32 %v4735, %v4767
        %v4776 = vpack.c.bf16 %v4769, %v4768
        %v4777 = vpack.c.bf16 %v4771, %v4770
        %v4778 = vpack.c.bf16 %v4773, %v4772
        %v4779 = vpack.c.bf16 %v4775, %v4774
        %v4780 = vpack.c.bf16 %v4447, %v4445
        %v4781 = vpack.c.bf16 %v4453, %v4451
        %v4782 = vpack.c.bf16 %v4459, %v4457
        %v4783 = vpack.c.bf16 %v4465, %v4463
        %v4785 = vsel %vm4686, %v4776, 0
        %vm4787 = vcmask 1045504
        %v4789 = vsel %vm4787, %v4780, 0
        %4791 = vmatprep.subr.bf16.mxu0 0
        %4792 = vmatpush1.bf16.msra.mxu0 %v4789
        %4793 = vmatprep.subr.bf16.mxu0 0
        %4794 = vmatpush1.bf16.msra.mxu0 0
        %4795 = vmatprep.subr.bf16.mxu0 0
        %4796 = vmatpush1.bf16.msra.mxu0 0
        %4797 = vmatprep.subr.bf16.mxu0 0
        %4798 = vmatpush1.bf16.msra.mxu0 0
        %4799 = vmatprep.subr.bf16.mxu0 0
        %4800 = vmatpush1.bf16.msra.mxu0 0
        %4801 = vmatprep.subr.bf16.mxu0 0
        %4802 = vmatpush1.bf16.msra.mxu0 0
        %4803 = vmatprep.subr.bf16.mxu0 0
        %4804 = vmatpush1.bf16.msra.mxu0 0
        %4805 = vmatprep.subr.bf16.mxu0 0
        %4806 = vmatpush1.bf16.msra.mxu0 0
        %4807 = vmatprep.subr.bf16.mxu0 0
        %4808 = vmatpush1.bf16.msra.mxu0 0
        %4809 = vmatprep.subr.bf16.mxu0 0
        %4810 = vmatpush1.bf16.msra.mxu0 0
        %4811 = vmatprep.subr.bf16.mxu0 0
        %4812 = vmatpush1.bf16.msra.mxu0 0
        %4813 = vmatprep.subr.bf16.mxu0 0
        %4814 = vmatpush1.bf16.msra.mxu0 0
        %4815 = vmatprep.subr.bf16.mxu0 0
        %4816 = vmatpush1.bf16.msra.mxu0 0
        %4817 = vmatprep.subr.bf16.mxu0 0
        %4818 = vmatpush1.bf16.msra.mxu0 0
        %4819 = vmatprep.subr.bf16.mxu0 0
        %4820 = vmatpush1.bf16.msra.mxu0 0
        %4821 = vmatprep.subr.bf16.mxu0 0
        %4822 = vmatpush1.bf16.msra.mxu0 0
        %4823 = vmatprep.mubr.bf16.mxu0 0
        %4824 = vmatmul.mubr.bf16.gmra.mrb[0].mxu0 %v4785
        %v4825 = vpop.f32.mrb[0].mxu0
        %v4826 = vadd.f32 0.0, %v4825
        %v4827 = vpop.f32.mrb[0].mxu0
        %v4828 = vpop.f32.mrb[0].mxu0
        %v4829 = vadd.f32 0.0, %v4828
        %v4830 = vpop.f32.mrb[0].mxu0
        %4831 = vdwg.mxu0
        %v4833 = vsel %vm4686, %v4777, 0
        %v4836 = vsel %vm4787, %v4781, 0
        %4838 = vmatprep.subr.bf16.mxu0 0
        %4839 = vmatpush1.bf16.msra.mxu0 %v4836
        %4840 = vmatprep.subr.bf16.mxu0 0
        %4841 = vmatpush1.bf16.msra.mxu0 0
        %4842 = vmatprep.subr.bf16.mxu0 0
        %4843 = vmatpush1.bf16.msra.mxu0 0
        %4844 = vmatprep.subr.bf16.mxu0 0
        %4845 = vmatpush1.bf16.msra.mxu0 0
        %4846 = vmatprep.subr.bf16.mxu0 0
        %4847 = vmatpush1.bf16.msra.mxu0 0
        %4848 = vmatprep.subr.bf16.mxu0 0
        %4849 = vmatpush1.bf16.msra.mxu0 0
        %4850 = vmatprep.subr.bf16.mxu0 0
        %4851 = vmatpush1.bf16.msra.mxu0 0
        %4852 = vmatprep.subr.bf16.mxu0 0
        %4853 = vmatpush1.bf16.msra.mxu0 0
        %4854 = vmatprep.subr.bf16.mxu0 0
        %4855 = vmatpush1.bf16.msra.mxu0 0
        %4856 = vmatprep.subr.bf16.mxu0 0
        %4857 = vmatpush1.bf16.msra.mxu0 0
        %4858 = vmatprep.subr.bf16.mxu0 0
        %4859 = vmatpush1.bf16.msra.mxu0 0
        %4860 = vmatprep.subr.bf16.mxu0 0
        %4861 = vmatpush1.bf16.msra.mxu0 0
        %4862 = vmatprep.subr.bf16.mxu0 0
        %4863 = vmatpush1.bf16.msra.mxu0 0
        %4864 = vmatprep.subr.bf16.mxu0 0
        %4865 = vmatpush1.bf16.msra.mxu0 0
        %4866 = vmatprep.subr.bf16.mxu0 0
        %4867 = vmatpush1.bf16.msra.mxu0 0
        %4868 = vmatprep.subr.bf16.mxu0 0
        %4869 = vmatpush1.bf16.msra.mxu0 0
        %4870 = vmatprep.mubr.bf16.mxu0 0
        %4871 = vmatmul.mubr.bf16.gmra.mrb[0].mxu0 %v4833
        %v4872 = vpop.f32.mrb[0].mxu0
        %v4873 = vadd.f32 0.0, %v4872
        %v4874 = vpop.f32.mrb[0].mxu0
        %v4875 = vpop.f32.mrb[0].mxu0
        %v4876 = vadd.f32 0.0, %v4875
        %v4877 = vpop.f32.mrb[0].mxu0
        %4878 = vdwg.mxu0
        %v4880 = vsel %vm4686, %v4778, 0
        %v4883 = vsel %vm4787, %v4782, 0
        %4885 = vmatprep.subr.bf16.mxu0 0
        %4886 = vmatpush1.bf16.msra.mxu0 %v4883
        %4887 = vmatprep.subr.bf16.mxu0 0
        %4888 = vmatpush1.bf16.msra.mxu0 0
        %4889 = vmatprep.subr.bf16.mxu0 0
        %4890 = vmatpush1.bf16.msra.mxu0 0
        %4891 = vmatprep.subr.bf16.mxu0 0
        %4892 = vmatpush1.bf16.msra.mxu0 0
        %4893 = vmatprep.subr.bf16.mxu0 0
        %4894 = vmatpush1.bf16.msra.mxu0 0
        %4895 = vmatprep.subr.bf16.mxu0 0
        %4896 = vmatpush1.bf16.msra.mxu0 0
        %4897 = vmatprep.subr.bf16.mxu0 0
        %4898 = vmatpush1.bf16.msra.mxu0 0
        %4899 = vmatprep.subr.bf16.mxu0 0
        %4900 = vmatpush1.bf16.msra.mxu0 0
        %4901 = vmatprep.subr.bf16.mxu0 0
        %4902 = vmatpush1.bf16.msra.mxu0 0
        %4903 = vmatprep.subr.bf16.mxu0 0
        %4904 = vmatpush1.bf16.msra.mxu0 0
        %4905 = vmatprep.subr.bf16.mxu0 0
        %4906 = vmatpush1.bf16.msra.mxu0 0
        %4907 = vmatprep.subr.bf16.mxu0 0
        %4908 = vmatpush1.bf16.msra.mxu0 0
        %4909 = vmatprep.subr.bf16.mxu0 0
        %4910 = vmatpush1.bf16.msra.mxu0 0
        %4911 = vmatprep.subr.bf16.mxu0 0
        %4912 = vmatpush1.bf16.msra.mxu0 0
        %4913 = vmatprep.subr.bf16.mxu0 0
        %4914 = vmatpush1.bf16.msra.mxu0 0
        %4915 = vmatprep.subr.bf16.mxu0 0
        %4916 = vmatpush1.bf16.msra.mxu0 0
        %4917 = vmatprep.mubr.bf16.mxu0 0
        %4918 = vmatmul.mubr.bf16.gmra.mrb[0].mxu0 %v4880
        %v4919 = vpop.f32.mrb[0].mxu0
        %v4920 = vadd.f32 0.0, %v4919
        %v4921 = vpop.f32.mrb[0].mxu0
        %v4922 = vpop.f32.mrb[0].mxu0
        %v4923 = vadd.f32 0.0, %v4922
        %v4924 = vpop.f32.mrb[0].mxu0
        %4925 = vdwg.mxu0
        %v4927 = vsel %vm4686, %v4779, 0
        %v4930 = vsel %vm4787, %v4783, 0
        %4932 = vmatprep.subr.bf16.mxu0 0
        %4933 = vmatpush1.bf16.msra.mxu0 %v4930
        %4934 = vmatprep.subr.bf16.mxu0 0
        %4935 = vmatpush1.bf16.msra.mxu0 0
        %4936 = vmatprep.subr.bf16.mxu0 0
        %4937 = vmatpush1.bf16.msra.mxu0 0
        %4938 = vmatprep.subr.bf16.mxu0 0
        %4939 = vmatpush1.bf16.msra.mxu0 0
        %4940 = vmatprep.subr.bf16.mxu0 0
        %4941 = vmatpush1.bf16.msra.mxu0 0
        %4942 = vmatprep.subr.bf16.mxu0 0
        %4943 = vmatpush1.bf16.msra.mxu0 0
        %4944 = vmatprep.subr.bf16.mxu0 0
        %4945 = vmatpush1.bf16.msra.mxu0 0
        %4946 = vmatprep.subr.bf16.mxu0 0
        %4947 = vmatpush1.bf16.msra.mxu0 0
        %4948 = vmatprep.subr.bf16.mxu0 0
        %4949 = vmatpush1.bf16.msra.mxu0 0
        %4950 = vmatprep.subr.bf16.mxu0 0
        %4951 = vmatpush1.bf16.msra.mxu0 0
        %4952 = vmatprep.subr.bf16.mxu0 0
        %4953 = vmatpush1.bf16.msra.mxu0 0
        %4954 = vmatprep.subr.bf16.mxu0 0
        %4955 = vmatpush1.bf16.msra.mxu0 0
        %4956 = vmatprep.subr.bf16.mxu0 0
        %4957 = vmatpush1.bf16.msra.mxu0 0
        %4958 = vmatprep.subr.bf16.mxu0 0
        %4959 = vmatpush1.bf16.msra.mxu0 0
        %4960 = vmatprep.subr.bf16.mxu0 0
        %4961 = vmatpush1.bf16.msra.mxu0 0
        %4962 = vmatprep.subr.bf16.mxu0 0
        %4963 = vmatpush1.bf16.msra.mxu0 0
        %4964 = vmatprep.mubr.bf16.mxu0 0
        %4965 = vmatmul.mubr.bf16.gmra.mrb[0].mxu0 %v4927
        %v4966 = vpop.f32.mrb[0].mxu0
        %v4967 = vadd.f32 0.0, %v4966
        %v4968 = vpop.f32.mrb[0].mxu0
        %v4969 = vpop.f32.mrb[0].mxu0
        %v4970 = vadd.f32 0.0, %v4969
        %v4971 = vpop.f32.mrb[0].mxu0
        %4972 = vdwg.mxu0
        %v4973 = vpack.c.bf16 %v4829, %v4826
        %v4974 = vpack.c.bf16 %v4876, %v4873
        %v4975 = vpack.c.bf16 %v4923, %v4920
        %v4976 = vpack.c.bf16 %v4970, %v4967
        %v4978 = vsel %vm805, %v4973, 0
        %v4981 = vsel %vm1227, %v4331, 0
        %4983 = vmatprep.subr.bf16.mxu0 0
        %4984 = vmatpush1.bf16.msra.mxu0 %v4981
        %4985 = vmatprep.subr.bf16.mxu0 0
        %4986 = vmatpush1.bf16.msra.mxu0 0
        %4987 = vmatprep.subr.bf16.mxu0 0
        %4988 = vmatpush1.bf16.msra.mxu0 0
        %4989 = vmatprep.subr.bf16.mxu0 0
        %4990 = vmatpush1.bf16.msra.mxu0 0
        %4991 = vmatprep.subr.bf16.mxu0 0
        %4992 = vmatpush1.bf16.msra.mxu0 0
        %4993 = vmatprep.subr.bf16.mxu0 0
        %4994 = vmatpush1.bf16.msra.mxu0 0
        %4995 = vmatprep.subr.bf16.mxu0 0
        %4996 = vmatpush1.bf16.msra.mxu0 0
        %4997 = vmatprep.subr.bf16.mxu0 0
        %4998 = vmatpush1.bf16.msra.mxu0 0
        %4999 = vmatprep.subr.bf16.mxu0 0
        %5000 = vmatpush1.bf16.msra.mxu0 0
        %5001 = vmatprep.subr.bf16.mxu0 0
        %5002 = vmatpush1.bf16.msra.mxu0 0
        %5003 = vmatprep.subr.bf16.mxu0 0
        %5004 = vmatpush1.bf16.msra.mxu0 0
        %5005 = vmatprep.subr.bf16.mxu0 0
        %5006 = vmatpush1.bf16.msra.mxu0 0
        %5007 = vmatprep.subr.bf16.mxu0 0
        %5008 = vmatpush1.bf16.msra.mxu0 0
        %5009 = vmatprep.subr.bf16.mxu0 0
        %5010 = vmatpush1.bf16.msra.mxu0 0
        %5011 = vmatprep.subr.bf16.mxu0 0
        %5012 = vmatpush1.bf16.msra.mxu0 0
        %5013 = vmatprep.subr.bf16.mxu0 0
        %5014 = vmatpush1.bf16.msra.mxu0 0
        %5015 = vmatprep.mubr.bf16.mxu0 0
        %5016 = vmatmul.mubr.bf16.gmra.mrb[0].mxu0 %v4978
        %v5017 = vpop.f32.mrb[0].mxu0
        %v5018 = vadd.f32 0.0, %v5017
        %v5019 = vpop.f32.mrb[0].mxu0
        %v5020 = vpop.f32.mrb[0].mxu0
        %v5021 = vadd.f32 0.0, %v5020
        %v5022 = vpop.f32.mrb[0].mxu0
        %5023 = vdwg.mxu0
        %v5025 = vsel %vm805, %v4974, 0
        %v5028 = vsel %vm1227, %v4332, 0
        %5030 = vmatprep.subr.bf16.mxu0 0
        %5031 = vmatpush1.bf16.msra.mxu0 %v5028
        %5032 = vmatprep.subr.bf16.mxu0 0
        %5033 = vmatpush1.bf16.msra.mxu0 0
        %5034 = vmatprep.subr.bf16.mxu0 0
        %5035 = vmatpush1.bf16.msra.mxu0 0
        %5036 = vmatprep.subr.bf16.mxu0 0
        %5037 = vmatpush1.bf16.msra.mxu0 0
        %5038 = vmatprep.subr.bf16.mxu0 0
        %5039 = vmatpush1.bf16.msra.mxu0 0
        %5040 = vmatprep.subr.bf16.mxu0 0
        %5041 = vmatpush1.bf16.msra.mxu0 0
        %5042 = vmatprep.subr.bf16.mxu0 0
        %5043 = vmatpush1.bf16.msra.mxu0 0
        %5044 = vmatprep.subr.bf16.mxu0 0
        %5045 = vmatpush1.bf16.msra.mxu0 0
        %5046 = vmatprep.subr.bf16.mxu0 0
        %5047 = vmatpush1.bf16.msra.mxu0 0
        %5048 = vmatprep.subr.bf16.mxu0 0
        %5049 = vmatpush1.bf16.msra.mxu0 0
        %5050 = vmatprep.subr.bf16.mxu0 0
        %5051 = vmatpush1.bf16.msra.mxu0 0
        %5052 = vmatprep.subr.bf16.mxu0 0
        %5053 = vmatpush1.bf16.msra.mxu0 0
        %5054 = vmatprep.subr.bf16.mxu0 0
        %5055 = vmatpush1.bf16.msra.mxu0 0
        %5056 = vmatprep.subr.bf16.mxu0 0
        %5057 = vmatpush1.bf16.msra.mxu0 0
        %5058 = vmatprep.subr.bf16.mxu0 0
        %5059 = vmatpush1.bf16.msra.mxu0 0
        %5060 = vmatprep.subr.bf16.mxu0 0
        %5061 = vmatpush1.bf16.msra.mxu0 0
        %5062 = vmatprep.mubr.bf16.mxu0 0
        %5063 = vmatmul.mubr.bf16.gmra.mrb[0].mxu0 %v5025
        %v5064 = vpop.f32.mrb[0].mxu0
        %v5065 = vadd.f32 0.0, %v5064
        %v5066 = vpop.f32.mrb[0].mxu0
        %v5067 = vpop.f32.mrb[0].mxu0
        %v5068 = vadd.f32 0.0, %v5067
        %v5069 = vpop.f32.mrb[0].mxu0
        %5070 = vdwg.mxu0
        %v5072 = vsel %vm805, %v4975, 0
        %v5075 = vsel %vm1227, %v4333, 0
        %5077 = vmatprep.subr.bf16.mxu0 0
        %5078 = vmatpush1.bf16.msra.mxu0 %v5075
        %5079 = vmatprep.subr.bf16.mxu0 0
        %5080 = vmatpush1.bf16.msra.mxu0 0
        %5081 = vmatprep.subr.bf16.mxu0 0
        %5082 = vmatpush1.bf16.msra.mxu0 0
        %5083 = vmatprep.subr.bf16.mxu0 0
        %5084 = vmatpush1.bf16.msra.mxu0 0
        %5085 = vmatprep.subr.bf16.mxu0 0
        %5086 = vmatpush1.bf16.msra.mxu0 0
        %5087 = vmatprep.subr.bf16.mxu0 0
        %5088 = vmatpush1.bf16.msra.mxu0 0
        %5089 = vmatprep.subr.bf16.mxu0 0
        %5090 = vmatpush1.bf16.msra.mxu0 0
        %5091 = vmatprep.subr.bf16.mxu0 0
        %5092 = vmatpush1.bf16.msra.mxu0 0
        %5093 = vmatprep.subr.bf16.mxu0 0
        %5094 = vmatpush1.bf16.msra.mxu0 0
        %5095 = vmatprep.subr.bf16.mxu0 0
        %5096 = vmatpush1.bf16.msra.mxu0 0
        %5097 = vmatprep.subr.bf16.mxu0 0
        %5098 = vmatpush1.bf16.msra.mxu0 0
        %5099 = vmatprep.subr.bf16.mxu0 0
        %5100 = vmatpush1.bf16.msra.mxu0 0
        %5101 = vmatprep.subr.bf16.mxu0 0
        %5102 = vmatpush1.bf16.msra.mxu0 0
        %5103 = vmatprep.subr.bf16.mxu0 0
        %5104 = vmatpush1.bf16.msra.mxu0 0
        %5105 = vmatprep.subr.bf16.mxu0 0
        %5106 = vmatpush1.bf16.msra.mxu0 0
        %5107 = vmatprep.subr.bf16.mxu0 0
        %5108 = vmatpush1.bf16.msra.mxu0 0
        %5109 = vmatprep.mubr.bf16.mxu0 0
        %5110 = vmatmul.mubr.bf16.gmra.mrb[0].mxu0 %v5072
        %v5111 = vpop.f32.mrb[0].mxu0
        %v5112 = vadd.f32 0.0, %v5111
        %v5113 = vpop.f32.mrb[0].mxu0
        %v5114 = vpop.f32.mrb[0].mxu0
        %v5115 = vadd.f32 0.0, %v5114
        %v5116 = vpop.f32.mrb[0].mxu0
        %5117 = vdwg.mxu0
        %v5119 = vsel %vm805, %v4976, 0
        %v5122 = vsel %vm1227, %v4334, 0
        %5124 = vmatprep.subr.bf16.mxu0 0
        %5125 = vmatpush1.bf16.msra.mxu0 %v5122
        %5126 = vmatprep.subr.bf16.mxu0 0
        %5127 = vmatpush1.bf16.msra.mxu0 0
        %5128 = vmatprep.subr.bf16.mxu0 0
        %5129 = vmatpush1.bf16.msra.mxu0 0
        %5130 = vmatprep.subr.bf16.mxu0 0
        %5131 = vmatpush1.bf16.msra.mxu0 0
        %5132 = vmatprep.subr.bf16.mxu0 0
        %5133 = vmatpush1.bf16.msra.mxu0 0
        %5134 = vmatprep.subr.bf16.mxu0 0
        %5135 = vmatpush1.bf16.msra.mxu0 0
        %5136 = vmatprep.subr.bf16.mxu0 0
        %5137 = vmatpush1.bf16.msra.mxu0 0
        %5138 = vmatprep.subr.bf16.mxu0 0
        %5139 = vmatpush1.bf16.msra.mxu0 0
        %5140 = vmatprep.subr.bf16.mxu0 0
        %5141 = vmatpush1.bf16.msra.mxu0 0
        %5142 = vmatprep.subr.bf16.mxu0 0
        %5143 = vmatpush1.bf16.msra.mxu0 0
        %5144 = vmatprep.subr.bf16.mxu0 0
        %5145 = vmatpush1.bf16.msra.mxu0 0
        %5146 = vmatprep.subr.bf16.mxu0 0
        %5147 = vmatpush1.bf16.msra.mxu0 0
        %5148 = vmatprep.subr.bf16.mxu0 0
        %5149 = vmatpush1.bf16.msra.mxu0 0
        %5150 = vmatprep.subr.bf16.mxu0 0
        %5151 = vmatpush1.bf16.msra.mxu0 0
        %5152 = vmatprep.subr.bf16.mxu0 0
        %5153 = vmatpush1.bf16.msra.mxu0 0
        %5154 = vmatprep.subr.bf16.mxu0 0
        %5155 = vmatpush1.bf16.msra.mxu0 0
        %5156 = vmatprep.mubr.bf16.mxu0 0
        %5157 = vmatmul.mubr.bf16.gmra.mrb[0].mxu0 %v5119
        %v5158 = vpop.f32.mrb[0].mxu0
        %v5159 = vadd.f32 0.0, %v5158
        %v5160 = vpop.f32.mrb[0].mxu0
        %v5161 = vpop.f32.mrb[0].mxu0
        %v5162 = vadd.f32 0.0, %v5161
        %v5163 = vpop.f32.mrb[0].mxu0
        %5164 = vdwg.mxu0
        %v5165 = vsel %vm640, %v5018, 0.0
        %v5166 = vsel %vm640, %v5065, 0.0
        %v5167 = vadd.f32 %v5165, %v5166
        %v5168 = vsel %vm640, %v5112, 0.0
        %v5169 = vadd.f32 %v5167, %v5168
        %v5170 = vsel %vm640, %v5159, 0.0
        %v5171 = vadd.f32 %v5169, %v5170
        %vm5172 = vcmask 257024
        %v5173 = vsel %vm5172, %v5021, 0.0
        %v5174 = vsel %vm5172, %v5068, 0.0
        %v5175 = vadd.f32 %v5173, %v5174
        %v5176 = vsel %vm5172, %v5115, 0.0
        %v5177 = vadd.f32 %v5175, %v5176
        %v5178 = vsel %vm5172, %v5162, 0.0
        %v5179 = vadd.f32 %v5177, %v5178
        %v5180 = vlaneseq
        %v5181 = vshrl.u32 %v5180, 7
        %v5182 = vsub.s32 0, %v5181
        %v5183 = vrot.slane %v4336, %v5182
        %v5184 = vadd.f32 %v5171, %v5183
        %v5185 = vadd.f32 %v5179, %v5183
        %v5186 = vadd.f32 %v5184, %v611
        %v5187 = vadd.f32 %v5185, %v3169
        %v5188 = vsel %vm640, %v5186, 0.0
        %5189 = vadd.xlane.f32.xlu0 %v5188
        %v5190 = vpop.xlane.xlu0 %5189
        %v5191 = vsel %vm5172, %v5187, 0.0
        %5192 = vadd.xlane.f32.xlu0 %v5191
        %v5193 = vpop.xlane.xlu0 %5192
        %v5194 = vmul.f32 %v5190, %v1421
        %v5195 = vmul.f32 %v5193, %v1421
        %v5196 = vsub.f32 %v5186, %v5194
        %v5197 = vsub.f32 %v5187, %v5195
        %v5198 = vmul.f32 %v5196, %v5196
        %v5199 = vmul.f32 %v5197, %v5197
        %v5200 = vsel %vm640, %v5198, 0.0
        %5201 = vadd.xlane.f32.xlu0 %v5200
        %v5202 = vpop.xlane.xlu0 %5201
        %v5203 = vsel %vm5172, %v5199, 0.0
        %5204 = vadd.xlane.f32.xlu0 %v5203
        %v5205 = vpop.xlane.xlu0 %5204
        %v5206 = vmul.f32 %v5202, %v1421
        %v5207 = vmul.f32 %v5205, %v1421
        %v5208 = vadd.f32 %v5206, 1e-05
        %v5209 = vadd.f32 %v5207, 1e-05
        %v5210 = vrsqrt.pop %v5208
        %v5211 = vrsqrt.pop %v5209
        %v5212 = vmul.f32 %v5196, %v5210
        %v5213 = vmul.f32 %v5197, %v5211
        %v5214 = vlaneseq
        %v5215 = vshrl.u32 %v5214, 7
        %v5216 = vsub.s32 1, %v5215
        %v5217 = vrot.slane %v4336, %v5216
        %v5218 = vmul.f32 %v5212, %v5217
        %v5219 = vmul.f32 %v5213, %v5217
        %v5220 = vlaneseq
        %v5221 = vshrl.u32 %v5220, 7
        %v5222 = vsub.s32 2, %v5221
        %v5223 = vrot.slane %v4336, %v5222
        %v5224 = vadd.f32 %v5218, %v5223
        %v5225 = vadd.f32 %v5219, %v5223
        %v5226 = vld [vmem:[%s8] sm:$0xf]
        %v5227 = vld [vmem:[%s8 + $0x4] sm:$0xf]
        %v5228 = vld [vmem:[%s8 + $0x8] sm:$0xf]
        %v5229 = vld [vmem:[%s8 + $0xc] sm:$0xf]
        %v5230 = vld [vmem:[%s9] sm:$0xf]
        %v5231 = vld [vmem:[%s9 + $0x4] sm:$0xf]
        %v5232 = vld [vmem:[%s9 + $0x8] sm:$0xf]
        %v5233 = vld [vmem:[%s9 + $0xc] sm:$0xf]
        %v5234 = vld [vmem:[%s9 + $0x10] sm:$0xf]
        %v5235 = vld [vmem:[%s9 + $0x14] sm:$0xf]
        %v5236 = vld [vmem:[%s9 + $0x18] sm:$0xf]
        %v5237 = vld [vmem:[%s9 + $0x1c] sm:$0xf]
        %v5238 = vld [vmem:[%s10] sm:$0x1]
        %v5239 = vld [vmem:[%s11] sm:$0x7]
        %v5240 = vpack.c.bf16 %v4321, %v4320
        %v5241 = vpack.c.bf16 %v4322, %v4322
        %v5243 = vlaneseq
        %v5244 = vshrl.u32 %v5243, 7
        %v5245 = vsub.s32 0, %v5244
        %v5246 = vrot.slane %v5238, %v5245
        %v5252 = vunpack.c.l.b16 %v5226
        %v5253 = vunpack.c.l.b16 %v5227
        %v5254 = vunpack.c.l.b16 %v5228
        %v5255 = vunpack.c.l.b16 %v5229
        %v5256 = vpack.c.b16 %v5253, %v5252
        %v5257 = vpack.c.b16 %v5255, %v5254
        %v5261 = vsel %vm640, %v5240, 0
        %v5264 = vsel %vm640, %v5241, 0
        %5266 = vmatprep.subr.bf16.mxu0 0
        %5267 = vmatpush1.bf16.msra.mxu0 %v5256
        %5268 = vmatprep.subr.bf16.mxu0 0
        %5269 = vmatpush1.bf16.msra.mxu0 %v5257
        %5270 = vmatprep.subr.bf16.mxu0 0
        %5271 = vmatpush1.bf16.msra.mxu0 0
        %5272 = vmatprep.subr.bf16.mxu0 0
        %5273 = vmatpush1.bf16.msra.mxu0 0
        %5274 = vmatprep.subr.bf16.mxu0 0
        %5275 = vmatpush1.bf16.msra.mxu0 0
        %5276 = vmatprep.subr.bf16.mxu0 0
        %5277 = vmatpush1.bf16.msra.mxu0 0
        %5278 = vmatprep.subr.bf16.mxu0 0
        %5279 = vmatpush1.bf16.msra.mxu0 0
        %5280 = vmatprep.subr.bf16.mxu0 0
        %5281 = vmatpush1.bf16.msra.mxu0 0
        %5282 = vmatprep.subr.bf16.mxu0 0
        %5283 = vmatpush1.bf16.msra.mxu0 0
        %5284 = vmatprep.subr.bf16.mxu0 0
        %5285 = vmatpush1.bf16.msra.mxu0 0
        %5286 = vmatprep.subr.bf16.mxu0 0
        %5287 = vmatpush1.bf16.msra.mxu0 0
        %5288 = vmatprep.subr.bf16.mxu0 0
        %5289 = vmatpush1.bf16.msra.mxu0 0
        %5290 = vmatprep.subr.bf16.mxu0 0
        %5291 = vmatpush1.bf16.msra.mxu0 0
        %5292 = vmatprep.subr.bf16.mxu0 0
        %5293 = vmatpush1.bf16.msra.mxu0 0
        %5294 = vmatprep.subr.bf16.mxu0 0
        %5295 = vmatpush1.bf16.msra.mxu0 0
        %5296 = vmatprep.subr.bf16.mxu0 0
        %5297 = vmatpush1.bf16.msra.mxu0 0
        %5298 = vmatprep.mubr.bf16.mxu0 0
        %5299 = vmatmul.mubr.bf16.gmra.mrb[0].mxu0 %v5261
        %v5300 = vpop.f32.mrb[0].mxu0
        %v5301 = vadd.f32 %v5246, %v5300
        %v5302 = vpop.f32.mrb[0].mxu0
        %v5303 = vpop.f32.mrb[0].mxu0
        %v5304 = vadd.f32 %v5246, %v5303
        %v5305 = vpop.f32.mrb[0].mxu0
        %5306 = vmatprep.mubr.bf16.mxu0 0
        %5307 = vmatmul.mubr.bf16.gmra.mrb[0].mxu0 %v5264
        %v5308 = vpop.f32.mrb[0].mxu0
        %v5309 = vadd.f32 %v5246, %v5308
        %v5310 = vpop.f32.mrb[0].mxu0
        %v5311 = vpop.f32.mrb[0].mxu0
        %v5312 = vpop.f32.mrb[0].mxu0
        %5313 = vdwg.mxu0
        %v5314 = vmax.f32 %v5301, 0.0
        %v5315 = vmax.f32 %v5304, 0.0
        %v5316 = vmax.f32 %v5309, 0.0
        %v5317 = vpack.c.bf16 %v5315, %v5314
        %v5318 = vpack.c.bf16 %v5316, %v5316
        %v5319 = vlaneseq
        %v5320 = vshrl.u32 %v5319, 7
        %v5321 = vsub.s32 0, %v5320
        %v5322 = vrot.slane %v5239, %v5321
        %v5331 = vunpack.c.l.b16 %v5230
        %v5332 = vunpack.c.l.b16 %v5231
        %v5333 = vunpack.c.l.b16 %v5232
        %v5334 = vunpack.c.l.b16 %v5233
        %v5335 = vunpack.c.l.b16 %v5234
        %v5336 = vunpack.c.l.b16 %v5235
        %v5337 = vunpack.c.l.b16 %v5236
        %v5338 = vunpack.c.l.b16 %v5237
        %v5339 = vpack.c.b16 %v5332, %v5331
        %v5340 = vpack.c.b16 %v5334, %v5333
        %v5341 = vpack.c.b16 %v5336, %v5335
        %v5342 = vpack.c.b16 %v5338, %v5337
        %vm5347 = vcmask 523264
        %v5349 = vsel %vm5347, %v5317, 0
        %v5352 = vsel %vm5347, %v5318, 0
        %5354 = vmatprep.subr.bf16.mxu0 0
        %5355 = vmatpush1.bf16.msra.mxu0 %v5339
        %5356 = vmatprep.subr.bf16.mxu0 0
        %5357 = vmatpush1.bf16.msra.mxu0 %v5340
        %5358 = vmatprep.subr.bf16.mxu0 0
        %5359 = vmatpush1.bf16.msra.mxu0 %v5341
        %5360 = vmatprep.subr.bf16.mxu0 0
        %5361 = vmatpush1.bf16.msra.mxu0 %v5342
        %5362 = vmatprep.subr.bf16.mxu0 0
        %5363 = vmatpush1.bf16.msra.mxu0 0
        %5364 = vmatprep.subr.bf16.mxu0 0
        %5365 = vmatpush1.bf16.msra.mxu0 0
        %5366 = vmatprep.subr.bf16.mxu0 0
        %5367 = vmatpush1.bf16.msra.mxu0 0
        %5368 = vmatprep.subr.bf16.mxu0 0
        %5369 = vmatpush1.bf16.msra.mxu0 0
        %5370 = vmatprep.subr.bf16.mxu0 0
        %5371 = vmatpush1.bf16.msra.mxu0 0
        %5372 = vmatprep.subr.bf16.mxu0 0
        %5373 = vmatpush1.bf16.msra.mxu0 0
        %5374 = vmatprep.subr.bf16.mxu0 0
        %5375 = vmatpush1.bf16.msra.mxu0 0
        %5376 = vmatprep.subr.bf16.mxu0 0
        %5377 = vmatpush1.bf16.msra.mxu0 0
        %5378 = vmatprep.subr.bf16.mxu0 0
        %5379 = vmatpush1.bf16.msra.mxu0 0
        %5380 = vmatprep.subr.bf16.mxu0 0
        %5381 = vmatpush1.bf16.msra.mxu0 0
        %5382 = vmatprep.subr.bf16.mxu0 0
        %5383 = vmatpush1.bf16.msra.mxu0 0
        %5384 = vmatprep.subr.bf16.mxu0 0
        %5385 = vmatpush1.bf16.msra.mxu0 0
        %5386 = vmatprep.mubr.bf16.mxu0 0
        %5387 = vmatmul.mubr.bf16.gmra.mrb[0].mxu0 %v5349
        %v5388 = vpop.f32.mrb[0].mxu0
        %v5389 = vadd.f32 %v5322, %v5388
        %v5390 = vpop.f32.mrb[0].mxu0
        %v5391 = vpop.f32.mrb[0].mxu0
        %v5392 = vadd.f32 %v5322, %v5391
        %v5393 = vpop.f32.mrb[0].mxu0
        %5394 = vmatprep.mubr.bf16.mxu0 0
        %5395 = vmatmul.mubr.bf16.gmra.mrb[0].mxu0 %v5352
        %v5396 = vpop.f32.mrb[0].mxu0
        %v5397 = vpop.f32.mrb[0].mxu0
        %v5398 = vpop.f32.mrb[0].mxu0
        %v5399 = vpop.f32.mrb[0].mxu0
        %5400 = vdwg.mxu0
        %v5401 = vadd.f32 %v5389, %v4320
        %v5402 = vadd.f32 %v5392, %v4321
        %v5403 = vsel %vm640, %v5401, 0.0
        %5404 = vadd.xlane.f32.xlu0 %v5403
        %v5405 = vpop.xlane.xlu0 %5404
        %v5406 = vsel %vm640, %v5402, 0.0
        %5407 = vadd.xlane.f32.xlu0 %v5406
        %v5408 = vpop.xlane.xlu0 %5407
        %v5409 = vmul.f32 %v5405, %v1421
        %v5410 = vmul.f32 %v5408, %v1421
        %v5411 = vsub.f32 %v5401, %v5409
        %v5412 = vsub.f32 %v5402, %v5410
        %v5413 = vmul.f32 %v5411, %v5411
        %v5414 = vmul.f32 %v5412, %v5412
        %v5415 = vsel %vm640, %v5413, 0.0
        %5416 = vadd.xlane.f32.xlu0 %v5415
        %v5417 = vpop.xlane.xlu0 %5416
        %v5418 = vsel %vm640, %v5414, 0.0
        %5419 = vadd.xlane.f32.xlu0 %v5418
        %v5420 = vpop.xlane.xlu0 %5419
        %v5421 = vmul.f32 %v5417, %v1421
        %v5422 = vmul.f32 %v5420, %v1421
        %v5423 = vadd.f32 %v5421, 1e-05
        %v5424 = vadd.f32 %v5422, 1e-05
        %v5425 = vrsqrt.pop %v5423
        %v5426 = vrsqrt.pop %v5424
        %v5427 = vmul.f32 %v5411, %v5425
        %v5428 = vmul.f32 %v5412, %v5426
        %v5429 = vlaneseq
        %v5430 = vshrl.u32 %v5429, 7
        %v5431 = vsub.s32 1, %v5430
        %v5432 = vrot.slane %v5239, %v5431
        %v5433 = vmul.f32 %v5427, %v5432
        %v5434 = vmul.f32 %v5428, %v5432
        %v5435 = vlaneseq
        %v5436 = vshrl.u32 %v5435, 7
        %v5437 = vsub.s32 2, %v5436
        %v5438 = vrot.slane %v5239, %v5437
        %v5439 = vadd.f32 %v5433, %v5438
        %v5440 = vadd.f32 %v5434, %v5438
        %5441 = vst.msk [vmem:[%s579] sm:$0xff] %vm640, %v5439
        %5442 = vst.msk [vmem:[%s579 + $0x8] sm:$0xff] %vm640, %v5440
        %s5443 = scalar_lea.vmem %s8, 16
        %v5444 = vld [vmem:[%s5443] sm:$0xf]
        %v5445 = vld [vmem:[%s5443 + $0x4] sm:$0xf]
        %v5446 = vld [vmem:[%s5443 + $0x8] sm:$0xf]
        %v5447 = vld [vmem:[%s5443 + $0xc] sm:$0xf]
        %s5448 = scalar_lea.vmem %s9, 32
        %v5449 = vld [vmem:[%s5448] sm:$0xf]
        %v5450 = vld [vmem:[%s5448 + $0x4] sm:$0xf]
        %v5451 = vld [vmem:[%s5448 + $0x8] sm:$0xf]
        %v5452 = vld [vmem:[%s5448 + $0xc] sm:$0xf]
        %v5453 = vld [vmem:[%s5448 + $0x10] sm:$0xf]
        %v5454 = vld [vmem:[%s5448 + $0x14] sm:$0xf]
        %v5455 = vld [vmem:[%s5448 + $0x18] sm:$0xf]
        %v5456 = vld [vmem:[%s5448 + $0x1c] sm:$0xf]
        %s5457 = scalar_lea.vmem %s10, 1
        %v5458 = vld [vmem:[%s5457] sm:$0x1]
        %s5459 = scalar_lea.vmem %s11, 4
        %v5460 = vld [vmem:[%s5459] sm:$0x7]
        %v5461 = vpack.c.bf16 %v5225, %v5224
        %v5463 = vlaneseq
        %v5464 = vshrl.u32 %v5463, 7
        %v5465 = vsub.s32 0, %v5464
        %v5466 = vrot.slane %v5458, %v5465
        %v5472 = vunpack.c.l.b16 %v5444
        %v5473 = vunpack.c.l.b16 %v5445
        %v5474 = vunpack.c.l.b16 %v5446
        %v5475 = vunpack.c.l.b16 %v5447
        %v5476 = vpack.c.b16 %v5473, %v5472
        %v5477 = vpack.c.b16 %v5475, %v5474
        %v5481 = vsel %vm640, %v5461, 0
        %5483 = vmatprep.subr.bf16.mxu0 0
        %5484 = vmatpush1.bf16.msra.mxu0 %v5476
        %5485 = vmatprep.subr.bf16.mxu0 0
        %5486 = vmatpush1.bf16.msra.mxu0 %v5477
        %5487 = vmatprep.subr.bf16.mxu0 0
        %5488 = vmatpush1.bf16.msra.mxu0 0
        %5489 = vmatprep.subr.bf16.mxu0 0
        %5490 = vmatpush1.bf16.msra.mxu0 0
        %5491 = vmatprep.subr.bf16.mxu0 0
        %5492 = vmatpush1.bf16.msra.mxu0 0
        %5493 = vmatprep.subr.bf16.mxu0 0
        %5494 = vmatpush1.bf16.msra.mxu0 0
        %5495 = vmatprep.subr.bf16.mxu0 0
        %5496 = vmatpush1.bf16.msra.mxu0 0
        %5497 = vmatprep.subr.bf16.mxu0 0
        %5498 = vmatpush1.bf16.msra.mxu0 0
        %5499 = vmatprep.subr.bf16.mxu0 0
        %5500 = vmatpush1.bf16.msra.mxu0 0
        %5501 = vmatprep.subr.bf16.mxu0 0
        %5502 = vmatpush1.bf16.msra.mxu0 0
        %5503 = vmatprep.subr.bf16.mxu0 0
        %5504 = vmatpush1.bf16.msra.mxu0 0
        %5505 = vmatprep.subr.bf16.mxu0 0
        %5506 = vmatpush1.bf16.msra.mxu0 0
        %5507 = vmatprep.subr.bf16.mxu0 0
        %5508 = vmatpush1.bf16.msra.mxu0 0
        %5509 = vmatprep.subr.bf16.mxu0 0
        %5510 = vmatpush1.bf16.msra.mxu0 0
        %5511 = vmatprep.subr.bf16.mxu0 0
        %5512 = vmatpush1.bf16.msra.mxu0 0
        %5513 = vmatprep.subr.bf16.mxu0 0
        %5514 = vmatpush1.bf16.msra.mxu0 0
        %5515 = vmatprep.mubr.bf16.mxu0 0
        %5516 = vmatmul.mubr.bf16.gmra.mrb[0].mxu0 %v5481
        %v5517 = vpop.f32.mrb[0].mxu0
        %v5518 = vadd.f32 %v5466, %v5517
        %v5519 = vpop.f32.mrb[0].mxu0
        %v5520 = vpop.f32.mrb[0].mxu0
        %v5521 = vadd.f32 %v5466, %v5520
        %v5522 = vpop.f32.mrb[0].mxu0
        %5523 = vdwg.mxu0
        %v5524 = vmax.f32 %v5518, 0.0
        %v5525 = vmax.f32 %v5521, 0.0
        %v5526 = vpack.c.bf16 %v5525, %v5524
        %v5527 = vlaneseq
        %v5528 = vshrl.u32 %v5527, 7
        %v5529 = vsub.s32 0, %v5528
        %v5530 = vrot.slane %v5460, %v5529
        %v5539 = vunpack.c.l.b16 %v5449
        %v5540 = vunpack.c.l.b16 %v5450
        %v5541 = vunpack.c.l.b16 %v5451
        %v5542 = vunpack.c.l.b16 %v5452
        %v5543 = vunpack.c.l.b16 %v5453
        %v5544 = vunpack.c.l.b16 %v5454
        %v5545 = vunpack.c.l.b16 %v5455
        %v5546 = vunpack.c.l.b16 %v5456
        %v5547 = vpack.c.b16 %v5540, %v5539
        %v5548 = vpack.c.b16 %v5542, %v5541
        %v5549 = vpack.c.b16 %v5544, %v5543
        %v5550 = vpack.c.b16 %v5546, %v5545
        %v5556 = vsel %vm5347, %v5526, 0
        %5558 = vmatprep.subr.bf16.mxu0 0
        %5559 = vmatpush1.bf16.msra.mxu0 %v5547
        %5560 = vmatprep.subr.bf16.mxu0 0
        %5561 = vmatpush1.bf16.msra.mxu0 %v5548
        %5562 = vmatprep.subr.bf16.mxu0 0
        %5563 = vmatpush1.bf16.msra.mxu0 %v5549
        %5564 = vmatprep.subr.bf16.mxu0 0
        %5565 = vmatpush1.bf16.msra.mxu0 %v5550
        %5566 = vmatprep.subr.bf16.mxu0 0
        %5567 = vmatpush1.bf16.msra.mxu0 0
        %5568 = vmatprep.subr.bf16.mxu0 0
        %5569 = vmatpush1.bf16.msra.mxu0 0
        %5570 = vmatprep.subr.bf16.mxu0 0
        %5571 = vmatpush1.bf16.msra.mxu0 0
        %5572 = vmatprep.subr.bf16.mxu0 0
        %5573 = vmatpush1.bf16.msra.mxu0 0
        %5574 = vmatprep.subr.bf16.mxu0 0
        %5575 = vmatpush1.bf16.msra.mxu0 0
        %5576 = vmatprep.subr.bf16.mxu0 0
        %5577 = vmatpush1.bf16.msra.mxu0 0
        %5578 = vmatprep.subr.bf16.mxu0 0
        %5579 = vmatpush1.bf16.msra.mxu0 0
        %5580 = vmatprep.subr.bf16.mxu0 0
        %5581 = vmatpush1.bf16.msra.mxu0 0
        %5582 = vmatprep.subr.bf16.mxu0 0
        %5583 = vmatpush1.bf16.msra.mxu0 0
        %5584 = vmatprep.subr.bf16.mxu0 0
        %5585 = vmatpush1.bf16.msra.mxu0 0
        %5586 = vmatprep.subr.bf16.mxu0 0
        %5587 = vmatpush1.bf16.msra.mxu0 0
        %5588 = vmatprep.subr.bf16.mxu0 0
        %5589 = vmatpush1.bf16.msra.mxu0 0
        %5590 = vmatprep.mubr.bf16.mxu0 0
        %5591 = vmatmul.mubr.bf16.gmra.mrb[0].mxu0 %v5556
        %v5592 = vpop.f32.mrb[0].mxu0
        %v5593 = vadd.f32 %v5530, %v5592
        %v5594 = vpop.f32.mrb[0].mxu0
        %v5595 = vpop.f32.mrb[0].mxu0
        %v5596 = vadd.f32 %v5530, %v5595
        %v5597 = vpop.f32.mrb[0].mxu0
        %5598 = vdwg.mxu0
        %v5599 = vadd.f32 %v5593, %v5224
        %v5600 = vadd.f32 %v5596, %v5225
        %v5601 = vsel %vm640, %v5599, 0.0
        %5602 = vadd.xlane.f32.xlu0 %v5601
        %v5603 = vpop.xlane.xlu0 %5602
        %v5604 = vsel %vm5172, %v5600, 0.0
        %5605 = vadd.xlane.f32.xlu0 %v5604
        %v5606 = vpop.xlane.xlu0 %5605
        %v5607 = vmul.f32 %v5603, %v1421
        %v5608 = vmul.f32 %v5606, %v1421
        %v5609 = vsub.f32 %v5599, %v5607
        %v5610 = vsub.f32 %v5600, %v5608
        %v5611 = vmul.f32 %v5609, %v5609
        %v5612 = vmul.f32 %v5610, %v5610
        %v5613 = vsel %vm640, %v5611, 0.0
        %5614 = vadd.xlane.f32.xlu0 %v5613
        %v5615 = vpop.xlane.xlu0 %5614
        %v5616 = vsel %vm5172, %v5612, 0.0
        %5617 = vadd.xlane.f32.xlu0 %v5616
        %v5618 = vpop.xlane.xlu0 %5617
        %v5619 = vmul.f32 %v5615, %v1421
        %v5620 = vmul.f32 %v5618, %v1421
        %v5621 = vadd.f32 %v5619, 1e-05
        %v5622 = vadd.f32 %v5620, 1e-05
        %v5623 = vrsqrt.pop %v5621
        %v5624 = vrsqrt.pop %v5622
        %v5625 = vmul.f32 %v5609, %v5623
        %v5626 = vmul.f32 %v5610, %v5624
        %v5627 = vlaneseq
        %v5628 = vshrl.u32 %v5627, 7
        %v5629 = vsub.s32 1, %v5628
        %v5630 = vrot.slane %v5460, %v5629
        %v5631 = vmul.f32 %v5625, %v5630
        %v5632 = vmul.f32 %v5626, %v5630
        %v5633 = vlaneseq
        %v5634 = vshrl.u32 %v5633, 7
        %v5635 = vsub.s32 2, %v5634
        %v5636 = vrot.slane %v5460, %v5635
        %v5637 = vadd.f32 %v5631, %v5636
        %v5638 = vadd.f32 %v5632, %v5636
        %5639 = vst.msk [vmem:[%s607] sm:$0xff] %vm640, %v5637
        %5640 = vst.msk [vmem:[%s607 + $0x8] sm:$0x3] %vm4252, %v5638
        %s5641 = sand.u32 %s396, 1
        %s5642 = scalar_lea.sflag [#allocation3], %s5641
        %s5643 = sand.u32 %s396, 1
        %s5644 = smul.addr %s5643, 16
        %s5645 = scalar_lea.vmem [#allocation2], %s5644
        %p5646 = scmp.lt.s32.totalorder %s32, 1
        %s5647 = scalar_select %p5646, %s32, 1
        %s5648 = smul.addr %s5647, 2
        %s5649 = smul.addr %s5648, 8
        %s5650 = scalar_lea.vmem %s17, %s5649
        // Predicated region
        $region85: #{encoder_layer.1} parent=83 // pred_check
          %p5651 = pneg %p406
        $region86: #{encoder_layer.1} parent=83 // pred_check_branch
          %5653 = sbr.rel (%p5651) target = $region88
        $region87: #{encoder_layer.1} parent=83 // pred_region
          %s5655 = ssub.s32 256, 256
          %5656 = vsyncadd %s5642, %s5655
          %s5657 = smul.addr %s32, 2
          %s5658 = smul.addr %s5657, 128
          %s5659 = scalar_lea.hbm %s16, %s5658
          %s5660 = sshll.u32 %s5645, 4
          %s5661 = int_to_ptr.vmem [resolvable:$true] %s5660
          %5666 = dma.vmem_to_hbm [thread:$0]  %s5661, 256, %s5659, %s5642, 128, 128, 8
        $region88: #{encoder_layer.1} parent=83 // pred_fallthru
          _
        // Predicated region
        $region89: #{encoder_layer.1} parent=83 // pred_check
          %p5667 = pneg %p432
        $region90: #{encoder_layer.1} parent=83 // pred_check_branch
          %5669 = sbr.rel (%p5667) target = $region92
        $region91: #{encoder_layer.1} parent=83 // pred_region
          _
        $region92: #{encoder_layer.1} parent=83 // pred_fallthru
          _
      $region84: #{encoder_layer.1} parent=5 // pred_fallthru
        _
      %p5670 = scmp.le.s32.totalorder 2, %s27
      // Predicated region
      $region93: #{encoder_layer.1} parent=5 // pred_check
        %p5671 = pneg %p5670
      $region94: #{encoder_layer.1} parent=5 // pred_check_branch
        %5673 = sbr.rel (%p5671) target = $region96
      $region95: #{encoder_layer.1} parent=5 // pred_region
        %s5674 = ssub.s32 %s27, 2
        // Predicated region
        $region97: #{encoder_layer.1} parent=95 // pred_check
          %p5675 = pneg %p412
        $region98: #{encoder_layer.1} parent=95 // pred_check_branch
          %5677 = sbr.rel (%p5675) target = $region100
        $region99: #{encoder_layer.1} parent=95 // pred_region
          %s5678 = sand.u32 %s397, 1
          %s5679 = scalar_lea.sflag [#allocation3], %s5678
          %s5680 = sand.u32 %s397, 1
          %s5681 = smul.addr %s5680, 16
          %s5682 = scalar_lea.vmem [#allocation2], %s5681
          %5683 = dma.done %s5679, 256
        $region100: #{encoder_layer.1} parent=95 // pred_fallthru
          _
        // Predicated region
        $region101: #{encoder_layer.1} parent=95 // pred_check
          %p5684 = pneg %p438
        $region102: #{encoder_layer.1} parent=95 // pred_check_branch
          %5686 = sbr.rel (%p5684) target = $region104
        $region103: #{encoder_layer.1} parent=95 // pred_region
          %p5687 = scmp.lt.s32.totalorder %s33, 1
          %s5688 = scalar_select %p5687, %s33, 1
          %s5689 = smul.addr %s5688, 2
          %s5690 = smul.addr %s5689, 8
          %s5691 = scalar_lea.vmem %s17, %s5690
        $region104: #{encoder_layer.1} parent=95 // pred_fallthru
          _
      $region96: #{encoder_layer.1} parent=5 // pred_fallthru
        _
    $region6: #{encoder_layer.1} parent=1 // loop_footer
      %s31 = sadd.s32 1, %s27
    $region7: #{encoder_layer.1} parent=1 // loop_footer_branch
      %26 = sbr.rel target = $region3
    $region8: #{encoder_layer.1} parent=1 // loop_exit
      _
    %5692 = vsyncpa [#allocation3], 1
    %s5693 = scalar_lea.sflag [#allocation3], 1
    %5694 = vsyncpa %s5693, 1

</llo_original>
